<compile_context>
chip_gen: v5e
topology: v5e:2x2
jax: 0.10.0
libtpu: 0.0.40
codegen_flags: <defaults>
</compile_context>

<pallas_src>
import jax
import jax.numpy as jnp
from jax import lax
from jax.experimental import pallas as pl
from jax.experimental.pallas import tpu as pltpu

LANE = 128


def _round_up(v, m):
    return (v + m - 1) // m * m


def _row_strip_size(H, W, Cp):
    # Target matmul M (= Hs*W): large enough to fill the MXU (>=128 rows when
    # it fits) but cap the live bf16 patch (M x 3*Cp) at ~96 KiB so the patch
    # (+ f32 accumulator) stays inside the 64-vreg file as Cp grows.
    m_cap = max(W, min(256, (96 * 1024) // (3 * Cp * 2)))
    hs = max(1, min(H, m_cap // W))
    while H % hs:          # Hs must divide H (perf cliff for prime H, not a bug)
        hs -= 1
    return hs


def _vmem_limit_bytes(H, W, Cp):
    # Budget what is actually resident: double-buffered input + output image
    # blocks, double-buffered bf16 weights, scale/shift vectors and the f32
    # mid scratch, plus ~30% headroom for compiler-internal scratch.
    img = H * W * Cp * 4                       # one f32 (1, H, W, Cp) block
    weights = 2 * 2 * (9 * Cp * Cp * 2)        # w1k + w2k, double-buffered, bf16
    vecs = 2 * 4 * (Cp * 4)                    # s1, b1, s2, b2 double-buffered
    mid = H * W * Cp * 4                       # f32 mid scratch
    need = 4 * img + weights + vecs + mid
    try:
        phys = pltpu.get_tpu_info().vmem_capacity_bytes   # 128 MiB v5e/v6e, 64 MiB v7x
    except Exception:
        phys = 64 << 20
    # TODO(synk): for very large spatial sizes (need close to phys) switch the
    #             mid scratch to a rolling (Hs+2, W, Cp) window and fuse the
    #             two convs strip-by-strip instead of asking for more VMEM.
    return int(min(0.9 * phys, max(1.3 * need + (2 << 20), 24 << 20)))


# --------------------------------------------------------------------------
# Kernel: one (1, H, W, Cp) image per grid step.  Both 3x3 convs are computed
# strip-by-strip as 3 matmuls (one per dy, K = 3*Cp, bf16 operands, f32
# accumulation); the dx shifts use pltpu.roll + a column mask, the H halo is
# handled only on the static top/bottom strips.
# --------------------------------------------------------------------------
def baseblock_kernel(x_ref, w1_ref, s1_ref, b1_ref, w2_ref, s2_ref, b2_ref,
                     out_ref, mid_ref):
    _, H, W, Cp = x_ref.shape
    Hs = _row_strip_size(H, W, Cp)
    n_strips = H // Hs
    M = Hs * W

    s1 = s1_ref[...]
    b1 = b1_ref[...]
    s2 = s2_ref[...]
    b2 = b2_ref[...]

    # Hoisted constants (JAX does not CSE broadcasts inside loops).
    col = lax.broadcasted_iota(jnp.int32, (1, W, Cp), 1)
    mask_l = (col != 0).astype(jnp.float32)        # zero the wrapped w == 0 column
    mask_r = (col != W - 1).astype(jnp.float32)    # zero the wrapped w == W-1 column
    zrow = jnp.zeros((1, W, Cp), jnp.float32)

    def conv3x3(load, r, w_ref, top, bottom):
        # 3x3 / stride-1 / pad-1 conv for output rows [r, r+Hs).
        # load(lo, n): rows [lo, lo+n) of the (H, W, Cp) f32 source (in-bounds).
        # top/bottom are *Python* bools: whether the -1 / H zero row is needed.
        def slab_for(dy):
            row0 = r + dy - 1
            if top and dy == 0:
                if Hs == 1:
                    return zrow
                return jnp.concatenate([zrow, load(0, Hs - 1)], axis=0)
            if bottom and dy == 2:
                if Hs == 1:
                    return zrow
                return jnp.concatenate([load(row0, Hs - 1), zrow], axis=0)
            return load(row0, Hs)

        acc = None
        for dy in range(3):
            slab = slab_for(dy)                                        # (Hs, W, Cp) f32
            # w-1 / w+1 taps: XLU roll + column mask (no misaligned concat).
            left = (pltpu.roll(slab, 1, axis=1) * mask_l).astype(jnp.bfloat16)
            right = (pltpu.roll(slab, W - 1, axis=1) * mask_r).astype(jnp.bfloat16)
            ctr = slab.astype(jnp.bfloat16)
            patch = jnp.concatenate([left, ctr, right], axis=-1)       # (Hs, W, 3Cp) bf16
            part = jnp.dot(patch.reshape(M, 3 * Cp), w_ref[dy],
                           preferred_element_type=jnp.float32)
            acc = part if acc is None else acc + part
        return acc                                                     # (M, Cp) f32

    def conv1_strip(r, top, bottom):
        load = lambda lo, n: x_ref[0, pl.ds(lo, n)]
        acc = conv3x3(load, r, w1_ref, top, bottom)
        mid_ref[pl.ds(r, Hs)] = jnp.maximum(acc * s1 + b1, 0.0).reshape(Hs, W, Cp)

    def conv2_strip(r, top, bottom):
        load = lambda lo, n: mid_ref[pl.ds(lo, n)]
        acc = conv3x3(load, r, w2_ref, top, bottom)
        y = (acc * s2 + b2).reshape(Hs, W, Cp) + x_ref[0, pl.ds(r, Hs)]
        out_ref[0, pl.ds(r, Hs)] = jnp.maximum(y, 0.0)

    def run_strips(strip_fn):
        strip_fn(0, True, n_strips == 1)                 # top strip (static halo)
        if n_strips > 2:                                 # interior strips: in-kernel loop
            @pl.loop(1, n_strips - 1, unroll=(n_strips - 2) <= 4)
            def _(si):
                strip_fn(si * Hs, False, False)
        if n_strips > 1:
            strip_fn(H - Hs, False, True)                # bottom strip (static halo)

    run_strips(conv1_strip)    # conv1 -> bn1 -> relu            -> mid scratch
    run_strips(conv2_strip)    # conv2 -> bn2 -> +x -> relu      -> out


# --------------------------------------------------------------------------
# Kernel-native entry point: channel-padded NHWC activations (keep this
# layout across consecutive Baseblocks in a full network).
# --------------------------------------------------------------------------
def baseblock_forward_padded_nhwc(x, w1k, s1, b1, w2k, s2, b2):
    N, H, W, Cp = x.shape
    return pl.pallas_call(
        baseblock_kernel,
        out_shape=jax.ShapeDtypeStruct((N, H, W, Cp), jnp.float32),
        grid_spec=pltpu.PrefetchScalarGridSpec(
            num_scalar_prefetch=0,
            grid=(N,),     # >= 2 steps whenever N >= 2 -> both v7x TCs busy
            in_specs=[
                pl.BlockSpec((1, H, W, Cp), lambda n: (n, 0, 0, 0)),
                pl.BlockSpec((3, 3 * Cp, Cp), lambda n: (0, 0, 0)),
                pl.BlockSpec((1, Cp), lambda n: (0, 0)),
                pl.BlockSpec((1, Cp), lambda n: (0, 0)),
                pl.BlockSpec((3, 3 * Cp, Cp), lambda n: (0, 0, 0)),
                pl.BlockSpec((1, Cp), lambda n: (0, 0)),
                pl.BlockSpec((1, Cp), lambda n: (0, 0)),
            ],
            out_specs=pl.BlockSpec((1, H, W, Cp), lambda n: (n, 0, 0, 0)),
            scratch_shapes=[pltpu.VMEM((H, W, Cp), jnp.float32)],
        ),
        compiler_params=pltpu.CompilerParams(
            dimension_semantics=("parallel",),          # batch axis carries no state
            vmem_limit_bytes=_vmem_limit_bytes(H, W, Cp),
        ),
    )(x, w1k, s1, b1, w2k, s2, b2)


# --------------------------------------------------------------------------
# Convenience wrapper matching the PyTorch module interface (NCHW in/out):
# NCHW -> NHWC, channel padding to 128, BN/bias folding, bf16 weight layout.
# --------------------------------------------------------------------------
def baseblock_forward(x_nchw, params, eps=1e-5):
    # TODO(synk): in a full network keep activations NHWC + channel-padded
    #             across consecutive Baseblocks so these transpose/pad/slice
    #             HBM passes are paid once per network, not once per block.
    x = jnp.transpose(x_nchw, (0, 2, 3, 1)).astype(jnp.float32)   # NHWC
    N, H, W, Cin = x.shape
    w1, w2 = params["w1"], params["w2"]                           # HWIO
    Cout = w1.shape[-1]
    assert Cin == Cout, "dim_change=None path requires Cin == Cout"
    C = Cout
    Cp = _round_up(C, LANE)
    pc = Cp - C

    # ---- lane-dense channel padding (zeros contribute nothing) ------------
    # TODO(synk): for genuinely small C (e.g. the C=4 test) padding to 128
    #             inflates MXU/HBM work ~Cp/C x; production targets C >= 128.
    if pc:
        x = jnp.pad(x, ((0, 0), (0, 0), (0, 0), (0, pc)))
        w1 = jnp.pad(w1, ((0, 0), (0, 0), (0, pc), (0, pc)))
        w2 = jnp.pad(w2, ((0, 0), (0, 0), (0, pc), (0, pc)))

    # ---- fold conv bias + BN (inference) into per-channel scale / shift ---
    def fold(gamma, beta, mean, var, cbias):
        s = gamma / jnp.sqrt(var + eps)
        b = (cbias - mean) * s + beta
        if pc:
            s = jnp.pad(s, (0, pc))
            b = jnp.pad(b, (0, pc))
        return (s.reshape(1, Cp).astype(jnp.float32),
                b.reshape(1, Cp).astype(jnp.float32))

    s1, b1 = fold(params["gamma1"], params["beta1"], params["mean1"],
                  params["var1"], params["cb1"])
    s2, b2 = fold(params["gamma2"], params["beta2"], params["mean2"],
                  params["var2"], params["cb2"])

    # weights laid out so the 3 dx taps share one matmul: (3, 3*Cp, Cp), and
    # cast to bf16 (MXU operands); accumulation stays f32 inside the kernel.
    w1k = w1.reshape(3, 3 * Cp, Cp).astype(jnp.bfloat16)
    w2k = w2.reshape(3, 3 * Cp, Cp).astype(jnp.bfloat16)

    out = baseblock_forward_padded_nhwc(x, w1k, s1, b1, w2k, s2, b2)
    out = out[..., :C]
    return jnp.transpose(out, (0, 3, 1, 2))   # back to NCHW


# --------------------------------------------------------------------------
# Pure-JAX reference (same semantics) for a correctness check.
# --------------------------------------------------------------------------
def baseblock_reference(x_nchw, p, eps=1e-5):
    x = jnp.transpose(x_nchw, (0, 2, 3, 1)).astype(jnp.float32)
    dn = ("NHWC", "HWIO", "NHWC")

    def bn(y, g, b, m, v):
        return (y - m) / jnp.sqrt(v + eps) * g + b

    y = lax.conv_general_dilated(x, p["w1"], (1, 1), "SAME",
                                 dimension_numbers=dn) + p["cb1"]
    y = jax.nn.relu(bn(y, p["gamma1"], p["beta1"], p["mean1"], p["var1"]))
    y = lax.conv_general_dilated(y, p["w2"], (1, 1), "SAME",
                                 dimension_numbers=dn) + p["cb2"]
    y = bn(y, p["gamma2"], p["beta2"], p["mean2"], p["var2"])
    y = jax.nn.relu(y + x)
    return jnp.transpose(y, (0, 3, 1, 2))


def make_params(key, cin, cout):
    ks = jax.random.split(key, 10)
    return {
        "w1":     0.1 * jax.random.normal(ks[0], (3, 3, cin, cout), jnp.float32),
        "cb1":    0.1 * jax.random.normal(ks[1], (cout,), jnp.float32),
        "gamma1": 1.0 + 0.1 * jax.random.normal(ks[2], (cout,), jnp.float32),
        "beta1":  0.1 * jax.random.normal(ks[3], (cout,), jnp.float32),
        "mean1":  0.1 * jax.random.normal(ks[4], (cout,), jnp.float32),
        "var1":   1.0 + 0.1 * jnp.abs(jax.random.normal(ks[5], (cout,), jnp.float32)),
        "w2":     0.1 * jax.random.normal(ks[6], (3, 3, cout, cout), jnp.float32),
        "cb2":    0.1 * jax.random.normal(ks[7], (cout,), jnp.float32),
        "gamma2": 1.0 + 0.1 * jax.random.normal(ks[8], (cout,), jnp.float32),
        "beta2":  0.1 * jax.random.normal(ks[9], (cout,), jnp.float32),
        "mean2":  0.1 * jax.random.normal(ks[4], (cout,), jnp.float32) * 0.5,
        "var2":   1.0 + 0.1 * jnp.abs(jax.random.normal(ks[5], (cout,), jnp.float32)) * 0.5,
    }


if __name__ == "__main__":
    key = jax.random.PRNGKey(0)
    kx, kp, kx2 = jax.random.split(key, 3)

    # Primary small case (input_planes == planes == 4).
    N, C, H, W = 2, 4, 16, 16
    x = jax.random.normal(kx, (N, C, H, W), jnp.float32)          # NCHW like PyTorch
    params = make_params(kp, C, C)

    out = jax.block_until_ready(baseblock_forward(x, params))
    ref = baseblock_reference(x, params)
    assert out.shape == (N, C, H, W)
    # bf16 MXU operands with f32 accumulation -> looser tolerance vs f32 ref.
    assert jnp.allclose(out, ref, atol=3e-2, rtol=3e-2), (
        f"max abs err {float(jnp.max(jnp.abs(out - ref)))}")

    # Larger spatial case: exercises the in-kernel pl.loop interior-strip path.
    x2 = jax.random.normal(kx2, (2, 4, 32, 32), jnp.float32)
    out2 = jax.block_until_ready(baseblock_forward(x2, params))
    ref2 = baseblock_reference(x2, params)
    assert jnp.allclose(out2, ref2, atol=3e-2, rtol=3e-2), (
        f"max abs err {float(jnp.max(jnp.abs(out2 - ref2)))}")

    print("KERNEL_OK")
</pallas_src>

<mosaic_0001>
module attributes {stable_mosaic.version = 11 : i64} {
  func.func @baseblock_kernel(%arg0: i32, %arg1: memref<1x16x16x128xf32, #tpu.memory_space<vmem>>, %arg2: memref<3x384x128xbf16, #tpu.memory_space<vmem>>, %arg3: memref<1x128xf32, #tpu.memory_space<vmem>>, %arg4: memref<1x128xf32, #tpu.memory_space<vmem>>, %arg5: memref<3x384x128xbf16, #tpu.memory_space<vmem>>, %arg6: memref<1x128xf32, #tpu.memory_space<vmem>>, %arg7: memref<1x128xf32, #tpu.memory_space<vmem>>, %arg8: memref<1x16x16x128xf32, #tpu.memory_space<vmem>>, %arg9: memref<16x16x128xf32, #tpu.memory_space<vmem>>) attributes {dimension_semantics = [#tpu.dimension_semantics<parallel>], iteration_bounds = array<i64: 2>, scalar_prefetch = 0 : i64, scratch_operands = 1 : i64, tpu.core_type = #tpu.core_type<tc>, window_params = [{transform_indices = @transform_0, window_bounds = array<i64: 1, 16, 16, 128>}, {pipeline_mode = #tpu.pipeline_mode<synchronous>, transform_indices = @transform_1, window_bounds = array<i64: 3, 384, 128>}, {pipeline_mode = #tpu.pipeline_mode<synchronous>, transform_indices = @transform_2, window_bounds = array<i64: 1, 128>}, {pipeline_mode = #tpu.pipeline_mode<synchronous>, transform_indices = @transform_3, window_bounds = array<i64: 1, 128>}, {pipeline_mode = #tpu.pipeline_mode<synchronous>, transform_indices = @transform_4, window_bounds = array<i64: 3, 384, 128>}, {pipeline_mode = #tpu.pipeline_mode<synchronous>, transform_indices = @transform_5, window_bounds = array<i64: 1, 128>}, {pipeline_mode = #tpu.pipeline_mode<synchronous>, transform_indices = @transform_6, window_bounds = array<i64: 1, 128>}, {transform_indices = @transform_7, window_bounds = array<i64: 1, 16, 16, 128>}]} {
    %c0 = arith.constant 0 : index
    %c0_0 = arith.constant 0 : index
    %0 = vector.load %arg3[%c0, %c0_0] : memref<1x128xf32, #tpu.memory_space<vmem>>, vector<1x128xf32>
    %c0_1 = arith.constant 0 : index
    %c0_2 = arith.constant 0 : index
    %1 = vector.load %arg4[%c0_1, %c0_2] : memref<1x128xf32, #tpu.memory_space<vmem>>, vector<1x128xf32>
    %c0_3 = arith.constant 0 : index
    %c0_4 = arith.constant 0 : index
    %2 = vector.load %arg6[%c0_3, %c0_4] : memref<1x128xf32, #tpu.memory_space<vmem>>, vector<1x128xf32>
    %c0_5 = arith.constant 0 : index
    %c0_6 = arith.constant 0 : index
    %3 = vector.load %arg7[%c0_5, %c0_6] : memref<1x128xf32, #tpu.memory_space<vmem>>, vector<1x128xf32>
    %4 = tpu.iota {dimensions = array<i32: 1>} : vector<1x16x128xi32>
    %c0_i32 = arith.constant 0 : i32
    %5 = vector.broadcast %c0_i32 : i32 to vector<1x16x128xi32>
    %6 = arith.cmpi ne, %4, %5 : vector<1x16x128xi32>
    %7 = arith.extui %6 : vector<1x16x128xi1> to vector<1x16x128xi32>
    %8 = arith.sitofp %7 : vector<1x16x128xi32> to vector<1x16x128xf32>
    %c15_i32 = arith.constant 15 : i32
    %9 = vector.broadcast %c15_i32 : i32 to vector<1x16x128xi32>
    %10 = arith.cmpi ne, %4, %9 : vector<1x16x128xi32>
    %11 = arith.extui %10 : vector<1x16x128xi1> to vector<1x16x128xi32>
    %12 = arith.sitofp %11 : vector<1x16x128xi32> to vector<1x16x128xf32>
    %cst = arith.constant 0.000000e+00 : f32
    %13 = vector.broadcast %cst : f32 to vector<1x16x128xf32>
    %c0_7 = arith.constant 0 : index
    %c0_8 = arith.constant 0 : index
    %c0_9 = arith.constant 0 : index
    %c0_10 = arith.constant 0 : index
    %14 = vector.load %arg1[%c0_7, %c0_8, %c0_9, %c0_10] : memref<1x16x16x128xf32, #tpu.memory_space<vmem>>, vector<1x7x16x128xf32>
    %15 = vector.shape_cast %14 : vector<1x7x16x128xf32> to vector<7x16x128xf32>
    %16 = tpu.concatenate %13, %15 in 0 : vector<1x16x128xf32>, vector<7x16x128xf32> -> vector<8x16x128xf32>
    %c1_i32 = arith.constant 1 : i32
    %17 = tpu.dynamic_rotate %16 by %c1_i32 dim 1 : vector<8x16x128xf32>, i32 -> vector<8x16x128xf32>
    %18 = vector.broadcast %8 : vector<1x16x128xf32> to vector<8x16x128xf32>
    %19 = arith.mulf %17, %18 : vector<8x16x128xf32>
    %20 = arith.truncf %19 : vector<8x16x128xf32> to vector<8x16x128xbf16>
    %c15_i32_11 = arith.constant 15 : i32
    %21 = tpu.dynamic_rotate %16 by %c15_i32_11 dim 1 : vector<8x16x128xf32>, i32 -> vector<8x16x128xf32>
    %22 = vector.broadcast %12 : vector<1x16x128xf32> to vector<8x16x128xf32>
    %23 = arith.mulf %21, %22 : vector<8x16x128xf32>
    %24 = arith.truncf %23 : vector<8x16x128xf32> to vector<8x16x128xbf16>
    %25 = arith.truncf %16 : vector<8x16x128xf32> to vector<8x16x128xbf16>
    %26 = tpu.concatenate %20, %25, %24 in 2 : vector<8x16x128xbf16>, vector<8x16x128xbf16>, vector<8x16x128xbf16> -> vector<8x16x384xbf16>
    %27 = vector.shape_cast %26 : vector<8x16x384xbf16> to vector<128x384xbf16>
    %c0_12 = arith.constant 0 : index
    %c0_13 = arith.constant 0 : index
    %c0_14 = arith.constant 0 : index
    %28 = vector.load %arg2[%c0_12, %c0_13, %c0_14] : memref<3x384x128xbf16, #tpu.memory_space<vmem>>, vector<1x384x128xbf16>
    %29 = vector.shape_cast %28 : vector<1x384x128xbf16> to vector<384x128xbf16>
    %cst_15 = arith.constant dense<0.000000e+00> : vector<128x128xf32>
    %30 = tpu.matmul %27, %29, %cst_15 {dimension_numbers = #tpu.dot_dimension_numbers<[1], [0], [0], [1], [0, 0, 1, 1], [], []>} : vector<128x384xbf16>, vector<384x128xbf16>, vector<128x128xf32> -> vector<128x128xf32>
    %c0_16 = arith.constant 0 : index
    %c0_17 = arith.constant 0 : index
    %c0_18 = arith.constant 0 : index
    %c0_19 = arith.constant 0 : index
    %31 = vector.load %arg1[%c0_16, %c0_17, %c0_18, %c0_19] : memref<1x16x16x128xf32, #tpu.memory_space<vmem>>, vector<1x8x16x128xf32>
    %32 = vector.shape_cast %31 : vector<1x8x16x128xf32> to vector<8x16x128xf32>
    %c1_i32_20 = arith.constant 1 : i32
    %33 = tpu.dynamic_rotate %32 by %c1_i32_20 dim 1 : vector<8x16x128xf32>, i32 -> vector<8x16x128xf32>
    %34 = vector.broadcast %8 : vector<1x16x128xf32> to vector<8x16x128xf32>
    %35 = arith.mulf %33, %34 : vector<8x16x128xf32>
    %36 = arith.truncf %35 : vector<8x16x128xf32> to vector<8x16x128xbf16>
    %c15_i32_21 = arith.constant 15 : i32
    %37 = tpu.dynamic_rotate %32 by %c15_i32_21 dim 1 : vector<8x16x128xf32>, i32 -> vector<8x16x128xf32>
    %38 = vector.broadcast %12 : vector<1x16x128xf32> to vector<8x16x128xf32>
    %39 = arith.mulf %37, %38 : vector<8x16x128xf32>
    %40 = arith.truncf %39 : vector<8x16x128xf32> to vector<8x16x128xbf16>
    %41 = arith.truncf %32 : vector<8x16x128xf32> to vector<8x16x128xbf16>
    %42 = tpu.concatenate %36, %41, %40 in 2 : vector<8x16x128xbf16>, vector<8x16x128xbf16>, vector<8x16x128xbf16> -> vector<8x16x384xbf16>
    %43 = vector.shape_cast %42 : vector<8x16x384xbf16> to vector<128x384xbf16>
    %c1 = arith.constant 1 : index
    %c0_22 = arith.constant 0 : index
    %c0_23 = arith.constant 0 : index
    %44 = vector.load %arg2[%c1, %c0_22, %c0_23] : memref<3x384x128xbf16, #tpu.memory_space<vmem>>, vector<1x384x128xbf16>
    %45 = vector.shape_cast %44 : vector<1x384x128xbf16> to vector<384x128xbf16>
    %cst_24 = arith.constant dense<0.000000e+00> : vector<128x128xf32>
    %46 = tpu.matmul %43, %45, %cst_24 {dimension_numbers = #tpu.dot_dimension_numbers<[1], [0], [0], [1], [0, 0, 1, 1], [], []>} : vector<128x384xbf16>, vector<384x128xbf16>, vector<128x128xf32> -> vector<128x128xf32>
    %47 = arith.addf %30, %46 : vector<128x128xf32>
    %c0_25 = arith.constant 0 : index
    %c1_26 = arith.constant 1 : index
    %c0_27 = arith.constant 0 : index
    %c0_28 = arith.constant 0 : index
    %48 = vector.load %arg1[%c0_25, %c1_26, %c0_27, %c0_28] : memref<1x16x16x128xf32, #tpu.memory_space<vmem>>, vector<1x8x16x128xf32>
    %49 = vector.shape_cast %48 : vector<1x8x16x128xf32> to vector<8x16x128xf32>
    %c1_i32_29 = arith.constant 1 : i32
    %50 = tpu.dynamic_rotate %49 by %c1_i32_29 dim 1 : vector<8x16x128xf32>, i32 -> vector<8x16x128xf32>
    %51 = vector.broadcast %8 : vector<1x16x128xf32> to vector<8x16x128xf32>
    %52 = arith.mulf %50, %51 : vector<8x16x128xf32>
    %53 = arith.truncf %52 : vector<8x16x128xf32> to vector<8x16x128xbf16>
    %c15_i32_30 = arith.constant 15 : i32
    %54 = tpu.dynamic_rotate %49 by %c15_i32_30 dim 1 : vector<8x16x128xf32>, i32 -> vector<8x16x128xf32>
    %55 = vector.broadcast %12 : vector<1x16x128xf32> to vector<8x16x128xf32>
    %56 = arith.mulf %54, %55 : vector<8x16x128xf32>
    %57 = arith.truncf %56 : vector<8x16x128xf32> to vector<8x16x128xbf16>
    %58 = arith.truncf %49 : vector<8x16x128xf32> to vector<8x16x128xbf16>
    %59 = tpu.concatenate %53, %58, %57 in 2 : vector<8x16x128xbf16>, vector<8x16x128xbf16>, vector<8x16x128xbf16> -> vector<8x16x384xbf16>
    %60 = vector.shape_cast %59 : vector<8x16x384xbf16> to vector<128x384xbf16>
    %c2 = arith.constant 2 : index
    %c0_31 = arith.constant 0 : index
    %c0_32 = arith.constant 0 : index
    %61 = vector.load %arg2[%c2, %c0_31, %c0_32] : memref<3x384x128xbf16, #tpu.memory_space<vmem>>, vector<1x384x128xbf16>
    %62 = vector.shape_cast %61 : vector<1x384x128xbf16> to vector<384x128xbf16>
    %cst_33 = arith.constant dense<0.000000e+00> : vector<128x128xf32>
    %63 = tpu.matmul %60, %62, %cst_33 {dimension_numbers = #tpu.dot_dimension_numbers<[1], [0], [0], [1], [0, 0, 1, 1], [], []>} : vector<128x384xbf16>, vector<384x128xbf16>, vector<128x128xf32> -> vector<128x128xf32>
    %64 = arith.addf %47, %63 : vector<128x128xf32>
    %65 = vector.broadcast %0 : vector<1x128xf32> to vector<128x128xf32>
    %66 = arith.mulf %64, %65 : vector<128x128xf32>
    %67 = vector.broadcast %1 : vector<1x128xf32> to vector<128x128xf32>
    %68 = arith.addf %66, %67 : vector<128x128xf32>
    %cst_34 = arith.constant 0.000000e+00 : f32
    %69 = vector.broadcast %cst_34 : f32 to vector<128x128xf32>
    %70 = arith.maximumf %68, %69 : vector<128x128xf32>
    %71 = vector.shape_cast %70 : vector<128x128xf32> to vector<8x16x128xf32>
    %c0_35 = arith.constant 0 : index
    %c0_36 = arith.constant 0 : index
    %c0_37 = arith.constant 0 : index
    %72 = vector.load %arg9[%c0_35, %c0_36, %c0_37] : memref<16x16x128xf32, #tpu.memory_space<vmem>>, vector<8x16x128xf32>
    tpu.vector_store %arg9[%c0_35, %c0_36, %c0_37], %71 {strides = array<i32>} : memref<16x16x128xf32, #tpu.memory_space<vmem>>, vector<8x16x128xf32>,
    %c0_38 = arith.constant 0 : index
    %c7 = arith.constant 7 : index
    %c0_39 = arith.constant 0 : index
    %c0_40 = arith.constant 0 : index
    %73 = vector.load %arg1[%c0_38, %c7, %c0_39, %c0_40] : memref<1x16x16x128xf32, #tpu.memory_space<vmem>>, vector<1x8x16x128xf32>
    %74 = vector.shape_cast %73 : vector<1x8x16x128xf32> to vector<8x16x128xf32>
    %c1_i32_41 = arith.constant 1 : i32
    %75 = tpu.dynamic_rotate %74 by %c1_i32_41 dim 1 : vector<8x16x128xf32>, i32 -> vector<8x16x128xf32>
    %76 = vector.broadcast %8 : vector<1x16x128xf32> to vector<8x16x128xf32>
    %77 = arith.mulf %75, %76 : vector<8x16x128xf32>
    %78 = arith.truncf %77 : vector<8x16x128xf32> to vector<8x16x128xbf16>
    %c15_i32_42 = arith.constant 15 : i32
    %79 = tpu.dynamic_rotate %74 by %c15_i32_42 dim 1 : vector<8x16x128xf32>, i32 -> vector<8x16x128xf32>
    %80 = vector.broadcast %12 : vector<1x16x128xf32> to vector<8x16x128xf32>
    %81 = arith.mulf %79, %80 : vector<8x16x128xf32>
    %82 = arith.truncf %81 : vector<8x16x128xf32> to vector<8x16x128xbf16>
    %83 = arith.truncf %74 : vector<8x16x128xf32> to vector<8x16x128xbf16>
    %84 = tpu.concatenate %78, %83, %82 in 2 : vector<8x16x128xbf16>, vector<8x16x128xbf16>, vector<8x16x128xbf16> -> vector<8x16x384xbf16>
    %85 = vector.shape_cast %84 : vector<8x16x384xbf16> to vector<128x384xbf16>
    %c0_43 = arith.constant 0 : index
    %c0_44 = arith.constant 0 : index
    %c0_45 = arith.constant 0 : index
    %86 = vector.load %arg2[%c0_43, %c0_44, %c0_45] : memref<3x384x128xbf16, #tpu.memory_space<vmem>>, vector<1x384x128xbf16>
    %87 = vector.shape_cast %86 : vector<1x384x128xbf16> to vector<384x128xbf16>
    %cst_46 = arith.constant dense<0.000000e+00> : vector<128x128xf32>
    %88 = tpu.matmul %85, %87, %cst_46 {dimension_numbers = #tpu.dot_dimension_numbers<[1], [0], [0], [1], [0, 0, 1, 1], [], []>} : vector<128x384xbf16>, vector<384x128xbf16>, vector<128x128xf32> -> vector<128x128xf32>
    %c0_47 = arith.constant 0 : index
    %c8 = arith.constant 8 : index
    %c0_48 = arith.constant 0 : index
    %c0_49 = arith.constant 0 : index
    %89 = vector.load %arg1[%c0_47, %c8, %c0_48, %c0_49] : memref<1x16x16x128xf32, #tpu.memory_space<vmem>>, vector<1x8x16x128xf32>
    %90 = vector.shape_cast %89 : vector<1x8x16x128xf32> to vector<8x16x128xf32>
    %c1_i32_50 = arith.constant 1 : i32
    %91 = tpu.dynamic_rotate %90 by %c1_i32_50 dim 1 : vector<8x16x128xf32>, i32 -> vector<8x16x128xf32>
    %92 = vector.broadcast %8 : vector<1x16x128xf32> to vector<8x16x128xf32>
    %93 = arith.mulf %91, %92 : vector<8x16x128xf32>
    %94 = arith.truncf %93 : vector<8x16x128xf32> to vector<8x16x128xbf16>
    %c15_i32_51 = arith.constant 15 : i32
    %95 = tpu.dynamic_rotate %90 by %c15_i32_51 dim 1 : vector<8x16x128xf32>, i32 -> vector<8x16x128xf32>
    %96 = vector.broadcast %12 : vector<1x16x128xf32> to vector<8x16x128xf32>
    %97 = arith.mulf %95, %96 : vector<8x16x128xf32>
    %98 = arith.truncf %97 : vector<8x16x128xf32> to vector<8x16x128xbf16>
    %99 = arith.truncf %90 : vector<8x16x128xf32> to vector<8x16x128xbf16>
    %100 = tpu.concatenate %94, %99, %98 in 2 : vector<8x16x128xbf16>, vector<8x16x128xbf16>, vector<8x16x128xbf16> -> vector<8x16x384xbf16>
    %101 = vector.shape_cast %100 : vector<8x16x384xbf16> to vector<128x384xbf16>
    %c1_52 = arith.constant 1 : index
    %c0_53 = arith.constant 0 : index
    %c0_54 = arith.constant 0 : index
    %102 = vector.load %arg2[%c1_52, %c0_53, %c0_54] : memref<3x384x128xbf16, #tpu.memory_space<vmem>>, vector<1x384x128xbf16>
    %103 = vector.shape_cast %102 : vector<1x384x128xbf16> to vector<384x128xbf16>
    %cst_55 = arith.constant dense<0.000000e+00> : vector<128x128xf32>
    %104 = tpu.matmul %101, %103, %cst_55 {dimension_numbers = #tpu.dot_dimension_numbers<[1], [0], [0], [1], [0, 0, 1, 1], [], []>} : vector<128x384xbf16>, vector<384x128xbf16>, vector<128x128xf32> -> vector<128x128xf32>
    %105 = arith.addf %88, %104 : vector<128x128xf32>
    %c0_56 = arith.constant 0 : index
    %c9 = arith.constant 9 : index
    %c0_57 = arith.constant 0 : index
    %c0_58 = arith.constant 0 : index
    %106 = vector.load %arg1[%c0_56, %c9, %c0_57, %c0_58] : memref<1x16x16x128xf32, #tpu.memory_space<vmem>>, vector<1x7x16x128xf32>
    %107 = vector.shape_cast %106 : vector<1x7x16x128xf32> to vector<7x16x128xf32>
    %108 = tpu.concatenate %107, %13 in 0 : vector<7x16x128xf32>, vector<1x16x128xf32> -> vector<8x16x128xf32>
    %c1_i32_59 = arith.constant 1 : i32
    %109 = tpu.dynamic_rotate %108 by %c1_i32_59 dim 1 : vector<8x16x128xf32>, i32 -> vector<8x16x128xf32>
    %110 = vector.broadcast %8 : vector<1x16x128xf32> to vector<8x16x128xf32>
    %111 = arith.mulf %109, %110 : vector<8x16x128xf32>
    %112 = arith.truncf %111 : vector<8x16x128xf32> to vector<8x16x128xbf16>
    %c15_i32_60 = arith.constant 15 : i32
    %113 = tpu.dynamic_rotate %108 by %c15_i32_60 dim 1 : vector<8x16x128xf32>, i32 -> vector<8x16x128xf32>
    %114 = vector.broadcast %12 : vector<1x16x128xf32> to vector<8x16x128xf32>
    %115 = arith.mulf %113, %114 : vector<8x16x128xf32>
    %116 = arith.truncf %115 : vector<8x16x128xf32> to vector<8x16x128xbf16>
    %117 = arith.truncf %108 : vector<8x16x128xf32> to vector<8x16x128xbf16>
    %118 = tpu.concatenate %112, %117, %116 in 2 : vector<8x16x128xbf16>, vector<8x16x128xbf16>, vector<8x16x128xbf16> -> vector<8x16x384xbf16>
    %119 = vector.shape_cast %118 : vector<8x16x384xbf16> to vector<128x384xbf16>
    %c2_61 = arith.constant 2 : index
    %c0_62 = arith.constant 0 : index
    %c0_63 = arith.constant 0 : index
    %120 = vector.load %arg2[%c2_61, %c0_62, %c0_63] : memref<3x384x128xbf16, #tpu.memory_space<vmem>>, vector<1x384x128xbf16>
    %121 = vector.shape_cast %120 : vector<1x384x128xbf16> to vector<384x128xbf16>
    %cst_64 = arith.constant dense<0.000000e+00> : vector<128x128xf32>
    %122 = tpu.matmul %119, %121, %cst_64 {dimension_numbers = #tpu.dot_dimension_numbers<[1], [0], [0], [1], [0, 0, 1, 1], [], []>} : vector<128x384xbf16>, vector<384x128xbf16>, vector<128x128xf32> -> vector<128x128xf32>
    %123 = arith.addf %105, %122 : vector<128x128xf32>
    %124 = vector.broadcast %0 : vector<1x128xf32> to vector<128x128xf32>
    %125 = arith.mulf %123, %124 : vector<128x128xf32>
    %126 = vector.broadcast %1 : vector<1x128xf32> to vector<128x128xf32>
    %127 = arith.addf %125, %126 : vector<128x128xf32>
    %cst_65 = arith.constant 0.000000e+00 : f32
    %128 = vector.broadcast %cst_65 : f32 to vector<128x128xf32>
    %129 = arith.maximumf %127, %128 : vector<128x128xf32>
    %130 = vector.shape_cast %129 : vector<128x128xf32> to vector<8x16x128xf32>
    %c8_66 = arith.constant 8 : index
    %c0_67 = arith.constant 0 : index
    %c0_68 = arith.constant 0 : index
    %131 = vector.load %arg9[%c8_66, %c0_67, %c0_68] : memref<16x16x128xf32, #tpu.memory_space<vmem>>, vector<8x16x128xf32>
    tpu.vector_store %arg9[%c8_66, %c0_67, %c0_68], %130 {strides = array<i32>} : memref<16x16x128xf32, #tpu.memory_space<vmem>>, vector<8x16x128xf32>,
    %c0_69 = arith.constant 0 : index
    %c0_70 = arith.constant 0 : index
    %c0_71 = arith.constant 0 : index
    %132 = vector.load %arg9[%c0_69, %c0_70, %c0_71] : memref<16x16x128xf32, #tpu.memory_space<vmem>>, vector<7x16x128xf32>
    %133 = tpu.concatenate %13, %132 in 0 : vector<1x16x128xf32>, vector<7x16x128xf32> -> vector<8x16x128xf32>
    %c1_i32_72 = arith.constant 1 : i32
    %134 = tpu.dynamic_rotate %133 by %c1_i32_72 dim 1 : vector<8x16x128xf32>, i32 -> vector<8x16x128xf32>
    %135 = vector.broadcast %8 : vector<1x16x128xf32> to vector<8x16x128xf32>
    %136 = arith.mulf %134, %135 : vector<8x16x128xf32>
    %137 = arith.truncf %136 : vector<8x16x128xf32> to vector<8x16x128xbf16>
    %c15_i32_73 = arith.constant 15 : i32
    %138 = tpu.dynamic_rotate %133 by %c15_i32_73 dim 1 : vector<8x16x128xf32>, i32 -> vector<8x16x128xf32>
    %139 = vector.broadcast %12 : vector<1x16x128xf32> to vector<8x16x128xf32>
    %140 = arith.mulf %138, %139 : vector<8x16x128xf32>
    %141 = arith.truncf %140 : vector<8x16x128xf32> to vector<8x16x128xbf16>
    %142 = arith.truncf %133 : vector<8x16x128xf32> to vector<8x16x128xbf16>
    %143 = tpu.concatenate %137, %142, %141 in 2 : vector<8x16x128xbf16>, vector<8x16x128xbf16>, vector<8x16x128xbf16> -> vector<8x16x384xbf16>
    %144 = vector.shape_cast %143 : vector<8x16x384xbf16> to vector<128x384xbf16>
    %c0_74 = arith.constant 0 : index
    %c0_75 = arith.constant 0 : index
    %c0_76 = arith.constant 0 : index
    %145 = vector.load %arg5[%c0_74, %c0_75, %c0_76] : memref<3x384x128xbf16, #tpu.memory_space<vmem>>, vector<1x384x128xbf16>
    %146 = vector.shape_cast %145 : vector<1x384x128xbf16> to vector<384x128xbf16>
    %cst_77 = arith.constant dense<0.000000e+00> : vector<128x128xf32>
    %147 = tpu.matmul %144, %146, %cst_77 {dimension_numbers = #tpu.dot_dimension_numbers<[1], [0], [0], [1], [0, 0, 1, 1], [], []>} : vector<128x384xbf16>, vector<384x128xbf16>, vector<128x128xf32> -> vector<128x128xf32>
    %c0_78 = arith.constant 0 : index
    %c0_79 = arith.constant 0 : index
    %c0_80 = arith.constant 0 : index
    %148 = vector.load %arg9[%c0_78, %c0_79, %c0_80] : memref<16x16x128xf32, #tpu.memory_space<vmem>>, vector<8x16x128xf32>
    %c1_i32_81 = arith.constant 1 : i32
    %149 = tpu.dynamic_rotate %148 by %c1_i32_81 dim 1 : vector<8x16x128xf32>, i32 -> vector<8x16x128xf32>
    %150 = vector.broadcast %8 : vector<1x16x128xf32> to vector<8x16x128xf32>
    %151 = arith.mulf %149, %150 : vector<8x16x128xf32>
    %152 = arith.truncf %151 : vector<8x16x128xf32> to vector<8x16x128xbf16>
    %c15_i32_82 = arith.constant 15 : i32
    %153 = tpu.dynamic_rotate %148 by %c15_i32_82 dim 1 : vector<8x16x128xf32>, i32 -> vector<8x16x128xf32>
    %154 = vector.broadcast %12 : vector<1x16x128xf32> to vector<8x16x128xf32>
    %155 = arith.mulf %153, %154 : vector<8x16x128xf32>
    %156 = arith.truncf %155 : vector<8x16x128xf32> to vector<8x16x128xbf16>
    %157 = arith.truncf %148 : vector<8x16x128xf32> to vector<8x16x128xbf16>
    %158 = tpu.concatenate %152, %157, %156 in 2 : vector<8x16x128xbf16>, vector<8x16x128xbf16>, vector<8x16x128xbf16> -> vector<8x16x384xbf16>
    %159 = vector.shape_cast %158 : vector<8x16x384xbf16> to vector<128x384xbf16>
    %c1_83 = arith.constant 1 : index
    %c0_84 = arith.constant 0 : index
    %c0_85 = arith.constant 0 : index
    %160 = vector.load %arg5[%c1_83, %c0_84, %c0_85] : memref<3x384x128xbf16, #tpu.memory_space<vmem>>, vector<1x384x128xbf16>
    %161 = vector.shape_cast %160 : vector<1x384x128xbf16> to vector<384x128xbf16>
    %cst_86 = arith.constant dense<0.000000e+00> : vector<128x128xf32>
    %162 = tpu.matmul %159, %161, %cst_86 {dimension_numbers = #tpu.dot_dimension_numbers<[1], [0], [0], [1], [0, 0, 1, 1], [], []>} : vector<128x384xbf16>, vector<384x128xbf16>, vector<128x128xf32> -> vector<128x128xf32>
    %163 = arith.addf %147, %162 : vector<128x128xf32>
    %c1_87 = arith.constant 1 : index
    %c0_88 = arith.constant 0 : index
    %c0_89 = arith.constant 0 : index
    %164 = vector.load %arg9[%c1_87, %c0_88, %c0_89] : memref<16x16x128xf32, #tpu.memory_space<vmem>>, vector<8x16x128xf32>
    %c1_i32_90 = arith.constant 1 : i32
    %165 = tpu.dynamic_rotate %164 by %c1_i32_90 dim 1 : vector<8x16x128xf32>, i32 -> vector<8x16x128xf32>
    %166 = vector.broadcast %8 : vector<1x16x128xf32> to vector<8x16x128xf32>
    %167 = arith.mulf %165, %166 : vector<8x16x128xf32>
    %168 = arith.truncf %167 : vector<8x16x128xf32> to vector<8x16x128xbf16>
    %c15_i32_91 = arith.constant 15 : i32
    %169 = tpu.dynamic_rotate %164 by %c15_i32_91 dim 1 : vector<8x16x128xf32>, i32 -> vector<8x16x128xf32>
    %170 = vector.broadcast %12 : vector<1x16x128xf32> to vector<8x16x128xf32>
    %171 = arith.mulf %169, %170 : vector<8x16x128xf32>
    %172 = arith.truncf %171 : vector<8x16x128xf32> to vector<8x16x128xbf16>
    %173 = arith.truncf %164 : vector<8x16x128xf32> to vector<8x16x128xbf16>
    %174 = tpu.concatenate %168, %173, %172 in 2 : vector<8x16x128xbf16>, vector<8x16x128xbf16>, vector<8x16x128xbf16> -> vector<8x16x384xbf16>
    %175 = vector.shape_cast %174 : vector<8x16x384xbf16> to vector<128x384xbf16>
    %c2_92 = arith.constant 2 : index
    %c0_93 = arith.constant 0 : index
    %c0_94 = arith.constant 0 : index
    %176 = vector.load %arg5[%c2_92, %c0_93, %c0_94] : memref<3x384x128xbf16, #tpu.memory_space<vmem>>, vector<1x384x128xbf16>
    %177 = vector.shape_cast %176 : vector<1x384x128xbf16> to vector<384x128xbf16>
    %cst_95 = arith.constant dense<0.000000e+00> : vector<128x128xf32>
    %178 = tpu.matmul %175, %177, %cst_95 {dimension_numbers = #tpu.dot_dimension_numbers<[1], [0], [0], [1], [0, 0, 1, 1], [], []>} : vector<128x384xbf16>, vector<384x128xbf16>, vector<128x128xf32> -> vector<128x128xf32>
    %179 = arith.addf %163, %178 : vector<128x128xf32>
    %180 = vector.broadcast %2 : vector<1x128xf32> to vector<128x128xf32>
    %181 = arith.mulf %179, %180 : vector<128x128xf32>
    %182 = vector.broadcast %3 : vector<1x128xf32> to vector<128x128xf32>
    %183 = arith.addf %181, %182 : vector<128x128xf32>
    %184 = vector.shape_cast %183 : vector<128x128xf32> to vector<8x16x128xf32>
    %c0_96 = arith.constant 0 : index
    %c0_97 = arith.constant 0 : index
    %c0_98 = arith.constant 0 : index
    %c0_99 = arith.constant 0 : index
    %185 = vector.load %arg1[%c0_96, %c0_97, %c0_98, %c0_99] : memref<1x16x16x128xf32, #tpu.memory_space<vmem>>, vector<1x8x16x128xf32>
    %186 = vector.shape_cast %185 : vector<1x8x16x128xf32> to vector<8x16x128xf32>
    %187 = arith.addf %184, %186 : vector<8x16x128xf32>
    %cst_100 = arith.constant 0.000000e+00 : f32
    %188 = vector.broadcast %cst_100 : f32 to vector<8x16x128xf32>
    %189 = arith.maximumf %187, %188 : vector<8x16x128xf32>
    %c0_101 = arith.constant 0 : index
    %c0_102 = arith.constant 0 : index
    %c0_103 = arith.constant 0 : index
    %c0_104 = arith.constant 0 : index
    %190 = vector.load %arg8[%c0_101, %c0_102, %c0_103, %c0_104] : memref<1x16x16x128xf32, #tpu.memory_space<vmem>>, vector<1x8x16x128xf32>
    %191 = vector.shape_cast %190 : vector<1x8x16x128xf32> to vector<8x16x128xf32>
    %192 = vector.shape_cast %189 : vector<8x16x128xf32> to vector<1x8x16x128xf32>
    tpu.vector_store %arg8[%c0_101, %c0_102, %c0_103, %c0_104], %192 {strides = array<i32>} : memref<1x16x16x128xf32, #tpu.memory_space<vmem>>, vector<1x8x16x128xf32>,
    %c7_105 = arith.constant 7 : index
    %c0_106 = arith.constant 0 : index
    %c0_107 = arith.constant 0 : index
    %193 = vector.load %arg9[%c7_105, %c0_106, %c0_107] : memref<16x16x128xf32, #tpu.memory_space<vmem>>, vector<8x16x128xf32>
    %c1_i32_108 = arith.constant 1 : i32
    %194 = tpu.dynamic_rotate %193 by %c1_i32_108 dim 1 : vector<8x16x128xf32>, i32 -> vector<8x16x128xf32>
    %195 = vector.broadcast %8 : vector<1x16x128xf32> to vector<8x16x128xf32>
    %196 = arith.mulf %194, %195 : vector<8x16x128xf32>
    %197 = arith.truncf %196 : vector<8x16x128xf32> to vector<8x16x128xbf16>
    %c15_i32_109 = arith.constant 15 : i32
    %198 = tpu.dynamic_rotate %193 by %c15_i32_109 dim 1 : vector<8x16x128xf32>, i32 -> vector<8x16x128xf32>
    %199 = vector.broadcast %12 : vector<1x16x128xf32> to vector<8x16x128xf32>
    %200 = arith.mulf %198, %199 : vector<8x16x128xf32>
    %201 = arith.truncf %200 : vector<8x16x128xf32> to vector<8x16x128xbf16>
    %202 = arith.truncf %193 : vector<8x16x128xf32> to vector<8x16x128xbf16>
    %203 = tpu.concatenate %197, %202, %201 in 2 : vector<8x16x128xbf16>, vector<8x16x128xbf16>, vector<8x16x128xbf16> -> vector<8x16x384xbf16>
    %204 = vector.shape_cast %203 : vector<8x16x384xbf16> to vector<128x384xbf16>
    %c0_110 = arith.constant 0 : index
    %c0_111 = arith.constant 0 : index
    %c0_112 = arith.constant 0 : index
    %205 = vector.load %arg5[%c0_110, %c0_111, %c0_112] : memref<3x384x128xbf16, #tpu.memory_space<vmem>>, vector<1x384x128xbf16>
    %206 = vector.shape_cast %205 : vector<1x384x128xbf16> to vector<384x128xbf16>
    %cst_113 = arith.constant dense<0.000000e+00> : vector<128x128xf32>
    %207 = tpu.matmul %204, %206, %cst_113 {dimension_numbers = #tpu.dot_dimension_numbers<[1], [0], [0], [1], [0, 0, 1, 1], [], []>} : vector<128x384xbf16>, vector<384x128xbf16>, vector<128x128xf32> -> vector<128x128xf32>
    %c8_114 = arith.constant 8 : index
    %c0_115 = arith.constant 0 : index
    %c0_116 = arith.constant 0 : index
    %208 = vector.load %arg9[%c8_114, %c0_115, %c0_116] : memref<16x16x128xf32, #tpu.memory_space<vmem>>, vector<8x16x128xf32>
    %c1_i32_117 = arith.constant 1 : i32
    %209 = tpu.dynamic_rotate %208 by %c1_i32_117 dim 1 : vector<8x16x128xf32>, i32 -> vector<8x16x128xf32>
    %210 = vector.broadcast %8 : vector<1x16x128xf32> to vector<8x16x128xf32>
    %211 = arith.mulf %209, %210 : vector<8x16x128xf32>
    %212 = arith.truncf %211 : vector<8x16x128xf32> to vector<8x16x128xbf16>
    %c15_i32_118 = arith.constant 15 : i32
    %213 = tpu.dynamic_rotate %208 by %c15_i32_118 dim 1 : vector<8x16x128xf32>, i32 -> vector<8x16x128xf32>
    %214 = vector.broadcast %12 : vector<1x16x128xf32> to vector<8x16x128xf32>
    %215 = arith.mulf %213, %214 : vector<8x16x128xf32>
    %216 = arith.truncf %215 : vector<8x16x128xf32> to vector<8x16x128xbf16>
    %217 = arith.truncf %208 : vector<8x16x128xf32> to vector<8x16x128xbf16>
    %218 = tpu.concatenate %212, %217, %216 in 2 : vector<8x16x128xbf16>, vector<8x16x128xbf16>, vector<8x16x128xbf16> -> vector<8x16x384xbf16>
    %219 = vector.shape_cast %218 : vector<8x16x384xbf16> to vector<128x384xbf16>
    %c1_119 = arith.constant 1 : index
    %c0_120 = arith.constant 0 : index
    %c0_121 = arith.constant 0 : index
    %220 = vector.load %arg5[%c1_119, %c0_120, %c0_121] : memref<3x384x128xbf16, #tpu.memory_space<vmem>>, vector<1x384x128xbf16>
    %221 = vector.shape_cast %220 : vector<1x384x128xbf16> to vector<384x128xbf16>
    %cst_122 = arith.constant dense<0.000000e+00> : vector<128x128xf32>
    %222 = tpu.matmul %219, %221, %cst_122 {dimension_numbers = #tpu.dot_dimension_numbers<[1], [0], [0], [1], [0, 0, 1, 1], [], []>} : vector<128x384xbf16>, vector<384x128xbf16>, vector<128x128xf32> -> vector<128x128xf32>
    %223 = arith.addf %207, %222 : vector<128x128xf32>
    %c9_123 = arith.constant 9 : index
    %c0_124 = arith.constant 0 : index
    %c0_125 = arith.constant 0 : index
    %224 = vector.load %arg9[%c9_123, %c0_124, %c0_125] : memref<16x16x128xf32, #tpu.memory_space<vmem>>, vector<7x16x128xf32>
    %225 = tpu.concatenate %224, %13 in 0 : vector<7x16x128xf32>, vector<1x16x128xf32> -> vector<8x16x128xf32>
    %c1_i32_126 = arith.constant 1 : i32
    %226 = tpu.dynamic_rotate %225 by %c1_i32_126 dim 1 : vector<8x16x128xf32>, i32 -> vector<8x16x128xf32>
    %227 = vector.broadcast %8 : vector<1x16x128xf32> to vector<8x16x128xf32>
    %228 = arith.mulf %226, %227 : vector<8x16x128xf32>
    %229 = arith.truncf %228 : vector<8x16x128xf32> to vector<8x16x128xbf16>
    %c15_i32_127 = arith.constant 15 : i32
    %230 = tpu.dynamic_rotate %225 by %c15_i32_127 dim 1 : vector<8x16x128xf32>, i32 -> vector<8x16x128xf32>
    %231 = vector.broadcast %12 : vector<1x16x128xf32> to vector<8x16x128xf32>
    %232 = arith.mulf %230, %231 : vector<8x16x128xf32>
    %233 = arith.truncf %232 : vector<8x16x128xf32> to vector<8x16x128xbf16>
    %234 = arith.truncf %225 : vector<8x16x128xf32> to vector<8x16x128xbf16>
    %235 = tpu.concatenate %229, %234, %233 in 2 : vector<8x16x128xbf16>, vector<8x16x128xbf16>, vector<8x16x128xbf16> -> vector<8x16x384xbf16>
    %236 = vector.shape_cast %235 : vector<8x16x384xbf16> to vector<128x384xbf16>
    %c2_128 = arith.constant 2 : index
    %c0_129 = arith.constant 0 : index
    %c0_130 = arith.constant 0 : index
    %237 = vector.load %arg5[%c2_128, %c0_129, %c0_130] : memref<3x384x128xbf16, #tpu.memory_space<vmem>>, vector<1x384x128xbf16>
    %238 = vector.shape_cast %237 : vector<1x384x128xbf16> to vector<384x128xbf16>
    %cst_131 = arith.constant dense<0.000000e+00> : vector<128x128xf32>
    %239 = tpu.matmul %236, %238, %cst_131 {dimension_numbers = #tpu.dot_dimension_numbers<[1], [0], [0], [1], [0, 0, 1, 1], [], []>} : vector<128x384xbf16>, vector<384x128xbf16>, vector<128x128xf32> -> vector<128x128xf32>
    %240 = arith.addf %223, %239 : vector<128x128xf32>
    %241 = vector.broadcast %2 : vector<1x128xf32> to vector<128x128xf32>
    %242 = arith.mulf %240, %241 : vector<128x128xf32>
    %243 = vector.broadcast %3 : vector<1x128xf32> to vector<128x128xf32>
    %244 = arith.addf %242, %243 : vector<128x128xf32>
    %245 = vector.shape_cast %244 : vector<128x128xf32> to vector<8x16x128xf32>
    %c0_132 = arith.constant 0 : index
    %c8_133 = arith.constant 8 : index
    %c0_134 = arith.constant 0 : index
    %c0_135 = arith.constant 0 : index
    %246 = vector.load %arg1[%c0_132, %c8_133, %c0_134, %c0_135] : memref<1x16x16x128xf32, #tpu.memory_space<vmem>>, vector<1x8x16x128xf32>
    %247 = vector.shape_cast %246 : vector<1x8x16x128xf32> to vector<8x16x128xf32>
    %248 = arith.addf %245, %247 : vector<8x16x128xf32>
    %cst_136 = arith.constant 0.000000e+00 : f32
    %249 = vector.broadcast %cst_136 : f32 to vector<8x16x128xf32>
    %250 = arith.maximumf %248, %249 : vector<8x16x128xf32>
    %c0_137 = arith.constant 0 : index
    %c8_138 = arith.constant 8 : index
    %c0_139 = arith.constant 0 : index
    %c0_140 = arith.constant 0 : index
    %251 = vector.load %arg8[%c0_137, %c8_138, %c0_139, %c0_140] : memref<1x16x16x128xf32, #tpu.memory_space<vmem>>, vector<1x8x16x128xf32>
    %252 = vector.shape_cast %251 : vector<1x8x16x128xf32> to vector<8x16x128xf32>
    %253 = vector.shape_cast %250 : vector<8x16x128xf32> to vector<1x8x16x128xf32>
    tpu.vector_store %arg8[%c0_137, %c8_138, %c0_139, %c0_140], %253 {strides = array<i32>} : memref<1x16x16x128xf32, #tpu.memory_space<vmem>>, vector<1x8x16x128xf32>,
    return
  }
  func.func @transform_0(%arg0: i32) -> (i32, i32, i32, i32) {
    %c0_i32 = arith.constant 0 : i32
    %c0_i32_0 = arith.constant 0 : i32
    %c0_i32_1 = arith.constant 0 : i32
    %c0_i32_2 = arith.constant 0 : i32
    return %arg0, %c0_i32, %c0_i32_0, %c0_i32_1 : i32, i32, i32, i32
  }
  func.func @transform_1(%arg0: i32) -> (i32, i32, i32) {
    %c0_i32 = arith.constant 0 : i32
    %c0_i32_0 = arith.constant 0 : i32
    %c0_i32_1 = arith.constant 0 : i32
    %c0_i32_2 = arith.constant 0 : i32
    return %c0_i32, %c0_i32_0, %c0_i32_1 : i32, i32, i32
  }
  func.func @transform_2(%arg0: i32) -> (i32, i32) {
    %c0_i32 = arith.constant 0 : i32
    %c0_i32_0 = arith.constant 0 : i32
    %c0_i32_1 = arith.constant 0 : i32
    return %c0_i32, %c0_i32_0 : i32, i32
  }
  func.func @transform_3(%arg0: i32) -> (i32, i32) {
    %c0_i32 = arith.constant 0 : i32
    %c0_i32_0 = arith.constant 0 : i32
    %c0_i32_1 = arith.constant 0 : i32
    return %c0_i32, %c0_i32_0 : i32, i32
  }
  func.func @transform_4(%arg0: i32) -> (i32, i32, i32) {
    %c0_i32 = arith.constant 0 : i32
    %c0_i32_0 = arith.constant 0 : i32
    %c0_i32_1 = arith.constant 0 : i32
    %c0_i32_2 = arith.constant 0 : i32
    return %c0_i32, %c0_i32_0, %c0_i32_1 : i32, i32, i32
  }
  func.func @transform_5(%arg0: i32) -> (i32, i32) {
    %c0_i32 = arith.constant 0 : i32
    %c0_i32_0 = arith.constant 0 : i32
    %c0_i32_1 = arith.constant 0 : i32
    return %c0_i32, %c0_i32_0 : i32, i32
  }
  func.func @transform_6(%arg0: i32) -> (i32, i32) {
    %c0_i32 = arith.constant 0 : i32
    %c0_i32_0 = arith.constant 0 : i32
    %c0_i32_1 = arith.constant 0 : i32
    return %c0_i32, %c0_i32_0 : i32, i32
  }
  func.func @transform_7(%arg0: i32) -> (i32, i32, i32, i32) {
    %c0_i32 = arith.constant 0 : i32
    %c0_i32_0 = arith.constant 0 : i32
    %c0_i32_1 = arith.constant 0 : i32
    %c0_i32_2 = arith.constant 0 : i32
    return %arg0, %c0_i32, %c0_i32_0, %c0_i32_1 : i32, i32, i32, i32
  }
}

</mosaic_0001>

<llo_original>
// kernel: tpu_custom_call.1
$region0: #{tpu_custom_call.1}
  #allocation0 [shape = 'u32[]', space=smem, size = 0x4, offset = 0x4, fixed_abs, tag = 'smem constant byte address 0x4 - core index']
  #allocation1 [shape = 'u32[72,128]{1,0:T(1,128)}', space=vmem, size = 0x9000, scoped, tag = 'internal scratch']
  #allocation2 [shape = 'f32[16,16,128]{2,1,0:T(8,128)}', space=vmem, size = 0x20000, scoped, tag = 'scratch operand']
  %s0 = inlined_call_operand.hbm [shape: f32[2,16,16,128], index: 0, kind: input, shape index: {}]
  %s1 = inlined_call_operand.hbm [shape: bf16[3,384,128], index: 1, kind: input, shape index: {}]
  %s2 = inlined_call_operand.vmem [shape: f32[1,128], index: 2, kind: input, shape index: {}]
  %s3 = inlined_call_operand.vmem [shape: f32[1,128], index: 3, kind: input, shape index: {}]
  %s4 = inlined_call_operand.hbm [shape: bf16[3,384,128], index: 4, kind: input, shape index: {}]
  %s5 = inlined_call_operand.vmem [shape: f32[1,128], index: 5, kind: input, shape index: {}]
  %s6 = inlined_call_operand.vmem [shape: f32[1,128], index: 6, kind: input, shape index: {}]
  %s7 = inlined_call_operand.hbm [shape: f32[2,16,16,128], index: 7, kind: output, shape index: {}]
  %s8 = sld [smem:[#allocation0]]
  $region73: #{tpu_custom_call.1} parent=0
    _
  %s10 = ssub.s32 1, %s8
  %s11 = scalar_select 0, %s10, %s8
  $region1: #{tpu_custom_call.1} parent=0
    #allocation3 [shape = 'u8[262144]{0}', space=vmem, size = 0x40000, scoped, tag = 'input window, operand 0']
    #allocation4 [shape = 's32[2]{0}', space=sflag, size = 0x8, scoped, tag = 'scoped memory for tpu_custom_call.1']
    #allocation5 [shape = 's32[2]{0}', space=sflag, size = 0x8, scoped, tag = 'scoped memory for tpu_custom_call.1']
    #allocation6 [shape = 'u8[294912]{0}', space=vmem, size = 0x48000, scoped, tag = 'input window, operand 1, single buffered']
    #allocation7 [shape = 's32[1]{0}', space=sflag, size = 0x4, scoped, tag = 'scoped memory for tpu_custom_call.1']
    #allocation8 [shape = 'u8[294912]{0}', space=vmem, size = 0x48000, scoped, tag = 'input window, operand 4, single buffered']
    #allocation9 [shape = 'u8[262144]{0}', space=vmem, size = 0x40000, scoped, tag = 'output window, operand 0']
    %12 = vsyncpa [#allocation4], 0
    %s13 = scalar_lea.sflag [#allocation4], 1
    %14 = vsyncpa %s13, 0
    %15 = vsyncpa [#allocation7], 0
    %16 = vsyncpa [#allocation5], 0
    %s17 = scalar_lea.sflag [#allocation5], 1
    %18 = vsyncpa %s17, 0
    loop: start=0, step=1, limit=4
    $region2: #{tpu_custom_call.1} parent=1 // loop_pre_header
      _
    $region3: #{tpu_custom_call.1} parent=1 // loop_header
      %s20 = sphi 0, %s24
      %p21 = scmp.ge.s32.totalorder %s20, 4
      %s30 = sphi 0, %s32
      %s33 = sphi 0, %s30
      %s34 = sphi 0, %s33
      %s50 = sphi 0, %s34
      %s54 = sphi 0, %s54
      %s56 = sphi 0, %s54
      %s57 = sphi 0, %s56
      %s71 = sphi 0, %s57
      %s75 = sphi 0, %s75
      %s77 = sphi 0, %s75
      %s78 = sphi 0, %s77
      %s92 = sphi 0, %s78
      %s96 = sphi 0, %s96
      %s98 = sphi 0, %s96
      %s99 = sphi 0, %s98
      %s113 = sphi 0, %s99
      %s117 = sphi 0, %s117
      %s119 = sphi 0, %s117
      %s120 = sphi 0, %s119
      %s134 = sphi 0, %s120
      %s138 = sphi 0, %s138
      %s140 = sphi 0, %s138
      %s141 = sphi 0, %s140
      %s155 = sphi 0, %s141
      %s159 = sphi 0, %s159
      %s161 = sphi 0, %s159
      %s162 = sphi 0, %s161
      %s176 = sphi 0, %s162
      %s182 = sphi 0, %s184
      %s185 = sphi 0, %s182
      %s186 = sphi 0, %s185
      %s202 = sphi 0, %s186
    $region4: #{tpu_custom_call.1} parent=1 // loop_header_branch
      %23 = sbr.rel (%p21) target = $region8
    $region5: #{tpu_custom_call.1} parent=1 // loop_body
      %s25 = ssub.s32 %s20, 1
      %s26 = ssub.s32 %s20, 2
      %s27 = sadd.s32 %s20, 1
      %s28 = ssub.s32 %s20, %s27
      %p29 = scmp.eq.s32.totalorder %s28, 0
      %s31 = sadd.s32 %s30, 1
      %s32 = scalar_select %p29, %s30, %s31
      %p35 = pneg %p29
      %p36 = scmp.eq.s32.totalorder %s20, 1
      %p37 = por %p35, %p36
      %p38 = scmp.ne.s32.totalorder %s30, %s33
      %p39 = scmp.eq.s32.totalorder %s20, 0
      %p40 = por %p38, %p39
      %p41 = scmp.ne.s32.totalorder %s30, %s33
      %p42 = scmp.eq.s32.totalorder %s25, 1
      %p43 = por %p41, %p42
      %p44 = scmp.ne.s32.totalorder %s33, %s34
      %p45 = scmp.eq.s32.totalorder %s25, 0
      %p46 = por %p44, %p45
      %p47 = scmp.ne.s32.totalorder %s33, %s34
      %p48 = scmp.eq.s32.totalorder %s26, 1
      %p49 = por %p47, %p48
      %p51 = scmp.ne.s32.totalorder %s34, %s50
      %p52 = scmp.eq.s32.totalorder %s26, 0
      %p53 = por %p51, %p52
      %s55 = sadd.s32 %s54, 1
      %p58 = scmp.eq.s32.totalorder %s20, 1
      %p59 = scmp.ne.s32.totalorder %s54, %s56
      %p60 = scmp.eq.s32.totalorder %s20, 0
      %p61 = por %p59, %p60
      %p62 = scmp.ne.s32.totalorder %s54, %s56
      %p63 = scmp.eq.s32.totalorder %s25, 1
      %p64 = por %p62, %p63
      %p65 = scmp.ne.s32.totalorder %s56, %s57
      %p66 = scmp.eq.s32.totalorder %s25, 0
      %p67 = por %p65, %p66
      %p68 = scmp.ne.s32.totalorder %s56, %s57
      %p69 = scmp.eq.s32.totalorder %s26, 1
      %p70 = por %p68, %p69
      %p72 = scmp.ne.s32.totalorder %s57, %s71
      %p73 = scmp.eq.s32.totalorder %s26, 0
      %p74 = por %p72, %p73
      %s76 = sadd.s32 %s75, 1
      %p79 = scmp.eq.s32.totalorder %s20, 1
      %p80 = scmp.ne.s32.totalorder %s75, %s77
      %p81 = scmp.eq.s32.totalorder %s20, 0
      %p82 = por %p80, %p81
      %p83 = scmp.ne.s32.totalorder %s75, %s77
      %p84 = scmp.eq.s32.totalorder %s25, 1
      %p85 = por %p83, %p84
      %p86 = scmp.ne.s32.totalorder %s77, %s78
      %p87 = scmp.eq.s32.totalorder %s25, 0
      %p88 = por %p86, %p87
      %p89 = scmp.ne.s32.totalorder %s77, %s78
      %p90 = scmp.eq.s32.totalorder %s26, 1
      %p91 = por %p89, %p90
      %p93 = scmp.ne.s32.totalorder %s78, %s92
      %p94 = scmp.eq.s32.totalorder %s26, 0
      %p95 = por %p93, %p94
      %s97 = sadd.s32 %s96, 1
      %p100 = scmp.eq.s32.totalorder %s20, 1
      %p101 = scmp.ne.s32.totalorder %s96, %s98
      %p102 = scmp.eq.s32.totalorder %s20, 0
      %p103 = por %p101, %p102
      %p104 = scmp.ne.s32.totalorder %s96, %s98
      %p105 = scmp.eq.s32.totalorder %s25, 1
      %p106 = por %p104, %p105
      %p107 = scmp.ne.s32.totalorder %s98, %s99
      %p108 = scmp.eq.s32.totalorder %s25, 0
      %p109 = por %p107, %p108
      %p110 = scmp.ne.s32.totalorder %s98, %s99
      %p111 = scmp.eq.s32.totalorder %s26, 1
      %p112 = por %p110, %p111
      %p114 = scmp.ne.s32.totalorder %s99, %s113
      %p115 = scmp.eq.s32.totalorder %s26, 0
      %p116 = por %p114, %p115
      %s118 = sadd.s32 %s117, 1
      %p121 = scmp.eq.s32.totalorder %s20, 1
      %p122 = scmp.ne.s32.totalorder %s117, %s119
      %p123 = scmp.eq.s32.totalorder %s20, 0
      %p124 = por %p122, %p123
      %p125 = scmp.ne.s32.totalorder %s117, %s119
      %p126 = scmp.eq.s32.totalorder %s25, 1
      %p127 = por %p125, %p126
      %p128 = scmp.ne.s32.totalorder %s119, %s120
      %p129 = scmp.eq.s32.totalorder %s25, 0
      %p130 = por %p128, %p129
      %p131 = scmp.ne.s32.totalorder %s119, %s120
      %p132 = scmp.eq.s32.totalorder %s26, 1
      %p133 = por %p131, %p132
      %p135 = scmp.ne.s32.totalorder %s120, %s134
      %p136 = scmp.eq.s32.totalorder %s26, 0
      %p137 = por %p135, %p136
      %s139 = sadd.s32 %s138, 1
      %p142 = scmp.eq.s32.totalorder %s20, 1
      %p143 = scmp.ne.s32.totalorder %s138, %s140
      %p144 = scmp.eq.s32.totalorder %s20, 0
      %p145 = por %p143, %p144
      %p146 = scmp.ne.s32.totalorder %s138, %s140
      %p147 = scmp.eq.s32.totalorder %s25, 1
      %p148 = por %p146, %p147
      %p149 = scmp.ne.s32.totalorder %s140, %s141
      %p150 = scmp.eq.s32.totalorder %s25, 0
      %p151 = por %p149, %p150
      %p152 = scmp.ne.s32.totalorder %s140, %s141
      %p153 = scmp.eq.s32.totalorder %s26, 1
      %p154 = por %p152, %p153
      %p156 = scmp.ne.s32.totalorder %s141, %s155
      %p157 = scmp.eq.s32.totalorder %s26, 0
      %p158 = por %p156, %p157
      %s160 = sadd.s32 %s159, 1
      %p163 = scmp.eq.s32.totalorder %s20, 1
      %p164 = scmp.ne.s32.totalorder %s159, %s161
      %p165 = scmp.eq.s32.totalorder %s20, 0
      %p166 = por %p164, %p165
      %p167 = scmp.ne.s32.totalorder %s159, %s161
      %p168 = scmp.eq.s32.totalorder %s25, 1
      %p169 = por %p167, %p168
      %p170 = scmp.ne.s32.totalorder %s161, %s162
      %p171 = scmp.eq.s32.totalorder %s25, 0
      %p172 = por %p170, %p171
      %p173 = scmp.ne.s32.totalorder %s161, %s162
      %p174 = scmp.eq.s32.totalorder %s26, 1
      %p175 = por %p173, %p174
      %p177 = scmp.ne.s32.totalorder %s162, %s176
      %p178 = scmp.eq.s32.totalorder %s26, 0
      %p179 = por %p177, %p178
      %s180 = ssub.s32 %s20, %s27
      %p181 = scmp.eq.s32.totalorder %s180, 0
      %s183 = sadd.s32 %s182, 1
      %s184 = scalar_select %p181, %s182, %s183
      %p187 = pneg %p181
      %p188 = scmp.eq.s32.totalorder %s20, 1
      %p189 = por %p187, %p188
      %p190 = scmp.ne.s32.totalorder %s182, %s185
      %p191 = scmp.eq.s32.totalorder %s20, 0
      %p192 = por %p190, %p191
      %p193 = scmp.ne.s32.totalorder %s182, %s185
      %p194 = scmp.eq.s32.totalorder %s25, 1
      %p195 = por %p193, %p194
      %p196 = scmp.ne.s32.totalorder %s185, %s186
      %p197 = scmp.eq.s32.totalorder %s25, 0
      %p198 = por %p196, %p197
      %p199 = scmp.ne.s32.totalorder %s185, %s186
      %p200 = scmp.eq.s32.totalorder %s26, 1
      %p201 = por %p199, %p200
      %p203 = scmp.ne.s32.totalorder %s186, %s202
      %p204 = scmp.eq.s32.totalorder %s26, 0
      %p205 = por %p203, %p204
      %p206 = scmp.le.s32.totalorder 1, %s20
      %p207 = scmp.lt.s32.totalorder %s20, 3
      %p208 = pnand %p206, %p207
      %p209 = pneg %p208
      // Predicated region
      $region9: #{tpu_custom_call.1} parent=5 // pred_check
        _
      $region10: #{tpu_custom_call.1} parent=5 // pred_check_branch
        %211 = sbr.rel (%p208) target = $region12
      $region11: #{tpu_custom_call.1} parent=5 // pred_region
        %s212 = ssub.s32 %s20, 1
        // Predicated region
        $region13: #{tpu_custom_call.1} parent=11 // pred_check
          %p213 = pneg %p67
        $region14: #{tpu_custom_call.1} parent=11 // pred_check_branch
          %215 = sbr.rel (%p213) target = $region16
        $region15: #{tpu_custom_call.1} parent=11 // pred_region
          %217 = vsyncadd [#allocation7], 0
          %s218 = sshll.u32 %s1, 4
          %s219 = int_to_ptr.hbm [resolvable:$true] %s218
          %s220 = sshll.u32 [#allocation6], 4
          %s221 = int_to_ptr.vmem [resolvable:$true] %s220
          %226 = dma.hbm_to_vmem [thread:$0]  %s219, 9216, %s221, [#allocation7], 64, 64, 4
        $region16: #{tpu_custom_call.1} parent=11 // pred_fallthru
          _
        // Predicated region
        $region17: #{tpu_custom_call.1} parent=11 // pred_check
          %p227 = pneg %p88
        $region18: #{tpu_custom_call.1} parent=11 // pred_check_branch
          %229 = sbr.rel (%p227) target = $region20
        $region19: #{tpu_custom_call.1} parent=11 // pred_region
          _
        $region20: #{tpu_custom_call.1} parent=11 // pred_fallthru
          _
        // Predicated region
        $region21: #{tpu_custom_call.1} parent=11 // pred_check
          %p230 = pneg %p109
        $region22: #{tpu_custom_call.1} parent=11 // pred_check_branch
          %232 = sbr.rel (%p230) target = $region24
        $region23: #{tpu_custom_call.1} parent=11 // pred_region
          _
        $region24: #{tpu_custom_call.1} parent=11 // pred_fallthru
          _
        // Predicated region
        $region25: #{tpu_custom_call.1} parent=11 // pred_check
          %p233 = pneg %p130
        $region26: #{tpu_custom_call.1} parent=11 // pred_check_branch
          %235 = sbr.rel (%p233) target = $region28
        $region27: #{tpu_custom_call.1} parent=11 // pred_region
          %237 = vsyncadd [#allocation7], 0
          %s238 = sshll.u32 %s4, 4
          %s239 = int_to_ptr.hbm [resolvable:$true] %s238
          %s240 = sshll.u32 [#allocation8], 4
          %s241 = int_to_ptr.vmem [resolvable:$true] %s240
          %246 = dma.hbm_to_vmem [thread:$0]  %s239, 9216, %s241, [#allocation7], 64, 64, 4
        $region28: #{tpu_custom_call.1} parent=11 // pred_fallthru
          _
        // Predicated region
        $region29: #{tpu_custom_call.1} parent=11 // pred_check
          %p247 = pneg %p151
        $region30: #{tpu_custom_call.1} parent=11 // pred_check_branch
          %249 = sbr.rel (%p247) target = $region32
        $region31: #{tpu_custom_call.1} parent=11 // pred_region
          _
        $region32: #{tpu_custom_call.1} parent=11 // pred_fallthru
          _
        // Predicated region
        $region33: #{tpu_custom_call.1} parent=11 // pred_check
          %p250 = pneg %p172
        $region34: #{tpu_custom_call.1} parent=11 // pred_check_branch
          %252 = sbr.rel (%p250) target = $region36
        $region35: #{tpu_custom_call.1} parent=11 // pred_region
          _
        $region36: #{tpu_custom_call.1} parent=11 // pred_fallthru
          _
      $region12: #{tpu_custom_call.1} parent=5 // pred_fallthru
        _
      %p253 = scmp.lt.s32.totalorder %s20, 2
      // Predicated region
      $region37: #{tpu_custom_call.1} parent=5 // pred_check
        %p254 = pneg %p253
      $region38: #{tpu_custom_call.1} parent=5 // pred_check_branch
        %256 = sbr.rel (%p254) target = $region40
      $region39: #{tpu_custom_call.1} parent=5 // pred_region
        // Predicated region
        $region41: #{tpu_custom_call.1} parent=39 // pred_check
          %p257 = pneg %p40
        $region42: #{tpu_custom_call.1} parent=39 // pred_check_branch
          %259 = sbr.rel (%p257) target = $region44
        $region43: #{tpu_custom_call.1} parent=39 // pred_region
          %s260 = sand.u32 %s30, 1
          %s261 = scalar_lea.sflag [#allocation4], %s260
          %s262 = sand.u32 %s30, 1
          %s263 = smul.addr %s262, 256
          %s264 = scalar_lea.vmem [#allocation3], %s263
          %266 = vsyncadd %s261, 0
          %s267 = smul.addr %s20, 32
          %s268 = smul.addr %s267, 8
          %s269 = scalar_lea.hbm %s0, %s268
          %s270 = sshll.u32 %s269, 4
          %s271 = int_to_ptr.hbm [resolvable:$true] %s270
          %s272 = sshll.u32 %s264, 4
          %s273 = int_to_ptr.vmem [resolvable:$true] %s272
          %278 = dma.hbm_to_vmem [thread:$0]  %s271, 4096, %s273, %s261, 128, 128, 8
        $region44: #{tpu_custom_call.1} parent=39 // pred_fallthru
          _
      $region40: #{tpu_custom_call.1} parent=5 // pred_fallthru
        _
      %p279 = scmp.le.s32.totalorder 1, %s20
      %p280 = scmp.lt.s32.totalorder %s20, 3
      %p281 = pnand %p279, %p280
      %p282 = pneg %p281
      // Predicated region
      $region45: #{tpu_custom_call.1} parent=5 // pred_check
        _
      $region46: #{tpu_custom_call.1} parent=5 // pred_check_branch
        %284 = sbr.rel (%p281) target = $region48
      $region47: #{tpu_custom_call.1} parent=5 // pred_region
        %s285 = ssub.s32 %s20, 1
        %s286 = sand.u32 %s33, 1
        %s287 = scalar_lea.sflag [#allocation4], %s286
        %s288 = sand.u32 %s33, 1
        %s289 = smul.addr %s288, 256
        %s290 = scalar_lea.vmem [#allocation3], %s289
        // Predicated region
        $region49: #{tpu_custom_call.1} parent=47 // pred_check
          %p291 = pneg %p46
        $region50: #{tpu_custom_call.1} parent=47 // pred_check_branch
          %293 = sbr.rel (%p291) target = $region52
        $region51: #{tpu_custom_call.1} parent=47 // pred_region
          %295 = dma.done %s287, 4096
        $region52: #{tpu_custom_call.1} parent=47 // pred_fallthru
          _
        // Predicated region
        $region53: #{tpu_custom_call.1} parent=47 // pred_check
          %p296 = pneg %p67
        $region54: #{tpu_custom_call.1} parent=47 // pred_check_branch
          %298 = sbr.rel (%p296) target = $region56
        $region55: #{tpu_custom_call.1} parent=47 // pred_region
          %300 = dma.done [#allocation7], 9216
        $region56: #{tpu_custom_call.1} parent=47 // pred_fallthru
          _
        // Predicated region
        $region57: #{tpu_custom_call.1} parent=47 // pred_check
          %p301 = pneg %p130
        $region58: #{tpu_custom_call.1} parent=47 // pred_check_branch
          %303 = sbr.rel (%p301) target = $region60
        $region59: #{tpu_custom_call.1} parent=47 // pred_region
          %305 = dma.done [#allocation7], 9216
        $region60: #{tpu_custom_call.1} parent=47 // pred_fallthru
          _
        %s306 = sand.u32 %s33, 1
        %s307 = scalar_lea.sflag [#allocation4], %s306
        %s308 = sand.u32 %s33, 1
        %s309 = smul.addr %s308, 256
        %s310 = scalar_lea.vmem [#allocation3], %s309
        %p311 = pneg %p46
        %p312 = pneg %p43
        %p313 = pneg %p67
        %p314 = pneg %p64
        %p315 = pneg %p88
        %p316 = pneg %p85
        %p317 = pneg %p109
        %p318 = pneg %p106
        %p319 = pneg %p130
        %p320 = pneg %p127
        %p321 = pneg %p151
        %p322 = pneg %p148
        %p323 = pneg %p172
        %p324 = pneg %p169
        %p325 = pneg %p198
        %p326 = pneg %p195
        %s327 = sand.u32 %s185, 1
        %s328 = scalar_lea.sflag [#allocation5], %s327
        %s329 = sand.u32 %s185, 1
        %s330 = smul.addr %s329, 256
        %s331 = scalar_lea.vmem [#allocation9], %s330
        %v332 = vld [vmem:[%s2] sm:$0x1]
        %v333 = vld [vmem:[%s3] sm:$0x1]
        %v334 = vld [vmem:[%s5] sm:$0x1]
        %v335 = vld [vmem:[%s6] sm:$0x1]
        %v336 = vlaneseq
        %v337 = vshrl.u32 %v336, 7
        %v338 = vadd.s32 %v337, 8
        %vm339 = vcmp.ne.s32.totalorder %v337, 0
        %vm340 = vcmp.ne.s32.totalorder %v338, 0
        %v341 = vsel %vm339, 1, 0
        %v342 = vsel %vm340, 1, 0
        %v343 = vcvt.s32.f32 %v341
        %v344 = vcvt.s32.f32 %v342
        %vm345 = vcmp.ne.s32.totalorder %v337, 15
        %vm346 = vcmp.ne.s32.totalorder %v338, 15
        %v347 = vsel %vm345, 1, 0
        %v348 = vsel %vm346, 1, 0
        %v349 = vcvt.s32.f32 %v347
        %v350 = vcvt.s32.f32 %v348
        %v351 = vld [vmem:[%s290] sm:$0xff]
        %v352 = vld [vmem:[%s290 + $0x8] sm:$0xff]
        %v353 = vld [vmem:[%s290 + $0x10] sm:$0xff]
        %v354 = vld [vmem:[%s290 + $0x18] sm:$0xff]
        %v355 = vld [vmem:[%s290 + $0x20] sm:$0xff]
        %v356 = vld [vmem:[%s290 + $0x28] sm:$0xff]
        %v357 = vld [vmem:[%s290 + $0x30] sm:$0xff]
        %v358 = vld [vmem:[%s290 + $0x38] sm:$0xff]
        %v359 = vld [vmem:[%s290 + $0x40] sm:$0xff]
        %v360 = vld [vmem:[%s290 + $0x48] sm:$0xff]
        %v361 = vld [vmem:[%s290 + $0x50] sm:$0xff]
        %v362 = vld [vmem:[%s290 + $0x58] sm:$0xff]
        %v363 = vld [vmem:[%s290 + $0x60] sm:$0xff]
        %v364 = vld [vmem:[%s290 + $0x68] sm:$0xff]
        %v365 = vrot.slane %v351, 7
        %v366 = vrot.slane %v353, 7
        %v367 = vrot.slane %v355, 7
        %v368 = vrot.slane %v357, 7
        %v369 = vrot.slane %v359, 7
        %v370 = vrot.slane %v361, 7
        %v371 = vrot.slane %v363, 7
        %v372 = vrot.slane %v352, 7
        %v373 = vrot.slane %v354, 7
        %v374 = vrot.slane %v356, 7
        %v375 = vrot.slane %v358, 7
        %v376 = vrot.slane %v360, 7
        %v377 = vrot.slane %v362, 7
        %v378 = vrot.slane %v364, 7
        %vm379 = vcmp.lt.s32.totalorder %v337, 1
        %v380 = vsel %vm379, %v365, %v372
        %v381 = vsel %vm379, %v366, %v373
        %v382 = vsel %vm379, %v367, %v374
        %v383 = vsel %vm379, %v368, %v375
        %v384 = vsel %vm379, %v369, %v376
        %v385 = vsel %vm379, %v370, %v377
        %v386 = vsel %vm379, %v371, %v378
        %v387 = vsel %vm379, %v372, %v365
        %v388 = vsel %vm379, %v373, %v366
        %v389 = vsel %vm379, %v374, %v367
        %v390 = vsel %vm379, %v375, %v368
        %v391 = vsel %vm379, %v376, %v369
        %v392 = vsel %vm379, %v377, %v370
        %v393 = vsel %vm379, %v378, %v371
        %v394 = vmul.f32 0.0, %v343
        %v395 = vmul.f32 0.0, %v344
        %v396 = vmul.f32 %v387, %v343
        %v397 = vmul.f32 %v380, %v344
        %v398 = vmul.f32 %v388, %v343
        %v399 = vmul.f32 %v381, %v344
        %v400 = vmul.f32 %v389, %v343
        %v401 = vmul.f32 %v382, %v344
        %v402 = vmul.f32 %v390, %v343
        %v403 = vmul.f32 %v383, %v344
        %v404 = vmul.f32 %v391, %v343
        %v405 = vmul.f32 %v384, %v344
        %v406 = vmul.f32 %v392, %v343
        %v407 = vmul.f32 %v385, %v344
        %v408 = vmul.f32 %v393, %v343
        %v409 = vmul.f32 %v386, %v344
        %v410 = vpack.c.bf16 %v394, %v394
        %v411 = vpack.c.bf16 %v395, %v395
        %v412 = vpack.c.bf16 %v396, %v396
        %v413 = vpack.c.bf16 %v397, %v397
        %v414 = vpack.c.bf16 %v398, %v398
        %v415 = vpack.c.bf16 %v399, %v399
        %v416 = vpack.c.bf16 %v400, %v400
        %v417 = vpack.c.bf16 %v401, %v401
        %v418 = vpack.c.bf16 %v402, %v402
        %v419 = vpack.c.bf16 %v403, %v403
        %v420 = vpack.c.bf16 %v404, %v404
        %v421 = vpack.c.bf16 %v405, %v405
        %v422 = vpack.c.bf16 %v406, %v406
        %v423 = vpack.c.bf16 %v407, %v407
        %v424 = vpack.c.bf16 %v408, %v408
        %v425 = vpack.c.bf16 %v409, %v409
        %v426 = vrot.slane %v351, 1
        %v427 = vrot.slane %v353, 1
        %v428 = vrot.slane %v355, 1
        %v429 = vrot.slane %v357, 1
        %v430 = vrot.slane %v359, 1
        %v431 = vrot.slane %v361, 1
        %v432 = vrot.slane %v363, 1
        %v433 = vrot.slane %v352, 1
        %v434 = vrot.slane %v354, 1
        %v435 = vrot.slane %v356, 1
        %v436 = vrot.slane %v358, 1
        %v437 = vrot.slane %v360, 1
        %v438 = vrot.slane %v362, 1
        %v439 = vrot.slane %v364, 1
        %vm440 = vcmp.lt.s32.totalorder %v337, 7
        %v441 = vsel %vm440, %v426, %v433
        %v442 = vsel %vm440, %v427, %v434
        %v443 = vsel %vm440, %v428, %v435
        %v444 = vsel %vm440, %v429, %v436
        %v445 = vsel %vm440, %v430, %v437
        %v446 = vsel %vm440, %v431, %v438
        %v447 = vsel %vm440, %v432, %v439
        %v448 = vsel %vm440, %v433, %v426
        %v449 = vsel %vm440, %v434, %v427
        %v450 = vsel %vm440, %v435, %v428
        %v451 = vsel %vm440, %v436, %v429
        %v452 = vsel %vm440, %v437, %v430
        %v453 = vsel %vm440, %v438, %v431
        %v454 = vsel %vm440, %v439, %v432
        %v455 = vmul.f32 0.0, %v349
        %v456 = vmul.f32 0.0, %v350
        %v457 = vmul.f32 %v441, %v349
        %v458 = vmul.f32 %v448, %v350
        %v459 = vmul.f32 %v442, %v349
        %v460 = vmul.f32 %v449, %v350
        %v461 = vmul.f32 %v443, %v349
        %v462 = vmul.f32 %v450, %v350
        %v463 = vmul.f32 %v444, %v349
        %v464 = vmul.f32 %v451, %v350
        %v465 = vmul.f32 %v445, %v349
        %v466 = vmul.f32 %v452, %v350
        %v467 = vmul.f32 %v446, %v349
        %v468 = vmul.f32 %v453, %v350
        %v469 = vmul.f32 %v447, %v349
        %v470 = vmul.f32 %v454, %v350
        %v471 = vpack.c.bf16 %v455, %v455
        %v472 = vpack.c.bf16 %v456, %v456
        %v473 = vpack.c.bf16 %v457, %v457
        %v474 = vpack.c.bf16 %v458, %v458
        %v475 = vpack.c.bf16 %v459, %v459
        %v476 = vpack.c.bf16 %v460, %v460
        %v477 = vpack.c.bf16 %v461, %v461
        %v478 = vpack.c.bf16 %v462, %v462
        %v479 = vpack.c.bf16 %v463, %v463
        %v480 = vpack.c.bf16 %v464, %v464
        %v481 = vpack.c.bf16 %v465, %v465
        %v482 = vpack.c.bf16 %v466, %v466
        %v483 = vpack.c.bf16 %v467, %v467
        %v484 = vpack.c.bf16 %v468, %v468
        %v485 = vpack.c.bf16 %v469, %v469
        %v486 = vpack.c.bf16 %v470, %v470
        %v487 = vpack.c.bf16 0.0, 0.0
        %v488 = vpack.c.bf16 %v351, %v351
        %v489 = vpack.c.bf16 %v352, %v352
        %v490 = vpack.c.bf16 %v353, %v353
        %v491 = vpack.c.bf16 %v354, %v354
        %v492 = vpack.c.bf16 %v355, %v355
        %v493 = vpack.c.bf16 %v356, %v356
        %v494 = vpack.c.bf16 %v357, %v357
        %v495 = vpack.c.bf16 %v358, %v358
        %v496 = vpack.c.bf16 %v359, %v359
        %v497 = vpack.c.bf16 %v360, %v360
        %v498 = vpack.c.bf16 %v361, %v361
        %v499 = vpack.c.bf16 %v362, %v362
        %v500 = vpack.c.bf16 %v363, %v363
        %v501 = vpack.c.bf16 %v364, %v364
        %v518 = vunpack.c.l.b16 %v410
        %v519 = vunpack.c.l.b16 %v411
        %v520 = vunpack.c.l.b16 %v412
        %v521 = vunpack.c.l.b16 %v413
        %v522 = vunpack.c.l.b16 %v414
        %v523 = vunpack.c.l.b16 %v415
        %v524 = vunpack.c.l.b16 %v416
        %v525 = vunpack.c.l.b16 %v417
        %v526 = vunpack.c.l.b16 %v418
        %v527 = vunpack.c.l.b16 %v419
        %v528 = vunpack.c.l.b16 %v420
        %v529 = vunpack.c.l.b16 %v421
        %v530 = vunpack.c.l.b16 %v422
        %v531 = vunpack.c.l.b16 %v423
        %v532 = vunpack.c.l.b16 %v424
        %v533 = vunpack.c.l.b16 %v425
        %v534 = vpack.c.b16 %v519, %v518
        %v535 = vpack.c.b16 %v521, %v520
        %v536 = vpack.c.b16 %v523, %v522
        %v537 = vpack.c.b16 %v525, %v524
        %v538 = vpack.c.b16 %v527, %v526
        %v539 = vpack.c.b16 %v529, %v528
        %v540 = vpack.c.b16 %v531, %v530
        %v541 = vpack.c.b16 %v533, %v532
        %v565 = vunpack.c.l.b16 %v487
        %v566 = vunpack.c.l.b16 %v488
        %v567 = vunpack.c.l.b16 %v489
        %v568 = vunpack.c.l.b16 %v490
        %v569 = vunpack.c.l.b16 %v491
        %v570 = vunpack.c.l.b16 %v492
        %v571 = vunpack.c.l.b16 %v493
        %v572 = vunpack.c.l.b16 %v494
        %v573 = vunpack.c.l.b16 %v495
        %v574 = vunpack.c.l.b16 %v496
        %v575 = vunpack.c.l.b16 %v497
        %v576 = vunpack.c.l.b16 %v498
        %v577 = vunpack.c.l.b16 %v499
        %v578 = vunpack.c.l.b16 %v500
        %v579 = vunpack.c.l.b16 %v501
        %v580 = vpack.c.b16 %v565, %v565
        %v581 = vpack.c.b16 %v567, %v566
        %v582 = vpack.c.b16 %v569, %v568
        %v583 = vpack.c.b16 %v571, %v570
        %v584 = vpack.c.b16 %v573, %v572
        %v585 = vpack.c.b16 %v575, %v574
        %v586 = vpack.c.b16 %v577, %v576
        %v587 = vpack.c.b16 %v579, %v578
        %v612 = vunpack.c.l.b16 %v471
        %v613 = vunpack.c.l.b16 %v472
        %v614 = vunpack.c.l.b16 %v473
        %v615 = vunpack.c.l.b16 %v474
        %v616 = vunpack.c.l.b16 %v475
        %v617 = vunpack.c.l.b16 %v476
        %v618 = vunpack.c.l.b16 %v477
        %v619 = vunpack.c.l.b16 %v478
        %v620 = vunpack.c.l.b16 %v479
        %v621 = vunpack.c.l.b16 %v480
        %v622 = vunpack.c.l.b16 %v481
        %v623 = vunpack.c.l.b16 %v482
        %v624 = vunpack.c.l.b16 %v483
        %v625 = vunpack.c.l.b16 %v484
        %v626 = vunpack.c.l.b16 %v485
        %v627 = vunpack.c.l.b16 %v486
        %v628 = vpack.c.b16 %v613, %v612
        %v629 = vpack.c.b16 %v615, %v614
        %v630 = vpack.c.b16 %v617, %v616
        %v631 = vpack.c.b16 %v619, %v618
        %v632 = vpack.c.b16 %v621, %v620
        %v633 = vpack.c.b16 %v623, %v622
        %v634 = vpack.c.b16 %v625, %v624
        %v635 = vpack.c.b16 %v627, %v626
        %v644 = vld [vmem:[#allocation6] sm:$0xf]
        %v645 = vld [vmem:[#allocation6 + $0x4] sm:$0xf]
        %v646 = vld [vmem:[#allocation6 + $0x8] sm:$0xf]
        %v647 = vld [vmem:[#allocation6 + $0xc] sm:$0xf]
        %v648 = vld [vmem:[#allocation6 + $0x10] sm:$0xf]
        %v649 = vld [vmem:[#allocation6 + $0x14] sm:$0xf]
        %v650 = vld [vmem:[#allocation6 + $0x18] sm:$0xf]
        %v651 = vld [vmem:[#allocation6 + $0x1c] sm:$0xf]
        %v652 = vld [vmem:[#allocation6 + $0x20] sm:$0xf]
        %v653 = vld [vmem:[#allocation6 + $0x24] sm:$0xf]
        %v654 = vld [vmem:[#allocation6 + $0x28] sm:$0xf]
        %v655 = vld [vmem:[#allocation6 + $0x2c] sm:$0xf]
        %v656 = vld [vmem:[#allocation6 + $0x30] sm:$0xf]
        %v657 = vld [vmem:[#allocation6 + $0x34] sm:$0xf]
        %v658 = vld [vmem:[#allocation6 + $0x38] sm:$0xf]
        %v659 = vld [vmem:[#allocation6 + $0x3c] sm:$0xf]
        %v660 = vld [vmem:[#allocation6 + $0x40] sm:$0xf]
        %v661 = vld [vmem:[#allocation6 + $0x44] sm:$0xf]
        %v662 = vld [vmem:[#allocation6 + $0x48] sm:$0xf]
        %v663 = vld [vmem:[#allocation6 + $0x4c] sm:$0xf]
        %v664 = vld [vmem:[#allocation6 + $0x50] sm:$0xf]
        %v665 = vld [vmem:[#allocation6 + $0x54] sm:$0xf]
        %v666 = vld [vmem:[#allocation6 + $0x58] sm:$0xf]
        %v667 = vld [vmem:[#allocation6 + $0x5c] sm:$0xf]
        %v668 = vld [vmem:[#allocation6 + $0x60] sm:$0xf]
        %v669 = vld [vmem:[#allocation6 + $0x64] sm:$0xf]
        %v670 = vld [vmem:[#allocation6 + $0x68] sm:$0xf]
        %v671 = vld [vmem:[#allocation6 + $0x6c] sm:$0xf]
        %v672 = vld [vmem:[#allocation6 + $0x70] sm:$0xf]
        %v673 = vld [vmem:[#allocation6 + $0x74] sm:$0xf]
        %v674 = vld [vmem:[#allocation6 + $0x78] sm:$0xf]
        %v675 = vld [vmem:[#allocation6 + $0x7c] sm:$0xf]
        %v676 = vld [vmem:[#allocation6 + $0x80] sm:$0xf]
        %v677 = vld [vmem:[#allocation6 + $0x84] sm:$0xf]
        %v678 = vld [vmem:[#allocation6 + $0x88] sm:$0xf]
        %v679 = vld [vmem:[#allocation6 + $0x8c] sm:$0xf]
        %v680 = vld [vmem:[#allocation6 + $0x90] sm:$0xf]
        %v681 = vld [vmem:[#allocation6 + $0x94] sm:$0xf]
        %v682 = vld [vmem:[#allocation6 + $0x98] sm:$0xf]
        %v683 = vld [vmem:[#allocation6 + $0x9c] sm:$0xf]
        %v684 = vld [vmem:[#allocation6 + $0xa0] sm:$0xf]
        %v685 = vld [vmem:[#allocation6 + $0xa4] sm:$0xf]
        %v686 = vld [vmem:[#allocation6 + $0xa8] sm:$0xf]
        %v687 = vld [vmem:[#allocation6 + $0xac] sm:$0xf]
        %v688 = vld [vmem:[#allocation6 + $0xb0] sm:$0xf]
        %v689 = vld [vmem:[#allocation6 + $0xb4] sm:$0xf]
        %v690 = vld [vmem:[#allocation6 + $0xb8] sm:$0xf]
        %v691 = vld [vmem:[#allocation6 + $0xbc] sm:$0xf]
        %v692 = vld [vmem:[%s290 + $0x70] sm:$0xff]
        %v693 = vld [vmem:[%s290 + $0x78] sm:$0xff]
        %v694 = vrot.slane %v692, 7
        %v695 = vrot.slane %v693, 7
        %v696 = vsel %vm379, %v694, %v695
        %v697 = vsel %vm379, %v695, %v694
        %v698 = vmul.f32 %v697, %v343
        %v699 = vmul.f32 %v696, %v344
        %v700 = vpack.c.bf16 %v698, %v698
        %v701 = vpack.c.bf16 %v699, %v699
        %v702 = vrot.slane %v692, 1
        %v703 = vrot.slane %v693, 1
        %v704 = vsel %vm440, %v702, %v703
        %v705 = vsel %vm440, %v703, %v702
        %v706 = vmul.f32 %v704, %v349
        %v707 = vmul.f32 %v705, %v350
        %v708 = vpack.c.bf16 %v706, %v706
        %v709 = vpack.c.bf16 %v707, %v707
        %v710 = vpack.c.bf16 %v692, %v692
        %v711 = vpack.c.bf16 %v693, %v693
        %v714 = vunpack.c.l.b16 %v700
        %v715 = vunpack.c.l.b16 %v701
        %v716 = vpack.c.b16 %v715, %v714
        %v720 = vunpack.c.l.b16 %v710
        %v721 = vunpack.c.l.b16 %v711
        %v722 = vpack.c.b16 %v721, %v720
        %v726 = vunpack.c.l.b16 %v708
        %v727 = vunpack.c.l.b16 %v709
        %v728 = vpack.c.b16 %v727, %v726
        %s730 = scalar_lea.vmem [#allocation6], 192
        %v731 = vld [vmem:[%s730] sm:$0xf]
        %v732 = vld [vmem:[%s730 + $0x4] sm:$0xf]
        %v733 = vld [vmem:[%s730 + $0x8] sm:$0xf]
        %v734 = vld [vmem:[%s730 + $0xc] sm:$0xf]
        %v735 = vld [vmem:[%s730 + $0x10] sm:$0xf]
        %v736 = vld [vmem:[%s730 + $0x14] sm:$0xf]
        %v737 = vld [vmem:[%s730 + $0x18] sm:$0xf]
        %v738 = vld [vmem:[%s730 + $0x1c] sm:$0xf]
        %v739 = vld [vmem:[%s730 + $0x20] sm:$0xf]
        %v740 = vld [vmem:[%s730 + $0x24] sm:$0xf]
        %v741 = vld [vmem:[%s730 + $0x28] sm:$0xf]
        %v742 = vld [vmem:[%s730 + $0x2c] sm:$0xf]
        %v743 = vld [vmem:[%s730 + $0x30] sm:$0xf]
        %v744 = vld [vmem:[%s730 + $0x34] sm:$0xf]
        %v745 = vld [vmem:[%s730 + $0x38] sm:$0xf]
        %v746 = vld [vmem:[%s730 + $0x3c] sm:$0xf]
        %v747 = vld [vmem:[%s730 + $0x40] sm:$0xf]
        %v748 = vld [vmem:[%s730 + $0x44] sm:$0xf]
        %v749 = vld [vmem:[%s730 + $0x48] sm:$0xf]
        %v750 = vld [vmem:[%s730 + $0x4c] sm:$0xf]
        %v751 = vld [vmem:[%s730 + $0x50] sm:$0xf]
        %v752 = vld [vmem:[%s730 + $0x54] sm:$0xf]
        %v753 = vld [vmem:[%s730 + $0x58] sm:$0xf]
        %v754 = vld [vmem:[%s730 + $0x5c] sm:$0xf]
        %v755 = vld [vmem:[%s730 + $0x60] sm:$0xf]
        %v756 = vld [vmem:[%s730 + $0x64] sm:$0xf]
        %v757 = vld [vmem:[%s730 + $0x68] sm:$0xf]
        %v758 = vld [vmem:[%s730 + $0x6c] sm:$0xf]
        %v759 = vld [vmem:[%s730 + $0x70] sm:$0xf]
        %v760 = vld [vmem:[%s730 + $0x74] sm:$0xf]
        %v761 = vld [vmem:[%s730 + $0x78] sm:$0xf]
        %v762 = vld [vmem:[%s730 + $0x7c] sm:$0xf]
        %v763 = vld [vmem:[%s730 + $0x80] sm:$0xf]
        %v764 = vld [vmem:[%s730 + $0x84] sm:$0xf]
        %v765 = vld [vmem:[%s730 + $0x88] sm:$0xf]
        %v766 = vld [vmem:[%s730 + $0x8c] sm:$0xf]
        %v767 = vld [vmem:[%s730 + $0x90] sm:$0xf]
        %v768 = vld [vmem:[%s730 + $0x94] sm:$0xf]
        %v769 = vld [vmem:[%s730 + $0x98] sm:$0xf]
        %v770 = vld [vmem:[%s730 + $0x9c] sm:$0xf]
        %v771 = vld [vmem:[%s730 + $0xa0] sm:$0xf]
        %v772 = vld [vmem:[%s730 + $0xa4] sm:$0xf]
        %v773 = vld [vmem:[%s730 + $0xa8] sm:$0xf]
        %v774 = vld [vmem:[%s730 + $0xac] sm:$0xf]
        %v775 = vld [vmem:[%s730 + $0xb0] sm:$0xf]
        %v776 = vld [vmem:[%s730 + $0xb4] sm:$0xf]
        %v777 = vld [vmem:[%s730 + $0xb8] sm:$0xf]
        %v778 = vld [vmem:[%s730 + $0xbc] sm:$0xf]
        %v827 = vunpack.c.l.b16 %v731
        %v828 = vunpack.c.l.b16 %v732
        %v829 = vunpack.c.l.b16 %v733
        %v830 = vunpack.c.l.b16 %v734
        %v831 = vunpack.c.l.b16 %v735
        %v832 = vunpack.c.l.b16 %v736
        %v833 = vunpack.c.l.b16 %v737
        %v834 = vunpack.c.l.b16 %v738
        %v835 = vunpack.c.l.b16 %v739
        %v836 = vunpack.c.l.b16 %v740
        %v837 = vunpack.c.l.b16 %v741
        %v838 = vunpack.c.l.b16 %v742
        %v839 = vunpack.c.l.b16 %v743
        %v840 = vunpack.c.l.b16 %v744
        %v841 = vunpack.c.l.b16 %v745
        %v842 = vunpack.c.l.b16 %v746
        %v843 = vunpack.c.l.b16 %v747
        %v844 = vunpack.c.l.b16 %v748
        %v845 = vunpack.c.l.b16 %v749
        %v846 = vunpack.c.l.b16 %v750
        %v847 = vunpack.c.l.b16 %v751
        %v848 = vunpack.c.l.b16 %v752
        %v849 = vunpack.c.l.b16 %v753
        %v850 = vunpack.c.l.b16 %v754
        %v851 = vunpack.c.l.b16 %v755
        %v852 = vunpack.c.l.b16 %v756
        %v853 = vunpack.c.l.b16 %v757
        %v854 = vunpack.c.l.b16 %v758
        %v855 = vunpack.c.l.b16 %v759
        %v856 = vunpack.c.l.b16 %v760
        %v857 = vunpack.c.l.b16 %v761
        %v858 = vunpack.c.l.b16 %v762
        %v859 = vunpack.c.l.b16 %v763
        %v860 = vunpack.c.l.b16 %v764
        %v861 = vunpack.c.l.b16 %v765
        %v862 = vunpack.c.l.b16 %v766
        %v863 = vunpack.c.l.b16 %v767
        %v864 = vunpack.c.l.b16 %v768
        %v865 = vunpack.c.l.b16 %v769
        %v866 = vunpack.c.l.b16 %v770
        %v867 = vunpack.c.l.b16 %v771
        %v868 = vunpack.c.l.b16 %v772
        %v869 = vunpack.c.l.b16 %v773
        %v870 = vunpack.c.l.b16 %v774
        %v871 = vunpack.c.l.b16 %v775
        %v872 = vunpack.c.l.b16 %v776
        %v873 = vunpack.c.l.b16 %v777
        %v874 = vunpack.c.l.b16 %v778
        %v875 = vpack.c.b16 %v828, %v827
        %v876 = vpack.c.b16 %v830, %v829
        %v877 = vpack.c.b16 %v832, %v831
        %v878 = vpack.c.b16 %v834, %v833
        %v879 = vpack.c.b16 %v836, %v835
        %v880 = vpack.c.b16 %v838, %v837
        %v881 = vpack.c.b16 %v840, %v839
        %v882 = vpack.c.b16 %v842, %v841
        %v883 = vpack.c.b16 %v844, %v843
        %v884 = vpack.c.b16 %v846, %v845
        %v885 = vpack.c.b16 %v848, %v847
        %v886 = vpack.c.b16 %v850, %v849
        %v887 = vpack.c.b16 %v852, %v851
        %v888 = vpack.c.b16 %v854, %v853
        %v889 = vpack.c.b16 %v856, %v855
        %v890 = vpack.c.b16 %v858, %v857
        %v891 = vpack.c.b16 %v860, %v859
        %v892 = vpack.c.b16 %v862, %v861
        %v893 = vpack.c.b16 %v864, %v863
        %v894 = vpack.c.b16 %v866, %v865
        %v895 = vpack.c.b16 %v868, %v867
        %v896 = vpack.c.b16 %v870, %v869
        %v897 = vpack.c.b16 %v872, %v871
        %v898 = vpack.c.b16 %v874, %v873
        %923 = vmatpush.bf16.msra.mxu0 %v882
        %924 = vmatpush.bf16.msra.mxu0 %v881
        %925 = vmatpush.bf16.msra.mxu0 %v880
        %926 = vmatpush.bf16.msra.mxu0 %v879
        %927 = vmatpush.bf16.msra.mxu0 %v878
        %928 = vmatpush.bf16.msra.mxu0 %v877
        %929 = vmatpush.bf16.msra.mxu0 %v876
        %930 = vmatpush.bf16.msra.mxu0 %v875
        %931 = vmatmul.bf16.gmra.mxu0 %v535
        %v932 = vpop.f32.mrf.mxu0
        %v933 = vadd.f32 0.0, %v932
        %v934 = vpop.f32.mrf.mxu0
        %v935 = vadd.f32 0.0, %v934
        %936 = vmatmul.bf16.gmra.mxu0 %v536
        %v937 = vpop.f32.mrf.mxu0
        %v938 = vadd.f32 0.0, %v937
        %v939 = vpop.f32.mrf.mxu0
        %v940 = vadd.f32 0.0, %v939
        %941 = vmatmul.bf16.gmra.mxu0 %v537
        %v942 = vpop.f32.mrf.mxu0
        %v943 = vadd.f32 0.0, %v942
        %v944 = vpop.f32.mrf.mxu0
        %v945 = vadd.f32 0.0, %v944
        %946 = vmatmul.bf16.gmra.mxu0 %v538
        %v947 = vpop.f32.mrf.mxu0
        %v948 = vadd.f32 0.0, %v947
        %v949 = vpop.f32.mrf.mxu0
        %v950 = vadd.f32 0.0, %v949
        %951 = vmatmul.bf16.gmra.mxu0 %v539
        %v952 = vpop.f32.mrf.mxu0
        %v953 = vadd.f32 0.0, %v952
        %v954 = vpop.f32.mrf.mxu0
        %v955 = vadd.f32 0.0, %v954
        %956 = vmatmul.bf16.gmra.mxu0 %v540
        %v957 = vpop.f32.mrf.mxu0
        %v958 = vadd.f32 0.0, %v957
        %v959 = vpop.f32.mrf.mxu0
        %v960 = vadd.f32 0.0, %v959
        %961 = vmatmul.bf16.gmra.mxu0 %v541
        %v962 = vpop.f32.mrf.mxu0
        %v963 = vadd.f32 0.0, %v962
        %v964 = vpop.f32.mrf.mxu0
        %v965 = vadd.f32 0.0, %v964
        %966 = vmatmul.bf16.gmra.mxu0 %v716
        %v967 = vpop.f32.mrf.mxu0
        %v968 = vadd.f32 0.0, %v967
        %v969 = vpop.f32.mrf.mxu0
        %v970 = vadd.f32 0.0, %v969
        %971 = vdwg.mxu0
        %972 = vmatpush.bf16.msra.mxu0 %v890
        %973 = vmatpush.bf16.msra.mxu0 %v889
        %974 = vmatpush.bf16.msra.mxu0 %v888
        %975 = vmatpush.bf16.msra.mxu0 %v887
        %976 = vmatpush.bf16.msra.mxu0 %v886
        %977 = vmatpush.bf16.msra.mxu0 %v885
        %978 = vmatpush.bf16.msra.mxu0 %v884
        %979 = vmatpush.bf16.msra.mxu0 %v883
        %980 = vmatmul.bf16.gmra.mxu0 %v581
        %v981 = vpop.f32.mrf.mxu0
        %v982 = vadd.f32 %v933, %v981
        %v983 = vpop.f32.mrf.mxu0
        %v984 = vadd.f32 %v935, %v983
        %985 = vmatmul.bf16.gmra.mxu0 %v582
        %v986 = vpop.f32.mrf.mxu0
        %v987 = vadd.f32 %v938, %v986
        %v988 = vpop.f32.mrf.mxu0
        %v989 = vadd.f32 %v940, %v988
        %990 = vmatmul.bf16.gmra.mxu0 %v583
        %v991 = vpop.f32.mrf.mxu0
        %v992 = vadd.f32 %v943, %v991
        %v993 = vpop.f32.mrf.mxu0
        %v994 = vadd.f32 %v945, %v993
        %995 = vmatmul.bf16.gmra.mxu0 %v584
        %v996 = vpop.f32.mrf.mxu0
        %v997 = vadd.f32 %v948, %v996
        %v998 = vpop.f32.mrf.mxu0
        %v999 = vadd.f32 %v950, %v998
        %1000 = vmatmul.bf16.gmra.mxu0 %v585
        %v1001 = vpop.f32.mrf.mxu0
        %v1002 = vadd.f32 %v953, %v1001
        %v1003 = vpop.f32.mrf.mxu0
        %v1004 = vadd.f32 %v955, %v1003
        %1005 = vmatmul.bf16.gmra.mxu0 %v586
        %v1006 = vpop.f32.mrf.mxu0
        %v1007 = vadd.f32 %v958, %v1006
        %v1008 = vpop.f32.mrf.mxu0
        %v1009 = vadd.f32 %v960, %v1008
        %1010 = vmatmul.bf16.gmra.mxu0 %v587
        %v1011 = vpop.f32.mrf.mxu0
        %v1012 = vadd.f32 %v963, %v1011
        %v1013 = vpop.f32.mrf.mxu0
        %v1014 = vadd.f32 %v965, %v1013
        %1015 = vmatmul.bf16.gmra.mxu0 %v722
        %v1016 = vpop.f32.mrf.mxu0
        %v1017 = vadd.f32 %v968, %v1016
        %v1018 = vpop.f32.mrf.mxu0
        %v1019 = vadd.f32 %v970, %v1018
        %1020 = vdwg.mxu0
        %1021 = vmatpush.bf16.msra.mxu0 %v898
        %1022 = vmatpush.bf16.msra.mxu0 %v897
        %1023 = vmatpush.bf16.msra.mxu0 %v896
        %1024 = vmatpush.bf16.msra.mxu0 %v895
        %1025 = vmatpush.bf16.msra.mxu0 %v894
        %1026 = vmatpush.bf16.msra.mxu0 %v893
        %1027 = vmatpush.bf16.msra.mxu0 %v892
        %1028 = vmatpush.bf16.msra.mxu0 %v891
        %1029 = vmatmul.bf16.gmra.mxu0 %v629
        %v1030 = vpop.f32.mrf.mxu0
        %v1031 = vadd.f32 %v982, %v1030
        %v1032 = vpop.f32.mrf.mxu0
        %v1033 = vadd.f32 %v984, %v1032
        %1034 = vmatmul.bf16.gmra.mxu0 %v630
        %v1035 = vpop.f32.mrf.mxu0
        %v1036 = vadd.f32 %v987, %v1035
        %v1037 = vpop.f32.mrf.mxu0
        %v1038 = vadd.f32 %v989, %v1037
        %1039 = vmatmul.bf16.gmra.mxu0 %v631
        %v1040 = vpop.f32.mrf.mxu0
        %v1041 = vadd.f32 %v992, %v1040
        %v1042 = vpop.f32.mrf.mxu0
        %v1043 = vadd.f32 %v994, %v1042
        %1044 = vmatmul.bf16.gmra.mxu0 %v632
        %v1045 = vpop.f32.mrf.mxu0
        %v1046 = vadd.f32 %v997, %v1045
        %v1047 = vpop.f32.mrf.mxu0
        %v1048 = vadd.f32 %v999, %v1047
        %1049 = vmatmul.bf16.gmra.mxu0 %v633
        %v1050 = vpop.f32.mrf.mxu0
        %v1051 = vadd.f32 %v1002, %v1050
        %v1052 = vpop.f32.mrf.mxu0
        %v1053 = vadd.f32 %v1004, %v1052
        %1054 = vmatmul.bf16.gmra.mxu0 %v634
        %v1055 = vpop.f32.mrf.mxu0
        %v1056 = vadd.f32 %v1007, %v1055
        %v1057 = vpop.f32.mrf.mxu0
        %v1058 = vadd.f32 %v1009, %v1057
        %1059 = vmatmul.bf16.gmra.mxu0 %v635
        %v1060 = vpop.f32.mrf.mxu0
        %v1061 = vadd.f32 %v1012, %v1060
        %v1062 = vpop.f32.mrf.mxu0
        %v1063 = vadd.f32 %v1014, %v1062
        %1064 = vmatmul.bf16.gmra.mxu0 %v728
        %v1065 = vpop.f32.mrf.mxu0
        %v1066 = vadd.f32 %v1017, %v1065
        %v1067 = vpop.f32.mrf.mxu0
        %v1068 = vadd.f32 %v1019, %v1067
        %1069 = vdwg.mxu0
        %v1118 = vunpack.c.l.b16 %v644
        %v1119 = vunpack.c.l.b16 %v645
        %v1120 = vunpack.c.l.b16 %v646
        %v1121 = vunpack.c.l.b16 %v647
        %v1122 = vunpack.c.l.b16 %v648
        %v1123 = vunpack.c.l.b16 %v649
        %v1124 = vunpack.c.l.b16 %v650
        %v1125 = vunpack.c.l.b16 %v651
        %v1126 = vunpack.c.l.b16 %v652
        %v1127 = vunpack.c.l.b16 %v653
        %v1128 = vunpack.c.l.b16 %v654
        %v1129 = vunpack.c.l.b16 %v655
        %v1130 = vunpack.c.l.b16 %v656
        %v1131 = vunpack.c.l.b16 %v657
        %v1132 = vunpack.c.l.b16 %v658
        %v1133 = vunpack.c.l.b16 %v659
        %v1134 = vunpack.c.l.b16 %v660
        %v1135 = vunpack.c.l.b16 %v661
        %v1136 = vunpack.c.l.b16 %v662
        %v1137 = vunpack.c.l.b16 %v663
        %v1138 = vunpack.c.l.b16 %v664
        %v1139 = vunpack.c.l.b16 %v665
        %v1140 = vunpack.c.l.b16 %v666
        %v1141 = vunpack.c.l.b16 %v667
        %v1142 = vunpack.c.l.b16 %v668
        %v1143 = vunpack.c.l.b16 %v669
        %v1144 = vunpack.c.l.b16 %v670
        %v1145 = vunpack.c.l.b16 %v671
        %v1146 = vunpack.c.l.b16 %v672
        %v1147 = vunpack.c.l.b16 %v673
        %v1148 = vunpack.c.l.b16 %v674
        %v1149 = vunpack.c.l.b16 %v675
        %v1150 = vunpack.c.l.b16 %v676
        %v1151 = vunpack.c.l.b16 %v677
        %v1152 = vunpack.c.l.b16 %v678
        %v1153 = vunpack.c.l.b16 %v679
        %v1154 = vunpack.c.l.b16 %v680
        %v1155 = vunpack.c.l.b16 %v681
        %v1156 = vunpack.c.l.b16 %v682
        %v1157 = vunpack.c.l.b16 %v683
        %v1158 = vunpack.c.l.b16 %v684
        %v1159 = vunpack.c.l.b16 %v685
        %v1160 = vunpack.c.l.b16 %v686
        %v1161 = vunpack.c.l.b16 %v687
        %v1162 = vunpack.c.l.b16 %v688
        %v1163 = vunpack.c.l.b16 %v689
        %v1164 = vunpack.c.l.b16 %v690
        %v1165 = vunpack.c.l.b16 %v691
        %v1166 = vpack.c.b16 %v1119, %v1118
        %v1167 = vpack.c.b16 %v1121, %v1120
        %v1168 = vpack.c.b16 %v1123, %v1122
        %v1169 = vpack.c.b16 %v1125, %v1124
        %v1170 = vpack.c.b16 %v1127, %v1126
        %v1171 = vpack.c.b16 %v1129, %v1128
        %v1172 = vpack.c.b16 %v1131, %v1130
        %v1173 = vpack.c.b16 %v1133, %v1132
        %v1174 = vpack.c.b16 %v1135, %v1134
        %v1175 = vpack.c.b16 %v1137, %v1136
        %v1176 = vpack.c.b16 %v1139, %v1138
        %v1177 = vpack.c.b16 %v1141, %v1140
        %v1178 = vpack.c.b16 %v1143, %v1142
        %v1179 = vpack.c.b16 %v1145, %v1144
        %v1180 = vpack.c.b16 %v1147, %v1146
        %v1181 = vpack.c.b16 %v1149, %v1148
        %v1182 = vpack.c.b16 %v1151, %v1150
        %v1183 = vpack.c.b16 %v1153, %v1152
        %v1184 = vpack.c.b16 %v1155, %v1154
        %v1185 = vpack.c.b16 %v1157, %v1156
        %v1186 = vpack.c.b16 %v1159, %v1158
        %v1187 = vpack.c.b16 %v1161, %v1160
        %v1188 = vpack.c.b16 %v1163, %v1162
        %v1189 = vpack.c.b16 %v1165, %v1164
        %1214 = vmatpush.bf16.msra.mxu0 %v1173
        %1215 = vmatpush.bf16.msra.mxu0 %v1172
        %1216 = vmatpush.bf16.msra.mxu0 %v1171
        %1217 = vmatpush.bf16.msra.mxu0 %v1170
        %1218 = vmatpush.bf16.msra.mxu0 %v1169
        %1219 = vmatpush.bf16.msra.mxu0 %v1168
        %1220 = vmatpush.bf16.msra.mxu0 %v1167
        %1221 = vmatpush.bf16.msra.mxu0 %v1166
        %1222 = vmatmul.bf16.gmra.mxu0 %v534
        %v1223 = vpop.f32.mrf.mxu0
        %v1224 = vadd.f32 %v1031, %v1223
        %v1225 = vpop.f32.mrf.mxu0
        %v1226 = vadd.f32 %v1033, %v1225
        %1227 = vmatmul.bf16.gmra.mxu0 %v535
        %v1228 = vpop.f32.mrf.mxu0
        %v1229 = vadd.f32 %v1036, %v1228
        %v1230 = vpop.f32.mrf.mxu0
        %v1231 = vadd.f32 %v1038, %v1230
        %1232 = vmatmul.bf16.gmra.mxu0 %v536
        %v1233 = vpop.f32.mrf.mxu0
        %v1234 = vadd.f32 %v1041, %v1233
        %v1235 = vpop.f32.mrf.mxu0
        %v1236 = vadd.f32 %v1043, %v1235
        %1237 = vmatmul.bf16.gmra.mxu0 %v537
        %v1238 = vpop.f32.mrf.mxu0
        %v1239 = vadd.f32 %v1046, %v1238
        %v1240 = vpop.f32.mrf.mxu0
        %v1241 = vadd.f32 %v1048, %v1240
        %1242 = vmatmul.bf16.gmra.mxu0 %v538
        %v1243 = vpop.f32.mrf.mxu0
        %v1244 = vadd.f32 %v1051, %v1243
        %v1245 = vpop.f32.mrf.mxu0
        %v1246 = vadd.f32 %v1053, %v1245
        %1247 = vmatmul.bf16.gmra.mxu0 %v539
        %v1248 = vpop.f32.mrf.mxu0
        %v1249 = vadd.f32 %v1056, %v1248
        %v1250 = vpop.f32.mrf.mxu0
        %v1251 = vadd.f32 %v1058, %v1250
        %1252 = vmatmul.bf16.gmra.mxu0 %v540
        %v1253 = vpop.f32.mrf.mxu0
        %v1254 = vadd.f32 %v1061, %v1253
        %v1255 = vpop.f32.mrf.mxu0
        %v1256 = vadd.f32 %v1063, %v1255
        %1257 = vmatmul.bf16.gmra.mxu0 %v541
        %v1258 = vpop.f32.mrf.mxu0
        %v1259 = vadd.f32 %v1066, %v1258
        %v1260 = vpop.f32.mrf.mxu0
        %v1261 = vadd.f32 %v1068, %v1260
        %1262 = vdwg.mxu0
        %1263 = vmatpush.bf16.msra.mxu0 %v1181
        %1264 = vmatpush.bf16.msra.mxu0 %v1180
        %1265 = vmatpush.bf16.msra.mxu0 %v1179
        %1266 = vmatpush.bf16.msra.mxu0 %v1178
        %1267 = vmatpush.bf16.msra.mxu0 %v1177
        %1268 = vmatpush.bf16.msra.mxu0 %v1176
        %1269 = vmatpush.bf16.msra.mxu0 %v1175
        %1270 = vmatpush.bf16.msra.mxu0 %v1174
        %1271 = vmatmul.bf16.gmra.mxu0 %v580
        %v1272 = vpop.f32.mrf.mxu0
        %v1273 = vadd.f32 %v1224, %v1272
        %v1274 = vpop.f32.mrf.mxu0
        %v1275 = vadd.f32 %v1226, %v1274
        %1276 = vmatmul.bf16.gmra.mxu0 %v581
        %v1277 = vpop.f32.mrf.mxu0
        %v1278 = vadd.f32 %v1229, %v1277
        %v1279 = vpop.f32.mrf.mxu0
        %v1280 = vadd.f32 %v1231, %v1279
        %1281 = vmatmul.bf16.gmra.mxu0 %v582
        %v1282 = vpop.f32.mrf.mxu0
        %v1283 = vadd.f32 %v1234, %v1282
        %v1284 = vpop.f32.mrf.mxu0
        %v1285 = vadd.f32 %v1236, %v1284
        %1286 = vmatmul.bf16.gmra.mxu0 %v583
        %v1287 = vpop.f32.mrf.mxu0
        %v1288 = vadd.f32 %v1239, %v1287
        %v1289 = vpop.f32.mrf.mxu0
        %v1290 = vadd.f32 %v1241, %v1289
        %1291 = vmatmul.bf16.gmra.mxu0 %v584
        %v1292 = vpop.f32.mrf.mxu0
        %v1293 = vadd.f32 %v1244, %v1292
        %v1294 = vpop.f32.mrf.mxu0
        %v1295 = vadd.f32 %v1246, %v1294
        %1296 = vmatmul.bf16.gmra.mxu0 %v585
        %v1297 = vpop.f32.mrf.mxu0
        %v1298 = vadd.f32 %v1249, %v1297
        %v1299 = vpop.f32.mrf.mxu0
        %v1300 = vadd.f32 %v1251, %v1299
        %1301 = vmatmul.bf16.gmra.mxu0 %v586
        %v1302 = vpop.f32.mrf.mxu0
        %v1303 = vadd.f32 %v1254, %v1302
        %v1304 = vpop.f32.mrf.mxu0
        %v1305 = vadd.f32 %v1256, %v1304
        %1306 = vmatmul.bf16.gmra.mxu0 %v587
        %v1307 = vpop.f32.mrf.mxu0
        %v1308 = vadd.f32 %v1259, %v1307
        %v1309 = vpop.f32.mrf.mxu0
        %v1310 = vadd.f32 %v1261, %v1309
        %1311 = vdwg.mxu0
        %1312 = vmatpush.bf16.msra.mxu0 %v1189
        %1313 = vmatpush.bf16.msra.mxu0 %v1188
        %1314 = vmatpush.bf16.msra.mxu0 %v1187
        %1315 = vmatpush.bf16.msra.mxu0 %v1186
        %1316 = vmatpush.bf16.msra.mxu0 %v1185
        %1317 = vmatpush.bf16.msra.mxu0 %v1184
        %1318 = vmatpush.bf16.msra.mxu0 %v1183
        %1319 = vmatpush.bf16.msra.mxu0 %v1182
        %1320 = vmatmul.bf16.gmra.mxu0 %v628
        %v1321 = vpop.f32.mrf.mxu0
        %v1322 = vadd.f32 %v1273, %v1321
        %v1323 = vpop.f32.mrf.mxu0
        %v1324 = vadd.f32 %v1275, %v1323
        %1325 = vmatmul.bf16.gmra.mxu0 %v629
        %v1326 = vpop.f32.mrf.mxu0
        %v1327 = vadd.f32 %v1278, %v1326
        %v1328 = vpop.f32.mrf.mxu0
        %v1329 = vadd.f32 %v1280, %v1328
        %1330 = vmatmul.bf16.gmra.mxu0 %v630
        %v1331 = vpop.f32.mrf.mxu0
        %v1332 = vadd.f32 %v1283, %v1331
        %v1333 = vpop.f32.mrf.mxu0
        %v1334 = vadd.f32 %v1285, %v1333
        %1335 = vmatmul.bf16.gmra.mxu0 %v631
        %v1336 = vpop.f32.mrf.mxu0
        %v1337 = vadd.f32 %v1288, %v1336
        %v1338 = vpop.f32.mrf.mxu0
        %v1339 = vadd.f32 %v1290, %v1338
        %1340 = vmatmul.bf16.gmra.mxu0 %v632
        %v1341 = vpop.f32.mrf.mxu0
        %v1342 = vadd.f32 %v1293, %v1341
        %v1343 = vpop.f32.mrf.mxu0
        %v1344 = vadd.f32 %v1295, %v1343
        %1345 = vmatmul.bf16.gmra.mxu0 %v633
        %v1346 = vpop.f32.mrf.mxu0
        %v1347 = vadd.f32 %v1298, %v1346
        %v1348 = vpop.f32.mrf.mxu0
        %v1349 = vadd.f32 %v1300, %v1348
        %1350 = vmatmul.bf16.gmra.mxu0 %v634
        %v1351 = vpop.f32.mrf.mxu0
        %v1352 = vadd.f32 %v1303, %v1351
        %v1353 = vpop.f32.mrf.mxu0
        %v1354 = vadd.f32 %v1305, %v1353
        %1355 = vmatmul.bf16.gmra.mxu0 %v635
        %v1356 = vpop.f32.mrf.mxu0
        %v1357 = vadd.f32 %v1308, %v1356
        %v1358 = vpop.f32.mrf.mxu0
        %v1359 = vadd.f32 %v1310, %v1358
        %1360 = vdwg.mxu0
        %s1361 = scalar_lea.vmem %s290, 16 [#allocation3]
        %v1362 = vld [vmem:[%s1361] sm:$0xff]
        %v1363 = vld [vmem:[%s1361 + $0x8] sm:$0xff]
        %v1364 = vld [vmem:[%s1361 + $0x10] sm:$0xff]
        %v1365 = vld [vmem:[%s1361 + $0x18] sm:$0xff]
        %v1366 = vld [vmem:[%s1361 + $0x20] sm:$0xff]
        %v1367 = vld [vmem:[%s1361 + $0x28] sm:$0xff]
        %v1368 = vld [vmem:[%s1361 + $0x30] sm:$0xff]
        %v1369 = vld [vmem:[%s1361 + $0x38] sm:$0xff]
        %v1370 = vld [vmem:[%s1361 + $0x40] sm:$0xff]
        %v1371 = vld [vmem:[%s1361 + $0x48] sm:$0xff]
        %v1372 = vld [vmem:[%s1361 + $0x50] sm:$0xff]
        %v1373 = vld [vmem:[%s1361 + $0x58] sm:$0xff]
        %v1374 = vld [vmem:[%s1361 + $0x60] sm:$0xff]
        %v1375 = vld [vmem:[%s1361 + $0x68] sm:$0xff]
        %v1376 = vld [vmem:[%s1361 + $0x70] sm:$0xff]
        %v1377 = vld [vmem:[%s1361 + $0x78] sm:$0xff]
        %v1378 = vrot.slane %v1362, 7
        %v1379 = vrot.slane %v1364, 7
        %v1380 = vrot.slane %v1366, 7
        %v1381 = vrot.slane %v1368, 7
        %v1382 = vrot.slane %v1370, 7
        %v1383 = vrot.slane %v1372, 7
        %v1384 = vrot.slane %v1374, 7
        %v1385 = vrot.slane %v1376, 7
        %v1386 = vrot.slane %v1363, 7
        %v1387 = vrot.slane %v1365, 7
        %v1388 = vrot.slane %v1367, 7
        %v1389 = vrot.slane %v1369, 7
        %v1390 = vrot.slane %v1371, 7
        %v1391 = vrot.slane %v1373, 7
        %v1392 = vrot.slane %v1375, 7
        %v1393 = vrot.slane %v1377, 7
        %v1394 = vsel %vm379, %v1378, %v1386
        %v1395 = vsel %vm379, %v1379, %v1387
        %v1396 = vsel %vm379, %v1380, %v1388
        %v1397 = vsel %vm379, %v1381, %v1389
        %v1398 = vsel %vm379, %v1382, %v1390
        %v1399 = vsel %vm379, %v1383, %v1391
        %v1400 = vsel %vm379, %v1384, %v1392
        %v1401 = vsel %vm379, %v1385, %v1393
        %v1402 = vsel %vm379, %v1386, %v1378
        %v1403 = vsel %vm379, %v1387, %v1379
        %v1404 = vsel %vm379, %v1388, %v1380
        %v1405 = vsel %vm379, %v1389, %v1381
        %v1406 = vsel %vm379, %v1390, %v1382
        %v1407 = vsel %vm379, %v1391, %v1383
        %v1408 = vsel %vm379, %v1392, %v1384
        %v1409 = vsel %vm379, %v1393, %v1385
        %v1410 = vmul.f32 %v1402, %v343
        %v1411 = vmul.f32 %v1394, %v344
        %v1412 = vmul.f32 %v1403, %v343
        %v1413 = vmul.f32 %v1395, %v344
        %v1414 = vmul.f32 %v1404, %v343
        %v1415 = vmul.f32 %v1396, %v344
        %v1416 = vmul.f32 %v1405, %v343
        %v1417 = vmul.f32 %v1397, %v344
        %v1418 = vmul.f32 %v1406, %v343
        %v1419 = vmul.f32 %v1398, %v344
        %v1420 = vmul.f32 %v1407, %v343
        %v1421 = vmul.f32 %v1399, %v344
        %v1422 = vmul.f32 %v1408, %v343
        %v1423 = vmul.f32 %v1400, %v344
        %v1424 = vmul.f32 %v1409, %v343
        %v1425 = vmul.f32 %v1401, %v344
        %v1426 = vpack.c.bf16 %v1410, %v1410
        %v1427 = vpack.c.bf16 %v1411, %v1411
        %v1428 = vpack.c.bf16 %v1412, %v1412
        %v1429 = vpack.c.bf16 %v1413, %v1413
        %v1430 = vpack.c.bf16 %v1414, %v1414
        %v1431 = vpack.c.bf16 %v1415, %v1415
        %v1432 = vpack.c.bf16 %v1416, %v1416
        %v1433 = vpack.c.bf16 %v1417, %v1417
        %v1434 = vpack.c.bf16 %v1418, %v1418
        %v1435 = vpack.c.bf16 %v1419, %v1419
        %v1436 = vpack.c.bf16 %v1420, %v1420
        %v1437 = vpack.c.bf16 %v1421, %v1421
        %v1438 = vpack.c.bf16 %v1422, %v1422
        %v1439 = vpack.c.bf16 %v1423, %v1423
        %v1440 = vpack.c.bf16 %v1424, %v1424
        %v1441 = vpack.c.bf16 %v1425, %v1425
        %v1442 = vrot.slane %v1362, 1
        %v1443 = vrot.slane %v1364, 1
        %v1444 = vrot.slane %v1366, 1
        %v1445 = vrot.slane %v1368, 1
        %v1446 = vrot.slane %v1370, 1
        %v1447 = vrot.slane %v1372, 1
        %v1448 = vrot.slane %v1374, 1
        %v1449 = vrot.slane %v1376, 1
        %v1450 = vrot.slane %v1363, 1
        %v1451 = vrot.slane %v1365, 1
        %v1452 = vrot.slane %v1367, 1
        %v1453 = vrot.slane %v1369, 1
        %v1454 = vrot.slane %v1371, 1
        %v1455 = vrot.slane %v1373, 1
        %v1456 = vrot.slane %v1375, 1
        %v1457 = vrot.slane %v1377, 1
        %v1458 = vsel %vm440, %v1442, %v1450
        %v1459 = vsel %vm440, %v1443, %v1451
        %v1460 = vsel %vm440, %v1444, %v1452
        %v1461 = vsel %vm440, %v1445, %v1453
        %v1462 = vsel %vm440, %v1446, %v1454
        %v1463 = vsel %vm440, %v1447, %v1455
        %v1464 = vsel %vm440, %v1448, %v1456
        %v1465 = vsel %vm440, %v1449, %v1457
        %v1466 = vsel %vm440, %v1450, %v1442
        %v1467 = vsel %vm440, %v1451, %v1443
        %v1468 = vsel %vm440, %v1452, %v1444
        %v1469 = vsel %vm440, %v1453, %v1445
        %v1470 = vsel %vm440, %v1454, %v1446
        %v1471 = vsel %vm440, %v1455, %v1447
        %v1472 = vsel %vm440, %v1456, %v1448
        %v1473 = vsel %vm440, %v1457, %v1449
        %v1474 = vmul.f32 %v1458, %v349
        %v1475 = vmul.f32 %v1466, %v350
        %v1476 = vmul.f32 %v1459, %v349
        %v1477 = vmul.f32 %v1467, %v350
        %v1478 = vmul.f32 %v1460, %v349
        %v1479 = vmul.f32 %v1468, %v350
        %v1480 = vmul.f32 %v1461, %v349
        %v1481 = vmul.f32 %v1469, %v350
        %v1482 = vmul.f32 %v1462, %v349
        %v1483 = vmul.f32 %v1470, %v350
        %v1484 = vmul.f32 %v1463, %v349
        %v1485 = vmul.f32 %v1471, %v350
        %v1486 = vmul.f32 %v1464, %v349
        %v1487 = vmul.f32 %v1472, %v350
        %v1488 = vmul.f32 %v1465, %v349
        %v1489 = vmul.f32 %v1473, %v350
        %v1490 = vpack.c.bf16 %v1474, %v1474
        %v1491 = vpack.c.bf16 %v1475, %v1475
        %v1492 = vpack.c.bf16 %v1476, %v1476
        %v1493 = vpack.c.bf16 %v1477, %v1477
        %v1494 = vpack.c.bf16 %v1478, %v1478
        %v1495 = vpack.c.bf16 %v1479, %v1479
        %v1496 = vpack.c.bf16 %v1480, %v1480
        %v1497 = vpack.c.bf16 %v1481, %v1481
        %v1498 = vpack.c.bf16 %v1482, %v1482
        %v1499 = vpack.c.bf16 %v1483, %v1483
        %v1500 = vpack.c.bf16 %v1484, %v1484
        %v1501 = vpack.c.bf16 %v1485, %v1485
        %v1502 = vpack.c.bf16 %v1486, %v1486
        %v1503 = vpack.c.bf16 %v1487, %v1487
        %v1504 = vpack.c.bf16 %v1488, %v1488
        %v1505 = vpack.c.bf16 %v1489, %v1489
        %v1506 = vpack.c.bf16 %v1362, %v1362
        %v1507 = vpack.c.bf16 %v1363, %v1363
        %v1508 = vpack.c.bf16 %v1364, %v1364
        %v1509 = vpack.c.bf16 %v1365, %v1365
        %v1510 = vpack.c.bf16 %v1366, %v1366
        %v1511 = vpack.c.bf16 %v1367, %v1367
        %v1512 = vpack.c.bf16 %v1368, %v1368
        %v1513 = vpack.c.bf16 %v1369, %v1369
        %v1514 = vpack.c.bf16 %v1370, %v1370
        %v1515 = vpack.c.bf16 %v1371, %v1371
        %v1516 = vpack.c.bf16 %v1372, %v1372
        %v1517 = vpack.c.bf16 %v1373, %v1373
        %v1518 = vpack.c.bf16 %v1374, %v1374
        %v1519 = vpack.c.bf16 %v1375, %v1375
        %v1520 = vpack.c.bf16 %v1376, %v1376
        %v1521 = vpack.c.bf16 %v1377, %v1377
        %v1538 = vunpack.c.l.b16 %v1426
        %v1539 = vunpack.c.l.b16 %v1427
        %v1540 = vunpack.c.l.b16 %v1428
        %v1541 = vunpack.c.l.b16 %v1429
        %v1542 = vunpack.c.l.b16 %v1430
        %v1543 = vunpack.c.l.b16 %v1431
        %v1544 = vunpack.c.l.b16 %v1432
        %v1545 = vunpack.c.l.b16 %v1433
        %v1546 = vunpack.c.l.b16 %v1434
        %v1547 = vunpack.c.l.b16 %v1435
        %v1548 = vunpack.c.l.b16 %v1436
        %v1549 = vunpack.c.l.b16 %v1437
        %v1550 = vunpack.c.l.b16 %v1438
        %v1551 = vunpack.c.l.b16 %v1439
        %v1552 = vunpack.c.l.b16 %v1440
        %v1553 = vunpack.c.l.b16 %v1441
        %v1554 = vpack.c.b16 %v1539, %v1538
        %v1555 = vpack.c.b16 %v1541, %v1540
        %v1556 = vpack.c.b16 %v1543, %v1542
        %v1557 = vpack.c.b16 %v1545, %v1544
        %v1558 = vpack.c.b16 %v1547, %v1546
        %v1559 = vpack.c.b16 %v1549, %v1548
        %v1560 = vpack.c.b16 %v1551, %v1550
        %v1561 = vpack.c.b16 %v1553, %v1552
        %v1586 = vunpack.c.l.b16 %v1506
        %v1587 = vunpack.c.l.b16 %v1507
        %v1588 = vunpack.c.l.b16 %v1508
        %v1589 = vunpack.c.l.b16 %v1509
        %v1590 = vunpack.c.l.b16 %v1510
        %v1591 = vunpack.c.l.b16 %v1511
        %v1592 = vunpack.c.l.b16 %v1512
        %v1593 = vunpack.c.l.b16 %v1513
        %v1594 = vunpack.c.l.b16 %v1514
        %v1595 = vunpack.c.l.b16 %v1515
        %v1596 = vunpack.c.l.b16 %v1516
        %v1597 = vunpack.c.l.b16 %v1517
        %v1598 = vunpack.c.l.b16 %v1518
        %v1599 = vunpack.c.l.b16 %v1519
        %v1600 = vunpack.c.l.b16 %v1520
        %v1601 = vunpack.c.l.b16 %v1521
        %v1602 = vpack.c.b16 %v1587, %v1586
        %v1603 = vpack.c.b16 %v1589, %v1588
        %v1604 = vpack.c.b16 %v1591, %v1590
        %v1605 = vpack.c.b16 %v1593, %v1592
        %v1606 = vpack.c.b16 %v1595, %v1594
        %v1607 = vpack.c.b16 %v1597, %v1596
        %v1608 = vpack.c.b16 %v1599, %v1598
        %v1609 = vpack.c.b16 %v1601, %v1600
        %v1634 = vunpack.c.l.b16 %v1490
        %v1635 = vunpack.c.l.b16 %v1491
        %v1636 = vunpack.c.l.b16 %v1492
        %v1637 = vunpack.c.l.b16 %v1493
        %v1638 = vunpack.c.l.b16 %v1494
        %v1639 = vunpack.c.l.b16 %v1495
        %v1640 = vunpack.c.l.b16 %v1496
        %v1641 = vunpack.c.l.b16 %v1497
        %v1642 = vunpack.c.l.b16 %v1498
        %v1643 = vunpack.c.l.b16 %v1499
        %v1644 = vunpack.c.l.b16 %v1500
        %v1645 = vunpack.c.l.b16 %v1501
        %v1646 = vunpack.c.l.b16 %v1502
        %v1647 = vunpack.c.l.b16 %v1503
        %v1648 = vunpack.c.l.b16 %v1504
        %v1649 = vunpack.c.l.b16 %v1505
        %v1650 = vpack.c.b16 %v1635, %v1634
        %v1651 = vpack.c.b16 %v1637, %v1636
        %v1652 = vpack.c.b16 %v1639, %v1638
        %v1653 = vpack.c.b16 %v1641, %v1640
        %v1654 = vpack.c.b16 %v1643, %v1642
        %v1655 = vpack.c.b16 %v1645, %v1644
        %v1656 = vpack.c.b16 %v1647, %v1646
        %v1657 = vpack.c.b16 %v1649, %v1648
        %s1666 = scalar_lea.vmem [#allocation6], 384
        %v1667 = vld [vmem:[%s1666] sm:$0xf]
        %v1668 = vld [vmem:[%s1666 + $0x4] sm:$0xf]
        %v1669 = vld [vmem:[%s1666 + $0x8] sm:$0xf]
        %v1670 = vld [vmem:[%s1666 + $0xc] sm:$0xf]
        %v1671 = vld [vmem:[%s1666 + $0x10] sm:$0xf]
        %v1672 = vld [vmem:[%s1666 + $0x14] sm:$0xf]
        %v1673 = vld [vmem:[%s1666 + $0x18] sm:$0xf]
        %v1674 = vld [vmem:[%s1666 + $0x1c] sm:$0xf]
        %v1675 = vld [vmem:[%s1666 + $0x20] sm:$0xf]
        %v1676 = vld [vmem:[%s1666 + $0x24] sm:$0xf]
        %v1677 = vld [vmem:[%s1666 + $0x28] sm:$0xf]
        %v1678 = vld [vmem:[%s1666 + $0x2c] sm:$0xf]
        %v1679 = vld [vmem:[%s1666 + $0x30] sm:$0xf]
        %v1680 = vld [vmem:[%s1666 + $0x34] sm:$0xf]
        %v1681 = vld [vmem:[%s1666 + $0x38] sm:$0xf]
        %v1682 = vld [vmem:[%s1666 + $0x3c] sm:$0xf]
        %v1683 = vld [vmem:[%s1666 + $0x40] sm:$0xf]
        %v1684 = vld [vmem:[%s1666 + $0x44] sm:$0xf]
        %v1685 = vld [vmem:[%s1666 + $0x48] sm:$0xf]
        %v1686 = vld [vmem:[%s1666 + $0x4c] sm:$0xf]
        %v1687 = vld [vmem:[%s1666 + $0x50] sm:$0xf]
        %v1688 = vld [vmem:[%s1666 + $0x54] sm:$0xf]
        %v1689 = vld [vmem:[%s1666 + $0x58] sm:$0xf]
        %v1690 = vld [vmem:[%s1666 + $0x5c] sm:$0xf]
        %v1691 = vld [vmem:[%s1666 + $0x60] sm:$0xf]
        %v1692 = vld [vmem:[%s1666 + $0x64] sm:$0xf]
        %v1693 = vld [vmem:[%s1666 + $0x68] sm:$0xf]
        %v1694 = vld [vmem:[%s1666 + $0x6c] sm:$0xf]
        %v1695 = vld [vmem:[%s1666 + $0x70] sm:$0xf]
        %v1696 = vld [vmem:[%s1666 + $0x74] sm:$0xf]
        %v1697 = vld [vmem:[%s1666 + $0x78] sm:$0xf]
        %v1698 = vld [vmem:[%s1666 + $0x7c] sm:$0xf]
        %v1699 = vld [vmem:[%s1666 + $0x80] sm:$0xf]
        %v1700 = vld [vmem:[%s1666 + $0x84] sm:$0xf]
        %v1701 = vld [vmem:[%s1666 + $0x88] sm:$0xf]
        %v1702 = vld [vmem:[%s1666 + $0x8c] sm:$0xf]
        %v1703 = vld [vmem:[%s1666 + $0x90] sm:$0xf]
        %v1704 = vld [vmem:[%s1666 + $0x94] sm:$0xf]
        %v1705 = vld [vmem:[%s1666 + $0x98] sm:$0xf]
        %v1706 = vld [vmem:[%s1666 + $0x9c] sm:$0xf]
        %v1707 = vld [vmem:[%s1666 + $0xa0] sm:$0xf]
        %v1708 = vld [vmem:[%s1666 + $0xa4] sm:$0xf]
        %v1709 = vld [vmem:[%s1666 + $0xa8] sm:$0xf]
        %v1710 = vld [vmem:[%s1666 + $0xac] sm:$0xf]
        %v1711 = vld [vmem:[%s1666 + $0xb0] sm:$0xf]
        %v1712 = vld [vmem:[%s1666 + $0xb4] sm:$0xf]
        %v1713 = vld [vmem:[%s1666 + $0xb8] sm:$0xf]
        %v1714 = vld [vmem:[%s1666 + $0xbc] sm:$0xf]
        %v1763 = vunpack.c.l.b16 %v1667
        %v1764 = vunpack.c.l.b16 %v1668
        %v1765 = vunpack.c.l.b16 %v1669
        %v1766 = vunpack.c.l.b16 %v1670
        %v1767 = vunpack.c.l.b16 %v1671
        %v1768 = vunpack.c.l.b16 %v1672
        %v1769 = vunpack.c.l.b16 %v1673
        %v1770 = vunpack.c.l.b16 %v1674
        %v1771 = vunpack.c.l.b16 %v1675
        %v1772 = vunpack.c.l.b16 %v1676
        %v1773 = vunpack.c.l.b16 %v1677
        %v1774 = vunpack.c.l.b16 %v1678
        %v1775 = vunpack.c.l.b16 %v1679
        %v1776 = vunpack.c.l.b16 %v1680
        %v1777 = vunpack.c.l.b16 %v1681
        %v1778 = vunpack.c.l.b16 %v1682
        %v1779 = vunpack.c.l.b16 %v1683
        %v1780 = vunpack.c.l.b16 %v1684
        %v1781 = vunpack.c.l.b16 %v1685
        %v1782 = vunpack.c.l.b16 %v1686
        %v1783 = vunpack.c.l.b16 %v1687
        %v1784 = vunpack.c.l.b16 %v1688
        %v1785 = vunpack.c.l.b16 %v1689
        %v1786 = vunpack.c.l.b16 %v1690
        %v1787 = vunpack.c.l.b16 %v1691
        %v1788 = vunpack.c.l.b16 %v1692
        %v1789 = vunpack.c.l.b16 %v1693
        %v1790 = vunpack.c.l.b16 %v1694
        %v1791 = vunpack.c.l.b16 %v1695
        %v1792 = vunpack.c.l.b16 %v1696
        %v1793 = vunpack.c.l.b16 %v1697
        %v1794 = vunpack.c.l.b16 %v1698
        %v1795 = vunpack.c.l.b16 %v1699
        %v1796 = vunpack.c.l.b16 %v1700
        %v1797 = vunpack.c.l.b16 %v1701
        %v1798 = vunpack.c.l.b16 %v1702
        %v1799 = vunpack.c.l.b16 %v1703
        %v1800 = vunpack.c.l.b16 %v1704
        %v1801 = vunpack.c.l.b16 %v1705
        %v1802 = vunpack.c.l.b16 %v1706
        %v1803 = vunpack.c.l.b16 %v1707
        %v1804 = vunpack.c.l.b16 %v1708
        %v1805 = vunpack.c.l.b16 %v1709
        %v1806 = vunpack.c.l.b16 %v1710
        %v1807 = vunpack.c.l.b16 %v1711
        %v1808 = vunpack.c.l.b16 %v1712
        %v1809 = vunpack.c.l.b16 %v1713
        %v1810 = vunpack.c.l.b16 %v1714
        %v1811 = vpack.c.b16 %v1764, %v1763
        %v1812 = vpack.c.b16 %v1766, %v1765
        %v1813 = vpack.c.b16 %v1768, %v1767
        %v1814 = vpack.c.b16 %v1770, %v1769
        %v1815 = vpack.c.b16 %v1772, %v1771
        %v1816 = vpack.c.b16 %v1774, %v1773
        %v1817 = vpack.c.b16 %v1776, %v1775
        %v1818 = vpack.c.b16 %v1778, %v1777
        %v1819 = vpack.c.b16 %v1780, %v1779
        %v1820 = vpack.c.b16 %v1782, %v1781
        %v1821 = vpack.c.b16 %v1784, %v1783
        %v1822 = vpack.c.b16 %v1786, %v1785
        %v1823 = vpack.c.b16 %v1788, %v1787
        %v1824 = vpack.c.b16 %v1790, %v1789
        %v1825 = vpack.c.b16 %v1792, %v1791
        %v1826 = vpack.c.b16 %v1794, %v1793
        %v1827 = vpack.c.b16 %v1796, %v1795
        %v1828 = vpack.c.b16 %v1798, %v1797
        %v1829 = vpack.c.b16 %v1800, %v1799
        %v1830 = vpack.c.b16 %v1802, %v1801
        %v1831 = vpack.c.b16 %v1804, %v1803
        %v1832 = vpack.c.b16 %v1806, %v1805
        %v1833 = vpack.c.b16 %v1808, %v1807
        %v1834 = vpack.c.b16 %v1810, %v1809
        %1859 = vmatpush.bf16.msra.mxu0 %v1818
        %1860 = vmatpush.bf16.msra.mxu0 %v1817
        %1861 = vmatpush.bf16.msra.mxu0 %v1816
        %1862 = vmatpush.bf16.msra.mxu0 %v1815
        %1863 = vmatpush.bf16.msra.mxu0 %v1814
        %1864 = vmatpush.bf16.msra.mxu0 %v1813
        %1865 = vmatpush.bf16.msra.mxu0 %v1812
        %1866 = vmatpush.bf16.msra.mxu0 %v1811
        %1867 = vmatmul.bf16.gmra.mxu0 %v1554
        %v1868 = vpop.f32.mrf.mxu0
        %v1869 = vadd.f32 0.0, %v1868
        %v1870 = vpop.f32.mrf.mxu0
        %v1871 = vadd.f32 0.0, %v1870
        %1872 = vmatmul.bf16.gmra.mxu0 %v1555
        %v1873 = vpop.f32.mrf.mxu0
        %v1874 = vadd.f32 0.0, %v1873
        %v1875 = vpop.f32.mrf.mxu0
        %v1876 = vadd.f32 0.0, %v1875
        %1877 = vmatmul.bf16.gmra.mxu0 %v1556
        %v1878 = vpop.f32.mrf.mxu0
        %v1879 = vadd.f32 0.0, %v1878
        %v1880 = vpop.f32.mrf.mxu0
        %v1881 = vadd.f32 0.0, %v1880
        %1882 = vmatmul.bf16.gmra.mxu0 %v1557
        %v1883 = vpop.f32.mrf.mxu0
        %v1884 = vadd.f32 0.0, %v1883
        %v1885 = vpop.f32.mrf.mxu0
        %v1886 = vadd.f32 0.0, %v1885
        %1887 = vmatmul.bf16.gmra.mxu0 %v1558
        %v1888 = vpop.f32.mrf.mxu0
        %v1889 = vadd.f32 0.0, %v1888
        %v1890 = vpop.f32.mrf.mxu0
        %v1891 = vadd.f32 0.0, %v1890
        %1892 = vmatmul.bf16.gmra.mxu0 %v1559
        %v1893 = vpop.f32.mrf.mxu0
        %v1894 = vadd.f32 0.0, %v1893
        %v1895 = vpop.f32.mrf.mxu0
        %v1896 = vadd.f32 0.0, %v1895
        %1897 = vmatmul.bf16.gmra.mxu0 %v1560
        %v1898 = vpop.f32.mrf.mxu0
        %v1899 = vadd.f32 0.0, %v1898
        %v1900 = vpop.f32.mrf.mxu0
        %v1901 = vadd.f32 0.0, %v1900
        %1902 = vmatmul.bf16.gmra.mxu0 %v1561
        %v1903 = vpop.f32.mrf.mxu0
        %v1904 = vadd.f32 0.0, %v1903
        %v1905 = vpop.f32.mrf.mxu0
        %v1906 = vadd.f32 0.0, %v1905
        %1907 = vdwg.mxu0
        %1908 = vmatpush.bf16.msra.mxu0 %v1826
        %1909 = vmatpush.bf16.msra.mxu0 %v1825
        %1910 = vmatpush.bf16.msra.mxu0 %v1824
        %1911 = vmatpush.bf16.msra.mxu0 %v1823
        %1912 = vmatpush.bf16.msra.mxu0 %v1822
        %1913 = vmatpush.bf16.msra.mxu0 %v1821
        %1914 = vmatpush.bf16.msra.mxu0 %v1820
        %1915 = vmatpush.bf16.msra.mxu0 %v1819
        %1916 = vmatmul.bf16.gmra.mxu0 %v1602
        %v1917 = vpop.f32.mrf.mxu0
        %v1918 = vadd.f32 %v1869, %v1917
        %v1919 = vpop.f32.mrf.mxu0
        %v1920 = vadd.f32 %v1871, %v1919
        %1921 = vmatmul.bf16.gmra.mxu0 %v1603
        %v1922 = vpop.f32.mrf.mxu0
        %v1923 = vadd.f32 %v1874, %v1922
        %v1924 = vpop.f32.mrf.mxu0
        %v1925 = vadd.f32 %v1876, %v1924
        %1926 = vmatmul.bf16.gmra.mxu0 %v1604
        %v1927 = vpop.f32.mrf.mxu0
        %v1928 = vadd.f32 %v1879, %v1927
        %v1929 = vpop.f32.mrf.mxu0
        %v1930 = vadd.f32 %v1881, %v1929
        %1931 = vmatmul.bf16.gmra.mxu0 %v1605
        %v1932 = vpop.f32.mrf.mxu0
        %v1933 = vadd.f32 %v1884, %v1932
        %v1934 = vpop.f32.mrf.mxu0
        %v1935 = vadd.f32 %v1886, %v1934
        %1936 = vmatmul.bf16.gmra.mxu0 %v1606
        %v1937 = vpop.f32.mrf.mxu0
        %v1938 = vadd.f32 %v1889, %v1937
        %v1939 = vpop.f32.mrf.mxu0
        %v1940 = vadd.f32 %v1891, %v1939
        %1941 = vmatmul.bf16.gmra.mxu0 %v1607
        %v1942 = vpop.f32.mrf.mxu0
        %v1943 = vadd.f32 %v1894, %v1942
        %v1944 = vpop.f32.mrf.mxu0
        %v1945 = vadd.f32 %v1896, %v1944
        %1946 = vmatmul.bf16.gmra.mxu0 %v1608
        %v1947 = vpop.f32.mrf.mxu0
        %v1948 = vadd.f32 %v1899, %v1947
        %v1949 = vpop.f32.mrf.mxu0
        %v1950 = vadd.f32 %v1901, %v1949
        %1951 = vmatmul.bf16.gmra.mxu0 %v1609
        %v1952 = vpop.f32.mrf.mxu0
        %v1953 = vadd.f32 %v1904, %v1952
        %v1954 = vpop.f32.mrf.mxu0
        %v1955 = vadd.f32 %v1906, %v1954
        %1956 = vdwg.mxu0
        %1957 = vmatpush.bf16.msra.mxu0 %v1834
        %1958 = vmatpush.bf16.msra.mxu0 %v1833
        %1959 = vmatpush.bf16.msra.mxu0 %v1832
        %1960 = vmatpush.bf16.msra.mxu0 %v1831
        %1961 = vmatpush.bf16.msra.mxu0 %v1830
        %1962 = vmatpush.bf16.msra.mxu0 %v1829
        %1963 = vmatpush.bf16.msra.mxu0 %v1828
        %1964 = vmatpush.bf16.msra.mxu0 %v1827
        %1965 = vmatmul.bf16.gmra.mxu0 %v1650
        %v1966 = vpop.f32.mrf.mxu0
        %v1967 = vadd.f32 %v1918, %v1966
        %v1968 = vpop.f32.mrf.mxu0
        %v1969 = vadd.f32 %v1920, %v1968
        %1970 = vmatmul.bf16.gmra.mxu0 %v1651
        %v1971 = vpop.f32.mrf.mxu0
        %v1972 = vadd.f32 %v1923, %v1971
        %v1973 = vpop.f32.mrf.mxu0
        %v1974 = vadd.f32 %v1925, %v1973
        %1975 = vmatmul.bf16.gmra.mxu0 %v1652
        %v1976 = vpop.f32.mrf.mxu0
        %v1977 = vadd.f32 %v1928, %v1976
        %v1978 = vpop.f32.mrf.mxu0
        %v1979 = vadd.f32 %v1930, %v1978
        %1980 = vmatmul.bf16.gmra.mxu0 %v1653
        %v1981 = vpop.f32.mrf.mxu0
        %v1982 = vadd.f32 %v1933, %v1981
        %v1983 = vpop.f32.mrf.mxu0
        %v1984 = vadd.f32 %v1935, %v1983
        %1985 = vmatmul.bf16.gmra.mxu0 %v1654
        %v1986 = vpop.f32.mrf.mxu0
        %v1987 = vadd.f32 %v1938, %v1986
        %v1988 = vpop.f32.mrf.mxu0
        %v1989 = vadd.f32 %v1940, %v1988
        %1990 = vmatmul.bf16.gmra.mxu0 %v1655
        %v1991 = vpop.f32.mrf.mxu0
        %v1992 = vadd.f32 %v1943, %v1991
        %v1993 = vpop.f32.mrf.mxu0
        %v1994 = vadd.f32 %v1945, %v1993
        %1995 = vmatmul.bf16.gmra.mxu0 %v1656
        %v1996 = vpop.f32.mrf.mxu0
        %v1997 = vadd.f32 %v1948, %v1996
        %v1998 = vpop.f32.mrf.mxu0
        %v1999 = vadd.f32 %v1950, %v1998
        %2000 = vmatmul.bf16.gmra.mxu0 %v1657
        %v2001 = vpop.f32.mrf.mxu0
        %v2002 = vadd.f32 %v1953, %v2001
        %v2003 = vpop.f32.mrf.mxu0
        %v2004 = vadd.f32 %v1955, %v2003
        %2005 = vdwg.mxu0
        %v2006 = vadd.f32 %v1322, %v1967
        %v2007 = vadd.f32 %v1324, %v1969
        %v2008 = vadd.f32 %v1327, %v1972
        %v2009 = vadd.f32 %v1329, %v1974
        %v2010 = vadd.f32 %v1332, %v1977
        %v2011 = vadd.f32 %v1334, %v1979
        %v2012 = vadd.f32 %v1337, %v1982
        %v2013 = vadd.f32 %v1339, %v1984
        %v2014 = vadd.f32 %v1342, %v1987
        %v2015 = vadd.f32 %v1344, %v1989
        %v2016 = vadd.f32 %v1347, %v1992
        %v2017 = vadd.f32 %v1349, %v1994
        %v2018 = vadd.f32 %v1352, %v1997
        %v2019 = vadd.f32 %v1354, %v1999
        %v2020 = vadd.f32 %v1357, %v2002
        %v2021 = vadd.f32 %v1359, %v2004
        %v2023 = vperm.slane %v332, 0
        %v2025 = vmul.f32 %v2006, %v2023
        %v2026 = vmul.f32 %v2007, %v2023
        %v2027 = vmul.f32 %v2008, %v2023
        %v2028 = vmul.f32 %v2009, %v2023
        %v2029 = vmul.f32 %v2010, %v2023
        %v2030 = vmul.f32 %v2011, %v2023
        %v2031 = vmul.f32 %v2012, %v2023
        %v2032 = vmul.f32 %v2013, %v2023
        %v2033 = vmul.f32 %v2014, %v2023
        %v2034 = vmul.f32 %v2015, %v2023
        %v2035 = vmul.f32 %v2016, %v2023
        %v2036 = vmul.f32 %v2017, %v2023
        %v2037 = vmul.f32 %v2018, %v2023
        %v2038 = vmul.f32 %v2019, %v2023
        %v2039 = vmul.f32 %v2020, %v2023
        %v2040 = vmul.f32 %v2021, %v2023
        %v2042 = vperm.slane %v333, 0
        %v2044 = vadd.f32 %v2025, %v2042
        %v2045 = vadd.f32 %v2026, %v2042
        %v2046 = vadd.f32 %v2027, %v2042
        %v2047 = vadd.f32 %v2028, %v2042
        %v2048 = vadd.f32 %v2029, %v2042
        %v2049 = vadd.f32 %v2030, %v2042
        %v2050 = vadd.f32 %v2031, %v2042
        %v2051 = vadd.f32 %v2032, %v2042
        %v2052 = vadd.f32 %v2033, %v2042
        %v2053 = vadd.f32 %v2034, %v2042
        %v2054 = vadd.f32 %v2035, %v2042
        %v2055 = vadd.f32 %v2036, %v2042
        %v2056 = vadd.f32 %v2037, %v2042
        %v2057 = vadd.f32 %v2038, %v2042
        %v2058 = vadd.f32 %v2039, %v2042
        %v2059 = vadd.f32 %v2040, %v2042
        %v2060 = vmax.f32 %v2044, 0.0
        %v2061 = vmax.f32 %v2045, 0.0
        %v2062 = vmax.f32 %v2046, 0.0
        %v2063 = vmax.f32 %v2047, 0.0
        %v2064 = vmax.f32 %v2048, 0.0
        %v2065 = vmax.f32 %v2049, 0.0
        %v2066 = vmax.f32 %v2050, 0.0
        %v2067 = vmax.f32 %v2051, 0.0
        %v2068 = vmax.f32 %v2052, 0.0
        %v2069 = vmax.f32 %v2053, 0.0
        %v2070 = vmax.f32 %v2054, 0.0
        %v2071 = vmax.f32 %v2055, 0.0
        %v2072 = vmax.f32 %v2056, 0.0
        %v2073 = vmax.f32 %v2057, 0.0
        %v2074 = vmax.f32 %v2058, 0.0
        %v2075 = vmax.f32 %v2059, 0.0
        %2076 = vst [vmem:[#allocation2] sm:$0xff] %v2060
        %2077 = vst [vmem:[#allocation2 + $0x8] sm:$0xff] %v2061
        %2078 = vst [vmem:[#allocation2 + $0x10] sm:$0xff] %v2062
        %2079 = vst [vmem:[#allocation2 + $0x18] sm:$0xff] %v2063
        %2080 = vst [vmem:[#allocation2 + $0x20] sm:$0xff] %v2064
        %2081 = vst [vmem:[#allocation2 + $0x28] sm:$0xff] %v2065
        %2082 = vst [vmem:[#allocation2 + $0x30] sm:$0xff] %v2066
        %2083 = vst [vmem:[#allocation2 + $0x38] sm:$0xff] %v2067
        %2084 = vst [vmem:[#allocation2 + $0x40] sm:$0xff] %v2068
        %2085 = vst [vmem:[#allocation2 + $0x48] sm:$0xff] %v2069
        %2086 = vst [vmem:[#allocation2 + $0x50] sm:$0xff] %v2070
        %2087 = vst [vmem:[#allocation2 + $0x58] sm:$0xff] %v2071
        %2088 = vst [vmem:[#allocation2 + $0x60] sm:$0xff] %v2072
        %2089 = vst [vmem:[#allocation2 + $0x68] sm:$0xff] %v2073
        %2090 = vst [vmem:[#allocation2 + $0x70] sm:$0xff] %v2074
        %2091 = vst [vmem:[#allocation2 + $0x78] sm:$0xff] %v2075
        %s2092 = scalar_lea.vmem %s290, 112 [#allocation3]
        %v2093 = vld [vmem:[%s2092] sm:$0xff]
        %v2094 = vld [vmem:[%s2092 + $0x8] sm:$0xff]
        %v2095 = vld [vmem:[%s2092 + $0x10] sm:$0xff]
        %v2096 = vld [vmem:[%s2092 + $0x18] sm:$0xff]
        %v2097 = vld [vmem:[%s2092 + $0x20] sm:$0xff]
        %v2098 = vld [vmem:[%s2092 + $0x28] sm:$0xff]
        %v2099 = vld [vmem:[%s2092 + $0x30] sm:$0xff]
        %v2100 = vld [vmem:[%s2092 + $0x38] sm:$0xff]
        %v2101 = vld [vmem:[%s2092 + $0x40] sm:$0xff]
        %v2102 = vld [vmem:[%s2092 + $0x48] sm:$0xff]
        %v2103 = vld [vmem:[%s2092 + $0x50] sm:$0xff]
        %v2104 = vld [vmem:[%s2092 + $0x58] sm:$0xff]
        %v2105 = vld [vmem:[%s2092 + $0x60] sm:$0xff]
        %v2106 = vld [vmem:[%s2092 + $0x68] sm:$0xff]
        %v2107 = vld [vmem:[%s2092 + $0x70] sm:$0xff]
        %v2108 = vld [vmem:[%s2092 + $0x78] sm:$0xff]
        %v2109 = vrot.slane %v2093, 7
        %v2110 = vrot.slane %v2095, 7
        %v2111 = vrot.slane %v2097, 7
        %v2112 = vrot.slane %v2099, 7
        %v2113 = vrot.slane %v2101, 7
        %v2114 = vrot.slane %v2103, 7
        %v2115 = vrot.slane %v2105, 7
        %v2116 = vrot.slane %v2107, 7
        %v2117 = vrot.slane %v2094, 7
        %v2118 = vrot.slane %v2096, 7
        %v2119 = vrot.slane %v2098, 7
        %v2120 = vrot.slane %v2100, 7
        %v2121 = vrot.slane %v2102, 7
        %v2122 = vrot.slane %v2104, 7
        %v2123 = vrot.slane %v2106, 7
        %v2124 = vrot.slane %v2108, 7
        %v2125 = vsel %vm379, %v2109, %v2117
        %v2126 = vsel %vm379, %v2110, %v2118
        %v2127 = vsel %vm379, %v2111, %v2119
        %v2128 = vsel %vm379, %v2112, %v2120
        %v2129 = vsel %vm379, %v2113, %v2121
        %v2130 = vsel %vm379, %v2114, %v2122
        %v2131 = vsel %vm379, %v2115, %v2123
        %v2132 = vsel %vm379, %v2116, %v2124
        %v2133 = vsel %vm379, %v2117, %v2109
        %v2134 = vsel %vm379, %v2118, %v2110
        %v2135 = vsel %vm379, %v2119, %v2111
        %v2136 = vsel %vm379, %v2120, %v2112
        %v2137 = vsel %vm379, %v2121, %v2113
        %v2138 = vsel %vm379, %v2122, %v2114
        %v2139 = vsel %vm379, %v2123, %v2115
        %v2140 = vsel %vm379, %v2124, %v2116
        %v2141 = vmul.f32 %v2133, %v343
        %v2142 = vmul.f32 %v2125, %v344
        %v2143 = vmul.f32 %v2134, %v343
        %v2144 = vmul.f32 %v2126, %v344
        %v2145 = vmul.f32 %v2135, %v343
        %v2146 = vmul.f32 %v2127, %v344
        %v2147 = vmul.f32 %v2136, %v343
        %v2148 = vmul.f32 %v2128, %v344
        %v2149 = vmul.f32 %v2137, %v343
        %v2150 = vmul.f32 %v2129, %v344
        %v2151 = vmul.f32 %v2138, %v343
        %v2152 = vmul.f32 %v2130, %v344
        %v2153 = vmul.f32 %v2139, %v343
        %v2154 = vmul.f32 %v2131, %v344
        %v2155 = vmul.f32 %v2140, %v343
        %v2156 = vmul.f32 %v2132, %v344
        %v2157 = vpack.c.bf16 %v2141, %v2141
        %v2158 = vpack.c.bf16 %v2142, %v2142
        %v2159 = vpack.c.bf16 %v2143, %v2143
        %v2160 = vpack.c.bf16 %v2144, %v2144
        %v2161 = vpack.c.bf16 %v2145, %v2145
        %v2162 = vpack.c.bf16 %v2146, %v2146
        %v2163 = vpack.c.bf16 %v2147, %v2147
        %v2164 = vpack.c.bf16 %v2148, %v2148
        %v2165 = vpack.c.bf16 %v2149, %v2149
        %v2166 = vpack.c.bf16 %v2150, %v2150
        %v2167 = vpack.c.bf16 %v2151, %v2151
        %v2168 = vpack.c.bf16 %v2152, %v2152
        %v2169 = vpack.c.bf16 %v2153, %v2153
        %v2170 = vpack.c.bf16 %v2154, %v2154
        %v2171 = vpack.c.bf16 %v2155, %v2155
        %v2172 = vpack.c.bf16 %v2156, %v2156
        %v2173 = vrot.slane %v2093, 1
        %v2174 = vrot.slane %v2095, 1
        %v2175 = vrot.slane %v2097, 1
        %v2176 = vrot.slane %v2099, 1
        %v2177 = vrot.slane %v2101, 1
        %v2178 = vrot.slane %v2103, 1
        %v2179 = vrot.slane %v2105, 1
        %v2180 = vrot.slane %v2107, 1
        %v2181 = vrot.slane %v2094, 1
        %v2182 = vrot.slane %v2096, 1
        %v2183 = vrot.slane %v2098, 1
        %v2184 = vrot.slane %v2100, 1
        %v2185 = vrot.slane %v2102, 1
        %v2186 = vrot.slane %v2104, 1
        %v2187 = vrot.slane %v2106, 1
        %v2188 = vrot.slane %v2108, 1
        %v2189 = vsel %vm440, %v2173, %v2181
        %v2190 = vsel %vm440, %v2174, %v2182
        %v2191 = vsel %vm440, %v2175, %v2183
        %v2192 = vsel %vm440, %v2176, %v2184
        %v2193 = vsel %vm440, %v2177, %v2185
        %v2194 = vsel %vm440, %v2178, %v2186
        %v2195 = vsel %vm440, %v2179, %v2187
        %v2196 = vsel %vm440, %v2180, %v2188
        %v2197 = vsel %vm440, %v2181, %v2173
        %v2198 = vsel %vm440, %v2182, %v2174
        %v2199 = vsel %vm440, %v2183, %v2175
        %v2200 = vsel %vm440, %v2184, %v2176
        %v2201 = vsel %vm440, %v2185, %v2177
        %v2202 = vsel %vm440, %v2186, %v2178
        %v2203 = vsel %vm440, %v2187, %v2179
        %v2204 = vsel %vm440, %v2188, %v2180
        %v2205 = vmul.f32 %v2189, %v349
        %v2206 = vmul.f32 %v2197, %v350
        %v2207 = vmul.f32 %v2190, %v349
        %v2208 = vmul.f32 %v2198, %v350
        %v2209 = vmul.f32 %v2191, %v349
        %v2210 = vmul.f32 %v2199, %v350
        %v2211 = vmul.f32 %v2192, %v349
        %v2212 = vmul.f32 %v2200, %v350
        %v2213 = vmul.f32 %v2193, %v349
        %v2214 = vmul.f32 %v2201, %v350
        %v2215 = vmul.f32 %v2194, %v349
        %v2216 = vmul.f32 %v2202, %v350
        %v2217 = vmul.f32 %v2195, %v349
        %v2218 = vmul.f32 %v2203, %v350
        %v2219 = vmul.f32 %v2196, %v349
        %v2220 = vmul.f32 %v2204, %v350
        %v2221 = vpack.c.bf16 %v2205, %v2205
        %v2222 = vpack.c.bf16 %v2206, %v2206
        %v2223 = vpack.c.bf16 %v2207, %v2207
        %v2224 = vpack.c.bf16 %v2208, %v2208
        %v2225 = vpack.c.bf16 %v2209, %v2209
        %v2226 = vpack.c.bf16 %v2210, %v2210
        %v2227 = vpack.c.bf16 %v2211, %v2211
        %v2228 = vpack.c.bf16 %v2212, %v2212
        %v2229 = vpack.c.bf16 %v2213, %v2213
        %v2230 = vpack.c.bf16 %v2214, %v2214
        %v2231 = vpack.c.bf16 %v2215, %v2215
        %v2232 = vpack.c.bf16 %v2216, %v2216
        %v2233 = vpack.c.bf16 %v2217, %v2217
        %v2234 = vpack.c.bf16 %v2218, %v2218
        %v2235 = vpack.c.bf16 %v2219, %v2219
        %v2236 = vpack.c.bf16 %v2220, %v2220
        %v2237 = vpack.c.bf16 %v2093, %v2093
        %v2238 = vpack.c.bf16 %v2094, %v2094
        %v2239 = vpack.c.bf16 %v2095, %v2095
        %v2240 = vpack.c.bf16 %v2096, %v2096
        %v2241 = vpack.c.bf16 %v2097, %v2097
        %v2242 = vpack.c.bf16 %v2098, %v2098
        %v2243 = vpack.c.bf16 %v2099, %v2099
        %v2244 = vpack.c.bf16 %v2100, %v2100
        %v2245 = vpack.c.bf16 %v2101, %v2101
        %v2246 = vpack.c.bf16 %v2102, %v2102
        %v2247 = vpack.c.bf16 %v2103, %v2103
        %v2248 = vpack.c.bf16 %v2104, %v2104
        %v2249 = vpack.c.bf16 %v2105, %v2105
        %v2250 = vpack.c.bf16 %v2106, %v2106
        %v2251 = vpack.c.bf16 %v2107, %v2107
        %v2252 = vpack.c.bf16 %v2108, %v2108
        %v2269 = vunpack.c.l.b16 %v2157
        %v2270 = vunpack.c.l.b16 %v2158
        %v2271 = vunpack.c.l.b16 %v2159
        %v2272 = vunpack.c.l.b16 %v2160
        %v2273 = vunpack.c.l.b16 %v2161
        %v2274 = vunpack.c.l.b16 %v2162
        %v2275 = vunpack.c.l.b16 %v2163
        %v2276 = vunpack.c.l.b16 %v2164
        %v2277 = vunpack.c.l.b16 %v2165
        %v2278 = vunpack.c.l.b16 %v2166
        %v2279 = vunpack.c.l.b16 %v2167
        %v2280 = vunpack.c.l.b16 %v2168
        %v2281 = vunpack.c.l.b16 %v2169
        %v2282 = vunpack.c.l.b16 %v2170
        %v2283 = vunpack.c.l.b16 %v2171
        %v2284 = vunpack.c.l.b16 %v2172
        %v2285 = vpack.c.b16 %v2270, %v2269
        %v2286 = vpack.c.b16 %v2272, %v2271
        %v2287 = vpack.c.b16 %v2274, %v2273
        %v2288 = vpack.c.b16 %v2276, %v2275
        %v2289 = vpack.c.b16 %v2278, %v2277
        %v2290 = vpack.c.b16 %v2280, %v2279
        %v2291 = vpack.c.b16 %v2282, %v2281
        %v2292 = vpack.c.b16 %v2284, %v2283
        %v2317 = vunpack.c.l.b16 %v2237
        %v2318 = vunpack.c.l.b16 %v2238
        %v2319 = vunpack.c.l.b16 %v2239
        %v2320 = vunpack.c.l.b16 %v2240
        %v2321 = vunpack.c.l.b16 %v2241
        %v2322 = vunpack.c.l.b16 %v2242
        %v2323 = vunpack.c.l.b16 %v2243
        %v2324 = vunpack.c.l.b16 %v2244
        %v2325 = vunpack.c.l.b16 %v2245
        %v2326 = vunpack.c.l.b16 %v2246
        %v2327 = vunpack.c.l.b16 %v2247
        %v2328 = vunpack.c.l.b16 %v2248
        %v2329 = vunpack.c.l.b16 %v2249
        %v2330 = vunpack.c.l.b16 %v2250
        %v2331 = vunpack.c.l.b16 %v2251
        %v2332 = vunpack.c.l.b16 %v2252
        %v2333 = vpack.c.b16 %v2318, %v2317
        %v2334 = vpack.c.b16 %v2320, %v2319
        %v2335 = vpack.c.b16 %v2322, %v2321
        %v2336 = vpack.c.b16 %v2324, %v2323
        %v2337 = vpack.c.b16 %v2326, %v2325
        %v2338 = vpack.c.b16 %v2328, %v2327
        %v2339 = vpack.c.b16 %v2330, %v2329
        %v2340 = vpack.c.b16 %v2332, %v2331
        %v2365 = vunpack.c.l.b16 %v2221
        %v2366 = vunpack.c.l.b16 %v2222
        %v2367 = vunpack.c.l.b16 %v2223
        %v2368 = vunpack.c.l.b16 %v2224
        %v2369 = vunpack.c.l.b16 %v2225
        %v2370 = vunpack.c.l.b16 %v2226
        %v2371 = vunpack.c.l.b16 %v2227
        %v2372 = vunpack.c.l.b16 %v2228
        %v2373 = vunpack.c.l.b16 %v2229
        %v2374 = vunpack.c.l.b16 %v2230
        %v2375 = vunpack.c.l.b16 %v2231
        %v2376 = vunpack.c.l.b16 %v2232
        %v2377 = vunpack.c.l.b16 %v2233
        %v2378 = vunpack.c.l.b16 %v2234
        %v2379 = vunpack.c.l.b16 %v2235
        %v2380 = vunpack.c.l.b16 %v2236
        %v2381 = vpack.c.b16 %v2366, %v2365
        %v2382 = vpack.c.b16 %v2368, %v2367
        %v2383 = vpack.c.b16 %v2370, %v2369
        %v2384 = vpack.c.b16 %v2372, %v2371
        %v2385 = vpack.c.b16 %v2374, %v2373
        %v2386 = vpack.c.b16 %v2376, %v2375
        %v2387 = vpack.c.b16 %v2378, %v2377
        %v2388 = vpack.c.b16 %v2380, %v2379
        %v2397 = vld [vmem:[#allocation6] sm:$0xf]
        %v2398 = vld [vmem:[#allocation6 + $0x4] sm:$0xf]
        %v2399 = vld [vmem:[#allocation6 + $0x8] sm:$0xf]
        %v2400 = vld [vmem:[#allocation6 + $0xc] sm:$0xf]
        %v2401 = vld [vmem:[#allocation6 + $0x10] sm:$0xf]
        %v2402 = vld [vmem:[#allocation6 + $0x14] sm:$0xf]
        %v2403 = vld [vmem:[#allocation6 + $0x18] sm:$0xf]
        %v2404 = vld [vmem:[#allocation6 + $0x1c] sm:$0xf]
        %v2405 = vld [vmem:[#allocation6 + $0x20] sm:$0xf]
        %v2406 = vld [vmem:[#allocation6 + $0x24] sm:$0xf]
        %v2407 = vld [vmem:[#allocation6 + $0x28] sm:$0xf]
        %v2408 = vld [vmem:[#allocation6 + $0x2c] sm:$0xf]
        %v2409 = vld [vmem:[#allocation6 + $0x30] sm:$0xf]
        %v2410 = vld [vmem:[#allocation6 + $0x34] sm:$0xf]
        %v2411 = vld [vmem:[#allocation6 + $0x38] sm:$0xf]
        %v2412 = vld [vmem:[#allocation6 + $0x3c] sm:$0xf]
        %v2413 = vld [vmem:[#allocation6 + $0x40] sm:$0xf]
        %v2414 = vld [vmem:[#allocation6 + $0x44] sm:$0xf]
        %v2415 = vld [vmem:[#allocation6 + $0x48] sm:$0xf]
        %v2416 = vld [vmem:[#allocation6 + $0x4c] sm:$0xf]
        %v2417 = vld [vmem:[#allocation6 + $0x50] sm:$0xf]
        %v2418 = vld [vmem:[#allocation6 + $0x54] sm:$0xf]
        %v2419 = vld [vmem:[#allocation6 + $0x58] sm:$0xf]
        %v2420 = vld [vmem:[#allocation6 + $0x5c] sm:$0xf]
        %v2421 = vld [vmem:[#allocation6 + $0x60] sm:$0xf]
        %v2422 = vld [vmem:[#allocation6 + $0x64] sm:$0xf]
        %v2423 = vld [vmem:[#allocation6 + $0x68] sm:$0xf]
        %v2424 = vld [vmem:[#allocation6 + $0x6c] sm:$0xf]
        %v2425 = vld [vmem:[#allocation6 + $0x70] sm:$0xf]
        %v2426 = vld [vmem:[#allocation6 + $0x74] sm:$0xf]
        %v2427 = vld [vmem:[#allocation6 + $0x78] sm:$0xf]
        %v2428 = vld [vmem:[#allocation6 + $0x7c] sm:$0xf]
        %v2429 = vld [vmem:[#allocation6 + $0x80] sm:$0xf]
        %v2430 = vld [vmem:[#allocation6 + $0x84] sm:$0xf]
        %v2431 = vld [vmem:[#allocation6 + $0x88] sm:$0xf]
        %v2432 = vld [vmem:[#allocation6 + $0x8c] sm:$0xf]
        %v2433 = vld [vmem:[#allocation6 + $0x90] sm:$0xf]
        %v2434 = vld [vmem:[#allocation6 + $0x94] sm:$0xf]
        %v2435 = vld [vmem:[#allocation6 + $0x98] sm:$0xf]
        %v2436 = vld [vmem:[#allocation6 + $0x9c] sm:$0xf]
        %v2437 = vld [vmem:[#allocation6 + $0xa0] sm:$0xf]
        %v2438 = vld [vmem:[#allocation6 + $0xa4] sm:$0xf]
        %v2439 = vld [vmem:[#allocation6 + $0xa8] sm:$0xf]
        %v2440 = vld [vmem:[#allocation6 + $0xac] sm:$0xf]
        %v2441 = vld [vmem:[#allocation6 + $0xb0] sm:$0xf]
        %v2442 = vld [vmem:[#allocation6 + $0xb4] sm:$0xf]
        %v2443 = vld [vmem:[#allocation6 + $0xb8] sm:$0xf]
        %v2444 = vld [vmem:[#allocation6 + $0xbc] sm:$0xf]
        %s2445 = scalar_lea.vmem %s290, 128 [#allocation3]
        %v2446 = vld [vmem:[%s2445] sm:$0xff]
        %v2447 = vld [vmem:[%s2445 + $0x8] sm:$0xff]
        %v2448 = vld [vmem:[%s2445 + $0x10] sm:$0xff]
        %v2449 = vld [vmem:[%s2445 + $0x18] sm:$0xff]
        %v2450 = vld [vmem:[%s2445 + $0x20] sm:$0xff]
        %v2451 = vld [vmem:[%s2445 + $0x28] sm:$0xff]
        %v2452 = vld [vmem:[%s2445 + $0x30] sm:$0xff]
        %v2453 = vld [vmem:[%s2445 + $0x38] sm:$0xff]
        %v2454 = vld [vmem:[%s2445 + $0x40] sm:$0xff]
        %v2455 = vld [vmem:[%s2445 + $0x48] sm:$0xff]
        %v2456 = vld [vmem:[%s2445 + $0x50] sm:$0xff]
        %v2457 = vld [vmem:[%s2445 + $0x58] sm:$0xff]
        %v2458 = vld [vmem:[%s2445 + $0x60] sm:$0xff]
        %v2459 = vld [vmem:[%s2445 + $0x68] sm:$0xff]
        %v2460 = vld [vmem:[%s2445 + $0x70] sm:$0xff]
        %v2461 = vld [vmem:[%s2445 + $0x78] sm:$0xff]
        %v2462 = vrot.slane %v2446, 7
        %v2463 = vrot.slane %v2448, 7
        %v2464 = vrot.slane %v2450, 7
        %v2465 = vrot.slane %v2452, 7
        %v2466 = vrot.slane %v2454, 7
        %v2467 = vrot.slane %v2456, 7
        %v2468 = vrot.slane %v2458, 7
        %v2469 = vrot.slane %v2460, 7
        %v2470 = vrot.slane %v2447, 7
        %v2471 = vrot.slane %v2449, 7
        %v2472 = vrot.slane %v2451, 7
        %v2473 = vrot.slane %v2453, 7
        %v2474 = vrot.slane %v2455, 7
        %v2475 = vrot.slane %v2457, 7
        %v2476 = vrot.slane %v2459, 7
        %v2477 = vrot.slane %v2461, 7
        %v2478 = vsel %vm379, %v2462, %v2470
        %v2479 = vsel %vm379, %v2463, %v2471
        %v2480 = vsel %vm379, %v2464, %v2472
        %v2481 = vsel %vm379, %v2465, %v2473
        %v2482 = vsel %vm379, %v2466, %v2474
        %v2483 = vsel %vm379, %v2467, %v2475
        %v2484 = vsel %vm379, %v2468, %v2476
        %v2485 = vsel %vm379, %v2469, %v2477
        %v2486 = vsel %vm379, %v2470, %v2462
        %v2487 = vsel %vm379, %v2471, %v2463
        %v2488 = vsel %vm379, %v2472, %v2464
        %v2489 = vsel %vm379, %v2473, %v2465
        %v2490 = vsel %vm379, %v2474, %v2466
        %v2491 = vsel %vm379, %v2475, %v2467
        %v2492 = vsel %vm379, %v2476, %v2468
        %v2493 = vsel %vm379, %v2477, %v2469
        %v2494 = vmul.f32 %v2486, %v343
        %v2495 = vmul.f32 %v2478, %v344
        %v2496 = vmul.f32 %v2487, %v343
        %v2497 = vmul.f32 %v2479, %v344
        %v2498 = vmul.f32 %v2488, %v343
        %v2499 = vmul.f32 %v2480, %v344
        %v2500 = vmul.f32 %v2489, %v343
        %v2501 = vmul.f32 %v2481, %v344
        %v2502 = vmul.f32 %v2490, %v343
        %v2503 = vmul.f32 %v2482, %v344
        %v2504 = vmul.f32 %v2491, %v343
        %v2505 = vmul.f32 %v2483, %v344
        %v2506 = vmul.f32 %v2492, %v343
        %v2507 = vmul.f32 %v2484, %v344
        %v2508 = vmul.f32 %v2493, %v343
        %v2509 = vmul.f32 %v2485, %v344
        %v2510 = vpack.c.bf16 %v2494, %v2494
        %v2511 = vpack.c.bf16 %v2495, %v2495
        %v2512 = vpack.c.bf16 %v2496, %v2496
        %v2513 = vpack.c.bf16 %v2497, %v2497
        %v2514 = vpack.c.bf16 %v2498, %v2498
        %v2515 = vpack.c.bf16 %v2499, %v2499
        %v2516 = vpack.c.bf16 %v2500, %v2500
        %v2517 = vpack.c.bf16 %v2501, %v2501
        %v2518 = vpack.c.bf16 %v2502, %v2502
        %v2519 = vpack.c.bf16 %v2503, %v2503
        %v2520 = vpack.c.bf16 %v2504, %v2504
        %v2521 = vpack.c.bf16 %v2505, %v2505
        %v2522 = vpack.c.bf16 %v2506, %v2506
        %v2523 = vpack.c.bf16 %v2507, %v2507
        %v2524 = vpack.c.bf16 %v2508, %v2508
        %v2525 = vpack.c.bf16 %v2509, %v2509
        %v2526 = vrot.slane %v2446, 1
        %v2527 = vrot.slane %v2448, 1
        %v2528 = vrot.slane %v2450, 1
        %v2529 = vrot.slane %v2452, 1
        %v2530 = vrot.slane %v2454, 1
        %v2531 = vrot.slane %v2456, 1
        %v2532 = vrot.slane %v2458, 1
        %v2533 = vrot.slane %v2460, 1
        %v2534 = vrot.slane %v2447, 1
        %v2535 = vrot.slane %v2449, 1
        %v2536 = vrot.slane %v2451, 1
        %v2537 = vrot.slane %v2453, 1
        %v2538 = vrot.slane %v2455, 1
        %v2539 = vrot.slane %v2457, 1
        %v2540 = vrot.slane %v2459, 1
        %v2541 = vrot.slane %v2461, 1
        %v2542 = vsel %vm440, %v2526, %v2534
        %v2543 = vsel %vm440, %v2527, %v2535
        %v2544 = vsel %vm440, %v2528, %v2536
        %v2545 = vsel %vm440, %v2529, %v2537
        %v2546 = vsel %vm440, %v2530, %v2538
        %v2547 = vsel %vm440, %v2531, %v2539
        %v2548 = vsel %vm440, %v2532, %v2540
        %v2549 = vsel %vm440, %v2533, %v2541
        %v2550 = vsel %vm440, %v2534, %v2526
        %v2551 = vsel %vm440, %v2535, %v2527
        %v2552 = vsel %vm440, %v2536, %v2528
        %v2553 = vsel %vm440, %v2537, %v2529
        %v2554 = vsel %vm440, %v2538, %v2530
        %v2555 = vsel %vm440, %v2539, %v2531
        %v2556 = vsel %vm440, %v2540, %v2532
        %v2557 = vsel %vm440, %v2541, %v2533
        %v2558 = vmul.f32 %v2542, %v349
        %v2559 = vmul.f32 %v2550, %v350
        %v2560 = vmul.f32 %v2543, %v349
        %v2561 = vmul.f32 %v2551, %v350
        %v2562 = vmul.f32 %v2544, %v349
        %v2563 = vmul.f32 %v2552, %v350
        %v2564 = vmul.f32 %v2545, %v349
        %v2565 = vmul.f32 %v2553, %v350
        %v2566 = vmul.f32 %v2546, %v349
        %v2567 = vmul.f32 %v2554, %v350
        %v2568 = vmul.f32 %v2547, %v349
        %v2569 = vmul.f32 %v2555, %v350
        %v2570 = vmul.f32 %v2548, %v349
        %v2571 = vmul.f32 %v2556, %v350
        %v2572 = vmul.f32 %v2549, %v349
        %v2573 = vmul.f32 %v2557, %v350
        %v2574 = vpack.c.bf16 %v2558, %v2558
        %v2575 = vpack.c.bf16 %v2559, %v2559
        %v2576 = vpack.c.bf16 %v2560, %v2560
        %v2577 = vpack.c.bf16 %v2561, %v2561
        %v2578 = vpack.c.bf16 %v2562, %v2562
        %v2579 = vpack.c.bf16 %v2563, %v2563
        %v2580 = vpack.c.bf16 %v2564, %v2564
        %v2581 = vpack.c.bf16 %v2565, %v2565
        %v2582 = vpack.c.bf16 %v2566, %v2566
        %v2583 = vpack.c.bf16 %v2567, %v2567
        %v2584 = vpack.c.bf16 %v2568, %v2568
        %v2585 = vpack.c.bf16 %v2569, %v2569
        %v2586 = vpack.c.bf16 %v2570, %v2570
        %v2587 = vpack.c.bf16 %v2571, %v2571
        %v2588 = vpack.c.bf16 %v2572, %v2572
        %v2589 = vpack.c.bf16 %v2573, %v2573
        %v2590 = vpack.c.bf16 %v2446, %v2446
        %v2591 = vpack.c.bf16 %v2447, %v2447
        %v2592 = vpack.c.bf16 %v2448, %v2448
        %v2593 = vpack.c.bf16 %v2449, %v2449
        %v2594 = vpack.c.bf16 %v2450, %v2450
        %v2595 = vpack.c.bf16 %v2451, %v2451
        %v2596 = vpack.c.bf16 %v2452, %v2452
        %v2597 = vpack.c.bf16 %v2453, %v2453
        %v2598 = vpack.c.bf16 %v2454, %v2454
        %v2599 = vpack.c.bf16 %v2455, %v2455
        %v2600 = vpack.c.bf16 %v2456, %v2456
        %v2601 = vpack.c.bf16 %v2457, %v2457
        %v2602 = vpack.c.bf16 %v2458, %v2458
        %v2603 = vpack.c.bf16 %v2459, %v2459
        %v2604 = vpack.c.bf16 %v2460, %v2460
        %v2605 = vpack.c.bf16 %v2461, %v2461
        %v2622 = vunpack.c.l.b16 %v2510
        %v2623 = vunpack.c.l.b16 %v2511
        %v2624 = vunpack.c.l.b16 %v2512
        %v2625 = vunpack.c.l.b16 %v2513
        %v2626 = vunpack.c.l.b16 %v2514
        %v2627 = vunpack.c.l.b16 %v2515
        %v2628 = vunpack.c.l.b16 %v2516
        %v2629 = vunpack.c.l.b16 %v2517
        %v2630 = vunpack.c.l.b16 %v2518
        %v2631 = vunpack.c.l.b16 %v2519
        %v2632 = vunpack.c.l.b16 %v2520
        %v2633 = vunpack.c.l.b16 %v2521
        %v2634 = vunpack.c.l.b16 %v2522
        %v2635 = vunpack.c.l.b16 %v2523
        %v2636 = vunpack.c.l.b16 %v2524
        %v2637 = vunpack.c.l.b16 %v2525
        %v2638 = vpack.c.b16 %v2623, %v2622
        %v2639 = vpack.c.b16 %v2625, %v2624
        %v2640 = vpack.c.b16 %v2627, %v2626
        %v2641 = vpack.c.b16 %v2629, %v2628
        %v2642 = vpack.c.b16 %v2631, %v2630
        %v2643 = vpack.c.b16 %v2633, %v2632
        %v2644 = vpack.c.b16 %v2635, %v2634
        %v2645 = vpack.c.b16 %v2637, %v2636
        %v2670 = vunpack.c.l.b16 %v2590
        %v2671 = vunpack.c.l.b16 %v2591
        %v2672 = vunpack.c.l.b16 %v2592
        %v2673 = vunpack.c.l.b16 %v2593
        %v2674 = vunpack.c.l.b16 %v2594
        %v2675 = vunpack.c.l.b16 %v2595
        %v2676 = vunpack.c.l.b16 %v2596
        %v2677 = vunpack.c.l.b16 %v2597
        %v2678 = vunpack.c.l.b16 %v2598
        %v2679 = vunpack.c.l.b16 %v2599
        %v2680 = vunpack.c.l.b16 %v2600
        %v2681 = vunpack.c.l.b16 %v2601
        %v2682 = vunpack.c.l.b16 %v2602
        %v2683 = vunpack.c.l.b16 %v2603
        %v2684 = vunpack.c.l.b16 %v2604
        %v2685 = vunpack.c.l.b16 %v2605
        %v2686 = vpack.c.b16 %v2671, %v2670
        %v2687 = vpack.c.b16 %v2673, %v2672
        %v2688 = vpack.c.b16 %v2675, %v2674
        %v2689 = vpack.c.b16 %v2677, %v2676
        %v2690 = vpack.c.b16 %v2679, %v2678
        %v2691 = vpack.c.b16 %v2681, %v2680
        %v2692 = vpack.c.b16 %v2683, %v2682
        %v2693 = vpack.c.b16 %v2685, %v2684
        %v2718 = vunpack.c.l.b16 %v2574
        %v2719 = vunpack.c.l.b16 %v2575
        %v2720 = vunpack.c.l.b16 %v2576
        %v2721 = vunpack.c.l.b16 %v2577
        %v2722 = vunpack.c.l.b16 %v2578
        %v2723 = vunpack.c.l.b16 %v2579
        %v2724 = vunpack.c.l.b16 %v2580
        %v2725 = vunpack.c.l.b16 %v2581
        %v2726 = vunpack.c.l.b16 %v2582
        %v2727 = vunpack.c.l.b16 %v2583
        %v2728 = vunpack.c.l.b16 %v2584
        %v2729 = vunpack.c.l.b16 %v2585
        %v2730 = vunpack.c.l.b16 %v2586
        %v2731 = vunpack.c.l.b16 %v2587
        %v2732 = vunpack.c.l.b16 %v2588
        %v2733 = vunpack.c.l.b16 %v2589
        %v2734 = vpack.c.b16 %v2719, %v2718
        %v2735 = vpack.c.b16 %v2721, %v2720
        %v2736 = vpack.c.b16 %v2723, %v2722
        %v2737 = vpack.c.b16 %v2725, %v2724
        %v2738 = vpack.c.b16 %v2727, %v2726
        %v2739 = vpack.c.b16 %v2729, %v2728
        %v2740 = vpack.c.b16 %v2731, %v2730
        %v2741 = vpack.c.b16 %v2733, %v2732
        %v2750 = vld [vmem:[%s730] sm:$0xf]
        %v2751 = vld [vmem:[%s730 + $0x4] sm:$0xf]
        %v2752 = vld [vmem:[%s730 + $0x8] sm:$0xf]
        %v2753 = vld [vmem:[%s730 + $0xc] sm:$0xf]
        %v2754 = vld [vmem:[%s730 + $0x10] sm:$0xf]
        %v2755 = vld [vmem:[%s730 + $0x14] sm:$0xf]
        %v2756 = vld [vmem:[%s730 + $0x18] sm:$0xf]
        %v2757 = vld [vmem:[%s730 + $0x1c] sm:$0xf]
        %v2758 = vld [vmem:[%s730 + $0x20] sm:$0xf]
        %v2759 = vld [vmem:[%s730 + $0x24] sm:$0xf]
        %v2760 = vld [vmem:[%s730 + $0x28] sm:$0xf]
        %v2761 = vld [vmem:[%s730 + $0x2c] sm:$0xf]
        %v2762 = vld [vmem:[%s730 + $0x30] sm:$0xf]
        %v2763 = vld [vmem:[%s730 + $0x34] sm:$0xf]
        %v2764 = vld [vmem:[%s730 + $0x38] sm:$0xf]
        %v2765 = vld [vmem:[%s730 + $0x3c] sm:$0xf]
        %v2766 = vld [vmem:[%s730 + $0x40] sm:$0xf]
        %v2767 = vld [vmem:[%s730 + $0x44] sm:$0xf]
        %v2768 = vld [vmem:[%s730 + $0x48] sm:$0xf]
        %v2769 = vld [vmem:[%s730 + $0x4c] sm:$0xf]
        %v2770 = vld [vmem:[%s730 + $0x50] sm:$0xf]
        %v2771 = vld [vmem:[%s730 + $0x54] sm:$0xf]
        %v2772 = vld [vmem:[%s730 + $0x58] sm:$0xf]
        %v2773 = vld [vmem:[%s730 + $0x5c] sm:$0xf]
        %v2774 = vld [vmem:[%s730 + $0x60] sm:$0xf]
        %v2775 = vld [vmem:[%s730 + $0x64] sm:$0xf]
        %v2776 = vld [vmem:[%s730 + $0x68] sm:$0xf]
        %v2777 = vld [vmem:[%s730 + $0x6c] sm:$0xf]
        %v2778 = vld [vmem:[%s730 + $0x70] sm:$0xf]
        %v2779 = vld [vmem:[%s730 + $0x74] sm:$0xf]
        %v2780 = vld [vmem:[%s730 + $0x78] sm:$0xf]
        %v2781 = vld [vmem:[%s730 + $0x7c] sm:$0xf]
        %v2782 = vld [vmem:[%s730 + $0x80] sm:$0xf]
        %v2783 = vld [vmem:[%s730 + $0x84] sm:$0xf]
        %v2784 = vld [vmem:[%s730 + $0x88] sm:$0xf]
        %v2785 = vld [vmem:[%s730 + $0x8c] sm:$0xf]
        %v2786 = vld [vmem:[%s730 + $0x90] sm:$0xf]
        %v2787 = vld [vmem:[%s730 + $0x94] sm:$0xf]
        %v2788 = vld [vmem:[%s730 + $0x98] sm:$0xf]
        %v2789 = vld [vmem:[%s730 + $0x9c] sm:$0xf]
        %v2790 = vld [vmem:[%s730 + $0xa0] sm:$0xf]
        %v2791 = vld [vmem:[%s730 + $0xa4] sm:$0xf]
        %v2792 = vld [vmem:[%s730 + $0xa8] sm:$0xf]
        %v2793 = vld [vmem:[%s730 + $0xac] sm:$0xf]
        %v2794 = vld [vmem:[%s730 + $0xb0] sm:$0xf]
        %v2795 = vld [vmem:[%s730 + $0xb4] sm:$0xf]
        %v2796 = vld [vmem:[%s730 + $0xb8] sm:$0xf]
        %v2797 = vld [vmem:[%s730 + $0xbc] sm:$0xf]
        %v2846 = vunpack.c.l.b16 %v2750
        %v2847 = vunpack.c.l.b16 %v2751
        %v2848 = vunpack.c.l.b16 %v2752
        %v2849 = vunpack.c.l.b16 %v2753
        %v2850 = vunpack.c.l.b16 %v2754
        %v2851 = vunpack.c.l.b16 %v2755
        %v2852 = vunpack.c.l.b16 %v2756
        %v2853 = vunpack.c.l.b16 %v2757
        %v2854 = vunpack.c.l.b16 %v2758
        %v2855 = vunpack.c.l.b16 %v2759
        %v2856 = vunpack.c.l.b16 %v2760
        %v2857 = vunpack.c.l.b16 %v2761
        %v2858 = vunpack.c.l.b16 %v2762
        %v2859 = vunpack.c.l.b16 %v2763
        %v2860 = vunpack.c.l.b16 %v2764
        %v2861 = vunpack.c.l.b16 %v2765
        %v2862 = vunpack.c.l.b16 %v2766
        %v2863 = vunpack.c.l.b16 %v2767
        %v2864 = vunpack.c.l.b16 %v2768
        %v2865 = vunpack.c.l.b16 %v2769
        %v2866 = vunpack.c.l.b16 %v2770
        %v2867 = vunpack.c.l.b16 %v2771
        %v2868 = vunpack.c.l.b16 %v2772
        %v2869 = vunpack.c.l.b16 %v2773
        %v2870 = vunpack.c.l.b16 %v2774
        %v2871 = vunpack.c.l.b16 %v2775
        %v2872 = vunpack.c.l.b16 %v2776
        %v2873 = vunpack.c.l.b16 %v2777
        %v2874 = vunpack.c.l.b16 %v2778
        %v2875 = vunpack.c.l.b16 %v2779
        %v2876 = vunpack.c.l.b16 %v2780
        %v2877 = vunpack.c.l.b16 %v2781
        %v2878 = vunpack.c.l.b16 %v2782
        %v2879 = vunpack.c.l.b16 %v2783
        %v2880 = vunpack.c.l.b16 %v2784
        %v2881 = vunpack.c.l.b16 %v2785
        %v2882 = vunpack.c.l.b16 %v2786
        %v2883 = vunpack.c.l.b16 %v2787
        %v2884 = vunpack.c.l.b16 %v2788
        %v2885 = vunpack.c.l.b16 %v2789
        %v2886 = vunpack.c.l.b16 %v2790
        %v2887 = vunpack.c.l.b16 %v2791
        %v2888 = vunpack.c.l.b16 %v2792
        %v2889 = vunpack.c.l.b16 %v2793
        %v2890 = vunpack.c.l.b16 %v2794
        %v2891 = vunpack.c.l.b16 %v2795
        %v2892 = vunpack.c.l.b16 %v2796
        %v2893 = vunpack.c.l.b16 %v2797
        %v2894 = vpack.c.b16 %v2847, %v2846
        %v2895 = vpack.c.b16 %v2849, %v2848
        %v2896 = vpack.c.b16 %v2851, %v2850
        %v2897 = vpack.c.b16 %v2853, %v2852
        %v2898 = vpack.c.b16 %v2855, %v2854
        %v2899 = vpack.c.b16 %v2857, %v2856
        %v2900 = vpack.c.b16 %v2859, %v2858
        %v2901 = vpack.c.b16 %v2861, %v2860
        %v2902 = vpack.c.b16 %v2863, %v2862
        %v2903 = vpack.c.b16 %v2865, %v2864
        %v2904 = vpack.c.b16 %v2867, %v2866
        %v2905 = vpack.c.b16 %v2869, %v2868
        %v2906 = vpack.c.b16 %v2871, %v2870
        %v2907 = vpack.c.b16 %v2873, %v2872
        %v2908 = vpack.c.b16 %v2875, %v2874
        %v2909 = vpack.c.b16 %v2877, %v2876
        %v2910 = vpack.c.b16 %v2879, %v2878
        %v2911 = vpack.c.b16 %v2881, %v2880
        %v2912 = vpack.c.b16 %v2883, %v2882
        %v2913 = vpack.c.b16 %v2885, %v2884
        %v2914 = vpack.c.b16 %v2887, %v2886
        %v2915 = vpack.c.b16 %v2889, %v2888
        %v2916 = vpack.c.b16 %v2891, %v2890
        %v2917 = vpack.c.b16 %v2893, %v2892
        %2942 = vmatpush.bf16.msra.mxu0 %v2901
        %2943 = vmatpush.bf16.msra.mxu0 %v2900
        %2944 = vmatpush.bf16.msra.mxu0 %v2899
        %2945 = vmatpush.bf16.msra.mxu0 %v2898
        %2946 = vmatpush.bf16.msra.mxu0 %v2897
        %2947 = vmatpush.bf16.msra.mxu0 %v2896
        %2948 = vmatpush.bf16.msra.mxu0 %v2895
        %2949 = vmatpush.bf16.msra.mxu0 %v2894
        %2950 = vmatmul.bf16.gmra.mxu0 %v2638
        %v2951 = vpop.f32.mrf.mxu0
        %v2952 = vadd.f32 0.0, %v2951
        %v2953 = vpop.f32.mrf.mxu0
        %v2954 = vadd.f32 0.0, %v2953
        %2955 = vmatmul.bf16.gmra.mxu0 %v2639
        %v2956 = vpop.f32.mrf.mxu0
        %v2957 = vadd.f32 0.0, %v2956
        %v2958 = vpop.f32.mrf.mxu0
        %v2959 = vadd.f32 0.0, %v2958
        %2960 = vmatmul.bf16.gmra.mxu0 %v2640
        %v2961 = vpop.f32.mrf.mxu0
        %v2962 = vadd.f32 0.0, %v2961
        %v2963 = vpop.f32.mrf.mxu0
        %v2964 = vadd.f32 0.0, %v2963
        %2965 = vmatmul.bf16.gmra.mxu0 %v2641
        %v2966 = vpop.f32.mrf.mxu0
        %v2967 = vadd.f32 0.0, %v2966
        %v2968 = vpop.f32.mrf.mxu0
        %v2969 = vadd.f32 0.0, %v2968
        %2970 = vmatmul.bf16.gmra.mxu0 %v2642
        %v2971 = vpop.f32.mrf.mxu0
        %v2972 = vadd.f32 0.0, %v2971
        %v2973 = vpop.f32.mrf.mxu0
        %v2974 = vadd.f32 0.0, %v2973
        %2975 = vmatmul.bf16.gmra.mxu0 %v2643
        %v2976 = vpop.f32.mrf.mxu0
        %v2977 = vadd.f32 0.0, %v2976
        %v2978 = vpop.f32.mrf.mxu0
        %v2979 = vadd.f32 0.0, %v2978
        %2980 = vmatmul.bf16.gmra.mxu0 %v2644
        %v2981 = vpop.f32.mrf.mxu0
        %v2982 = vadd.f32 0.0, %v2981
        %v2983 = vpop.f32.mrf.mxu0
        %v2984 = vadd.f32 0.0, %v2983
        %2985 = vmatmul.bf16.gmra.mxu0 %v2645
        %v2986 = vpop.f32.mrf.mxu0
        %v2987 = vadd.f32 0.0, %v2986
        %v2988 = vpop.f32.mrf.mxu0
        %v2989 = vadd.f32 0.0, %v2988
        %2990 = vdwg.mxu0
        %2991 = vmatpush.bf16.msra.mxu0 %v2909
        %2992 = vmatpush.bf16.msra.mxu0 %v2908
        %2993 = vmatpush.bf16.msra.mxu0 %v2907
        %2994 = vmatpush.bf16.msra.mxu0 %v2906
        %2995 = vmatpush.bf16.msra.mxu0 %v2905
        %2996 = vmatpush.bf16.msra.mxu0 %v2904
        %2997 = vmatpush.bf16.msra.mxu0 %v2903
        %2998 = vmatpush.bf16.msra.mxu0 %v2902
        %2999 = vmatmul.bf16.gmra.mxu0 %v2686
        %v3000 = vpop.f32.mrf.mxu0
        %v3001 = vadd.f32 %v2952, %v3000
        %v3002 = vpop.f32.mrf.mxu0
        %v3003 = vadd.f32 %v2954, %v3002
        %3004 = vmatmul.bf16.gmra.mxu0 %v2687
        %v3005 = vpop.f32.mrf.mxu0
        %v3006 = vadd.f32 %v2957, %v3005
        %v3007 = vpop.f32.mrf.mxu0
        %v3008 = vadd.f32 %v2959, %v3007
        %3009 = vmatmul.bf16.gmra.mxu0 %v2688
        %v3010 = vpop.f32.mrf.mxu0
        %v3011 = vadd.f32 %v2962, %v3010
        %v3012 = vpop.f32.mrf.mxu0
        %v3013 = vadd.f32 %v2964, %v3012
        %3014 = vmatmul.bf16.gmra.mxu0 %v2689
        %v3015 = vpop.f32.mrf.mxu0
        %v3016 = vadd.f32 %v2967, %v3015
        %v3017 = vpop.f32.mrf.mxu0
        %v3018 = vadd.f32 %v2969, %v3017
        %3019 = vmatmul.bf16.gmra.mxu0 %v2690
        %v3020 = vpop.f32.mrf.mxu0
        %v3021 = vadd.f32 %v2972, %v3020
        %v3022 = vpop.f32.mrf.mxu0
        %v3023 = vadd.f32 %v2974, %v3022
        %3024 = vmatmul.bf16.gmra.mxu0 %v2691
        %v3025 = vpop.f32.mrf.mxu0
        %v3026 = vadd.f32 %v2977, %v3025
        %v3027 = vpop.f32.mrf.mxu0
        %v3028 = vadd.f32 %v2979, %v3027
        %3029 = vmatmul.bf16.gmra.mxu0 %v2692
        %v3030 = vpop.f32.mrf.mxu0
        %v3031 = vadd.f32 %v2982, %v3030
        %v3032 = vpop.f32.mrf.mxu0
        %v3033 = vadd.f32 %v2984, %v3032
        %3034 = vmatmul.bf16.gmra.mxu0 %v2693
        %v3035 = vpop.f32.mrf.mxu0
        %v3036 = vadd.f32 %v2987, %v3035
        %v3037 = vpop.f32.mrf.mxu0
        %v3038 = vadd.f32 %v2989, %v3037
        %3039 = vdwg.mxu0
        %3040 = vmatpush.bf16.msra.mxu0 %v2917
        %3041 = vmatpush.bf16.msra.mxu0 %v2916
        %3042 = vmatpush.bf16.msra.mxu0 %v2915
        %3043 = vmatpush.bf16.msra.mxu0 %v2914
        %3044 = vmatpush.bf16.msra.mxu0 %v2913
        %3045 = vmatpush.bf16.msra.mxu0 %v2912
        %3046 = vmatpush.bf16.msra.mxu0 %v2911
        %3047 = vmatpush.bf16.msra.mxu0 %v2910
        %3048 = vmatmul.bf16.gmra.mxu0 %v2734
        %v3049 = vpop.f32.mrf.mxu0
        %v3050 = vadd.f32 %v3001, %v3049
        %v3051 = vpop.f32.mrf.mxu0
        %v3052 = vadd.f32 %v3003, %v3051
        %3053 = vmatmul.bf16.gmra.mxu0 %v2735
        %v3054 = vpop.f32.mrf.mxu0
        %v3055 = vadd.f32 %v3006, %v3054
        %v3056 = vpop.f32.mrf.mxu0
        %v3057 = vadd.f32 %v3008, %v3056
        %3058 = vmatmul.bf16.gmra.mxu0 %v2736
        %v3059 = vpop.f32.mrf.mxu0
        %v3060 = vadd.f32 %v3011, %v3059
        %v3061 = vpop.f32.mrf.mxu0
        %v3062 = vadd.f32 %v3013, %v3061
        %3063 = vmatmul.bf16.gmra.mxu0 %v2737
        %v3064 = vpop.f32.mrf.mxu0
        %v3065 = vadd.f32 %v3016, %v3064
        %v3066 = vpop.f32.mrf.mxu0
        %v3067 = vadd.f32 %v3018, %v3066
        %3068 = vmatmul.bf16.gmra.mxu0 %v2738
        %v3069 = vpop.f32.mrf.mxu0
        %v3070 = vadd.f32 %v3021, %v3069
        %v3071 = vpop.f32.mrf.mxu0
        %v3072 = vadd.f32 %v3023, %v3071
        %3073 = vmatmul.bf16.gmra.mxu0 %v2739
        %v3074 = vpop.f32.mrf.mxu0
        %v3075 = vadd.f32 %v3026, %v3074
        %v3076 = vpop.f32.mrf.mxu0
        %v3077 = vadd.f32 %v3028, %v3076
        %3078 = vmatmul.bf16.gmra.mxu0 %v2740
        %v3079 = vpop.f32.mrf.mxu0
        %v3080 = vadd.f32 %v3031, %v3079
        %v3081 = vpop.f32.mrf.mxu0
        %v3082 = vadd.f32 %v3033, %v3081
        %3083 = vmatmul.bf16.gmra.mxu0 %v2741
        %v3084 = vpop.f32.mrf.mxu0
        %v3085 = vadd.f32 %v3036, %v3084
        %v3086 = vpop.f32.mrf.mxu0
        %v3087 = vadd.f32 %v3038, %v3086
        %3088 = vdwg.mxu0
        %v3137 = vunpack.c.l.b16 %v2397
        %v3138 = vunpack.c.l.b16 %v2398
        %v3139 = vunpack.c.l.b16 %v2399
        %v3140 = vunpack.c.l.b16 %v2400
        %v3141 = vunpack.c.l.b16 %v2401
        %v3142 = vunpack.c.l.b16 %v2402
        %v3143 = vunpack.c.l.b16 %v2403
        %v3144 = vunpack.c.l.b16 %v2404
        %v3145 = vunpack.c.l.b16 %v2405
        %v3146 = vunpack.c.l.b16 %v2406
        %v3147 = vunpack.c.l.b16 %v2407
        %v3148 = vunpack.c.l.b16 %v2408
        %v3149 = vunpack.c.l.b16 %v2409
        %v3150 = vunpack.c.l.b16 %v2410
        %v3151 = vunpack.c.l.b16 %v2411
        %v3152 = vunpack.c.l.b16 %v2412
        %v3153 = vunpack.c.l.b16 %v2413
        %v3154 = vunpack.c.l.b16 %v2414
        %v3155 = vunpack.c.l.b16 %v2415
        %v3156 = vunpack.c.l.b16 %v2416
        %v3157 = vunpack.c.l.b16 %v2417
        %v3158 = vunpack.c.l.b16 %v2418
        %v3159 = vunpack.c.l.b16 %v2419
        %v3160 = vunpack.c.l.b16 %v2420
        %v3161 = vunpack.c.l.b16 %v2421
        %v3162 = vunpack.c.l.b16 %v2422
        %v3163 = vunpack.c.l.b16 %v2423
        %v3164 = vunpack.c.l.b16 %v2424
        %v3165 = vunpack.c.l.b16 %v2425
        %v3166 = vunpack.c.l.b16 %v2426
        %v3167 = vunpack.c.l.b16 %v2427
        %v3168 = vunpack.c.l.b16 %v2428
        %v3169 = vunpack.c.l.b16 %v2429
        %v3170 = vunpack.c.l.b16 %v2430
        %v3171 = vunpack.c.l.b16 %v2431
        %v3172 = vunpack.c.l.b16 %v2432
        %v3173 = vunpack.c.l.b16 %v2433
        %v3174 = vunpack.c.l.b16 %v2434
        %v3175 = vunpack.c.l.b16 %v2435
        %v3176 = vunpack.c.l.b16 %v2436
        %v3177 = vunpack.c.l.b16 %v2437
        %v3178 = vunpack.c.l.b16 %v2438
        %v3179 = vunpack.c.l.b16 %v2439
        %v3180 = vunpack.c.l.b16 %v2440
        %v3181 = vunpack.c.l.b16 %v2441
        %v3182 = vunpack.c.l.b16 %v2442
        %v3183 = vunpack.c.l.b16 %v2443
        %v3184 = vunpack.c.l.b16 %v2444
        %v3185 = vpack.c.b16 %v3138, %v3137
        %v3186 = vpack.c.b16 %v3140, %v3139
        %v3187 = vpack.c.b16 %v3142, %v3141
        %v3188 = vpack.c.b16 %v3144, %v3143
        %v3189 = vpack.c.b16 %v3146, %v3145
        %v3190 = vpack.c.b16 %v3148, %v3147
        %v3191 = vpack.c.b16 %v3150, %v3149
        %v3192 = vpack.c.b16 %v3152, %v3151
        %v3193 = vpack.c.b16 %v3154, %v3153
        %v3194 = vpack.c.b16 %v3156, %v3155
        %v3195 = vpack.c.b16 %v3158, %v3157
        %v3196 = vpack.c.b16 %v3160, %v3159
        %v3197 = vpack.c.b16 %v3162, %v3161
        %v3198 = vpack.c.b16 %v3164, %v3163
        %v3199 = vpack.c.b16 %v3166, %v3165
        %v3200 = vpack.c.b16 %v3168, %v3167
        %v3201 = vpack.c.b16 %v3170, %v3169
        %v3202 = vpack.c.b16 %v3172, %v3171
        %v3203 = vpack.c.b16 %v3174, %v3173
        %v3204 = vpack.c.b16 %v3176, %v3175
        %v3205 = vpack.c.b16 %v3178, %v3177
        %v3206 = vpack.c.b16 %v3180, %v3179
        %v3207 = vpack.c.b16 %v3182, %v3181
        %v3208 = vpack.c.b16 %v3184, %v3183
        %3233 = vmatpush.bf16.msra.mxu0 %v3192
        %3234 = vmatpush.bf16.msra.mxu0 %v3191
        %3235 = vmatpush.bf16.msra.mxu0 %v3190
        %3236 = vmatpush.bf16.msra.mxu0 %v3189
        %3237 = vmatpush.bf16.msra.mxu0 %v3188
        %3238 = vmatpush.bf16.msra.mxu0 %v3187
        %3239 = vmatpush.bf16.msra.mxu0 %v3186
        %3240 = vmatpush.bf16.msra.mxu0 %v3185
        %3241 = vmatmul.bf16.gmra.mxu0 %v2285
        %v3242 = vpop.f32.mrf.mxu0
        %v3243 = vadd.f32 %v3050, %v3242
        %v3244 = vpop.f32.mrf.mxu0
        %v3245 = vadd.f32 %v3052, %v3244
        %3246 = vmatmul.bf16.gmra.mxu0 %v2286
        %v3247 = vpop.f32.mrf.mxu0
        %v3248 = vadd.f32 %v3055, %v3247
        %v3249 = vpop.f32.mrf.mxu0
        %v3250 = vadd.f32 %v3057, %v3249
        %3251 = vmatmul.bf16.gmra.mxu0 %v2287
        %v3252 = vpop.f32.mrf.mxu0
        %v3253 = vadd.f32 %v3060, %v3252
        %v3254 = vpop.f32.mrf.mxu0
        %v3255 = vadd.f32 %v3062, %v3254
        %3256 = vmatmul.bf16.gmra.mxu0 %v2288
        %v3257 = vpop.f32.mrf.mxu0
        %v3258 = vadd.f32 %v3065, %v3257
        %v3259 = vpop.f32.mrf.mxu0
        %v3260 = vadd.f32 %v3067, %v3259
        %3261 = vmatmul.bf16.gmra.mxu0 %v2289
        %v3262 = vpop.f32.mrf.mxu0
        %v3263 = vadd.f32 %v3070, %v3262
        %v3264 = vpop.f32.mrf.mxu0
        %v3265 = vadd.f32 %v3072, %v3264
        %3266 = vmatmul.bf16.gmra.mxu0 %v2290
        %v3267 = vpop.f32.mrf.mxu0
        %v3268 = vadd.f32 %v3075, %v3267
        %v3269 = vpop.f32.mrf.mxu0
        %v3270 = vadd.f32 %v3077, %v3269
        %3271 = vmatmul.bf16.gmra.mxu0 %v2291
        %v3272 = vpop.f32.mrf.mxu0
        %v3273 = vadd.f32 %v3080, %v3272
        %v3274 = vpop.f32.mrf.mxu0
        %v3275 = vadd.f32 %v3082, %v3274
        %3276 = vmatmul.bf16.gmra.mxu0 %v2292
        %v3277 = vpop.f32.mrf.mxu0
        %v3278 = vadd.f32 %v3085, %v3277
        %v3279 = vpop.f32.mrf.mxu0
        %v3280 = vadd.f32 %v3087, %v3279
        %3281 = vdwg.mxu0
        %3282 = vmatpush.bf16.msra.mxu0 %v3200
        %3283 = vmatpush.bf16.msra.mxu0 %v3199
        %3284 = vmatpush.bf16.msra.mxu0 %v3198
        %3285 = vmatpush.bf16.msra.mxu0 %v3197
        %3286 = vmatpush.bf16.msra.mxu0 %v3196
        %3287 = vmatpush.bf16.msra.mxu0 %v3195
        %3288 = vmatpush.bf16.msra.mxu0 %v3194
        %3289 = vmatpush.bf16.msra.mxu0 %v3193
        %3290 = vmatmul.bf16.gmra.mxu0 %v2333
        %v3291 = vpop.f32.mrf.mxu0
        %v3292 = vadd.f32 %v3243, %v3291
        %v3293 = vpop.f32.mrf.mxu0
        %v3294 = vadd.f32 %v3245, %v3293
        %3295 = vmatmul.bf16.gmra.mxu0 %v2334
        %v3296 = vpop.f32.mrf.mxu0
        %v3297 = vadd.f32 %v3248, %v3296
        %v3298 = vpop.f32.mrf.mxu0
        %v3299 = vadd.f32 %v3250, %v3298
        %3300 = vmatmul.bf16.gmra.mxu0 %v2335
        %v3301 = vpop.f32.mrf.mxu0
        %v3302 = vadd.f32 %v3253, %v3301
        %v3303 = vpop.f32.mrf.mxu0
        %v3304 = vadd.f32 %v3255, %v3303
        %3305 = vmatmul.bf16.gmra.mxu0 %v2336
        %v3306 = vpop.f32.mrf.mxu0
        %v3307 = vadd.f32 %v3258, %v3306
        %v3308 = vpop.f32.mrf.mxu0
        %v3309 = vadd.f32 %v3260, %v3308
        %3310 = vmatmul.bf16.gmra.mxu0 %v2337
        %v3311 = vpop.f32.mrf.mxu0
        %v3312 = vadd.f32 %v3263, %v3311
        %v3313 = vpop.f32.mrf.mxu0
        %v3314 = vadd.f32 %v3265, %v3313
        %3315 = vmatmul.bf16.gmra.mxu0 %v2338
        %v3316 = vpop.f32.mrf.mxu0
        %v3317 = vadd.f32 %v3268, %v3316
        %v3318 = vpop.f32.mrf.mxu0
        %v3319 = vadd.f32 %v3270, %v3318
        %3320 = vmatmul.bf16.gmra.mxu0 %v2339
        %v3321 = vpop.f32.mrf.mxu0
        %v3322 = vadd.f32 %v3273, %v3321
        %v3323 = vpop.f32.mrf.mxu0
        %v3324 = vadd.f32 %v3275, %v3323
        %3325 = vmatmul.bf16.gmra.mxu0 %v2340
        %v3326 = vpop.f32.mrf.mxu0
        %v3327 = vadd.f32 %v3278, %v3326
        %v3328 = vpop.f32.mrf.mxu0
        %v3329 = vadd.f32 %v3280, %v3328
        %3330 = vdwg.mxu0
        %3331 = vmatpush.bf16.msra.mxu0 %v3208
        %3332 = vmatpush.bf16.msra.mxu0 %v3207
        %3333 = vmatpush.bf16.msra.mxu0 %v3206
        %3334 = vmatpush.bf16.msra.mxu0 %v3205
        %3335 = vmatpush.bf16.msra.mxu0 %v3204
        %3336 = vmatpush.bf16.msra.mxu0 %v3203
        %3337 = vmatpush.bf16.msra.mxu0 %v3202
        %3338 = vmatpush.bf16.msra.mxu0 %v3201
        %3339 = vmatmul.bf16.gmra.mxu0 %v2381
        %v3340 = vpop.f32.mrf.mxu0
        %v3341 = vadd.f32 %v3292, %v3340
        %v3342 = vpop.f32.mrf.mxu0
        %v3343 = vadd.f32 %v3294, %v3342
        %3344 = vmatmul.bf16.gmra.mxu0 %v2382
        %v3345 = vpop.f32.mrf.mxu0
        %v3346 = vadd.f32 %v3297, %v3345
        %v3347 = vpop.f32.mrf.mxu0
        %v3348 = vadd.f32 %v3299, %v3347
        %3349 = vmatmul.bf16.gmra.mxu0 %v2383
        %v3350 = vpop.f32.mrf.mxu0
        %v3351 = vadd.f32 %v3302, %v3350
        %v3352 = vpop.f32.mrf.mxu0
        %v3353 = vadd.f32 %v3304, %v3352
        %3354 = vmatmul.bf16.gmra.mxu0 %v2384
        %v3355 = vpop.f32.mrf.mxu0
        %v3356 = vadd.f32 %v3307, %v3355
        %v3357 = vpop.f32.mrf.mxu0
        %v3358 = vadd.f32 %v3309, %v3357
        %3359 = vmatmul.bf16.gmra.mxu0 %v2385
        %v3360 = vpop.f32.mrf.mxu0
        %v3361 = vadd.f32 %v3312, %v3360
        %v3362 = vpop.f32.mrf.mxu0
        %v3363 = vadd.f32 %v3314, %v3362
        %3364 = vmatmul.bf16.gmra.mxu0 %v2386
        %v3365 = vpop.f32.mrf.mxu0
        %v3366 = vadd.f32 %v3317, %v3365
        %v3367 = vpop.f32.mrf.mxu0
        %v3368 = vadd.f32 %v3319, %v3367
        %3369 = vmatmul.bf16.gmra.mxu0 %v2387
        %v3370 = vpop.f32.mrf.mxu0
        %v3371 = vadd.f32 %v3322, %v3370
        %v3372 = vpop.f32.mrf.mxu0
        %v3373 = vadd.f32 %v3324, %v3372
        %3374 = vmatmul.bf16.gmra.mxu0 %v2388
        %v3375 = vpop.f32.mrf.mxu0
        %v3376 = vadd.f32 %v3327, %v3375
        %v3377 = vpop.f32.mrf.mxu0
        %v3378 = vadd.f32 %v3329, %v3377
        %3379 = vdwg.mxu0
        %s3380 = scalar_lea.vmem %s290, 144 [#allocation3]
        %v3381 = vld [vmem:[%s3380] sm:$0xff]
        %v3382 = vld [vmem:[%s3380 + $0x8] sm:$0xff]
        %v3383 = vld [vmem:[%s3380 + $0x10] sm:$0xff]
        %v3384 = vld [vmem:[%s3380 + $0x18] sm:$0xff]
        %v3385 = vld [vmem:[%s3380 + $0x20] sm:$0xff]
        %v3386 = vld [vmem:[%s3380 + $0x28] sm:$0xff]
        %v3387 = vld [vmem:[%s3380 + $0x30] sm:$0xff]
        %v3388 = vld [vmem:[%s3380 + $0x38] sm:$0xff]
        %v3389 = vld [vmem:[%s3380 + $0x40] sm:$0xff]
        %v3390 = vld [vmem:[%s3380 + $0x48] sm:$0xff]
        %v3391 = vld [vmem:[%s3380 + $0x50] sm:$0xff]
        %v3392 = vld [vmem:[%s3380 + $0x58] sm:$0xff]
        %v3393 = vld [vmem:[%s3380 + $0x60] sm:$0xff]
        %v3394 = vld [vmem:[%s3380 + $0x68] sm:$0xff]
        %v3395 = vrot.slane %v3381, 7
        %v3396 = vrot.slane %v3383, 7
        %v3397 = vrot.slane %v3385, 7
        %v3398 = vrot.slane %v3387, 7
        %v3399 = vrot.slane %v3389, 7
        %v3400 = vrot.slane %v3391, 7
        %v3401 = vrot.slane %v3393, 7
        %v3402 = vrot.slane %v3382, 7
        %v3403 = vrot.slane %v3384, 7
        %v3404 = vrot.slane %v3386, 7
        %v3405 = vrot.slane %v3388, 7
        %v3406 = vrot.slane %v3390, 7
        %v3407 = vrot.slane %v3392, 7
        %v3408 = vrot.slane %v3394, 7
        %v3409 = vsel %vm379, %v3395, %v3402
        %v3410 = vsel %vm379, %v3396, %v3403
        %v3411 = vsel %vm379, %v3397, %v3404
        %v3412 = vsel %vm379, %v3398, %v3405
        %v3413 = vsel %vm379, %v3399, %v3406
        %v3414 = vsel %vm379, %v3400, %v3407
        %v3415 = vsel %vm379, %v3401, %v3408
        %v3416 = vsel %vm379, %v3402, %v3395
        %v3417 = vsel %vm379, %v3403, %v3396
        %v3418 = vsel %vm379, %v3404, %v3397
        %v3419 = vsel %vm379, %v3405, %v3398
        %v3420 = vsel %vm379, %v3406, %v3399
        %v3421 = vsel %vm379, %v3407, %v3400
        %v3422 = vsel %vm379, %v3408, %v3401
        %v3423 = vmul.f32 %v3416, %v343
        %v3424 = vmul.f32 %v3409, %v344
        %v3425 = vmul.f32 %v3417, %v343
        %v3426 = vmul.f32 %v3410, %v344
        %v3427 = vmul.f32 %v3418, %v343
        %v3428 = vmul.f32 %v3411, %v344
        %v3429 = vmul.f32 %v3419, %v343
        %v3430 = vmul.f32 %v3412, %v344
        %v3431 = vmul.f32 %v3420, %v343
        %v3432 = vmul.f32 %v3413, %v344
        %v3433 = vmul.f32 %v3421, %v343
        %v3434 = vmul.f32 %v3414, %v344
        %v3435 = vmul.f32 %v3422, %v343
        %v3436 = vmul.f32 %v3415, %v344
        %v3437 = vpack.c.bf16 %v3423, %v3423
        %v3438 = vpack.c.bf16 %v3424, %v3424
        %v3439 = vpack.c.bf16 %v3425, %v3425
        %v3440 = vpack.c.bf16 %v3426, %v3426
        %v3441 = vpack.c.bf16 %v3427, %v3427
        %v3442 = vpack.c.bf16 %v3428, %v3428
        %v3443 = vpack.c.bf16 %v3429, %v3429
        %v3444 = vpack.c.bf16 %v3430, %v3430
        %v3445 = vpack.c.bf16 %v3431, %v3431
        %v3446 = vpack.c.bf16 %v3432, %v3432
        %v3447 = vpack.c.bf16 %v3433, %v3433
        %v3448 = vpack.c.bf16 %v3434, %v3434
        %v3449 = vpack.c.bf16 %v3435, %v3435
        %v3450 = vpack.c.bf16 %v3436, %v3436
        %v3451 = vrot.slane %v3381, 1
        %v3452 = vrot.slane %v3383, 1
        %v3453 = vrot.slane %v3385, 1
        %v3454 = vrot.slane %v3387, 1
        %v3455 = vrot.slane %v3389, 1
        %v3456 = vrot.slane %v3391, 1
        %v3457 = vrot.slane %v3393, 1
        %v3458 = vrot.slane %v3382, 1
        %v3459 = vrot.slane %v3384, 1
        %v3460 = vrot.slane %v3386, 1
        %v3461 = vrot.slane %v3388, 1
        %v3462 = vrot.slane %v3390, 1
        %v3463 = vrot.slane %v3392, 1
        %v3464 = vrot.slane %v3394, 1
        %v3465 = vsel %vm440, %v3451, %v3458
        %v3466 = vsel %vm440, %v3452, %v3459
        %v3467 = vsel %vm440, %v3453, %v3460
        %v3468 = vsel %vm440, %v3454, %v3461
        %v3469 = vsel %vm440, %v3455, %v3462
        %v3470 = vsel %vm440, %v3456, %v3463
        %v3471 = vsel %vm440, %v3457, %v3464
        %v3472 = vsel %vm440, %v3458, %v3451
        %v3473 = vsel %vm440, %v3459, %v3452
        %v3474 = vsel %vm440, %v3460, %v3453
        %v3475 = vsel %vm440, %v3461, %v3454
        %v3476 = vsel %vm440, %v3462, %v3455
        %v3477 = vsel %vm440, %v3463, %v3456
        %v3478 = vsel %vm440, %v3464, %v3457
        %v3479 = vmul.f32 %v3465, %v349
        %v3480 = vmul.f32 %v3472, %v350
        %v3481 = vmul.f32 %v3466, %v349
        %v3482 = vmul.f32 %v3473, %v350
        %v3483 = vmul.f32 %v3467, %v349
        %v3484 = vmul.f32 %v3474, %v350
        %v3485 = vmul.f32 %v3468, %v349
        %v3486 = vmul.f32 %v3475, %v350
        %v3487 = vmul.f32 %v3469, %v349
        %v3488 = vmul.f32 %v3476, %v350
        %v3489 = vmul.f32 %v3470, %v349
        %v3490 = vmul.f32 %v3477, %v350
        %v3491 = vmul.f32 %v3471, %v349
        %v3492 = vmul.f32 %v3478, %v350
        %v3493 = vpack.c.bf16 %v3479, %v3479
        %v3494 = vpack.c.bf16 %v3480, %v3480
        %v3495 = vpack.c.bf16 %v3481, %v3481
        %v3496 = vpack.c.bf16 %v3482, %v3482
        %v3497 = vpack.c.bf16 %v3483, %v3483
        %v3498 = vpack.c.bf16 %v3484, %v3484
        %v3499 = vpack.c.bf16 %v3485, %v3485
        %v3500 = vpack.c.bf16 %v3486, %v3486
        %v3501 = vpack.c.bf16 %v3487, %v3487
        %v3502 = vpack.c.bf16 %v3488, %v3488
        %v3503 = vpack.c.bf16 %v3489, %v3489
        %v3504 = vpack.c.bf16 %v3490, %v3490
        %v3505 = vpack.c.bf16 %v3491, %v3491
        %v3506 = vpack.c.bf16 %v3492, %v3492
        %v3507 = vpack.c.bf16 %v3381, %v3381
        %v3508 = vpack.c.bf16 %v3382, %v3382
        %v3509 = vpack.c.bf16 %v3383, %v3383
        %v3510 = vpack.c.bf16 %v3384, %v3384
        %v3511 = vpack.c.bf16 %v3385, %v3385
        %v3512 = vpack.c.bf16 %v3386, %v3386
        %v3513 = vpack.c.bf16 %v3387, %v3387
        %v3514 = vpack.c.bf16 %v3388, %v3388
        %v3515 = vpack.c.bf16 %v3389, %v3389
        %v3516 = vpack.c.bf16 %v3390, %v3390
        %v3517 = vpack.c.bf16 %v3391, %v3391
        %v3518 = vpack.c.bf16 %v3392, %v3392
        %v3519 = vpack.c.bf16 %v3393, %v3393
        %v3520 = vpack.c.bf16 %v3394, %v3394
        %v3535 = vunpack.c.l.b16 %v3437
        %v3536 = vunpack.c.l.b16 %v3438
        %v3537 = vunpack.c.l.b16 %v3439
        %v3538 = vunpack.c.l.b16 %v3440
        %v3539 = vunpack.c.l.b16 %v3441
        %v3540 = vunpack.c.l.b16 %v3442
        %v3541 = vunpack.c.l.b16 %v3443
        %v3542 = vunpack.c.l.b16 %v3444
        %v3543 = vunpack.c.l.b16 %v3445
        %v3544 = vunpack.c.l.b16 %v3446
        %v3545 = vunpack.c.l.b16 %v3447
        %v3546 = vunpack.c.l.b16 %v3448
        %v3547 = vunpack.c.l.b16 %v3449
        %v3548 = vunpack.c.l.b16 %v3450
        %v3549 = vpack.c.b16 %v3536, %v3535
        %v3550 = vpack.c.b16 %v3538, %v3537
        %v3551 = vpack.c.b16 %v3540, %v3539
        %v3552 = vpack.c.b16 %v3542, %v3541
        %v3553 = vpack.c.b16 %v3544, %v3543
        %v3554 = vpack.c.b16 %v3546, %v3545
        %v3555 = vpack.c.b16 %v3548, %v3547
        %v3577 = vunpack.c.l.b16 %v3507
        %v3578 = vunpack.c.l.b16 %v3508
        %v3579 = vunpack.c.l.b16 %v3509
        %v3580 = vunpack.c.l.b16 %v3510
        %v3581 = vunpack.c.l.b16 %v3511
        %v3582 = vunpack.c.l.b16 %v3512
        %v3583 = vunpack.c.l.b16 %v3513
        %v3584 = vunpack.c.l.b16 %v3514
        %v3585 = vunpack.c.l.b16 %v3515
        %v3586 = vunpack.c.l.b16 %v3516
        %v3587 = vunpack.c.l.b16 %v3517
        %v3588 = vunpack.c.l.b16 %v3518
        %v3589 = vunpack.c.l.b16 %v3519
        %v3590 = vunpack.c.l.b16 %v3520
        %v3591 = vpack.c.b16 %v3578, %v3577
        %v3592 = vpack.c.b16 %v3580, %v3579
        %v3593 = vpack.c.b16 %v3582, %v3581
        %v3594 = vpack.c.b16 %v3584, %v3583
        %v3595 = vpack.c.b16 %v3586, %v3585
        %v3596 = vpack.c.b16 %v3588, %v3587
        %v3597 = vpack.c.b16 %v3590, %v3589
        %v3619 = vunpack.c.l.b16 %v3493
        %v3620 = vunpack.c.l.b16 %v3494
        %v3621 = vunpack.c.l.b16 %v3495
        %v3622 = vunpack.c.l.b16 %v3496
        %v3623 = vunpack.c.l.b16 %v3497
        %v3624 = vunpack.c.l.b16 %v3498
        %v3625 = vunpack.c.l.b16 %v3499
        %v3626 = vunpack.c.l.b16 %v3500
        %v3627 = vunpack.c.l.b16 %v3501
        %v3628 = vunpack.c.l.b16 %v3502
        %v3629 = vunpack.c.l.b16 %v3503
        %v3630 = vunpack.c.l.b16 %v3504
        %v3631 = vunpack.c.l.b16 %v3505
        %v3632 = vunpack.c.l.b16 %v3506
        %v3633 = vpack.c.b16 %v3620, %v3619
        %v3634 = vpack.c.b16 %v3622, %v3621
        %v3635 = vpack.c.b16 %v3624, %v3623
        %v3636 = vpack.c.b16 %v3626, %v3625
        %v3637 = vpack.c.b16 %v3628, %v3627
        %v3638 = vpack.c.b16 %v3630, %v3629
        %v3639 = vpack.c.b16 %v3632, %v3631
        %v3647 = vld [vmem:[%s1666] sm:$0xf]
        %v3648 = vld [vmem:[%s1666 + $0x4] sm:$0xf]
        %v3649 = vld [vmem:[%s1666 + $0x8] sm:$0xf]
        %v3650 = vld [vmem:[%s1666 + $0xc] sm:$0xf]
        %v3651 = vld [vmem:[%s1666 + $0x10] sm:$0xf]
        %v3652 = vld [vmem:[%s1666 + $0x14] sm:$0xf]
        %v3653 = vld [vmem:[%s1666 + $0x18] sm:$0xf]
        %v3654 = vld [vmem:[%s1666 + $0x1c] sm:$0xf]
        %v3655 = vld [vmem:[%s1666 + $0x20] sm:$0xf]
        %v3656 = vld [vmem:[%s1666 + $0x24] sm:$0xf]
        %v3657 = vld [vmem:[%s1666 + $0x28] sm:$0xf]
        %v3658 = vld [vmem:[%s1666 + $0x2c] sm:$0xf]
        %v3659 = vld [vmem:[%s1666 + $0x30] sm:$0xf]
        %v3660 = vld [vmem:[%s1666 + $0x34] sm:$0xf]
        %v3661 = vld [vmem:[%s1666 + $0x38] sm:$0xf]
        %v3662 = vld [vmem:[%s1666 + $0x3c] sm:$0xf]
        %v3663 = vld [vmem:[%s1666 + $0x40] sm:$0xf]
        %v3664 = vld [vmem:[%s1666 + $0x44] sm:$0xf]
        %v3665 = vld [vmem:[%s1666 + $0x48] sm:$0xf]
        %v3666 = vld [vmem:[%s1666 + $0x4c] sm:$0xf]
        %v3667 = vld [vmem:[%s1666 + $0x50] sm:$0xf]
        %v3668 = vld [vmem:[%s1666 + $0x54] sm:$0xf]
        %v3669 = vld [vmem:[%s1666 + $0x58] sm:$0xf]
        %v3670 = vld [vmem:[%s1666 + $0x5c] sm:$0xf]
        %v3671 = vld [vmem:[%s1666 + $0x60] sm:$0xf]
        %v3672 = vld [vmem:[%s1666 + $0x64] sm:$0xf]
        %v3673 = vld [vmem:[%s1666 + $0x68] sm:$0xf]
        %v3674 = vld [vmem:[%s1666 + $0x6c] sm:$0xf]
        %v3675 = vld [vmem:[%s1666 + $0x70] sm:$0xf]
        %v3676 = vld [vmem:[%s1666 + $0x74] sm:$0xf]
        %v3677 = vld [vmem:[%s1666 + $0x78] sm:$0xf]
        %v3678 = vld [vmem:[%s1666 + $0x7c] sm:$0xf]
        %v3679 = vld [vmem:[%s1666 + $0x80] sm:$0xf]
        %v3680 = vld [vmem:[%s1666 + $0x84] sm:$0xf]
        %v3681 = vld [vmem:[%s1666 + $0x88] sm:$0xf]
        %v3682 = vld [vmem:[%s1666 + $0x8c] sm:$0xf]
        %v3683 = vld [vmem:[%s1666 + $0x90] sm:$0xf]
        %v3684 = vld [vmem:[%s1666 + $0x94] sm:$0xf]
        %v3685 = vld [vmem:[%s1666 + $0x98] sm:$0xf]
        %v3686 = vld [vmem:[%s1666 + $0x9c] sm:$0xf]
        %v3687 = vld [vmem:[%s1666 + $0xa0] sm:$0xf]
        %v3688 = vld [vmem:[%s1666 + $0xa4] sm:$0xf]
        %v3689 = vld [vmem:[%s1666 + $0xa8] sm:$0xf]
        %v3690 = vld [vmem:[%s1666 + $0xac] sm:$0xf]
        %v3691 = vld [vmem:[%s1666 + $0xb0] sm:$0xf]
        %v3692 = vld [vmem:[%s1666 + $0xb4] sm:$0xf]
        %v3693 = vld [vmem:[%s1666 + $0xb8] sm:$0xf]
        %v3694 = vld [vmem:[%s1666 + $0xbc] sm:$0xf]
        %v3743 = vunpack.c.l.b16 %v3647
        %v3744 = vunpack.c.l.b16 %v3648
        %v3745 = vunpack.c.l.b16 %v3649
        %v3746 = vunpack.c.l.b16 %v3650
        %v3747 = vunpack.c.l.b16 %v3651
        %v3748 = vunpack.c.l.b16 %v3652
        %v3749 = vunpack.c.l.b16 %v3653
        %v3750 = vunpack.c.l.b16 %v3654
        %v3751 = vunpack.c.l.b16 %v3655
        %v3752 = vunpack.c.l.b16 %v3656
        %v3753 = vunpack.c.l.b16 %v3657
        %v3754 = vunpack.c.l.b16 %v3658
        %v3755 = vunpack.c.l.b16 %v3659
        %v3756 = vunpack.c.l.b16 %v3660
        %v3757 = vunpack.c.l.b16 %v3661
        %v3758 = vunpack.c.l.b16 %v3662
        %v3759 = vunpack.c.l.b16 %v3663
        %v3760 = vunpack.c.l.b16 %v3664
        %v3761 = vunpack.c.l.b16 %v3665
        %v3762 = vunpack.c.l.b16 %v3666
        %v3763 = vunpack.c.l.b16 %v3667
        %v3764 = vunpack.c.l.b16 %v3668
        %v3765 = vunpack.c.l.b16 %v3669
        %v3766 = vunpack.c.l.b16 %v3670
        %v3767 = vunpack.c.l.b16 %v3671
        %v3768 = vunpack.c.l.b16 %v3672
        %v3769 = vunpack.c.l.b16 %v3673
        %v3770 = vunpack.c.l.b16 %v3674
        %v3771 = vunpack.c.l.b16 %v3675
        %v3772 = vunpack.c.l.b16 %v3676
        %v3773 = vunpack.c.l.b16 %v3677
        %v3774 = vunpack.c.l.b16 %v3678
        %v3775 = vunpack.c.l.b16 %v3679
        %v3776 = vunpack.c.l.b16 %v3680
        %v3777 = vunpack.c.l.b16 %v3681
        %v3778 = vunpack.c.l.b16 %v3682
        %v3779 = vunpack.c.l.b16 %v3683
        %v3780 = vunpack.c.l.b16 %v3684
        %v3781 = vunpack.c.l.b16 %v3685
        %v3782 = vunpack.c.l.b16 %v3686
        %v3783 = vunpack.c.l.b16 %v3687
        %v3784 = vunpack.c.l.b16 %v3688
        %v3785 = vunpack.c.l.b16 %v3689
        %v3786 = vunpack.c.l.b16 %v3690
        %v3787 = vunpack.c.l.b16 %v3691
        %v3788 = vunpack.c.l.b16 %v3692
        %v3789 = vunpack.c.l.b16 %v3693
        %v3790 = vunpack.c.l.b16 %v3694
        %v3791 = vpack.c.b16 %v3744, %v3743
        %v3792 = vpack.c.b16 %v3746, %v3745
        %v3793 = vpack.c.b16 %v3748, %v3747
        %v3794 = vpack.c.b16 %v3750, %v3749
        %v3795 = vpack.c.b16 %v3752, %v3751
        %v3796 = vpack.c.b16 %v3754, %v3753
        %v3797 = vpack.c.b16 %v3756, %v3755
        %v3798 = vpack.c.b16 %v3758, %v3757
        %v3799 = vpack.c.b16 %v3760, %v3759
        %v3800 = vpack.c.b16 %v3762, %v3761
        %v3801 = vpack.c.b16 %v3764, %v3763
        %v3802 = vpack.c.b16 %v3766, %v3765
        %v3803 = vpack.c.b16 %v3768, %v3767
        %v3804 = vpack.c.b16 %v3770, %v3769
        %v3805 = vpack.c.b16 %v3772, %v3771
        %v3806 = vpack.c.b16 %v3774, %v3773
        %v3807 = vpack.c.b16 %v3776, %v3775
        %v3808 = vpack.c.b16 %v3778, %v3777
        %v3809 = vpack.c.b16 %v3780, %v3779
        %v3810 = vpack.c.b16 %v3782, %v3781
        %v3811 = vpack.c.b16 %v3784, %v3783
        %v3812 = vpack.c.b16 %v3786, %v3785
        %v3813 = vpack.c.b16 %v3788, %v3787
        %v3814 = vpack.c.b16 %v3790, %v3789
        %3839 = vmatpush.bf16.msra.mxu0 %v3798
        %3840 = vmatpush.bf16.msra.mxu0 %v3797
        %3841 = vmatpush.bf16.msra.mxu0 %v3796
        %3842 = vmatpush.bf16.msra.mxu0 %v3795
        %3843 = vmatpush.bf16.msra.mxu0 %v3794
        %3844 = vmatpush.bf16.msra.mxu0 %v3793
        %3845 = vmatpush.bf16.msra.mxu0 %v3792
        %3846 = vmatpush.bf16.msra.mxu0 %v3791
        %3847 = vmatmul.bf16.gmra.mxu0 %v3549
        %v3848 = vpop.f32.mrf.mxu0
        %v3849 = vadd.f32 0.0, %v3848
        %v3850 = vpop.f32.mrf.mxu0
        %v3851 = vadd.f32 0.0, %v3850
        %3852 = vmatmul.bf16.gmra.mxu0 %v3550
        %v3853 = vpop.f32.mrf.mxu0
        %v3854 = vadd.f32 0.0, %v3853
        %v3855 = vpop.f32.mrf.mxu0
        %v3856 = vadd.f32 0.0, %v3855
        %3857 = vmatmul.bf16.gmra.mxu0 %v3551
        %v3858 = vpop.f32.mrf.mxu0
        %v3859 = vadd.f32 0.0, %v3858
        %v3860 = vpop.f32.mrf.mxu0
        %v3861 = vadd.f32 0.0, %v3860
        %3862 = vmatmul.bf16.gmra.mxu0 %v3552
        %v3863 = vpop.f32.mrf.mxu0
        %v3864 = vadd.f32 0.0, %v3863
        %v3865 = vpop.f32.mrf.mxu0
        %v3866 = vadd.f32 0.0, %v3865
        %3867 = vmatmul.bf16.gmra.mxu0 %v3553
        %v3868 = vpop.f32.mrf.mxu0
        %v3869 = vadd.f32 0.0, %v3868
        %v3870 = vpop.f32.mrf.mxu0
        %v3871 = vadd.f32 0.0, %v3870
        %3872 = vmatmul.bf16.gmra.mxu0 %v3554
        %v3873 = vpop.f32.mrf.mxu0
        %v3874 = vadd.f32 0.0, %v3873
        %v3875 = vpop.f32.mrf.mxu0
        %v3876 = vadd.f32 0.0, %v3875
        %3877 = vmatmul.bf16.gmra.mxu0 %v3555
        %v3878 = vpop.f32.mrf.mxu0
        %v3879 = vadd.f32 0.0, %v3878
        %v3880 = vpop.f32.mrf.mxu0
        %v3881 = vadd.f32 0.0, %v3880
        %3882 = vmatmul.bf16.gmra.mxu0 %v534
        %v3883 = vpop.f32.mrf.mxu0
        %v3884 = vadd.f32 0.0, %v3883
        %v3885 = vpop.f32.mrf.mxu0
        %v3886 = vadd.f32 0.0, %v3885
        %3887 = vdwg.mxu0
        %3888 = vmatpush.bf16.msra.mxu0 %v3806
        %3889 = vmatpush.bf16.msra.mxu0 %v3805
        %3890 = vmatpush.bf16.msra.mxu0 %v3804
        %3891 = vmatpush.bf16.msra.mxu0 %v3803
        %3892 = vmatpush.bf16.msra.mxu0 %v3802
        %3893 = vmatpush.bf16.msra.mxu0 %v3801
        %3894 = vmatpush.bf16.msra.mxu0 %v3800
        %3895 = vmatpush.bf16.msra.mxu0 %v3799
        %3896 = vmatmul.bf16.gmra.mxu0 %v3591
        %v3897 = vpop.f32.mrf.mxu0
        %v3898 = vadd.f32 %v3849, %v3897
        %v3899 = vpop.f32.mrf.mxu0
        %v3900 = vadd.f32 %v3851, %v3899
        %3901 = vmatmul.bf16.gmra.mxu0 %v3592
        %v3902 = vpop.f32.mrf.mxu0
        %v3903 = vadd.f32 %v3854, %v3902
        %v3904 = vpop.f32.mrf.mxu0
        %v3905 = vadd.f32 %v3856, %v3904
        %3906 = vmatmul.bf16.gmra.mxu0 %v3593
        %v3907 = vpop.f32.mrf.mxu0
        %v3908 = vadd.f32 %v3859, %v3907
        %v3909 = vpop.f32.mrf.mxu0
        %v3910 = vadd.f32 %v3861, %v3909
        %3911 = vmatmul.bf16.gmra.mxu0 %v3594
        %v3912 = vpop.f32.mrf.mxu0
        %v3913 = vadd.f32 %v3864, %v3912
        %v3914 = vpop.f32.mrf.mxu0
        %v3915 = vadd.f32 %v3866, %v3914
        %3916 = vmatmul.bf16.gmra.mxu0 %v3595
        %v3917 = vpop.f32.mrf.mxu0
        %v3918 = vadd.f32 %v3869, %v3917
        %v3919 = vpop.f32.mrf.mxu0
        %v3920 = vadd.f32 %v3871, %v3919
        %3921 = vmatmul.bf16.gmra.mxu0 %v3596
        %v3922 = vpop.f32.mrf.mxu0
        %v3923 = vadd.f32 %v3874, %v3922
        %v3924 = vpop.f32.mrf.mxu0
        %v3925 = vadd.f32 %v3876, %v3924
        %3926 = vmatmul.bf16.gmra.mxu0 %v3597
        %v3927 = vpop.f32.mrf.mxu0
        %v3928 = vadd.f32 %v3879, %v3927
        %v3929 = vpop.f32.mrf.mxu0
        %v3930 = vadd.f32 %v3881, %v3929
        %3931 = vmatmul.bf16.gmra.mxu0 %v580
        %v3932 = vpop.f32.mrf.mxu0
        %v3933 = vadd.f32 %v3884, %v3932
        %v3934 = vpop.f32.mrf.mxu0
        %v3935 = vadd.f32 %v3886, %v3934
        %3936 = vdwg.mxu0
        %3937 = vmatpush.bf16.msra.mxu0 %v3814
        %3938 = vmatpush.bf16.msra.mxu0 %v3813
        %3939 = vmatpush.bf16.msra.mxu0 %v3812
        %3940 = vmatpush.bf16.msra.mxu0 %v3811
        %3941 = vmatpush.bf16.msra.mxu0 %v3810
        %3942 = vmatpush.bf16.msra.mxu0 %v3809
        %3943 = vmatpush.bf16.msra.mxu0 %v3808
        %3944 = vmatpush.bf16.msra.mxu0 %v3807
        %3945 = vmatmul.bf16.gmra.mxu0 %v3633
        %v3946 = vpop.f32.mrf.mxu0
        %v3947 = vadd.f32 %v3898, %v3946
        %v3948 = vpop.f32.mrf.mxu0
        %v3949 = vadd.f32 %v3900, %v3948
        %3950 = vmatmul.bf16.gmra.mxu0 %v3634
        %v3951 = vpop.f32.mrf.mxu0
        %v3952 = vadd.f32 %v3903, %v3951
        %v3953 = vpop.f32.mrf.mxu0
        %v3954 = vadd.f32 %v3905, %v3953
        %3955 = vmatmul.bf16.gmra.mxu0 %v3635
        %v3956 = vpop.f32.mrf.mxu0
        %v3957 = vadd.f32 %v3908, %v3956
        %v3958 = vpop.f32.mrf.mxu0
        %v3959 = vadd.f32 %v3910, %v3958
        %3960 = vmatmul.bf16.gmra.mxu0 %v3636
        %v3961 = vpop.f32.mrf.mxu0
        %v3962 = vadd.f32 %v3913, %v3961
        %v3963 = vpop.f32.mrf.mxu0
        %v3964 = vadd.f32 %v3915, %v3963
        %3965 = vmatmul.bf16.gmra.mxu0 %v3637
        %v3966 = vpop.f32.mrf.mxu0
        %v3967 = vadd.f32 %v3918, %v3966
        %v3968 = vpop.f32.mrf.mxu0
        %v3969 = vadd.f32 %v3920, %v3968
        %3970 = vmatmul.bf16.gmra.mxu0 %v3638
        %v3971 = vpop.f32.mrf.mxu0
        %v3972 = vadd.f32 %v3923, %v3971
        %v3973 = vpop.f32.mrf.mxu0
        %v3974 = vadd.f32 %v3925, %v3973
        %3975 = vmatmul.bf16.gmra.mxu0 %v3639
        %v3976 = vpop.f32.mrf.mxu0
        %v3977 = vadd.f32 %v3928, %v3976
        %v3978 = vpop.f32.mrf.mxu0
        %v3979 = vadd.f32 %v3930, %v3978
        %3980 = vmatmul.bf16.gmra.mxu0 %v628
        %v3981 = vpop.f32.mrf.mxu0
        %v3982 = vadd.f32 %v3933, %v3981
        %v3983 = vpop.f32.mrf.mxu0
        %v3984 = vadd.f32 %v3935, %v3983
        %3985 = vdwg.mxu0
        %v3986 = vadd.f32 %v3341, %v3947
        %v3987 = vadd.f32 %v3343, %v3949
        %v3988 = vadd.f32 %v3346, %v3952
        %v3989 = vadd.f32 %v3348, %v3954
        %v3990 = vadd.f32 %v3351, %v3957
        %v3991 = vadd.f32 %v3353, %v3959
        %v3992 = vadd.f32 %v3356, %v3962
        %v3993 = vadd.f32 %v3358, %v3964
        %v3994 = vadd.f32 %v3361, %v3967
        %v3995 = vadd.f32 %v3363, %v3969
        %v3996 = vadd.f32 %v3366, %v3972
        %v3997 = vadd.f32 %v3368, %v3974
        %v3998 = vadd.f32 %v3371, %v3977
        %v3999 = vadd.f32 %v3373, %v3979
        %v4000 = vadd.f32 %v3376, %v3982
        %v4001 = vadd.f32 %v3378, %v3984
        %v4002 = vmul.f32 %v3986, %v2023
        %v4003 = vmul.f32 %v3987, %v2023
        %v4004 = vmul.f32 %v3988, %v2023
        %v4005 = vmul.f32 %v3989, %v2023
        %v4006 = vmul.f32 %v3990, %v2023
        %v4007 = vmul.f32 %v3991, %v2023
        %v4008 = vmul.f32 %v3992, %v2023
        %v4009 = vmul.f32 %v3993, %v2023
        %v4010 = vmul.f32 %v3994, %v2023
        %v4011 = vmul.f32 %v3995, %v2023
        %v4012 = vmul.f32 %v3996, %v2023
        %v4013 = vmul.f32 %v3997, %v2023
        %v4014 = vmul.f32 %v3998, %v2023
        %v4015 = vmul.f32 %v3999, %v2023
        %v4016 = vmul.f32 %v4000, %v2023
        %v4017 = vmul.f32 %v4001, %v2023
        %v4018 = vadd.f32 %v4002, %v2042
        %v4019 = vadd.f32 %v4003, %v2042
        %v4020 = vadd.f32 %v4004, %v2042
        %v4021 = vadd.f32 %v4005, %v2042
        %v4022 = vadd.f32 %v4006, %v2042
        %v4023 = vadd.f32 %v4007, %v2042
        %v4024 = vadd.f32 %v4008, %v2042
        %v4025 = vadd.f32 %v4009, %v2042
        %v4026 = vadd.f32 %v4010, %v2042
        %v4027 = vadd.f32 %v4011, %v2042
        %v4028 = vadd.f32 %v4012, %v2042
        %v4029 = vadd.f32 %v4013, %v2042
        %v4030 = vadd.f32 %v4014, %v2042
        %v4031 = vadd.f32 %v4015, %v2042
        %v4032 = vadd.f32 %v4016, %v2042
        %v4033 = vadd.f32 %v4017, %v2042
        %v4034 = vmax.f32 %v4018, 0.0
        %v4035 = vmax.f32 %v4019, 0.0
        %v4036 = vmax.f32 %v4020, 0.0
        %v4037 = vmax.f32 %v4021, 0.0
        %v4038 = vmax.f32 %v4022, 0.0
        %v4039 = vmax.f32 %v4023, 0.0
        %v4040 = vmax.f32 %v4024, 0.0
        %v4041 = vmax.f32 %v4025, 0.0
        %v4042 = vmax.f32 %v4026, 0.0
        %v4043 = vmax.f32 %v4027, 0.0
        %v4044 = vmax.f32 %v4028, 0.0
        %v4045 = vmax.f32 %v4029, 0.0
        %v4046 = vmax.f32 %v4030, 0.0
        %v4047 = vmax.f32 %v4031, 0.0
        %v4048 = vmax.f32 %v4032, 0.0
        %v4049 = vmax.f32 %v4033, 0.0
        %s4050 = scalar_lea.vmem [#allocation2], 128
        %4051 = vst [vmem:[%s4050] sm:$0xff] %v4034
        %4052 = vst [vmem:[%s4050 + $0x8] sm:$0xff] %v4035
        %4053 = vst [vmem:[%s4050 + $0x10] sm:$0xff] %v4036
        %4054 = vst [vmem:[%s4050 + $0x18] sm:$0xff] %v4037
        %4055 = vst [vmem:[%s4050 + $0x20] sm:$0xff] %v4038
        %4056 = vst [vmem:[%s4050 + $0x28] sm:$0xff] %v4039
        %4057 = vst [vmem:[%s4050 + $0x30] sm:$0xff] %v4040
        %4058 = vst [vmem:[%s4050 + $0x38] sm:$0xff] %v4041
        %4059 = vst [vmem:[%s4050 + $0x40] sm:$0xff] %v4042
        %4060 = vst [vmem:[%s4050 + $0x48] sm:$0xff] %v4043
        %4061 = vst [vmem:[%s4050 + $0x50] sm:$0xff] %v4044
        %4062 = vst [vmem:[%s4050 + $0x58] sm:$0xff] %v4045
        %4063 = vst [vmem:[%s4050 + $0x60] sm:$0xff] %v4046
        %4064 = vst [vmem:[%s4050 + $0x68] sm:$0xff] %v4047
        %4065 = vst [vmem:[%s4050 + $0x70] sm:$0xff] %v4048
        %4066 = vst [vmem:[%s4050 + $0x78] sm:$0xff] %v4049
        %v4067 = vld [vmem:[#allocation2] sm:$0xff]
        %v4068 = vld [vmem:[#allocation2 + $0x8] sm:$0xff]
        %v4069 = vld [vmem:[#allocation2 + $0x10] sm:$0xff]
        %v4070 = vld [vmem:[#allocation2 + $0x18] sm:$0xff]
        %v4071 = vld [vmem:[#allocation2 + $0x20] sm:$0xff]
        %v4072 = vld [vmem:[#allocation2 + $0x28] sm:$0xff]
        %v4073 = vld [vmem:[#allocation2 + $0x30] sm:$0xff]
        %v4074 = vld [vmem:[#allocation2 + $0x38] sm:$0xff]
        %v4075 = vld [vmem:[#allocation2 + $0x40] sm:$0xff]
        %v4076 = vld [vmem:[#allocation2 + $0x48] sm:$0xff]
        %v4077 = vld [vmem:[#allocation2 + $0x50] sm:$0xff]
        %v4078 = vld [vmem:[#allocation2 + $0x58] sm:$0xff]
        %v4079 = vld [vmem:[#allocation2 + $0x60] sm:$0xff]
        %v4080 = vld [vmem:[#allocation2 + $0x68] sm:$0xff]
        %v4081 = vrot.slane %v4067, 7
        %v4082 = vrot.slane %v4069, 7
        %v4083 = vrot.slane %v4071, 7
        %v4084 = vrot.slane %v4073, 7
        %v4085 = vrot.slane %v4075, 7
        %v4086 = vrot.slane %v4077, 7
        %v4087 = vrot.slane %v4079, 7
        %v4088 = vrot.slane %v4068, 7
        %v4089 = vrot.slane %v4070, 7
        %v4090 = vrot.slane %v4072, 7
        %v4091 = vrot.slane %v4074, 7
        %v4092 = vrot.slane %v4076, 7
        %v4093 = vrot.slane %v4078, 7
        %v4094 = vrot.slane %v4080, 7
        %v4095 = vsel %vm379, %v4081, %v4088
        %v4096 = vsel %vm379, %v4082, %v4089
        %v4097 = vsel %vm379, %v4083, %v4090
        %v4098 = vsel %vm379, %v4084, %v4091
        %v4099 = vsel %vm379, %v4085, %v4092
        %v4100 = vsel %vm379, %v4086, %v4093
        %v4101 = vsel %vm379, %v4087, %v4094
        %v4102 = vsel %vm379, %v4088, %v4081
        %v4103 = vsel %vm379, %v4089, %v4082
        %v4104 = vsel %vm379, %v4090, %v4083
        %v4105 = vsel %vm379, %v4091, %v4084
        %v4106 = vsel %vm379, %v4092, %v4085
        %v4107 = vsel %vm379, %v4093, %v4086
        %v4108 = vsel %vm379, %v4094, %v4087
        %v4109 = vmul.f32 %v4102, %v343
        %v4110 = vmul.f32 %v4095, %v344
        %v4111 = vmul.f32 %v4103, %v343
        %v4112 = vmul.f32 %v4096, %v344
        %v4113 = vmul.f32 %v4104, %v343
        %v4114 = vmul.f32 %v4097, %v344
        %v4115 = vmul.f32 %v4105, %v343
        %v4116 = vmul.f32 %v4098, %v344
        %v4117 = vmul.f32 %v4106, %v343
        %v4118 = vmul.f32 %v4099, %v344
        %v4119 = vmul.f32 %v4107, %v343
        %v4120 = vmul.f32 %v4100, %v344
        %v4121 = vmul.f32 %v4108, %v343
        %v4122 = vmul.f32 %v4101, %v344
        %v4123 = vpack.c.bf16 %v4109, %v4109
        %v4124 = vpack.c.bf16 %v4110, %v4110
        %v4125 = vpack.c.bf16 %v4111, %v4111
        %v4126 = vpack.c.bf16 %v4112, %v4112
        %v4127 = vpack.c.bf16 %v4113, %v4113
        %v4128 = vpack.c.bf16 %v4114, %v4114
        %v4129 = vpack.c.bf16 %v4115, %v4115
        %v4130 = vpack.c.bf16 %v4116, %v4116
        %v4131 = vpack.c.bf16 %v4117, %v4117
        %v4132 = vpack.c.bf16 %v4118, %v4118
        %v4133 = vpack.c.bf16 %v4119, %v4119
        %v4134 = vpack.c.bf16 %v4120, %v4120
        %v4135 = vpack.c.bf16 %v4121, %v4121
        %v4136 = vpack.c.bf16 %v4122, %v4122
        %v4137 = vrot.slane %v4067, 1
        %v4138 = vrot.slane %v4069, 1
        %v4139 = vrot.slane %v4071, 1
        %v4140 = vrot.slane %v4073, 1
        %v4141 = vrot.slane %v4075, 1
        %v4142 = vrot.slane %v4077, 1
        %v4143 = vrot.slane %v4079, 1
        %v4144 = vrot.slane %v4068, 1
        %v4145 = vrot.slane %v4070, 1
        %v4146 = vrot.slane %v4072, 1
        %v4147 = vrot.slane %v4074, 1
        %v4148 = vrot.slane %v4076, 1
        %v4149 = vrot.slane %v4078, 1
        %v4150 = vrot.slane %v4080, 1
        %v4151 = vsel %vm440, %v4137, %v4144
        %v4152 = vsel %vm440, %v4138, %v4145
        %v4153 = vsel %vm440, %v4139, %v4146
        %v4154 = vsel %vm440, %v4140, %v4147
        %v4155 = vsel %vm440, %v4141, %v4148
        %v4156 = vsel %vm440, %v4142, %v4149
        %v4157 = vsel %vm440, %v4143, %v4150
        %v4158 = vsel %vm440, %v4144, %v4137
        %v4159 = vsel %vm440, %v4145, %v4138
        %v4160 = vsel %vm440, %v4146, %v4139
        %v4161 = vsel %vm440, %v4147, %v4140
        %v4162 = vsel %vm440, %v4148, %v4141
        %v4163 = vsel %vm440, %v4149, %v4142
        %v4164 = vsel %vm440, %v4150, %v4143
        %v4165 = vmul.f32 %v4151, %v349
        %v4166 = vmul.f32 %v4158, %v350
        %v4167 = vmul.f32 %v4152, %v349
        %v4168 = vmul.f32 %v4159, %v350
        %v4169 = vmul.f32 %v4153, %v349
        %v4170 = vmul.f32 %v4160, %v350
        %v4171 = vmul.f32 %v4154, %v349
        %v4172 = vmul.f32 %v4161, %v350
        %v4173 = vmul.f32 %v4155, %v349
        %v4174 = vmul.f32 %v4162, %v350
        %v4175 = vmul.f32 %v4156, %v349
        %v4176 = vmul.f32 %v4163, %v350
        %v4177 = vmul.f32 %v4157, %v349
        %v4178 = vmul.f32 %v4164, %v350
        %v4179 = vpack.c.bf16 %v4165, %v4165
        %v4180 = vpack.c.bf16 %v4166, %v4166
        %v4181 = vpack.c.bf16 %v4167, %v4167
        %v4182 = vpack.c.bf16 %v4168, %v4168
        %v4183 = vpack.c.bf16 %v4169, %v4169
        %v4184 = vpack.c.bf16 %v4170, %v4170
        %v4185 = vpack.c.bf16 %v4171, %v4171
        %v4186 = vpack.c.bf16 %v4172, %v4172
        %v4187 = vpack.c.bf16 %v4173, %v4173
        %v4188 = vpack.c.bf16 %v4174, %v4174
        %v4189 = vpack.c.bf16 %v4175, %v4175
        %v4190 = vpack.c.bf16 %v4176, %v4176
        %v4191 = vpack.c.bf16 %v4177, %v4177
        %v4192 = vpack.c.bf16 %v4178, %v4178
        %v4193 = vpack.c.bf16 %v4067, %v4067
        %v4194 = vpack.c.bf16 %v4068, %v4068
        %v4195 = vpack.c.bf16 %v4069, %v4069
        %v4196 = vpack.c.bf16 %v4070, %v4070
        %v4197 = vpack.c.bf16 %v4071, %v4071
        %v4198 = vpack.c.bf16 %v4072, %v4072
        %v4199 = vpack.c.bf16 %v4073, %v4073
        %v4200 = vpack.c.bf16 %v4074, %v4074
        %v4201 = vpack.c.bf16 %v4075, %v4075
        %v4202 = vpack.c.bf16 %v4076, %v4076
        %v4203 = vpack.c.bf16 %v4077, %v4077
        %v4204 = vpack.c.bf16 %v4078, %v4078
        %v4205 = vpack.c.bf16 %v4079, %v4079
        %v4206 = vpack.c.bf16 %v4080, %v4080
        %v4221 = vunpack.c.l.b16 %v4123
        %v4222 = vunpack.c.l.b16 %v4124
        %v4223 = vunpack.c.l.b16 %v4125
        %v4224 = vunpack.c.l.b16 %v4126
        %v4225 = vunpack.c.l.b16 %v4127
        %v4226 = vunpack.c.l.b16 %v4128
        %v4227 = vunpack.c.l.b16 %v4129
        %v4228 = vunpack.c.l.b16 %v4130
        %v4229 = vunpack.c.l.b16 %v4131
        %v4230 = vunpack.c.l.b16 %v4132
        %v4231 = vunpack.c.l.b16 %v4133
        %v4232 = vunpack.c.l.b16 %v4134
        %v4233 = vunpack.c.l.b16 %v4135
        %v4234 = vunpack.c.l.b16 %v4136
        %v4235 = vpack.c.b16 %v4222, %v4221
        %v4236 = vpack.c.b16 %v4224, %v4223
        %v4237 = vpack.c.b16 %v4226, %v4225
        %v4238 = vpack.c.b16 %v4228, %v4227
        %v4239 = vpack.c.b16 %v4230, %v4229
        %v4240 = vpack.c.b16 %v4232, %v4231
        %v4241 = vpack.c.b16 %v4234, %v4233
        %v4263 = vunpack.c.l.b16 %v4193
        %v4264 = vunpack.c.l.b16 %v4194
        %v4265 = vunpack.c.l.b16 %v4195
        %v4266 = vunpack.c.l.b16 %v4196
        %v4267 = vunpack.c.l.b16 %v4197
        %v4268 = vunpack.c.l.b16 %v4198
        %v4269 = vunpack.c.l.b16 %v4199
        %v4270 = vunpack.c.l.b16 %v4200
        %v4271 = vunpack.c.l.b16 %v4201
        %v4272 = vunpack.c.l.b16 %v4202
        %v4273 = vunpack.c.l.b16 %v4203
        %v4274 = vunpack.c.l.b16 %v4204
        %v4275 = vunpack.c.l.b16 %v4205
        %v4276 = vunpack.c.l.b16 %v4206
        %v4277 = vpack.c.b16 %v4264, %v4263
        %v4278 = vpack.c.b16 %v4266, %v4265
        %v4279 = vpack.c.b16 %v4268, %v4267
        %v4280 = vpack.c.b16 %v4270, %v4269
        %v4281 = vpack.c.b16 %v4272, %v4271
        %v4282 = vpack.c.b16 %v4274, %v4273
        %v4283 = vpack.c.b16 %v4276, %v4275
        %v4305 = vunpack.c.l.b16 %v4179
        %v4306 = vunpack.c.l.b16 %v4180
        %v4307 = vunpack.c.l.b16 %v4181
        %v4308 = vunpack.c.l.b16 %v4182
        %v4309 = vunpack.c.l.b16 %v4183
        %v4310 = vunpack.c.l.b16 %v4184
        %v4311 = vunpack.c.l.b16 %v4185
        %v4312 = vunpack.c.l.b16 %v4186
        %v4313 = vunpack.c.l.b16 %v4187
        %v4314 = vunpack.c.l.b16 %v4188
        %v4315 = vunpack.c.l.b16 %v4189
        %v4316 = vunpack.c.l.b16 %v4190
        %v4317 = vunpack.c.l.b16 %v4191
        %v4318 = vunpack.c.l.b16 %v4192
        %v4319 = vpack.c.b16 %v4306, %v4305
        %v4320 = vpack.c.b16 %v4308, %v4307
        %v4321 = vpack.c.b16 %v4310, %v4309
        %v4322 = vpack.c.b16 %v4312, %v4311
        %v4323 = vpack.c.b16 %v4314, %v4313
        %v4324 = vpack.c.b16 %v4316, %v4315
        %v4325 = vpack.c.b16 %v4318, %v4317
        %v4333 = vld [vmem:[#allocation8] sm:$0xf]
        %v4334 = vld [vmem:[#allocation8 + $0x4] sm:$0xf]
        %v4335 = vld [vmem:[#allocation8 + $0x8] sm:$0xf]
        %v4336 = vld [vmem:[#allocation8 + $0xc] sm:$0xf]
        %v4337 = vld [vmem:[#allocation8 + $0x10] sm:$0xf]
        %v4338 = vld [vmem:[#allocation8 + $0x14] sm:$0xf]
        %v4339 = vld [vmem:[#allocation8 + $0x18] sm:$0xf]
        %v4340 = vld [vmem:[#allocation8 + $0x1c] sm:$0xf]
        %v4341 = vld [vmem:[#allocation8 + $0x20] sm:$0xf]
        %v4342 = vld [vmem:[#allocation8 + $0x24] sm:$0xf]
        %v4343 = vld [vmem:[#allocation8 + $0x28] sm:$0xf]
        %v4344 = vld [vmem:[#allocation8 + $0x2c] sm:$0xf]
        %v4345 = vld [vmem:[#allocation8 + $0x30] sm:$0xf]
        %v4346 = vld [vmem:[#allocation8 + $0x34] sm:$0xf]
        %v4347 = vld [vmem:[#allocation8 + $0x38] sm:$0xf]
        %v4348 = vld [vmem:[#allocation8 + $0x3c] sm:$0xf]
        %v4349 = vld [vmem:[#allocation8 + $0x40] sm:$0xf]
        %v4350 = vld [vmem:[#allocation8 + $0x44] sm:$0xf]
        %v4351 = vld [vmem:[#allocation8 + $0x48] sm:$0xf]
        %v4352 = vld [vmem:[#allocation8 + $0x4c] sm:$0xf]
        %v4353 = vld [vmem:[#allocation8 + $0x50] sm:$0xf]
        %v4354 = vld [vmem:[#allocation8 + $0x54] sm:$0xf]
        %v4355 = vld [vmem:[#allocation8 + $0x58] sm:$0xf]
        %v4356 = vld [vmem:[#allocation8 + $0x5c] sm:$0xf]
        %v4357 = vld [vmem:[#allocation8 + $0x60] sm:$0xf]
        %v4358 = vld [vmem:[#allocation8 + $0x64] sm:$0xf]
        %v4359 = vld [vmem:[#allocation8 + $0x68] sm:$0xf]
        %v4360 = vld [vmem:[#allocation8 + $0x6c] sm:$0xf]
        %v4361 = vld [vmem:[#allocation8 + $0x70] sm:$0xf]
        %v4362 = vld [vmem:[#allocation8 + $0x74] sm:$0xf]
        %v4363 = vld [vmem:[#allocation8 + $0x78] sm:$0xf]
        %v4364 = vld [vmem:[#allocation8 + $0x7c] sm:$0xf]
        %v4365 = vld [vmem:[#allocation8 + $0x80] sm:$0xf]
        %v4366 = vld [vmem:[#allocation8 + $0x84] sm:$0xf]
        %v4367 = vld [vmem:[#allocation8 + $0x88] sm:$0xf]
        %v4368 = vld [vmem:[#allocation8 + $0x8c] sm:$0xf]
        %v4369 = vld [vmem:[#allocation8 + $0x90] sm:$0xf]
        %v4370 = vld [vmem:[#allocation8 + $0x94] sm:$0xf]
        %v4371 = vld [vmem:[#allocation8 + $0x98] sm:$0xf]
        %v4372 = vld [vmem:[#allocation8 + $0x9c] sm:$0xf]
        %v4373 = vld [vmem:[#allocation8 + $0xa0] sm:$0xf]
        %v4374 = vld [vmem:[#allocation8 + $0xa4] sm:$0xf]
        %v4375 = vld [vmem:[#allocation8 + $0xa8] sm:$0xf]
        %v4376 = vld [vmem:[#allocation8 + $0xac] sm:$0xf]
        %v4377 = vld [vmem:[#allocation8 + $0xb0] sm:$0xf]
        %v4378 = vld [vmem:[#allocation8 + $0xb4] sm:$0xf]
        %v4379 = vld [vmem:[#allocation8 + $0xb8] sm:$0xf]
        %v4380 = vld [vmem:[#allocation8 + $0xbc] sm:$0xf]
        %v4381 = vld [vmem:[#allocation2 + $0x70] sm:$0xff]
        %v4382 = vld [vmem:[#allocation2 + $0x78] sm:$0xff]
        %v4383 = vrot.slane %v4381, 7
        %v4384 = vrot.slane %v4382, 7
        %v4385 = vsel %vm379, %v4383, %v4384
        %v4386 = vsel %vm379, %v4384, %v4383
        %v4387 = vmul.f32 %v4386, %v343
        %v4388 = vmul.f32 %v4385, %v344
        %v4389 = vpack.c.bf16 %v4387, %v4387
        %v4390 = vpack.c.bf16 %v4388, %v4388
        %v4391 = vrot.slane %v4381, 1
        %v4392 = vrot.slane %v4382, 1
        %v4393 = vsel %vm440, %v4391, %v4392
        %v4394 = vsel %vm440, %v4392, %v4391
        %v4395 = vmul.f32 %v4393, %v349
        %v4396 = vmul.f32 %v4394, %v350
        %v4397 = vpack.c.bf16 %v4395, %v4395
        %v4398 = vpack.c.bf16 %v4396, %v4396
        %v4399 = vpack.c.bf16 %v4381, %v4381
        %v4400 = vpack.c.bf16 %v4382, %v4382
        %v4403 = vunpack.c.l.b16 %v4389
        %v4404 = vunpack.c.l.b16 %v4390
        %v4405 = vpack.c.b16 %v4404, %v4403
        %v4409 = vunpack.c.l.b16 %v4399
        %v4410 = vunpack.c.l.b16 %v4400
        %v4411 = vpack.c.b16 %v4410, %v4409
        %v4415 = vunpack.c.l.b16 %v4397
        %v4416 = vunpack.c.l.b16 %v4398
        %v4417 = vpack.c.b16 %v4416, %v4415
        %s4419 = scalar_lea.vmem [#allocation8], 192
        %v4420 = vld [vmem:[%s4419] sm:$0xf]
        %v4421 = vld [vmem:[%s4419 + $0x4] sm:$0xf]
        %v4422 = vld [vmem:[%s4419 + $0x8] sm:$0xf]
        %v4423 = vld [vmem:[%s4419 + $0xc] sm:$0xf]
        %v4424 = vld [vmem:[%s4419 + $0x10] sm:$0xf]
        %v4425 = vld [vmem:[%s4419 + $0x14] sm:$0xf]
        %v4426 = vld [vmem:[%s4419 + $0x18] sm:$0xf]
        %v4427 = vld [vmem:[%s4419 + $0x1c] sm:$0xf]
        %v4428 = vld [vmem:[%s4419 + $0x20] sm:$0xf]
        %v4429 = vld [vmem:[%s4419 + $0x24] sm:$0xf]
        %v4430 = vld [vmem:[%s4419 + $0x28] sm:$0xf]
        %v4431 = vld [vmem:[%s4419 + $0x2c] sm:$0xf]
        %v4432 = vld [vmem:[%s4419 + $0x30] sm:$0xf]
        %v4433 = vld [vmem:[%s4419 + $0x34] sm:$0xf]
        %v4434 = vld [vmem:[%s4419 + $0x38] sm:$0xf]
        %v4435 = vld [vmem:[%s4419 + $0x3c] sm:$0xf]
        %v4436 = vld [vmem:[%s4419 + $0x40] sm:$0xf]
        %v4437 = vld [vmem:[%s4419 + $0x44] sm:$0xf]
        %v4438 = vld [vmem:[%s4419 + $0x48] sm:$0xf]
        %v4439 = vld [vmem:[%s4419 + $0x4c] sm:$0xf]
        %v4440 = vld [vmem:[%s4419 + $0x50] sm:$0xf]
        %v4441 = vld [vmem:[%s4419 + $0x54] sm:$0xf]
        %v4442 = vld [vmem:[%s4419 + $0x58] sm:$0xf]
        %v4443 = vld [vmem:[%s4419 + $0x5c] sm:$0xf]
        %v4444 = vld [vmem:[%s4419 + $0x60] sm:$0xf]
        %v4445 = vld [vmem:[%s4419 + $0x64] sm:$0xf]
        %v4446 = vld [vmem:[%s4419 + $0x68] sm:$0xf]
        %v4447 = vld [vmem:[%s4419 + $0x6c] sm:$0xf]
        %v4448 = vld [vmem:[%s4419 + $0x70] sm:$0xf]
        %v4449 = vld [vmem:[%s4419 + $0x74] sm:$0xf]
        %v4450 = vld [vmem:[%s4419 + $0x78] sm:$0xf]
        %v4451 = vld [vmem:[%s4419 + $0x7c] sm:$0xf]
        %v4452 = vld [vmem:[%s4419 + $0x80] sm:$0xf]
        %v4453 = vld [vmem:[%s4419 + $0x84] sm:$0xf]
        %v4454 = vld [vmem:[%s4419 + $0x88] sm:$0xf]
        %v4455 = vld [vmem:[%s4419 + $0x8c] sm:$0xf]
        %v4456 = vld [vmem:[%s4419 + $0x90] sm:$0xf]
        %v4457 = vld [vmem:[%s4419 + $0x94] sm:$0xf]
        %v4458 = vld [vmem:[%s4419 + $0x98] sm:$0xf]
        %v4459 = vld [vmem:[%s4419 + $0x9c] sm:$0xf]
        %v4460 = vld [vmem:[%s4419 + $0xa0] sm:$0xf]
        %v4461 = vld [vmem:[%s4419 + $0xa4] sm:$0xf]
        %v4462 = vld [vmem:[%s4419 + $0xa8] sm:$0xf]
        %v4463 = vld [vmem:[%s4419 + $0xac] sm:$0xf]
        %v4464 = vld [vmem:[%s4419 + $0xb0] sm:$0xf]
        %v4465 = vld [vmem:[%s4419 + $0xb4] sm:$0xf]
        %v4466 = vld [vmem:[%s4419 + $0xb8] sm:$0xf]
        %v4467 = vld [vmem:[%s4419 + $0xbc] sm:$0xf]
        %v4516 = vunpack.c.l.b16 %v4420
        %v4517 = vunpack.c.l.b16 %v4421
        %v4518 = vunpack.c.l.b16 %v4422
        %v4519 = vunpack.c.l.b16 %v4423
        %v4520 = vunpack.c.l.b16 %v4424
        %v4521 = vunpack.c.l.b16 %v4425
        %v4522 = vunpack.c.l.b16 %v4426
        %v4523 = vunpack.c.l.b16 %v4427
        %v4524 = vunpack.c.l.b16 %v4428
        %v4525 = vunpack.c.l.b16 %v4429
        %v4526 = vunpack.c.l.b16 %v4430
        %v4527 = vunpack.c.l.b16 %v4431
        %v4528 = vunpack.c.l.b16 %v4432
        %v4529 = vunpack.c.l.b16 %v4433
        %v4530 = vunpack.c.l.b16 %v4434
        %v4531 = vunpack.c.l.b16 %v4435
        %v4532 = vunpack.c.l.b16 %v4436
        %v4533 = vunpack.c.l.b16 %v4437
        %v4534 = vunpack.c.l.b16 %v4438
        %v4535 = vunpack.c.l.b16 %v4439
        %v4536 = vunpack.c.l.b16 %v4440
        %v4537 = vunpack.c.l.b16 %v4441
        %v4538 = vunpack.c.l.b16 %v4442
        %v4539 = vunpack.c.l.b16 %v4443
        %v4540 = vunpack.c.l.b16 %v4444
        %v4541 = vunpack.c.l.b16 %v4445
        %v4542 = vunpack.c.l.b16 %v4446
        %v4543 = vunpack.c.l.b16 %v4447
        %v4544 = vunpack.c.l.b16 %v4448
        %v4545 = vunpack.c.l.b16 %v4449
        %v4546 = vunpack.c.l.b16 %v4450
        %v4547 = vunpack.c.l.b16 %v4451
        %v4548 = vunpack.c.l.b16 %v4452
        %v4549 = vunpack.c.l.b16 %v4453
        %v4550 = vunpack.c.l.b16 %v4454
        %v4551 = vunpack.c.l.b16 %v4455
        %v4552 = vunpack.c.l.b16 %v4456
        %v4553 = vunpack.c.l.b16 %v4457
        %v4554 = vunpack.c.l.b16 %v4458
        %v4555 = vunpack.c.l.b16 %v4459
        %v4556 = vunpack.c.l.b16 %v4460
        %v4557 = vunpack.c.l.b16 %v4461
        %v4558 = vunpack.c.l.b16 %v4462
        %v4559 = vunpack.c.l.b16 %v4463
        %v4560 = vunpack.c.l.b16 %v4464
        %v4561 = vunpack.c.l.b16 %v4465
        %v4562 = vunpack.c.l.b16 %v4466
        %v4563 = vunpack.c.l.b16 %v4467
        %v4564 = vpack.c.b16 %v4517, %v4516
        %v4565 = vpack.c.b16 %v4519, %v4518
        %v4566 = vpack.c.b16 %v4521, %v4520
        %v4567 = vpack.c.b16 %v4523, %v4522
        %v4568 = vpack.c.b16 %v4525, %v4524
        %v4569 = vpack.c.b16 %v4527, %v4526
        %v4570 = vpack.c.b16 %v4529, %v4528
        %v4571 = vpack.c.b16 %v4531, %v4530
        %v4572 = vpack.c.b16 %v4533, %v4532
        %v4573 = vpack.c.b16 %v4535, %v4534
        %v4574 = vpack.c.b16 %v4537, %v4536
        %v4575 = vpack.c.b16 %v4539, %v4538
        %v4576 = vpack.c.b16 %v4541, %v4540
        %v4577 = vpack.c.b16 %v4543, %v4542
        %v4578 = vpack.c.b16 %v4545, %v4544
        %v4579 = vpack.c.b16 %v4547, %v4546
        %v4580 = vpack.c.b16 %v4549, %v4548
        %v4581 = vpack.c.b16 %v4551, %v4550
        %v4582 = vpack.c.b16 %v4553, %v4552
        %v4583 = vpack.c.b16 %v4555, %v4554
        %v4584 = vpack.c.b16 %v4557, %v4556
        %v4585 = vpack.c.b16 %v4559, %v4558
        %v4586 = vpack.c.b16 %v4561, %v4560
        %v4587 = vpack.c.b16 %v4563, %v4562
        %4612 = vmatpush.bf16.msra.mxu0 %v4571
        %4613 = vmatpush.bf16.msra.mxu0 %v4570
        %4614 = vmatpush.bf16.msra.mxu0 %v4569
        %4615 = vmatpush.bf16.msra.mxu0 %v4568
        %4616 = vmatpush.bf16.msra.mxu0 %v4567
        %4617 = vmatpush.bf16.msra.mxu0 %v4566
        %4618 = vmatpush.bf16.msra.mxu0 %v4565
        %4619 = vmatpush.bf16.msra.mxu0 %v4564
        %4620 = vmatmul.bf16.gmra.mxu0 %v4235
        %v4621 = vpop.f32.mrf.mxu0
        %v4622 = vadd.f32 0.0, %v4621
        %v4623 = vpop.f32.mrf.mxu0
        %v4624 = vadd.f32 0.0, %v4623
        %4625 = vmatmul.bf16.gmra.mxu0 %v4236
        %v4626 = vpop.f32.mrf.mxu0
        %v4627 = vadd.f32 0.0, %v4626
        %v4628 = vpop.f32.mrf.mxu0
        %v4629 = vadd.f32 0.0, %v4628
        %4630 = vmatmul.bf16.gmra.mxu0 %v4237
        %v4631 = vpop.f32.mrf.mxu0
        %v4632 = vadd.f32 0.0, %v4631
        %v4633 = vpop.f32.mrf.mxu0
        %v4634 = vadd.f32 0.0, %v4633
        %4635 = vmatmul.bf16.gmra.mxu0 %v4238
        %v4636 = vpop.f32.mrf.mxu0
        %v4637 = vadd.f32 0.0, %v4636
        %v4638 = vpop.f32.mrf.mxu0
        %v4639 = vadd.f32 0.0, %v4638
        %4640 = vmatmul.bf16.gmra.mxu0 %v4239
        %v4641 = vpop.f32.mrf.mxu0
        %v4642 = vadd.f32 0.0, %v4641
        %v4643 = vpop.f32.mrf.mxu0
        %v4644 = vadd.f32 0.0, %v4643
        %4645 = vmatmul.bf16.gmra.mxu0 %v4240
        %v4646 = vpop.f32.mrf.mxu0
        %v4647 = vadd.f32 0.0, %v4646
        %v4648 = vpop.f32.mrf.mxu0
        %v4649 = vadd.f32 0.0, %v4648
        %4650 = vmatmul.bf16.gmra.mxu0 %v4241
        %v4651 = vpop.f32.mrf.mxu0
        %v4652 = vadd.f32 0.0, %v4651
        %v4653 = vpop.f32.mrf.mxu0
        %v4654 = vadd.f32 0.0, %v4653
        %4655 = vmatmul.bf16.gmra.mxu0 %v4405
        %v4656 = vpop.f32.mrf.mxu0
        %v4657 = vadd.f32 0.0, %v4656
        %v4658 = vpop.f32.mrf.mxu0
        %v4659 = vadd.f32 0.0, %v4658
        %4660 = vdwg.mxu0
        %4661 = vmatpush.bf16.msra.mxu0 %v4579
        %4662 = vmatpush.bf16.msra.mxu0 %v4578
        %4663 = vmatpush.bf16.msra.mxu0 %v4577
        %4664 = vmatpush.bf16.msra.mxu0 %v4576
        %4665 = vmatpush.bf16.msra.mxu0 %v4575
        %4666 = vmatpush.bf16.msra.mxu0 %v4574
        %4667 = vmatpush.bf16.msra.mxu0 %v4573
        %4668 = vmatpush.bf16.msra.mxu0 %v4572
        %4669 = vmatmul.bf16.gmra.mxu0 %v4277
        %v4670 = vpop.f32.mrf.mxu0
        %v4671 = vadd.f32 %v4622, %v4670
        %v4672 = vpop.f32.mrf.mxu0
        %v4673 = vadd.f32 %v4624, %v4672
        %4674 = vmatmul.bf16.gmra.mxu0 %v4278
        %v4675 = vpop.f32.mrf.mxu0
        %v4676 = vadd.f32 %v4627, %v4675
        %v4677 = vpop.f32.mrf.mxu0
        %v4678 = vadd.f32 %v4629, %v4677
        %4679 = vmatmul.bf16.gmra.mxu0 %v4279
        %v4680 = vpop.f32.mrf.mxu0
        %v4681 = vadd.f32 %v4632, %v4680
        %v4682 = vpop.f32.mrf.mxu0
        %v4683 = vadd.f32 %v4634, %v4682
        %4684 = vmatmul.bf16.gmra.mxu0 %v4280
        %v4685 = vpop.f32.mrf.mxu0
        %v4686 = vadd.f32 %v4637, %v4685
        %v4687 = vpop.f32.mrf.mxu0
        %v4688 = vadd.f32 %v4639, %v4687
        %4689 = vmatmul.bf16.gmra.mxu0 %v4281
        %v4690 = vpop.f32.mrf.mxu0
        %v4691 = vadd.f32 %v4642, %v4690
        %v4692 = vpop.f32.mrf.mxu0
        %v4693 = vadd.f32 %v4644, %v4692
        %4694 = vmatmul.bf16.gmra.mxu0 %v4282
        %v4695 = vpop.f32.mrf.mxu0
        %v4696 = vadd.f32 %v4647, %v4695
        %v4697 = vpop.f32.mrf.mxu0
        %v4698 = vadd.f32 %v4649, %v4697
        %4699 = vmatmul.bf16.gmra.mxu0 %v4283
        %v4700 = vpop.f32.mrf.mxu0
        %v4701 = vadd.f32 %v4652, %v4700
        %v4702 = vpop.f32.mrf.mxu0
        %v4703 = vadd.f32 %v4654, %v4702
        %4704 = vmatmul.bf16.gmra.mxu0 %v4411
        %v4705 = vpop.f32.mrf.mxu0
        %v4706 = vadd.f32 %v4657, %v4705
        %v4707 = vpop.f32.mrf.mxu0
        %v4708 = vadd.f32 %v4659, %v4707
        %4709 = vdwg.mxu0
        %4710 = vmatpush.bf16.msra.mxu0 %v4587
        %4711 = vmatpush.bf16.msra.mxu0 %v4586
        %4712 = vmatpush.bf16.msra.mxu0 %v4585
        %4713 = vmatpush.bf16.msra.mxu0 %v4584
        %4714 = vmatpush.bf16.msra.mxu0 %v4583
        %4715 = vmatpush.bf16.msra.mxu0 %v4582
        %4716 = vmatpush.bf16.msra.mxu0 %v4581
        %4717 = vmatpush.bf16.msra.mxu0 %v4580
        %4718 = vmatmul.bf16.gmra.mxu0 %v4319
        %v4719 = vpop.f32.mrf.mxu0
        %v4720 = vadd.f32 %v4671, %v4719
        %v4721 = vpop.f32.mrf.mxu0
        %v4722 = vadd.f32 %v4673, %v4721
        %4723 = vmatmul.bf16.gmra.mxu0 %v4320
        %v4724 = vpop.f32.mrf.mxu0
        %v4725 = vadd.f32 %v4676, %v4724
        %v4726 = vpop.f32.mrf.mxu0
        %v4727 = vadd.f32 %v4678, %v4726
        %4728 = vmatmul.bf16.gmra.mxu0 %v4321
        %v4729 = vpop.f32.mrf.mxu0
        %v4730 = vadd.f32 %v4681, %v4729
        %v4731 = vpop.f32.mrf.mxu0
        %v4732 = vadd.f32 %v4683, %v4731
        %4733 = vmatmul.bf16.gmra.mxu0 %v4322
        %v4734 = vpop.f32.mrf.mxu0
        %v4735 = vadd.f32 %v4686, %v4734
        %v4736 = vpop.f32.mrf.mxu0
        %v4737 = vadd.f32 %v4688, %v4736
        %4738 = vmatmul.bf16.gmra.mxu0 %v4323
        %v4739 = vpop.f32.mrf.mxu0
        %v4740 = vadd.f32 %v4691, %v4739
        %v4741 = vpop.f32.mrf.mxu0
        %v4742 = vadd.f32 %v4693, %v4741
        %4743 = vmatmul.bf16.gmra.mxu0 %v4324
        %v4744 = vpop.f32.mrf.mxu0
        %v4745 = vadd.f32 %v4696, %v4744
        %v4746 = vpop.f32.mrf.mxu0
        %v4747 = vadd.f32 %v4698, %v4746
        %4748 = vmatmul.bf16.gmra.mxu0 %v4325
        %v4749 = vpop.f32.mrf.mxu0
        %v4750 = vadd.f32 %v4701, %v4749
        %v4751 = vpop.f32.mrf.mxu0
        %v4752 = vadd.f32 %v4703, %v4751
        %4753 = vmatmul.bf16.gmra.mxu0 %v4417
        %v4754 = vpop.f32.mrf.mxu0
        %v4755 = vadd.f32 %v4706, %v4754
        %v4756 = vpop.f32.mrf.mxu0
        %v4757 = vadd.f32 %v4708, %v4756
        %4758 = vdwg.mxu0
        %v4807 = vunpack.c.l.b16 %v4333
        %v4808 = vunpack.c.l.b16 %v4334
        %v4809 = vunpack.c.l.b16 %v4335
        %v4810 = vunpack.c.l.b16 %v4336
        %v4811 = vunpack.c.l.b16 %v4337
        %v4812 = vunpack.c.l.b16 %v4338
        %v4813 = vunpack.c.l.b16 %v4339
        %v4814 = vunpack.c.l.b16 %v4340
        %v4815 = vunpack.c.l.b16 %v4341
        %v4816 = vunpack.c.l.b16 %v4342
        %v4817 = vunpack.c.l.b16 %v4343
        %v4818 = vunpack.c.l.b16 %v4344
        %v4819 = vunpack.c.l.b16 %v4345
        %v4820 = vunpack.c.l.b16 %v4346
        %v4821 = vunpack.c.l.b16 %v4347
        %v4822 = vunpack.c.l.b16 %v4348
        %v4823 = vunpack.c.l.b16 %v4349
        %v4824 = vunpack.c.l.b16 %v4350
        %v4825 = vunpack.c.l.b16 %v4351
        %v4826 = vunpack.c.l.b16 %v4352
        %v4827 = vunpack.c.l.b16 %v4353
        %v4828 = vunpack.c.l.b16 %v4354
        %v4829 = vunpack.c.l.b16 %v4355
        %v4830 = vunpack.c.l.b16 %v4356
        %v4831 = vunpack.c.l.b16 %v4357
        %v4832 = vunpack.c.l.b16 %v4358
        %v4833 = vunpack.c.l.b16 %v4359
        %v4834 = vunpack.c.l.b16 %v4360
        %v4835 = vunpack.c.l.b16 %v4361
        %v4836 = vunpack.c.l.b16 %v4362
        %v4837 = vunpack.c.l.b16 %v4363
        %v4838 = vunpack.c.l.b16 %v4364
        %v4839 = vunpack.c.l.b16 %v4365
        %v4840 = vunpack.c.l.b16 %v4366
        %v4841 = vunpack.c.l.b16 %v4367
        %v4842 = vunpack.c.l.b16 %v4368
        %v4843 = vunpack.c.l.b16 %v4369
        %v4844 = vunpack.c.l.b16 %v4370
        %v4845 = vunpack.c.l.b16 %v4371
        %v4846 = vunpack.c.l.b16 %v4372
        %v4847 = vunpack.c.l.b16 %v4373
        %v4848 = vunpack.c.l.b16 %v4374
        %v4849 = vunpack.c.l.b16 %v4375
        %v4850 = vunpack.c.l.b16 %v4376
        %v4851 = vunpack.c.l.b16 %v4377
        %v4852 = vunpack.c.l.b16 %v4378
        %v4853 = vunpack.c.l.b16 %v4379
        %v4854 = vunpack.c.l.b16 %v4380
        %v4855 = vpack.c.b16 %v4808, %v4807
        %v4856 = vpack.c.b16 %v4810, %v4809
        %v4857 = vpack.c.b16 %v4812, %v4811
        %v4858 = vpack.c.b16 %v4814, %v4813
        %v4859 = vpack.c.b16 %v4816, %v4815
        %v4860 = vpack.c.b16 %v4818, %v4817
        %v4861 = vpack.c.b16 %v4820, %v4819
        %v4862 = vpack.c.b16 %v4822, %v4821
        %v4863 = vpack.c.b16 %v4824, %v4823
        %v4864 = vpack.c.b16 %v4826, %v4825
        %v4865 = vpack.c.b16 %v4828, %v4827
        %v4866 = vpack.c.b16 %v4830, %v4829
        %v4867 = vpack.c.b16 %v4832, %v4831
        %v4868 = vpack.c.b16 %v4834, %v4833
        %v4869 = vpack.c.b16 %v4836, %v4835
        %v4870 = vpack.c.b16 %v4838, %v4837
        %v4871 = vpack.c.b16 %v4840, %v4839
        %v4872 = vpack.c.b16 %v4842, %v4841
        %v4873 = vpack.c.b16 %v4844, %v4843
        %v4874 = vpack.c.b16 %v4846, %v4845
        %v4875 = vpack.c.b16 %v4848, %v4847
        %v4876 = vpack.c.b16 %v4850, %v4849
        %v4877 = vpack.c.b16 %v4852, %v4851
        %v4878 = vpack.c.b16 %v4854, %v4853
        %4903 = vmatpush.bf16.msra.mxu0 %v4862
        %4904 = vmatpush.bf16.msra.mxu0 %v4861
        %4905 = vmatpush.bf16.msra.mxu0 %v4860
        %4906 = vmatpush.bf16.msra.mxu0 %v4859
        %4907 = vmatpush.bf16.msra.mxu0 %v4858
        %4908 = vmatpush.bf16.msra.mxu0 %v4857
        %4909 = vmatpush.bf16.msra.mxu0 %v4856
        %4910 = vmatpush.bf16.msra.mxu0 %v4855
        %4911 = vmatmul.bf16.gmra.mxu0 %v534
        %v4912 = vpop.f32.mrf.mxu0
        %v4913 = vadd.f32 %v4720, %v4912
        %v4914 = vpop.f32.mrf.mxu0
        %v4915 = vadd.f32 %v4722, %v4914
        %4916 = vmatmul.bf16.gmra.mxu0 %v4235
        %v4917 = vpop.f32.mrf.mxu0
        %v4918 = vadd.f32 %v4725, %v4917
        %v4919 = vpop.f32.mrf.mxu0
        %v4920 = vadd.f32 %v4727, %v4919
        %4921 = vmatmul.bf16.gmra.mxu0 %v4236
        %v4922 = vpop.f32.mrf.mxu0
        %v4923 = vadd.f32 %v4730, %v4922
        %v4924 = vpop.f32.mrf.mxu0
        %v4925 = vadd.f32 %v4732, %v4924
        %4926 = vmatmul.bf16.gmra.mxu0 %v4237
        %v4927 = vpop.f32.mrf.mxu0
        %v4928 = vadd.f32 %v4735, %v4927
        %v4929 = vpop.f32.mrf.mxu0
        %v4930 = vadd.f32 %v4737, %v4929
        %4931 = vmatmul.bf16.gmra.mxu0 %v4238
        %v4932 = vpop.f32.mrf.mxu0
        %v4933 = vadd.f32 %v4740, %v4932
        %v4934 = vpop.f32.mrf.mxu0
        %v4935 = vadd.f32 %v4742, %v4934
        %4936 = vmatmul.bf16.gmra.mxu0 %v4239
        %v4937 = vpop.f32.mrf.mxu0
        %v4938 = vadd.f32 %v4745, %v4937
        %v4939 = vpop.f32.mrf.mxu0
        %v4940 = vadd.f32 %v4747, %v4939
        %4941 = vmatmul.bf16.gmra.mxu0 %v4240
        %v4942 = vpop.f32.mrf.mxu0
        %v4943 = vadd.f32 %v4750, %v4942
        %v4944 = vpop.f32.mrf.mxu0
        %v4945 = vadd.f32 %v4752, %v4944
        %4946 = vmatmul.bf16.gmra.mxu0 %v4241
        %v4947 = vpop.f32.mrf.mxu0
        %v4948 = vadd.f32 %v4755, %v4947
        %v4949 = vpop.f32.mrf.mxu0
        %v4950 = vadd.f32 %v4757, %v4949
        %4951 = vdwg.mxu0
        %4952 = vmatpush.bf16.msra.mxu0 %v4870
        %4953 = vmatpush.bf16.msra.mxu0 %v4869
        %4954 = vmatpush.bf16.msra.mxu0 %v4868
        %4955 = vmatpush.bf16.msra.mxu0 %v4867
        %4956 = vmatpush.bf16.msra.mxu0 %v4866
        %4957 = vmatpush.bf16.msra.mxu0 %v4865
        %4958 = vmatpush.bf16.msra.mxu0 %v4864
        %4959 = vmatpush.bf16.msra.mxu0 %v4863
        %4960 = vmatmul.bf16.gmra.mxu0 %v580
        %v4961 = vpop.f32.mrf.mxu0
        %v4962 = vadd.f32 %v4913, %v4961
        %v4963 = vpop.f32.mrf.mxu0
        %v4964 = vadd.f32 %v4915, %v4963
        %4965 = vmatmul.bf16.gmra.mxu0 %v4277
        %v4966 = vpop.f32.mrf.mxu0
        %v4967 = vadd.f32 %v4918, %v4966
        %v4968 = vpop.f32.mrf.mxu0
        %v4969 = vadd.f32 %v4920, %v4968
        %4970 = vmatmul.bf16.gmra.mxu0 %v4278
        %v4971 = vpop.f32.mrf.mxu0
        %v4972 = vadd.f32 %v4923, %v4971
        %v4973 = vpop.f32.mrf.mxu0
        %v4974 = vadd.f32 %v4925, %v4973
        %4975 = vmatmul.bf16.gmra.mxu0 %v4279
        %v4976 = vpop.f32.mrf.mxu0
        %v4977 = vadd.f32 %v4928, %v4976
        %v4978 = vpop.f32.mrf.mxu0
        %v4979 = vadd.f32 %v4930, %v4978
        %4980 = vmatmul.bf16.gmra.mxu0 %v4280
        %v4981 = vpop.f32.mrf.mxu0
        %v4982 = vadd.f32 %v4933, %v4981
        %v4983 = vpop.f32.mrf.mxu0
        %v4984 = vadd.f32 %v4935, %v4983
        %4985 = vmatmul.bf16.gmra.mxu0 %v4281
        %v4986 = vpop.f32.mrf.mxu0
        %v4987 = vadd.f32 %v4938, %v4986
        %v4988 = vpop.f32.mrf.mxu0
        %v4989 = vadd.f32 %v4940, %v4988
        %4990 = vmatmul.bf16.gmra.mxu0 %v4282
        %v4991 = vpop.f32.mrf.mxu0
        %v4992 = vadd.f32 %v4943, %v4991
        %v4993 = vpop.f32.mrf.mxu0
        %v4994 = vadd.f32 %v4945, %v4993
        %4995 = vmatmul.bf16.gmra.mxu0 %v4283
        %v4996 = vpop.f32.mrf.mxu0
        %v4997 = vadd.f32 %v4948, %v4996
        %v4998 = vpop.f32.mrf.mxu0
        %v4999 = vadd.f32 %v4950, %v4998
        %5000 = vdwg.mxu0
        %5001 = vmatpush.bf16.msra.mxu0 %v4878
        %5002 = vmatpush.bf16.msra.mxu0 %v4877
        %5003 = vmatpush.bf16.msra.mxu0 %v4876
        %5004 = vmatpush.bf16.msra.mxu0 %v4875
        %5005 = vmatpush.bf16.msra.mxu0 %v4874
        %5006 = vmatpush.bf16.msra.mxu0 %v4873
        %5007 = vmatpush.bf16.msra.mxu0 %v4872
        %5008 = vmatpush.bf16.msra.mxu0 %v4871
        %5009 = vmatmul.bf16.gmra.mxu0 %v628
        %v5010 = vpop.f32.mrf.mxu0
        %v5011 = vadd.f32 %v4962, %v5010
        %v5012 = vpop.f32.mrf.mxu0
        %v5013 = vadd.f32 %v4964, %v5012
        %5014 = vmatmul.bf16.gmra.mxu0 %v4319
        %v5015 = vpop.f32.mrf.mxu0
        %v5016 = vadd.f32 %v4967, %v5015
        %v5017 = vpop.f32.mrf.mxu0
        %v5018 = vadd.f32 %v4969, %v5017
        %5019 = vmatmul.bf16.gmra.mxu0 %v4320
        %v5020 = vpop.f32.mrf.mxu0
        %v5021 = vadd.f32 %v4972, %v5020
        %v5022 = vpop.f32.mrf.mxu0
        %v5023 = vadd.f32 %v4974, %v5022
        %5024 = vmatmul.bf16.gmra.mxu0 %v4321
        %v5025 = vpop.f32.mrf.mxu0
        %v5026 = vadd.f32 %v4977, %v5025
        %v5027 = vpop.f32.mrf.mxu0
        %v5028 = vadd.f32 %v4979, %v5027
        %5029 = vmatmul.bf16.gmra.mxu0 %v4322
        %v5030 = vpop.f32.mrf.mxu0
        %v5031 = vadd.f32 %v4982, %v5030
        %v5032 = vpop.f32.mrf.mxu0
        %v5033 = vadd.f32 %v4984, %v5032
        %5034 = vmatmul.bf16.gmra.mxu0 %v4323
        %v5035 = vpop.f32.mrf.mxu0
        %v5036 = vadd.f32 %v4987, %v5035
        %v5037 = vpop.f32.mrf.mxu0
        %v5038 = vadd.f32 %v4989, %v5037
        %5039 = vmatmul.bf16.gmra.mxu0 %v4324
        %v5040 = vpop.f32.mrf.mxu0
        %v5041 = vadd.f32 %v4992, %v5040
        %v5042 = vpop.f32.mrf.mxu0
        %v5043 = vadd.f32 %v4994, %v5042
        %5044 = vmatmul.bf16.gmra.mxu0 %v4325
        %v5045 = vpop.f32.mrf.mxu0
        %v5046 = vadd.f32 %v4997, %v5045
        %v5047 = vpop.f32.mrf.mxu0
        %v5048 = vadd.f32 %v4999, %v5047
        %5049 = vdwg.mxu0
        %s5050 = scalar_lea.vmem [#allocation2], 16
        %v5051 = vld [vmem:[%s5050] sm:$0xff]
        %v5052 = vld [vmem:[%s5050 + $0x8] sm:$0xff]
        %v5053 = vld [vmem:[%s5050 + $0x10] sm:$0xff]
        %v5054 = vld [vmem:[%s5050 + $0x18] sm:$0xff]
        %v5055 = vld [vmem:[%s5050 + $0x20] sm:$0xff]
        %v5056 = vld [vmem:[%s5050 + $0x28] sm:$0xff]
        %v5057 = vld [vmem:[%s5050 + $0x30] sm:$0xff]
        %v5058 = vld [vmem:[%s5050 + $0x38] sm:$0xff]
        %v5059 = vld [vmem:[%s5050 + $0x40] sm:$0xff]
        %v5060 = vld [vmem:[%s5050 + $0x48] sm:$0xff]
        %v5061 = vld [vmem:[%s5050 + $0x50] sm:$0xff]
        %v5062 = vld [vmem:[%s5050 + $0x58] sm:$0xff]
        %v5063 = vld [vmem:[%s5050 + $0x60] sm:$0xff]
        %v5064 = vld [vmem:[%s5050 + $0x68] sm:$0xff]
        %v5065 = vld [vmem:[%s5050 + $0x70] sm:$0xff]
        %v5066 = vld [vmem:[%s5050 + $0x78] sm:$0xff]
        %v5067 = vrot.slane %v5051, 7
        %v5068 = vrot.slane %v5053, 7
        %v5069 = vrot.slane %v5055, 7
        %v5070 = vrot.slane %v5057, 7
        %v5071 = vrot.slane %v5059, 7
        %v5072 = vrot.slane %v5061, 7
        %v5073 = vrot.slane %v5063, 7
        %v5074 = vrot.slane %v5065, 7
        %v5075 = vrot.slane %v5052, 7
        %v5076 = vrot.slane %v5054, 7
        %v5077 = vrot.slane %v5056, 7
        %v5078 = vrot.slane %v5058, 7
        %v5079 = vrot.slane %v5060, 7
        %v5080 = vrot.slane %v5062, 7
        %v5081 = vrot.slane %v5064, 7
        %v5082 = vrot.slane %v5066, 7
        %v5083 = vsel %vm379, %v5067, %v5075
        %v5084 = vsel %vm379, %v5068, %v5076
        %v5085 = vsel %vm379, %v5069, %v5077
        %v5086 = vsel %vm379, %v5070, %v5078
        %v5087 = vsel %vm379, %v5071, %v5079
        %v5088 = vsel %vm379, %v5072, %v5080
        %v5089 = vsel %vm379, %v5073, %v5081
        %v5090 = vsel %vm379, %v5074, %v5082
        %v5091 = vsel %vm379, %v5075, %v5067
        %v5092 = vsel %vm379, %v5076, %v5068
        %v5093 = vsel %vm379, %v5077, %v5069
        %v5094 = vsel %vm379, %v5078, %v5070
        %v5095 = vsel %vm379, %v5079, %v5071
        %v5096 = vsel %vm379, %v5080, %v5072
        %v5097 = vsel %vm379, %v5081, %v5073
        %v5098 = vsel %vm379, %v5082, %v5074
        %v5099 = vmul.f32 %v5091, %v343
        %v5100 = vmul.f32 %v5083, %v344
        %v5101 = vmul.f32 %v5092, %v343
        %v5102 = vmul.f32 %v5084, %v344
        %v5103 = vmul.f32 %v5093, %v343
        %v5104 = vmul.f32 %v5085, %v344
        %v5105 = vmul.f32 %v5094, %v343
        %v5106 = vmul.f32 %v5086, %v344
        %v5107 = vmul.f32 %v5095, %v343
        %v5108 = vmul.f32 %v5087, %v344
        %v5109 = vmul.f32 %v5096, %v343
        %v5110 = vmul.f32 %v5088, %v344
        %v5111 = vmul.f32 %v5097, %v343
        %v5112 = vmul.f32 %v5089, %v344
        %v5113 = vmul.f32 %v5098, %v343
        %v5114 = vmul.f32 %v5090, %v344
        %v5115 = vpack.c.bf16 %v5099, %v5099
        %v5116 = vpack.c.bf16 %v5100, %v5100
        %v5117 = vpack.c.bf16 %v5101, %v5101
        %v5118 = vpack.c.bf16 %v5102, %v5102
        %v5119 = vpack.c.bf16 %v5103, %v5103
        %v5120 = vpack.c.bf16 %v5104, %v5104
        %v5121 = vpack.c.bf16 %v5105, %v5105
        %v5122 = vpack.c.bf16 %v5106, %v5106
        %v5123 = vpack.c.bf16 %v5107, %v5107
        %v5124 = vpack.c.bf16 %v5108, %v5108
        %v5125 = vpack.c.bf16 %v5109, %v5109
        %v5126 = vpack.c.bf16 %v5110, %v5110
        %v5127 = vpack.c.bf16 %v5111, %v5111
        %v5128 = vpack.c.bf16 %v5112, %v5112
        %v5129 = vpack.c.bf16 %v5113, %v5113
        %v5130 = vpack.c.bf16 %v5114, %v5114
        %v5131 = vrot.slane %v5051, 1
        %v5132 = vrot.slane %v5053, 1
        %v5133 = vrot.slane %v5055, 1
        %v5134 = vrot.slane %v5057, 1
        %v5135 = vrot.slane %v5059, 1
        %v5136 = vrot.slane %v5061, 1
        %v5137 = vrot.slane %v5063, 1
        %v5138 = vrot.slane %v5065, 1
        %v5139 = vrot.slane %v5052, 1
        %v5140 = vrot.slane %v5054, 1
        %v5141 = vrot.slane %v5056, 1
        %v5142 = vrot.slane %v5058, 1
        %v5143 = vrot.slane %v5060, 1
        %v5144 = vrot.slane %v5062, 1
        %v5145 = vrot.slane %v5064, 1
        %v5146 = vrot.slane %v5066, 1
        %v5147 = vsel %vm440, %v5131, %v5139
        %v5148 = vsel %vm440, %v5132, %v5140
        %v5149 = vsel %vm440, %v5133, %v5141
        %v5150 = vsel %vm440, %v5134, %v5142
        %v5151 = vsel %vm440, %v5135, %v5143
        %v5152 = vsel %vm440, %v5136, %v5144
        %v5153 = vsel %vm440, %v5137, %v5145
        %v5154 = vsel %vm440, %v5138, %v5146
        %v5155 = vsel %vm440, %v5139, %v5131
        %v5156 = vsel %vm440, %v5140, %v5132
        %v5157 = vsel %vm440, %v5141, %v5133
        %v5158 = vsel %vm440, %v5142, %v5134
        %v5159 = vsel %vm440, %v5143, %v5135
        %v5160 = vsel %vm440, %v5144, %v5136
        %v5161 = vsel %vm440, %v5145, %v5137
        %v5162 = vsel %vm440, %v5146, %v5138
        %v5163 = vmul.f32 %v5147, %v349
        %v5164 = vmul.f32 %v5155, %v350
        %v5165 = vmul.f32 %v5148, %v349
        %v5166 = vmul.f32 %v5156, %v350
        %v5167 = vmul.f32 %v5149, %v349
        %v5168 = vmul.f32 %v5157, %v350
        %v5169 = vmul.f32 %v5150, %v349
        %v5170 = vmul.f32 %v5158, %v350
        %v5171 = vmul.f32 %v5151, %v349
        %v5172 = vmul.f32 %v5159, %v350
        %v5173 = vmul.f32 %v5152, %v349
        %v5174 = vmul.f32 %v5160, %v350
        %v5175 = vmul.f32 %v5153, %v349
        %v5176 = vmul.f32 %v5161, %v350
        %v5177 = vmul.f32 %v5154, %v349
        %v5178 = vmul.f32 %v5162, %v350
        %v5179 = vpack.c.bf16 %v5163, %v5163
        %v5180 = vpack.c.bf16 %v5164, %v5164
        %v5181 = vpack.c.bf16 %v5165, %v5165
        %v5182 = vpack.c.bf16 %v5166, %v5166
        %v5183 = vpack.c.bf16 %v5167, %v5167
        %v5184 = vpack.c.bf16 %v5168, %v5168
        %v5185 = vpack.c.bf16 %v5169, %v5169
        %v5186 = vpack.c.bf16 %v5170, %v5170
        %v5187 = vpack.c.bf16 %v5171, %v5171
        %v5188 = vpack.c.bf16 %v5172, %v5172
        %v5189 = vpack.c.bf16 %v5173, %v5173
        %v5190 = vpack.c.bf16 %v5174, %v5174
        %v5191 = vpack.c.bf16 %v5175, %v5175
        %v5192 = vpack.c.bf16 %v5176, %v5176
        %v5193 = vpack.c.bf16 %v5177, %v5177
        %v5194 = vpack.c.bf16 %v5178, %v5178
        %v5195 = vpack.c.bf16 %v5051, %v5051
        %v5196 = vpack.c.bf16 %v5052, %v5052
        %v5197 = vpack.c.bf16 %v5053, %v5053
        %v5198 = vpack.c.bf16 %v5054, %v5054
        %v5199 = vpack.c.bf16 %v5055, %v5055
        %v5200 = vpack.c.bf16 %v5056, %v5056
        %v5201 = vpack.c.bf16 %v5057, %v5057
        %v5202 = vpack.c.bf16 %v5058, %v5058
        %v5203 = vpack.c.bf16 %v5059, %v5059
        %v5204 = vpack.c.bf16 %v5060, %v5060
        %v5205 = vpack.c.bf16 %v5061, %v5061
        %v5206 = vpack.c.bf16 %v5062, %v5062
        %v5207 = vpack.c.bf16 %v5063, %v5063
        %v5208 = vpack.c.bf16 %v5064, %v5064
        %v5209 = vpack.c.bf16 %v5065, %v5065
        %v5210 = vpack.c.bf16 %v5066, %v5066
        %v5227 = vunpack.c.l.b16 %v5115
        %v5228 = vunpack.c.l.b16 %v5116
        %v5229 = vunpack.c.l.b16 %v5117
        %v5230 = vunpack.c.l.b16 %v5118
        %v5231 = vunpack.c.l.b16 %v5119
        %v5232 = vunpack.c.l.b16 %v5120
        %v5233 = vunpack.c.l.b16 %v5121
        %v5234 = vunpack.c.l.b16 %v5122
        %v5235 = vunpack.c.l.b16 %v5123
        %v5236 = vunpack.c.l.b16 %v5124
        %v5237 = vunpack.c.l.b16 %v5125
        %v5238 = vunpack.c.l.b16 %v5126
        %v5239 = vunpack.c.l.b16 %v5127
        %v5240 = vunpack.c.l.b16 %v5128
        %v5241 = vunpack.c.l.b16 %v5129
        %v5242 = vunpack.c.l.b16 %v5130
        %v5243 = vpack.c.b16 %v5228, %v5227
        %v5244 = vpack.c.b16 %v5230, %v5229
        %v5245 = vpack.c.b16 %v5232, %v5231
        %v5246 = vpack.c.b16 %v5234, %v5233
        %v5247 = vpack.c.b16 %v5236, %v5235
        %v5248 = vpack.c.b16 %v5238, %v5237
        %v5249 = vpack.c.b16 %v5240, %v5239
        %v5250 = vpack.c.b16 %v5242, %v5241
        %v5275 = vunpack.c.l.b16 %v5195
        %v5276 = vunpack.c.l.b16 %v5196
        %v5277 = vunpack.c.l.b16 %v5197
        %v5278 = vunpack.c.l.b16 %v5198
        %v5279 = vunpack.c.l.b16 %v5199
        %v5280 = vunpack.c.l.b16 %v5200
        %v5281 = vunpack.c.l.b16 %v5201
        %v5282 = vunpack.c.l.b16 %v5202
        %v5283 = vunpack.c.l.b16 %v5203
        %v5284 = vunpack.c.l.b16 %v5204
        %v5285 = vunpack.c.l.b16 %v5205
        %v5286 = vunpack.c.l.b16 %v5206
        %v5287 = vunpack.c.l.b16 %v5207
        %v5288 = vunpack.c.l.b16 %v5208
        %v5289 = vunpack.c.l.b16 %v5209
        %v5290 = vunpack.c.l.b16 %v5210
        %v5291 = vpack.c.b16 %v5276, %v5275
        %v5292 = vpack.c.b16 %v5278, %v5277
        %v5293 = vpack.c.b16 %v5280, %v5279
        %v5294 = vpack.c.b16 %v5282, %v5281
        %v5295 = vpack.c.b16 %v5284, %v5283
        %v5296 = vpack.c.b16 %v5286, %v5285
        %v5297 = vpack.c.b16 %v5288, %v5287
        %v5298 = vpack.c.b16 %v5290, %v5289
        %v5323 = vunpack.c.l.b16 %v5179
        %v5324 = vunpack.c.l.b16 %v5180
        %v5325 = vunpack.c.l.b16 %v5181
        %v5326 = vunpack.c.l.b16 %v5182
        %v5327 = vunpack.c.l.b16 %v5183
        %v5328 = vunpack.c.l.b16 %v5184
        %v5329 = vunpack.c.l.b16 %v5185
        %v5330 = vunpack.c.l.b16 %v5186
        %v5331 = vunpack.c.l.b16 %v5187
        %v5332 = vunpack.c.l.b16 %v5188
        %v5333 = vunpack.c.l.b16 %v5189
        %v5334 = vunpack.c.l.b16 %v5190
        %v5335 = vunpack.c.l.b16 %v5191
        %v5336 = vunpack.c.l.b16 %v5192
        %v5337 = vunpack.c.l.b16 %v5193
        %v5338 = vunpack.c.l.b16 %v5194
        %v5339 = vpack.c.b16 %v5324, %v5323
        %v5340 = vpack.c.b16 %v5326, %v5325
        %v5341 = vpack.c.b16 %v5328, %v5327
        %v5342 = vpack.c.b16 %v5330, %v5329
        %v5343 = vpack.c.b16 %v5332, %v5331
        %v5344 = vpack.c.b16 %v5334, %v5333
        %v5345 = vpack.c.b16 %v5336, %v5335
        %v5346 = vpack.c.b16 %v5338, %v5337
        %s5355 = scalar_lea.vmem [#allocation8], 384
        %v5356 = vld [vmem:[%s5355] sm:$0xf]
        %v5357 = vld [vmem:[%s5355 + $0x4] sm:$0xf]
        %v5358 = vld [vmem:[%s5355 + $0x8] sm:$0xf]
        %v5359 = vld [vmem:[%s5355 + $0xc] sm:$0xf]
        %v5360 = vld [vmem:[%s5355 + $0x10] sm:$0xf]
        %v5361 = vld [vmem:[%s5355 + $0x14] sm:$0xf]
        %v5362 = vld [vmem:[%s5355 + $0x18] sm:$0xf]
        %v5363 = vld [vmem:[%s5355 + $0x1c] sm:$0xf]
        %v5364 = vld [vmem:[%s5355 + $0x20] sm:$0xf]
        %v5365 = vld [vmem:[%s5355 + $0x24] sm:$0xf]
        %v5366 = vld [vmem:[%s5355 + $0x28] sm:$0xf]
        %v5367 = vld [vmem:[%s5355 + $0x2c] sm:$0xf]
        %v5368 = vld [vmem:[%s5355 + $0x30] sm:$0xf]
        %v5369 = vld [vmem:[%s5355 + $0x34] sm:$0xf]
        %v5370 = vld [vmem:[%s5355 + $0x38] sm:$0xf]
        %v5371 = vld [vmem:[%s5355 + $0x3c] sm:$0xf]
        %v5372 = vld [vmem:[%s5355 + $0x40] sm:$0xf]
        %v5373 = vld [vmem:[%s5355 + $0x44] sm:$0xf]
        %v5374 = vld [vmem:[%s5355 + $0x48] sm:$0xf]
        %v5375 = vld [vmem:[%s5355 + $0x4c] sm:$0xf]
        %v5376 = vld [vmem:[%s5355 + $0x50] sm:$0xf]
        %v5377 = vld [vmem:[%s5355 + $0x54] sm:$0xf]
        %v5378 = vld [vmem:[%s5355 + $0x58] sm:$0xf]
        %v5379 = vld [vmem:[%s5355 + $0x5c] sm:$0xf]
        %v5380 = vld [vmem:[%s5355 + $0x60] sm:$0xf]
        %v5381 = vld [vmem:[%s5355 + $0x64] sm:$0xf]
        %v5382 = vld [vmem:[%s5355 + $0x68] sm:$0xf]
        %v5383 = vld [vmem:[%s5355 + $0x6c] sm:$0xf]
        %v5384 = vld [vmem:[%s5355 + $0x70] sm:$0xf]
        %v5385 = vld [vmem:[%s5355 + $0x74] sm:$0xf]
        %v5386 = vld [vmem:[%s5355 + $0x78] sm:$0xf]
        %v5387 = vld [vmem:[%s5355 + $0x7c] sm:$0xf]
        %v5388 = vld [vmem:[%s5355 + $0x80] sm:$0xf]
        %v5389 = vld [vmem:[%s5355 + $0x84] sm:$0xf]
        %v5390 = vld [vmem:[%s5355 + $0x88] sm:$0xf]
        %v5391 = vld [vmem:[%s5355 + $0x8c] sm:$0xf]
        %v5392 = vld [vmem:[%s5355 + $0x90] sm:$0xf]
        %v5393 = vld [vmem:[%s5355 + $0x94] sm:$0xf]
        %v5394 = vld [vmem:[%s5355 + $0x98] sm:$0xf]
        %v5395 = vld [vmem:[%s5355 + $0x9c] sm:$0xf]
        %v5396 = vld [vmem:[%s5355 + $0xa0] sm:$0xf]
        %v5397 = vld [vmem:[%s5355 + $0xa4] sm:$0xf]
        %v5398 = vld [vmem:[%s5355 + $0xa8] sm:$0xf]
        %v5399 = vld [vmem:[%s5355 + $0xac] sm:$0xf]
        %v5400 = vld [vmem:[%s5355 + $0xb0] sm:$0xf]
        %v5401 = vld [vmem:[%s5355 + $0xb4] sm:$0xf]
        %v5402 = vld [vmem:[%s5355 + $0xb8] sm:$0xf]
        %v5403 = vld [vmem:[%s5355 + $0xbc] sm:$0xf]
        %v5452 = vunpack.c.l.b16 %v5356
        %v5453 = vunpack.c.l.b16 %v5357
        %v5454 = vunpack.c.l.b16 %v5358
        %v5455 = vunpack.c.l.b16 %v5359
        %v5456 = vunpack.c.l.b16 %v5360
        %v5457 = vunpack.c.l.b16 %v5361
        %v5458 = vunpack.c.l.b16 %v5362
        %v5459 = vunpack.c.l.b16 %v5363
        %v5460 = vunpack.c.l.b16 %v5364
        %v5461 = vunpack.c.l.b16 %v5365
        %v5462 = vunpack.c.l.b16 %v5366
        %v5463 = vunpack.c.l.b16 %v5367
        %v5464 = vunpack.c.l.b16 %v5368
        %v5465 = vunpack.c.l.b16 %v5369
        %v5466 = vunpack.c.l.b16 %v5370
        %v5467 = vunpack.c.l.b16 %v5371
        %v5468 = vunpack.c.l.b16 %v5372
        %v5469 = vunpack.c.l.b16 %v5373
        %v5470 = vunpack.c.l.b16 %v5374
        %v5471 = vunpack.c.l.b16 %v5375
        %v5472 = vunpack.c.l.b16 %v5376
        %v5473 = vunpack.c.l.b16 %v5377
        %v5474 = vunpack.c.l.b16 %v5378
        %v5475 = vunpack.c.l.b16 %v5379
        %v5476 = vunpack.c.l.b16 %v5380
        %v5477 = vunpack.c.l.b16 %v5381
        %v5478 = vunpack.c.l.b16 %v5382
        %v5479 = vunpack.c.l.b16 %v5383
        %v5480 = vunpack.c.l.b16 %v5384
        %v5481 = vunpack.c.l.b16 %v5385
        %v5482 = vunpack.c.l.b16 %v5386
        %v5483 = vunpack.c.l.b16 %v5387
        %v5484 = vunpack.c.l.b16 %v5388
        %v5485 = vunpack.c.l.b16 %v5389
        %v5486 = vunpack.c.l.b16 %v5390
        %v5487 = vunpack.c.l.b16 %v5391
        %v5488 = vunpack.c.l.b16 %v5392
        %v5489 = vunpack.c.l.b16 %v5393
        %v5490 = vunpack.c.l.b16 %v5394
        %v5491 = vunpack.c.l.b16 %v5395
        %v5492 = vunpack.c.l.b16 %v5396
        %v5493 = vunpack.c.l.b16 %v5397
        %v5494 = vunpack.c.l.b16 %v5398
        %v5495 = vunpack.c.l.b16 %v5399
        %v5496 = vunpack.c.l.b16 %v5400
        %v5497 = vunpack.c.l.b16 %v5401
        %v5498 = vunpack.c.l.b16 %v5402
        %v5499 = vunpack.c.l.b16 %v5403
        %v5500 = vpack.c.b16 %v5453, %v5452
        %v5501 = vpack.c.b16 %v5455, %v5454
        %v5502 = vpack.c.b16 %v5457, %v5456
        %v5503 = vpack.c.b16 %v5459, %v5458
        %v5504 = vpack.c.b16 %v5461, %v5460
        %v5505 = vpack.c.b16 %v5463, %v5462
        %v5506 = vpack.c.b16 %v5465, %v5464
        %v5507 = vpack.c.b16 %v5467, %v5466
        %v5508 = vpack.c.b16 %v5469, %v5468
        %v5509 = vpack.c.b16 %v5471, %v5470
        %v5510 = vpack.c.b16 %v5473, %v5472
        %v5511 = vpack.c.b16 %v5475, %v5474
        %v5512 = vpack.c.b16 %v5477, %v5476
        %v5513 = vpack.c.b16 %v5479, %v5478
        %v5514 = vpack.c.b16 %v5481, %v5480
        %v5515 = vpack.c.b16 %v5483, %v5482
        %v5516 = vpack.c.b16 %v5485, %v5484
        %v5517 = vpack.c.b16 %v5487, %v5486
        %v5518 = vpack.c.b16 %v5489, %v5488
        %v5519 = vpack.c.b16 %v5491, %v5490
        %v5520 = vpack.c.b16 %v5493, %v5492
        %v5521 = vpack.c.b16 %v5495, %v5494
        %v5522 = vpack.c.b16 %v5497, %v5496
        %v5523 = vpack.c.b16 %v5499, %v5498
        %5548 = vmatpush.bf16.msra.mxu0 %v5507
        %5549 = vmatpush.bf16.msra.mxu0 %v5506
        %5550 = vmatpush.bf16.msra.mxu0 %v5505
        %5551 = vmatpush.bf16.msra.mxu0 %v5504
        %5552 = vmatpush.bf16.msra.mxu0 %v5503
        %5553 = vmatpush.bf16.msra.mxu0 %v5502
        %5554 = vmatpush.bf16.msra.mxu0 %v5501
        %5555 = vmatpush.bf16.msra.mxu0 %v5500
        %5556 = vmatmul.bf16.gmra.mxu0 %v5243
        %v5557 = vpop.f32.mrf.mxu0
        %v5558 = vadd.f32 0.0, %v5557
        %v5559 = vpop.f32.mrf.mxu0
        %v5560 = vadd.f32 0.0, %v5559
        %5561 = vmatmul.bf16.gmra.mxu0 %v5244
        %v5562 = vpop.f32.mrf.mxu0
        %v5563 = vadd.f32 0.0, %v5562
        %v5564 = vpop.f32.mrf.mxu0
        %v5565 = vadd.f32 0.0, %v5564
        %5566 = vmatmul.bf16.gmra.mxu0 %v5245
        %v5567 = vpop.f32.mrf.mxu0
        %v5568 = vadd.f32 0.0, %v5567
        %v5569 = vpop.f32.mrf.mxu0
        %v5570 = vadd.f32 0.0, %v5569
        %5571 = vmatmul.bf16.gmra.mxu0 %v5246
        %v5572 = vpop.f32.mrf.mxu0
        %v5573 = vadd.f32 0.0, %v5572
        %v5574 = vpop.f32.mrf.mxu0
        %v5575 = vadd.f32 0.0, %v5574
        %5576 = vmatmul.bf16.gmra.mxu0 %v5247
        %v5577 = vpop.f32.mrf.mxu0
        %v5578 = vadd.f32 0.0, %v5577
        %v5579 = vpop.f32.mrf.mxu0
        %v5580 = vadd.f32 0.0, %v5579
        %5581 = vmatmul.bf16.gmra.mxu0 %v5248
        %v5582 = vpop.f32.mrf.mxu0
        %v5583 = vadd.f32 0.0, %v5582
        %v5584 = vpop.f32.mrf.mxu0
        %v5585 = vadd.f32 0.0, %v5584
        %5586 = vmatmul.bf16.gmra.mxu0 %v5249
        %v5587 = vpop.f32.mrf.mxu0
        %v5588 = vadd.f32 0.0, %v5587
        %v5589 = vpop.f32.mrf.mxu0
        %v5590 = vadd.f32 0.0, %v5589
        %5591 = vmatmul.bf16.gmra.mxu0 %v5250
        %v5592 = vpop.f32.mrf.mxu0
        %v5593 = vadd.f32 0.0, %v5592
        %v5594 = vpop.f32.mrf.mxu0
        %v5595 = vadd.f32 0.0, %v5594
        %5596 = vdwg.mxu0
        %5597 = vmatpush.bf16.msra.mxu0 %v5515
        %5598 = vmatpush.bf16.msra.mxu0 %v5514
        %5599 = vmatpush.bf16.msra.mxu0 %v5513
        %5600 = vmatpush.bf16.msra.mxu0 %v5512
        %5601 = vmatpush.bf16.msra.mxu0 %v5511
        %5602 = vmatpush.bf16.msra.mxu0 %v5510
        %5603 = vmatpush.bf16.msra.mxu0 %v5509
        %5604 = vmatpush.bf16.msra.mxu0 %v5508
        %5605 = vmatmul.bf16.gmra.mxu0 %v5291
        %v5606 = vpop.f32.mrf.mxu0
        %v5607 = vadd.f32 %v5558, %v5606
        %v5608 = vpop.f32.mrf.mxu0
        %v5609 = vadd.f32 %v5560, %v5608
        %5610 = vmatmul.bf16.gmra.mxu0 %v5292
        %v5611 = vpop.f32.mrf.mxu0
        %v5612 = vadd.f32 %v5563, %v5611
        %v5613 = vpop.f32.mrf.mxu0
        %v5614 = vadd.f32 %v5565, %v5613
        %5615 = vmatmul.bf16.gmra.mxu0 %v5293
        %v5616 = vpop.f32.mrf.mxu0
        %v5617 = vadd.f32 %v5568, %v5616
        %v5618 = vpop.f32.mrf.mxu0
        %v5619 = vadd.f32 %v5570, %v5618
        %5620 = vmatmul.bf16.gmra.mxu0 %v5294
        %v5621 = vpop.f32.mrf.mxu0
        %v5622 = vadd.f32 %v5573, %v5621
        %v5623 = vpop.f32.mrf.mxu0
        %v5624 = vadd.f32 %v5575, %v5623
        %5625 = vmatmul.bf16.gmra.mxu0 %v5295
        %v5626 = vpop.f32.mrf.mxu0
        %v5627 = vadd.f32 %v5578, %v5626
        %v5628 = vpop.f32.mrf.mxu0
        %v5629 = vadd.f32 %v5580, %v5628
        %5630 = vmatmul.bf16.gmra.mxu0 %v5296
        %v5631 = vpop.f32.mrf.mxu0
        %v5632 = vadd.f32 %v5583, %v5631
        %v5633 = vpop.f32.mrf.mxu0
        %v5634 = vadd.f32 %v5585, %v5633
        %5635 = vmatmul.bf16.gmra.mxu0 %v5297
        %v5636 = vpop.f32.mrf.mxu0
        %v5637 = vadd.f32 %v5588, %v5636
        %v5638 = vpop.f32.mrf.mxu0
        %v5639 = vadd.f32 %v5590, %v5638
        %5640 = vmatmul.bf16.gmra.mxu0 %v5298
        %v5641 = vpop.f32.mrf.mxu0
        %v5642 = vadd.f32 %v5593, %v5641
        %v5643 = vpop.f32.mrf.mxu0
        %v5644 = vadd.f32 %v5595, %v5643
        %5645 = vdwg.mxu0
        %5646 = vmatpush.bf16.msra.mxu0 %v5523
        %5647 = vmatpush.bf16.msra.mxu0 %v5522
        %5648 = vmatpush.bf16.msra.mxu0 %v5521
        %5649 = vmatpush.bf16.msra.mxu0 %v5520
        %5650 = vmatpush.bf16.msra.mxu0 %v5519
        %5651 = vmatpush.bf16.msra.mxu0 %v5518
        %5652 = vmatpush.bf16.msra.mxu0 %v5517
        %5653 = vmatpush.bf16.msra.mxu0 %v5516
        %5654 = vmatmul.bf16.gmra.mxu0 %v5339
        %v5655 = vpop.f32.mrf.mxu0
        %v5656 = vadd.f32 %v5607, %v5655
        %v5657 = vpop.f32.mrf.mxu0
        %v5658 = vadd.f32 %v5609, %v5657
        %5659 = vmatmul.bf16.gmra.mxu0 %v5340
        %v5660 = vpop.f32.mrf.mxu0
        %v5661 = vadd.f32 %v5612, %v5660
        %v5662 = vpop.f32.mrf.mxu0
        %v5663 = vadd.f32 %v5614, %v5662
        %5664 = vmatmul.bf16.gmra.mxu0 %v5341
        %v5665 = vpop.f32.mrf.mxu0
        %v5666 = vadd.f32 %v5617, %v5665
        %v5667 = vpop.f32.mrf.mxu0
        %v5668 = vadd.f32 %v5619, %v5667
        %5669 = vmatmul.bf16.gmra.mxu0 %v5342
        %v5670 = vpop.f32.mrf.mxu0
        %v5671 = vadd.f32 %v5622, %v5670
        %v5672 = vpop.f32.mrf.mxu0
        %v5673 = vadd.f32 %v5624, %v5672
        %5674 = vmatmul.bf16.gmra.mxu0 %v5343
        %v5675 = vpop.f32.mrf.mxu0
        %v5676 = vadd.f32 %v5627, %v5675
        %v5677 = vpop.f32.mrf.mxu0
        %v5678 = vadd.f32 %v5629, %v5677
        %5679 = vmatmul.bf16.gmra.mxu0 %v5344
        %v5680 = vpop.f32.mrf.mxu0
        %v5681 = vadd.f32 %v5632, %v5680
        %v5682 = vpop.f32.mrf.mxu0
        %v5683 = vadd.f32 %v5634, %v5682
        %5684 = vmatmul.bf16.gmra.mxu0 %v5345
        %v5685 = vpop.f32.mrf.mxu0
        %v5686 = vadd.f32 %v5637, %v5685
        %v5687 = vpop.f32.mrf.mxu0
        %v5688 = vadd.f32 %v5639, %v5687
        %5689 = vmatmul.bf16.gmra.mxu0 %v5346
        %v5690 = vpop.f32.mrf.mxu0
        %v5691 = vadd.f32 %v5642, %v5690
        %v5692 = vpop.f32.mrf.mxu0
        %v5693 = vadd.f32 %v5644, %v5692
        %5694 = vdwg.mxu0
        %v5695 = vadd.f32 %v5011, %v5656
        %v5696 = vadd.f32 %v5013, %v5658
        %v5697 = vadd.f32 %v5016, %v5661
        %v5698 = vadd.f32 %v5018, %v5663
        %v5699 = vadd.f32 %v5021, %v5666
        %v5700 = vadd.f32 %v5023, %v5668
        %v5701 = vadd.f32 %v5026, %v5671
        %v5702 = vadd.f32 %v5028, %v5673
        %v5703 = vadd.f32 %v5031, %v5676
        %v5704 = vadd.f32 %v5033, %v5678
        %v5705 = vadd.f32 %v5036, %v5681
        %v5706 = vadd.f32 %v5038, %v5683
        %v5707 = vadd.f32 %v5041, %v5686
        %v5708 = vadd.f32 %v5043, %v5688
        %v5709 = vadd.f32 %v5046, %v5691
        %v5710 = vadd.f32 %v5048, %v5693
        %v5712 = vperm.slane %v334, 0
        %v5714 = vmul.f32 %v5695, %v5712
        %v5715 = vmul.f32 %v5696, %v5712
        %v5716 = vmul.f32 %v5697, %v5712
        %v5717 = vmul.f32 %v5698, %v5712
        %v5718 = vmul.f32 %v5699, %v5712
        %v5719 = vmul.f32 %v5700, %v5712
        %v5720 = vmul.f32 %v5701, %v5712
        %v5721 = vmul.f32 %v5702, %v5712
        %v5722 = vmul.f32 %v5703, %v5712
        %v5723 = vmul.f32 %v5704, %v5712
        %v5724 = vmul.f32 %v5705, %v5712
        %v5725 = vmul.f32 %v5706, %v5712
        %v5726 = vmul.f32 %v5707, %v5712
        %v5727 = vmul.f32 %v5708, %v5712
        %v5728 = vmul.f32 %v5709, %v5712
        %v5729 = vmul.f32 %v5710, %v5712
        %v5731 = vperm.slane %v335, 0
        %v5733 = vadd.f32 %v5714, %v5731
        %v5734 = vadd.f32 %v5715, %v5731
        %v5735 = vadd.f32 %v5716, %v5731
        %v5736 = vadd.f32 %v5717, %v5731
        %v5737 = vadd.f32 %v5718, %v5731
        %v5738 = vadd.f32 %v5719, %v5731
        %v5739 = vadd.f32 %v5720, %v5731
        %v5740 = vadd.f32 %v5721, %v5731
        %v5741 = vadd.f32 %v5722, %v5731
        %v5742 = vadd.f32 %v5723, %v5731
        %v5743 = vadd.f32 %v5724, %v5731
        %v5744 = vadd.f32 %v5725, %v5731
        %v5745 = vadd.f32 %v5726, %v5731
        %v5746 = vadd.f32 %v5727, %v5731
        %v5747 = vadd.f32 %v5728, %v5731
        %v5748 = vadd.f32 %v5729, %v5731
        %v5749 = vld [vmem:[%s290] sm:$0xff]
        %v5750 = vld [vmem:[%s290 + $0x8] sm:$0xff]
        %v5751 = vld [vmem:[%s290 + $0x10] sm:$0xff]
        %v5752 = vld [vmem:[%s290 + $0x18] sm:$0xff]
        %v5753 = vld [vmem:[%s290 + $0x20] sm:$0xff]
        %v5754 = vld [vmem:[%s290 + $0x28] sm:$0xff]
        %v5755 = vld [vmem:[%s290 + $0x30] sm:$0xff]
        %v5756 = vld [vmem:[%s290 + $0x38] sm:$0xff]
        %v5757 = vld [vmem:[%s290 + $0x40] sm:$0xff]
        %v5758 = vld [vmem:[%s290 + $0x48] sm:$0xff]
        %v5759 = vld [vmem:[%s290 + $0x50] sm:$0xff]
        %v5760 = vld [vmem:[%s290 + $0x58] sm:$0xff]
        %v5761 = vld [vmem:[%s290 + $0x60] sm:$0xff]
        %v5762 = vld [vmem:[%s290 + $0x68] sm:$0xff]
        %v5763 = vld [vmem:[%s290 + $0x70] sm:$0xff]
        %v5764 = vld [vmem:[%s290 + $0x78] sm:$0xff]
        %v5765 = vadd.f32 %v5733, %v5749
        %v5766 = vadd.f32 %v5734, %v5750
        %v5767 = vadd.f32 %v5735, %v5751
        %v5768 = vadd.f32 %v5736, %v5752
        %v5769 = vadd.f32 %v5737, %v5753
        %v5770 = vadd.f32 %v5738, %v5754
        %v5771 = vadd.f32 %v5739, %v5755
        %v5772 = vadd.f32 %v5740, %v5756
        %v5773 = vadd.f32 %v5741, %v5757
        %v5774 = vadd.f32 %v5742, %v5758
        %v5775 = vadd.f32 %v5743, %v5759
        %v5776 = vadd.f32 %v5744, %v5760
        %v5777 = vadd.f32 %v5745, %v5761
        %v5778 = vadd.f32 %v5746, %v5762
        %v5779 = vadd.f32 %v5747, %v5763
        %v5780 = vadd.f32 %v5748, %v5764
        %v5781 = vmax.f32 %v5765, 0.0
        %v5782 = vmax.f32 %v5766, 0.0
        %v5783 = vmax.f32 %v5767, 0.0
        %v5784 = vmax.f32 %v5768, 0.0
        %v5785 = vmax.f32 %v5769, 0.0
        %v5786 = vmax.f32 %v5770, 0.0
        %v5787 = vmax.f32 %v5771, 0.0
        %v5788 = vmax.f32 %v5772, 0.0
        %v5789 = vmax.f32 %v5773, 0.0
        %v5790 = vmax.f32 %v5774, 0.0
        %v5791 = vmax.f32 %v5775, 0.0
        %v5792 = vmax.f32 %v5776, 0.0
        %v5793 = vmax.f32 %v5777, 0.0
        %v5794 = vmax.f32 %v5778, 0.0
        %v5795 = vmax.f32 %v5779, 0.0
        %v5796 = vmax.f32 %v5780, 0.0
        %5797 = vst [vmem:[%s331] sm:$0xff] %v5781
        %5798 = vst [vmem:[%s331 + $0x8] sm:$0xff] %v5782
        %5799 = vst [vmem:[%s331 + $0x10] sm:$0xff] %v5783
        %5800 = vst [vmem:[%s331 + $0x18] sm:$0xff] %v5784
        %5801 = vst [vmem:[%s331 + $0x20] sm:$0xff] %v5785
        %5802 = vst [vmem:[%s331 + $0x28] sm:$0xff] %v5786
        %5803 = vst [vmem:[%s331 + $0x30] sm:$0xff] %v5787
        %5804 = vst [vmem:[%s331 + $0x38] sm:$0xff] %v5788
        %5805 = vst [vmem:[%s331 + $0x40] sm:$0xff] %v5789
        %5806 = vst [vmem:[%s331 + $0x48] sm:$0xff] %v5790
        %5807 = vst [vmem:[%s331 + $0x50] sm:$0xff] %v5791
        %5808 = vst [vmem:[%s331 + $0x58] sm:$0xff] %v5792
        %5809 = vst [vmem:[%s331 + $0x60] sm:$0xff] %v5793
        %5810 = vst [vmem:[%s331 + $0x68] sm:$0xff] %v5794
        %5811 = vst [vmem:[%s331 + $0x70] sm:$0xff] %v5795
        %5812 = vst [vmem:[%s331 + $0x78] sm:$0xff] %v5796
        %s5813 = scalar_lea.vmem [#allocation2], 112
        %v5814 = vld [vmem:[%s5813] sm:$0xff]
        %v5815 = vld [vmem:[%s5813 + $0x8] sm:$0xff]
        %v5816 = vld [vmem:[%s5813 + $0x10] sm:$0xff]
        %v5817 = vld [vmem:[%s5813 + $0x18] sm:$0xff]
        %v5818 = vld [vmem:[%s5813 + $0x20] sm:$0xff]
        %v5819 = vld [vmem:[%s5813 + $0x28] sm:$0xff]
        %v5820 = vld [vmem:[%s5813 + $0x30] sm:$0xff]
        %v5821 = vld [vmem:[%s5813 + $0x38] sm:$0xff]
        %v5822 = vld [vmem:[%s5813 + $0x40] sm:$0xff]
        %v5823 = vld [vmem:[%s5813 + $0x48] sm:$0xff]
        %v5824 = vld [vmem:[%s5813 + $0x50] sm:$0xff]
        %v5825 = vld [vmem:[%s5813 + $0x58] sm:$0xff]
        %v5826 = vld [vmem:[%s5813 + $0x60] sm:$0xff]
        %v5827 = vld [vmem:[%s5813 + $0x68] sm:$0xff]
        %v5828 = vld [vmem:[%s5813 + $0x70] sm:$0xff]
        %v5829 = vld [vmem:[%s5813 + $0x78] sm:$0xff]
        %v5830 = vrot.slane %v5814, 7
        %v5831 = vrot.slane %v5816, 7
        %v5832 = vrot.slane %v5818, 7
        %v5833 = vrot.slane %v5820, 7
        %v5834 = vrot.slane %v5822, 7
        %v5835 = vrot.slane %v5824, 7
        %v5836 = vrot.slane %v5826, 7
        %v5837 = vrot.slane %v5828, 7
        %v5838 = vrot.slane %v5815, 7
        %v5839 = vrot.slane %v5817, 7
        %v5840 = vrot.slane %v5819, 7
        %v5841 = vrot.slane %v5821, 7
        %v5842 = vrot.slane %v5823, 7
        %v5843 = vrot.slane %v5825, 7
        %v5844 = vrot.slane %v5827, 7
        %v5845 = vrot.slane %v5829, 7
        %v5846 = vsel %vm379, %v5830, %v5838
        %v5847 = vsel %vm379, %v5831, %v5839
        %v5848 = vsel %vm379, %v5832, %v5840
        %v5849 = vsel %vm379, %v5833, %v5841
        %v5850 = vsel %vm379, %v5834, %v5842
        %v5851 = vsel %vm379, %v5835, %v5843
        %v5852 = vsel %vm379, %v5836, %v5844
        %v5853 = vsel %vm379, %v5837, %v5845
        %v5854 = vsel %vm379, %v5838, %v5830
        %v5855 = vsel %vm379, %v5839, %v5831
        %v5856 = vsel %vm379, %v5840, %v5832
        %v5857 = vsel %vm379, %v5841, %v5833
        %v5858 = vsel %vm379, %v5842, %v5834
        %v5859 = vsel %vm379, %v5843, %v5835
        %v5860 = vsel %vm379, %v5844, %v5836
        %v5861 = vsel %vm379, %v5845, %v5837
        %v5862 = vmul.f32 %v5854, %v343
        %v5863 = vmul.f32 %v5846, %v344
        %v5864 = vmul.f32 %v5855, %v343
        %v5865 = vmul.f32 %v5847, %v344
        %v5866 = vmul.f32 %v5856, %v343
        %v5867 = vmul.f32 %v5848, %v344
        %v5868 = vmul.f32 %v5857, %v343
        %v5869 = vmul.f32 %v5849, %v344
        %v5870 = vmul.f32 %v5858, %v343
        %v5871 = vmul.f32 %v5850, %v344
        %v5872 = vmul.f32 %v5859, %v343
        %v5873 = vmul.f32 %v5851, %v344
        %v5874 = vmul.f32 %v5860, %v343
        %v5875 = vmul.f32 %v5852, %v344
        %v5876 = vmul.f32 %v5861, %v343
        %v5877 = vmul.f32 %v5853, %v344
        %v5878 = vpack.c.bf16 %v5862, %v5862
        %v5879 = vpack.c.bf16 %v5863, %v5863
        %v5880 = vpack.c.bf16 %v5864, %v5864
        %v5881 = vpack.c.bf16 %v5865, %v5865
        %v5882 = vpack.c.bf16 %v5866, %v5866
        %v5883 = vpack.c.bf16 %v5867, %v5867
        %v5884 = vpack.c.bf16 %v5868, %v5868
        %v5885 = vpack.c.bf16 %v5869, %v5869
        %v5886 = vpack.c.bf16 %v5870, %v5870
        %v5887 = vpack.c.bf16 %v5871, %v5871
        %v5888 = vpack.c.bf16 %v5872, %v5872
        %v5889 = vpack.c.bf16 %v5873, %v5873
        %v5890 = vpack.c.bf16 %v5874, %v5874
        %v5891 = vpack.c.bf16 %v5875, %v5875
        %v5892 = vpack.c.bf16 %v5876, %v5876
        %v5893 = vpack.c.bf16 %v5877, %v5877
        %v5894 = vrot.slane %v5814, 1
        %v5895 = vrot.slane %v5816, 1
        %v5896 = vrot.slane %v5818, 1
        %v5897 = vrot.slane %v5820, 1
        %v5898 = vrot.slane %v5822, 1
        %v5899 = vrot.slane %v5824, 1
        %v5900 = vrot.slane %v5826, 1
        %v5901 = vrot.slane %v5828, 1
        %v5902 = vrot.slane %v5815, 1
        %v5903 = vrot.slane %v5817, 1
        %v5904 = vrot.slane %v5819, 1
        %v5905 = vrot.slane %v5821, 1
        %v5906 = vrot.slane %v5823, 1
        %v5907 = vrot.slane %v5825, 1
        %v5908 = vrot.slane %v5827, 1
        %v5909 = vrot.slane %v5829, 1
        %v5910 = vsel %vm440, %v5894, %v5902
        %v5911 = vsel %vm440, %v5895, %v5903
        %v5912 = vsel %vm440, %v5896, %v5904
        %v5913 = vsel %vm440, %v5897, %v5905
        %v5914 = vsel %vm440, %v5898, %v5906
        %v5915 = vsel %vm440, %v5899, %v5907
        %v5916 = vsel %vm440, %v5900, %v5908
        %v5917 = vsel %vm440, %v5901, %v5909
        %v5918 = vsel %vm440, %v5902, %v5894
        %v5919 = vsel %vm440, %v5903, %v5895
        %v5920 = vsel %vm440, %v5904, %v5896
        %v5921 = vsel %vm440, %v5905, %v5897
        %v5922 = vsel %vm440, %v5906, %v5898
        %v5923 = vsel %vm440, %v5907, %v5899
        %v5924 = vsel %vm440, %v5908, %v5900
        %v5925 = vsel %vm440, %v5909, %v5901
        %v5926 = vmul.f32 %v5910, %v349
        %v5927 = vmul.f32 %v5918, %v350
        %v5928 = vmul.f32 %v5911, %v349
        %v5929 = vmul.f32 %v5919, %v350
        %v5930 = vmul.f32 %v5912, %v349
        %v5931 = vmul.f32 %v5920, %v350
        %v5932 = vmul.f32 %v5913, %v349
        %v5933 = vmul.f32 %v5921, %v350
        %v5934 = vmul.f32 %v5914, %v349
        %v5935 = vmul.f32 %v5922, %v350
        %v5936 = vmul.f32 %v5915, %v349
        %v5937 = vmul.f32 %v5923, %v350
        %v5938 = vmul.f32 %v5916, %v349
        %v5939 = vmul.f32 %v5924, %v350
        %v5940 = vmul.f32 %v5917, %v349
        %v5941 = vmul.f32 %v5925, %v350
        %v5942 = vpack.c.bf16 %v5926, %v5926
        %v5943 = vpack.c.bf16 %v5927, %v5927
        %v5944 = vpack.c.bf16 %v5928, %v5928
        %v5945 = vpack.c.bf16 %v5929, %v5929
        %v5946 = vpack.c.bf16 %v5930, %v5930
        %v5947 = vpack.c.bf16 %v5931, %v5931
        %v5948 = vpack.c.bf16 %v5932, %v5932
        %v5949 = vpack.c.bf16 %v5933, %v5933
        %v5950 = vpack.c.bf16 %v5934, %v5934
        %v5951 = vpack.c.bf16 %v5935, %v5935
        %v5952 = vpack.c.bf16 %v5936, %v5936
        %v5953 = vpack.c.bf16 %v5937, %v5937
        %v5954 = vpack.c.bf16 %v5938, %v5938
        %v5955 = vpack.c.bf16 %v5939, %v5939
        %v5956 = vpack.c.bf16 %v5940, %v5940
        %v5957 = vpack.c.bf16 %v5941, %v5941
        %v5958 = vpack.c.bf16 %v5814, %v5814
        %v5959 = vpack.c.bf16 %v5815, %v5815
        %v5960 = vpack.c.bf16 %v5816, %v5816
        %v5961 = vpack.c.bf16 %v5817, %v5817
        %v5962 = vpack.c.bf16 %v5818, %v5818
        %v5963 = vpack.c.bf16 %v5819, %v5819
        %v5964 = vpack.c.bf16 %v5820, %v5820
        %v5965 = vpack.c.bf16 %v5821, %v5821
        %v5966 = vpack.c.bf16 %v5822, %v5822
        %v5967 = vpack.c.bf16 %v5823, %v5823
        %v5968 = vpack.c.bf16 %v5824, %v5824
        %v5969 = vpack.c.bf16 %v5825, %v5825
        %v5970 = vpack.c.bf16 %v5826, %v5826
        %v5971 = vpack.c.bf16 %v5827, %v5827
        %v5972 = vpack.c.bf16 %v5828, %v5828
        %v5973 = vpack.c.bf16 %v5829, %v5829
        %v5990 = vunpack.c.l.b16 %v5878
        %v5991 = vunpack.c.l.b16 %v5879
        %v5992 = vunpack.c.l.b16 %v5880
        %v5993 = vunpack.c.l.b16 %v5881
        %v5994 = vunpack.c.l.b16 %v5882
        %v5995 = vunpack.c.l.b16 %v5883
        %v5996 = vunpack.c.l.b16 %v5884
        %v5997 = vunpack.c.l.b16 %v5885
        %v5998 = vunpack.c.l.b16 %v5886
        %v5999 = vunpack.c.l.b16 %v5887
        %v6000 = vunpack.c.l.b16 %v5888
        %v6001 = vunpack.c.l.b16 %v5889
        %v6002 = vunpack.c.l.b16 %v5890
        %v6003 = vunpack.c.l.b16 %v5891
        %v6004 = vunpack.c.l.b16 %v5892
        %v6005 = vunpack.c.l.b16 %v5893
        %v6006 = vpack.c.b16 %v5991, %v5990
        %v6007 = vpack.c.b16 %v5993, %v5992
        %v6008 = vpack.c.b16 %v5995, %v5994
        %v6009 = vpack.c.b16 %v5997, %v5996
        %v6010 = vpack.c.b16 %v5999, %v5998
        %v6011 = vpack.c.b16 %v6001, %v6000
        %v6012 = vpack.c.b16 %v6003, %v6002
        %v6013 = vpack.c.b16 %v6005, %v6004
        %v6038 = vunpack.c.l.b16 %v5958
        %v6039 = vunpack.c.l.b16 %v5959
        %v6040 = vunpack.c.l.b16 %v5960
        %v6041 = vunpack.c.l.b16 %v5961
        %v6042 = vunpack.c.l.b16 %v5962
        %v6043 = vunpack.c.l.b16 %v5963
        %v6044 = vunpack.c.l.b16 %v5964
        %v6045 = vunpack.c.l.b16 %v5965
        %v6046 = vunpack.c.l.b16 %v5966
        %v6047 = vunpack.c.l.b16 %v5967
        %v6048 = vunpack.c.l.b16 %v5968
        %v6049 = vunpack.c.l.b16 %v5969
        %v6050 = vunpack.c.l.b16 %v5970
        %v6051 = vunpack.c.l.b16 %v5971
        %v6052 = vunpack.c.l.b16 %v5972
        %v6053 = vunpack.c.l.b16 %v5973
        %v6054 = vpack.c.b16 %v6039, %v6038
        %v6055 = vpack.c.b16 %v6041, %v6040
        %v6056 = vpack.c.b16 %v6043, %v6042
        %v6057 = vpack.c.b16 %v6045, %v6044
        %v6058 = vpack.c.b16 %v6047, %v6046
        %v6059 = vpack.c.b16 %v6049, %v6048
        %v6060 = vpack.c.b16 %v6051, %v6050
        %v6061 = vpack.c.b16 %v6053, %v6052
        %v6086 = vunpack.c.l.b16 %v5942
        %v6087 = vunpack.c.l.b16 %v5943
        %v6088 = vunpack.c.l.b16 %v5944
        %v6089 = vunpack.c.l.b16 %v5945
        %v6090 = vunpack.c.l.b16 %v5946
        %v6091 = vunpack.c.l.b16 %v5947
        %v6092 = vunpack.c.l.b16 %v5948
        %v6093 = vunpack.c.l.b16 %v5949
        %v6094 = vunpack.c.l.b16 %v5950
        %v6095 = vunpack.c.l.b16 %v5951
        %v6096 = vunpack.c.l.b16 %v5952
        %v6097 = vunpack.c.l.b16 %v5953
        %v6098 = vunpack.c.l.b16 %v5954
        %v6099 = vunpack.c.l.b16 %v5955
        %v6100 = vunpack.c.l.b16 %v5956
        %v6101 = vunpack.c.l.b16 %v5957
        %v6102 = vpack.c.b16 %v6087, %v6086
        %v6103 = vpack.c.b16 %v6089, %v6088
        %v6104 = vpack.c.b16 %v6091, %v6090
        %v6105 = vpack.c.b16 %v6093, %v6092
        %v6106 = vpack.c.b16 %v6095, %v6094
        %v6107 = vpack.c.b16 %v6097, %v6096
        %v6108 = vpack.c.b16 %v6099, %v6098
        %v6109 = vpack.c.b16 %v6101, %v6100
        %v6118 = vld [vmem:[#allocation8] sm:$0xf]
        %v6119 = vld [vmem:[#allocation8 + $0x4] sm:$0xf]
        %v6120 = vld [vmem:[#allocation8 + $0x8] sm:$0xf]
        %v6121 = vld [vmem:[#allocation8 + $0xc] sm:$0xf]
        %v6122 = vld [vmem:[#allocation8 + $0x10] sm:$0xf]
        %v6123 = vld [vmem:[#allocation8 + $0x14] sm:$0xf]
        %v6124 = vld [vmem:[#allocation8 + $0x18] sm:$0xf]
        %v6125 = vld [vmem:[#allocation8 + $0x1c] sm:$0xf]
        %v6126 = vld [vmem:[#allocation8 + $0x20] sm:$0xf]
        %v6127 = vld [vmem:[#allocation8 + $0x24] sm:$0xf]
        %v6128 = vld [vmem:[#allocation8 + $0x28] sm:$0xf]
        %v6129 = vld [vmem:[#allocation8 + $0x2c] sm:$0xf]
        %v6130 = vld [vmem:[#allocation8 + $0x30] sm:$0xf]
        %v6131 = vld [vmem:[#allocation8 + $0x34] sm:$0xf]
        %v6132 = vld [vmem:[#allocation8 + $0x38] sm:$0xf]
        %v6133 = vld [vmem:[#allocation8 + $0x3c] sm:$0xf]
        %v6134 = vld [vmem:[#allocation8 + $0x40] sm:$0xf]
        %v6135 = vld [vmem:[#allocation8 + $0x44] sm:$0xf]
        %v6136 = vld [vmem:[#allocation8 + $0x48] sm:$0xf]
        %v6137 = vld [vmem:[#allocation8 + $0x4c] sm:$0xf]
        %v6138 = vld [vmem:[#allocation8 + $0x50] sm:$0xf]
        %v6139 = vld [vmem:[#allocation8 + $0x54] sm:$0xf]
        %v6140 = vld [vmem:[#allocation8 + $0x58] sm:$0xf]
        %v6141 = vld [vmem:[#allocation8 + $0x5c] sm:$0xf]
        %v6142 = vld [vmem:[#allocation8 + $0x60] sm:$0xf]
        %v6143 = vld [vmem:[#allocation8 + $0x64] sm:$0xf]
        %v6144 = vld [vmem:[#allocation8 + $0x68] sm:$0xf]
        %v6145 = vld [vmem:[#allocation8 + $0x6c] sm:$0xf]
        %v6146 = vld [vmem:[#allocation8 + $0x70] sm:$0xf]
        %v6147 = vld [vmem:[#allocation8 + $0x74] sm:$0xf]
        %v6148 = vld [vmem:[#allocation8 + $0x78] sm:$0xf]
        %v6149 = vld [vmem:[#allocation8 + $0x7c] sm:$0xf]
        %v6150 = vld [vmem:[#allocation8 + $0x80] sm:$0xf]
        %v6151 = vld [vmem:[#allocation8 + $0x84] sm:$0xf]
        %v6152 = vld [vmem:[#allocation8 + $0x88] sm:$0xf]
        %v6153 = vld [vmem:[#allocation8 + $0x8c] sm:$0xf]
        %v6154 = vld [vmem:[#allocation8 + $0x90] sm:$0xf]
        %v6155 = vld [vmem:[#allocation8 + $0x94] sm:$0xf]
        %v6156 = vld [vmem:[#allocation8 + $0x98] sm:$0xf]
        %v6157 = vld [vmem:[#allocation8 + $0x9c] sm:$0xf]
        %v6158 = vld [vmem:[#allocation8 + $0xa0] sm:$0xf]
        %v6159 = vld [vmem:[#allocation8 + $0xa4] sm:$0xf]
        %v6160 = vld [vmem:[#allocation8 + $0xa8] sm:$0xf]
        %v6161 = vld [vmem:[#allocation8 + $0xac] sm:$0xf]
        %v6162 = vld [vmem:[#allocation8 + $0xb0] sm:$0xf]
        %v6163 = vld [vmem:[#allocation8 + $0xb4] sm:$0xf]
        %v6164 = vld [vmem:[#allocation8 + $0xb8] sm:$0xf]
        %v6165 = vld [vmem:[#allocation8 + $0xbc] sm:$0xf]
        %v6166 = vld [vmem:[%s4050] sm:$0xff]
        %v6167 = vld [vmem:[%s4050 + $0x8] sm:$0xff]
        %v6168 = vld [vmem:[%s4050 + $0x10] sm:$0xff]
        %v6169 = vld [vmem:[%s4050 + $0x18] sm:$0xff]
        %v6170 = vld [vmem:[%s4050 + $0x20] sm:$0xff]
        %v6171 = vld [vmem:[%s4050 + $0x28] sm:$0xff]
        %v6172 = vld [vmem:[%s4050 + $0x30] sm:$0xff]
        %v6173 = vld [vmem:[%s4050 + $0x38] sm:$0xff]
        %v6174 = vld [vmem:[%s4050 + $0x40] sm:$0xff]
        %v6175 = vld [vmem:[%s4050 + $0x48] sm:$0xff]
        %v6176 = vld [vmem:[%s4050 + $0x50] sm:$0xff]
        %v6177 = vld [vmem:[%s4050 + $0x58] sm:$0xff]
        %v6178 = vld [vmem:[%s4050 + $0x60] sm:$0xff]
        %v6179 = vld [vmem:[%s4050 + $0x68] sm:$0xff]
        %v6180 = vld [vmem:[%s4050 + $0x70] sm:$0xff]
        %v6181 = vld [vmem:[%s4050 + $0x78] sm:$0xff]
        %v6182 = vrot.slane %v6166, 7
        %v6183 = vrot.slane %v6168, 7
        %v6184 = vrot.slane %v6170, 7
        %v6185 = vrot.slane %v6172, 7
        %v6186 = vrot.slane %v6174, 7
        %v6187 = vrot.slane %v6176, 7
        %v6188 = vrot.slane %v6178, 7
        %v6189 = vrot.slane %v6180, 7
        %v6190 = vrot.slane %v6167, 7
        %v6191 = vrot.slane %v6169, 7
        %v6192 = vrot.slane %v6171, 7
        %v6193 = vrot.slane %v6173, 7
        %v6194 = vrot.slane %v6175, 7
        %v6195 = vrot.slane %v6177, 7
        %v6196 = vrot.slane %v6179, 7
        %v6197 = vrot.slane %v6181, 7
        %v6198 = vsel %vm379, %v6182, %v6190
        %v6199 = vsel %vm379, %v6183, %v6191
        %v6200 = vsel %vm379, %v6184, %v6192
        %v6201 = vsel %vm379, %v6185, %v6193
        %v6202 = vsel %vm379, %v6186, %v6194
        %v6203 = vsel %vm379, %v6187, %v6195
        %v6204 = vsel %vm379, %v6188, %v6196
        %v6205 = vsel %vm379, %v6189, %v6197
        %v6206 = vsel %vm379, %v6190, %v6182
        %v6207 = vsel %vm379, %v6191, %v6183
        %v6208 = vsel %vm379, %v6192, %v6184
        %v6209 = vsel %vm379, %v6193, %v6185
        %v6210 = vsel %vm379, %v6194, %v6186
        %v6211 = vsel %vm379, %v6195, %v6187
        %v6212 = vsel %vm379, %v6196, %v6188
        %v6213 = vsel %vm379, %v6197, %v6189
        %v6214 = vmul.f32 %v6206, %v343
        %v6215 = vmul.f32 %v6198, %v344
        %v6216 = vmul.f32 %v6207, %v343
        %v6217 = vmul.f32 %v6199, %v344
        %v6218 = vmul.f32 %v6208, %v343
        %v6219 = vmul.f32 %v6200, %v344
        %v6220 = vmul.f32 %v6209, %v343
        %v6221 = vmul.f32 %v6201, %v344
        %v6222 = vmul.f32 %v6210, %v343
        %v6223 = vmul.f32 %v6202, %v344
        %v6224 = vmul.f32 %v6211, %v343
        %v6225 = vmul.f32 %v6203, %v344
        %v6226 = vmul.f32 %v6212, %v343
        %v6227 = vmul.f32 %v6204, %v344
        %v6228 = vmul.f32 %v6213, %v343
        %v6229 = vmul.f32 %v6205, %v344
        %v6230 = vpack.c.bf16 %v6214, %v6214
        %v6231 = vpack.c.bf16 %v6215, %v6215
        %v6232 = vpack.c.bf16 %v6216, %v6216
        %v6233 = vpack.c.bf16 %v6217, %v6217
        %v6234 = vpack.c.bf16 %v6218, %v6218
        %v6235 = vpack.c.bf16 %v6219, %v6219
        %v6236 = vpack.c.bf16 %v6220, %v6220
        %v6237 = vpack.c.bf16 %v6221, %v6221
        %v6238 = vpack.c.bf16 %v6222, %v6222
        %v6239 = vpack.c.bf16 %v6223, %v6223
        %v6240 = vpack.c.bf16 %v6224, %v6224
        %v6241 = vpack.c.bf16 %v6225, %v6225
        %v6242 = vpack.c.bf16 %v6226, %v6226
        %v6243 = vpack.c.bf16 %v6227, %v6227
        %v6244 = vpack.c.bf16 %v6228, %v6228
        %v6245 = vpack.c.bf16 %v6229, %v6229
        %v6246 = vrot.slane %v6166, 1
        %v6247 = vrot.slane %v6168, 1
        %v6248 = vrot.slane %v6170, 1
        %v6249 = vrot.slane %v6172, 1
        %v6250 = vrot.slane %v6174, 1
        %v6251 = vrot.slane %v6176, 1
        %v6252 = vrot.slane %v6178, 1
        %v6253 = vrot.slane %v6180, 1
        %v6254 = vrot.slane %v6167, 1
        %v6255 = vrot.slane %v6169, 1
        %v6256 = vrot.slane %v6171, 1
        %v6257 = vrot.slane %v6173, 1
        %v6258 = vrot.slane %v6175, 1
        %v6259 = vrot.slane %v6177, 1
        %v6260 = vrot.slane %v6179, 1
        %v6261 = vrot.slane %v6181, 1
        %v6262 = vsel %vm440, %v6246, %v6254
        %v6263 = vsel %vm440, %v6247, %v6255
        %v6264 = vsel %vm440, %v6248, %v6256
        %v6265 = vsel %vm440, %v6249, %v6257
        %v6266 = vsel %vm440, %v6250, %v6258
        %v6267 = vsel %vm440, %v6251, %v6259
        %v6268 = vsel %vm440, %v6252, %v6260
        %v6269 = vsel %vm440, %v6253, %v6261
        %v6270 = vsel %vm440, %v6254, %v6246
        %v6271 = vsel %vm440, %v6255, %v6247
        %v6272 = vsel %vm440, %v6256, %v6248
        %v6273 = vsel %vm440, %v6257, %v6249
        %v6274 = vsel %vm440, %v6258, %v6250
        %v6275 = vsel %vm440, %v6259, %v6251
        %v6276 = vsel %vm440, %v6260, %v6252
        %v6277 = vsel %vm440, %v6261, %v6253
        %v6278 = vmul.f32 %v6262, %v349
        %v6279 = vmul.f32 %v6270, %v350
        %v6280 = vmul.f32 %v6263, %v349
        %v6281 = vmul.f32 %v6271, %v350
        %v6282 = vmul.f32 %v6264, %v349
        %v6283 = vmul.f32 %v6272, %v350
        %v6284 = vmul.f32 %v6265, %v349
        %v6285 = vmul.f32 %v6273, %v350
        %v6286 = vmul.f32 %v6266, %v349
        %v6287 = vmul.f32 %v6274, %v350
        %v6288 = vmul.f32 %v6267, %v349
        %v6289 = vmul.f32 %v6275, %v350
        %v6290 = vmul.f32 %v6268, %v349
        %v6291 = vmul.f32 %v6276, %v350
        %v6292 = vmul.f32 %v6269, %v349
        %v6293 = vmul.f32 %v6277, %v350
        %v6294 = vpack.c.bf16 %v6278, %v6278
        %v6295 = vpack.c.bf16 %v6279, %v6279
        %v6296 = vpack.c.bf16 %v6280, %v6280
        %v6297 = vpack.c.bf16 %v6281, %v6281
        %v6298 = vpack.c.bf16 %v6282, %v6282
        %v6299 = vpack.c.bf16 %v6283, %v6283
        %v6300 = vpack.c.bf16 %v6284, %v6284
        %v6301 = vpack.c.bf16 %v6285, %v6285
        %v6302 = vpack.c.bf16 %v6286, %v6286
        %v6303 = vpack.c.bf16 %v6287, %v6287
        %v6304 = vpack.c.bf16 %v6288, %v6288
        %v6305 = vpack.c.bf16 %v6289, %v6289
        %v6306 = vpack.c.bf16 %v6290, %v6290
        %v6307 = vpack.c.bf16 %v6291, %v6291
        %v6308 = vpack.c.bf16 %v6292, %v6292
        %v6309 = vpack.c.bf16 %v6293, %v6293
        %v6310 = vpack.c.bf16 %v6166, %v6166
        %v6311 = vpack.c.bf16 %v6167, %v6167
        %v6312 = vpack.c.bf16 %v6168, %v6168
        %v6313 = vpack.c.bf16 %v6169, %v6169
        %v6314 = vpack.c.bf16 %v6170, %v6170
        %v6315 = vpack.c.bf16 %v6171, %v6171
        %v6316 = vpack.c.bf16 %v6172, %v6172
        %v6317 = vpack.c.bf16 %v6173, %v6173
        %v6318 = vpack.c.bf16 %v6174, %v6174
        %v6319 = vpack.c.bf16 %v6175, %v6175
        %v6320 = vpack.c.bf16 %v6176, %v6176
        %v6321 = vpack.c.bf16 %v6177, %v6177
        %v6322 = vpack.c.bf16 %v6178, %v6178
        %v6323 = vpack.c.bf16 %v6179, %v6179
        %v6324 = vpack.c.bf16 %v6180, %v6180
        %v6325 = vpack.c.bf16 %v6181, %v6181
        %v6342 = vunpack.c.l.b16 %v6230
        %v6343 = vunpack.c.l.b16 %v6231
        %v6344 = vunpack.c.l.b16 %v6232
        %v6345 = vunpack.c.l.b16 %v6233
        %v6346 = vunpack.c.l.b16 %v6234
        %v6347 = vunpack.c.l.b16 %v6235
        %v6348 = vunpack.c.l.b16 %v6236
        %v6349 = vunpack.c.l.b16 %v6237
        %v6350 = vunpack.c.l.b16 %v6238
        %v6351 = vunpack.c.l.b16 %v6239
        %v6352 = vunpack.c.l.b16 %v6240
        %v6353 = vunpack.c.l.b16 %v6241
        %v6354 = vunpack.c.l.b16 %v6242
        %v6355 = vunpack.c.l.b16 %v6243
        %v6356 = vunpack.c.l.b16 %v6244
        %v6357 = vunpack.c.l.b16 %v6245
        %v6358 = vpack.c.b16 %v6343, %v6342
        %v6359 = vpack.c.b16 %v6345, %v6344
        %v6360 = vpack.c.b16 %v6347, %v6346
        %v6361 = vpack.c.b16 %v6349, %v6348
        %v6362 = vpack.c.b16 %v6351, %v6350
        %v6363 = vpack.c.b16 %v6353, %v6352
        %v6364 = vpack.c.b16 %v6355, %v6354
        %v6365 = vpack.c.b16 %v6357, %v6356
        %v6390 = vunpack.c.l.b16 %v6310
        %v6391 = vunpack.c.l.b16 %v6311
        %v6392 = vunpack.c.l.b16 %v6312
        %v6393 = vunpack.c.l.b16 %v6313
        %v6394 = vunpack.c.l.b16 %v6314
        %v6395 = vunpack.c.l.b16 %v6315
        %v6396 = vunpack.c.l.b16 %v6316
        %v6397 = vunpack.c.l.b16 %v6317
        %v6398 = vunpack.c.l.b16 %v6318
        %v6399 = vunpack.c.l.b16 %v6319
        %v6400 = vunpack.c.l.b16 %v6320
        %v6401 = vunpack.c.l.b16 %v6321
        %v6402 = vunpack.c.l.b16 %v6322
        %v6403 = vunpack.c.l.b16 %v6323
        %v6404 = vunpack.c.l.b16 %v6324
        %v6405 = vunpack.c.l.b16 %v6325
        %v6406 = vpack.c.b16 %v6391, %v6390
        %v6407 = vpack.c.b16 %v6393, %v6392
        %v6408 = vpack.c.b16 %v6395, %v6394
        %v6409 = vpack.c.b16 %v6397, %v6396
        %v6410 = vpack.c.b16 %v6399, %v6398
        %v6411 = vpack.c.b16 %v6401, %v6400
        %v6412 = vpack.c.b16 %v6403, %v6402
        %v6413 = vpack.c.b16 %v6405, %v6404
        %v6438 = vunpack.c.l.b16 %v6294
        %v6439 = vunpack.c.l.b16 %v6295
        %v6440 = vunpack.c.l.b16 %v6296
        %v6441 = vunpack.c.l.b16 %v6297
        %v6442 = vunpack.c.l.b16 %v6298
        %v6443 = vunpack.c.l.b16 %v6299
        %v6444 = vunpack.c.l.b16 %v6300
        %v6445 = vunpack.c.l.b16 %v6301
        %v6446 = vunpack.c.l.b16 %v6302
        %v6447 = vunpack.c.l.b16 %v6303
        %v6448 = vunpack.c.l.b16 %v6304
        %v6449 = vunpack.c.l.b16 %v6305
        %v6450 = vunpack.c.l.b16 %v6306
        %v6451 = vunpack.c.l.b16 %v6307
        %v6452 = vunpack.c.l.b16 %v6308
        %v6453 = vunpack.c.l.b16 %v6309
        %v6454 = vpack.c.b16 %v6439, %v6438
        %v6455 = vpack.c.b16 %v6441, %v6440
        %v6456 = vpack.c.b16 %v6443, %v6442
        %v6457 = vpack.c.b16 %v6445, %v6444
        %v6458 = vpack.c.b16 %v6447, %v6446
        %v6459 = vpack.c.b16 %v6449, %v6448
        %v6460 = vpack.c.b16 %v6451, %v6450
        %v6461 = vpack.c.b16 %v6453, %v6452
        %v6470 = vld [vmem:[%s4419] sm:$0xf]
        %v6471 = vld [vmem:[%s4419 + $0x4] sm:$0xf]
        %v6472 = vld [vmem:[%s4419 + $0x8] sm:$0xf]
        %v6473 = vld [vmem:[%s4419 + $0xc] sm:$0xf]
        %v6474 = vld [vmem:[%s4419 + $0x10] sm:$0xf]
        %v6475 = vld [vmem:[%s4419 + $0x14] sm:$0xf]
        %v6476 = vld [vmem:[%s4419 + $0x18] sm:$0xf]
        %v6477 = vld [vmem:[%s4419 + $0x1c] sm:$0xf]
        %v6478 = vld [vmem:[%s4419 + $0x20] sm:$0xf]
        %v6479 = vld [vmem:[%s4419 + $0x24] sm:$0xf]
        %v6480 = vld [vmem:[%s4419 + $0x28] sm:$0xf]
        %v6481 = vld [vmem:[%s4419 + $0x2c] sm:$0xf]
        %v6482 = vld [vmem:[%s4419 + $0x30] sm:$0xf]
        %v6483 = vld [vmem:[%s4419 + $0x34] sm:$0xf]
        %v6484 = vld [vmem:[%s4419 + $0x38] sm:$0xf]
        %v6485 = vld [vmem:[%s4419 + $0x3c] sm:$0xf]
        %v6486 = vld [vmem:[%s4419 + $0x40] sm:$0xf]
        %v6487 = vld [vmem:[%s4419 + $0x44] sm:$0xf]
        %v6488 = vld [vmem:[%s4419 + $0x48] sm:$0xf]
        %v6489 = vld [vmem:[%s4419 + $0x4c] sm:$0xf]
        %v6490 = vld [vmem:[%s4419 + $0x50] sm:$0xf]
        %v6491 = vld [vmem:[%s4419 + $0x54] sm:$0xf]
        %v6492 = vld [vmem:[%s4419 + $0x58] sm:$0xf]
        %v6493 = vld [vmem:[%s4419 + $0x5c] sm:$0xf]
        %v6494 = vld [vmem:[%s4419 + $0x60] sm:$0xf]
        %v6495 = vld [vmem:[%s4419 + $0x64] sm:$0xf]
        %v6496 = vld [vmem:[%s4419 + $0x68] sm:$0xf]
        %v6497 = vld [vmem:[%s4419 + $0x6c] sm:$0xf]
        %v6498 = vld [vmem:[%s4419 + $0x70] sm:$0xf]
        %v6499 = vld [vmem:[%s4419 + $0x74] sm:$0xf]
        %v6500 = vld [vmem:[%s4419 + $0x78] sm:$0xf]
        %v6501 = vld [vmem:[%s4419 + $0x7c] sm:$0xf]
        %v6502 = vld [vmem:[%s4419 + $0x80] sm:$0xf]
        %v6503 = vld [vmem:[%s4419 + $0x84] sm:$0xf]
        %v6504 = vld [vmem:[%s4419 + $0x88] sm:$0xf]
        %v6505 = vld [vmem:[%s4419 + $0x8c] sm:$0xf]
        %v6506 = vld [vmem:[%s4419 + $0x90] sm:$0xf]
        %v6507 = vld [vmem:[%s4419 + $0x94] sm:$0xf]
        %v6508 = vld [vmem:[%s4419 + $0x98] sm:$0xf]
        %v6509 = vld [vmem:[%s4419 + $0x9c] sm:$0xf]
        %v6510 = vld [vmem:[%s4419 + $0xa0] sm:$0xf]
        %v6511 = vld [vmem:[%s4419 + $0xa4] sm:$0xf]
        %v6512 = vld [vmem:[%s4419 + $0xa8] sm:$0xf]
        %v6513 = vld [vmem:[%s4419 + $0xac] sm:$0xf]
        %v6514 = vld [vmem:[%s4419 + $0xb0] sm:$0xf]
        %v6515 = vld [vmem:[%s4419 + $0xb4] sm:$0xf]
        %v6516 = vld [vmem:[%s4419 + $0xb8] sm:$0xf]
        %v6517 = vld [vmem:[%s4419 + $0xbc] sm:$0xf]
        %v6566 = vunpack.c.l.b16 %v6470
        %v6567 = vunpack.c.l.b16 %v6471
        %v6568 = vunpack.c.l.b16 %v6472
        %v6569 = vunpack.c.l.b16 %v6473
        %v6570 = vunpack.c.l.b16 %v6474
        %v6571 = vunpack.c.l.b16 %v6475
        %v6572 = vunpack.c.l.b16 %v6476
        %v6573 = vunpack.c.l.b16 %v6477
        %v6574 = vunpack.c.l.b16 %v6478
        %v6575 = vunpack.c.l.b16 %v6479
        %v6576 = vunpack.c.l.b16 %v6480
        %v6577 = vunpack.c.l.b16 %v6481
        %v6578 = vunpack.c.l.b16 %v6482
        %v6579 = vunpack.c.l.b16 %v6483
        %v6580 = vunpack.c.l.b16 %v6484
        %v6581 = vunpack.c.l.b16 %v6485
        %v6582 = vunpack.c.l.b16 %v6486
        %v6583 = vunpack.c.l.b16 %v6487
        %v6584 = vunpack.c.l.b16 %v6488
        %v6585 = vunpack.c.l.b16 %v6489
        %v6586 = vunpack.c.l.b16 %v6490
        %v6587 = vunpack.c.l.b16 %v6491
        %v6588 = vunpack.c.l.b16 %v6492
        %v6589 = vunpack.c.l.b16 %v6493
        %v6590 = vunpack.c.l.b16 %v6494
        %v6591 = vunpack.c.l.b16 %v6495
        %v6592 = vunpack.c.l.b16 %v6496
        %v6593 = vunpack.c.l.b16 %v6497
        %v6594 = vunpack.c.l.b16 %v6498
        %v6595 = vunpack.c.l.b16 %v6499
        %v6596 = vunpack.c.l.b16 %v6500
        %v6597 = vunpack.c.l.b16 %v6501
        %v6598 = vunpack.c.l.b16 %v6502
        %v6599 = vunpack.c.l.b16 %v6503
        %v6600 = vunpack.c.l.b16 %v6504
        %v6601 = vunpack.c.l.b16 %v6505
        %v6602 = vunpack.c.l.b16 %v6506
        %v6603 = vunpack.c.l.b16 %v6507
        %v6604 = vunpack.c.l.b16 %v6508
        %v6605 = vunpack.c.l.b16 %v6509
        %v6606 = vunpack.c.l.b16 %v6510
        %v6607 = vunpack.c.l.b16 %v6511
        %v6608 = vunpack.c.l.b16 %v6512
        %v6609 = vunpack.c.l.b16 %v6513
        %v6610 = vunpack.c.l.b16 %v6514
        %v6611 = vunpack.c.l.b16 %v6515
        %v6612 = vunpack.c.l.b16 %v6516
        %v6613 = vunpack.c.l.b16 %v6517
        %v6614 = vpack.c.b16 %v6567, %v6566
        %v6615 = vpack.c.b16 %v6569, %v6568
        %v6616 = vpack.c.b16 %v6571, %v6570
        %v6617 = vpack.c.b16 %v6573, %v6572
        %v6618 = vpack.c.b16 %v6575, %v6574
        %v6619 = vpack.c.b16 %v6577, %v6576
        %v6620 = vpack.c.b16 %v6579, %v6578
        %v6621 = vpack.c.b16 %v6581, %v6580
        %v6622 = vpack.c.b16 %v6583, %v6582
        %v6623 = vpack.c.b16 %v6585, %v6584
        %v6624 = vpack.c.b16 %v6587, %v6586
        %v6625 = vpack.c.b16 %v6589, %v6588
        %v6626 = vpack.c.b16 %v6591, %v6590
        %v6627 = vpack.c.b16 %v6593, %v6592
        %v6628 = vpack.c.b16 %v6595, %v6594
        %v6629 = vpack.c.b16 %v6597, %v6596
        %v6630 = vpack.c.b16 %v6599, %v6598
        %v6631 = vpack.c.b16 %v6601, %v6600
        %v6632 = vpack.c.b16 %v6603, %v6602
        %v6633 = vpack.c.b16 %v6605, %v6604
        %v6634 = vpack.c.b16 %v6607, %v6606
        %v6635 = vpack.c.b16 %v6609, %v6608
        %v6636 = vpack.c.b16 %v6611, %v6610
        %v6637 = vpack.c.b16 %v6613, %v6612
        %6662 = vmatpush.bf16.msra.mxu0 %v6621
        %6663 = vmatpush.bf16.msra.mxu0 %v6620
        %6664 = vmatpush.bf16.msra.mxu0 %v6619
        %6665 = vmatpush.bf16.msra.mxu0 %v6618
        %6666 = vmatpush.bf16.msra.mxu0 %v6617
        %6667 = vmatpush.bf16.msra.mxu0 %v6616
        %6668 = vmatpush.bf16.msra.mxu0 %v6615
        %6669 = vmatpush.bf16.msra.mxu0 %v6614
        %6670 = vmatmul.bf16.gmra.mxu0 %v6358
        %v6671 = vpop.f32.mrf.mxu0
        %v6672 = vadd.f32 0.0, %v6671
        %v6673 = vpop.f32.mrf.mxu0
        %v6674 = vadd.f32 0.0, %v6673
        %6675 = vmatmul.bf16.gmra.mxu0 %v6359
        %v6676 = vpop.f32.mrf.mxu0
        %v6677 = vadd.f32 0.0, %v6676
        %v6678 = vpop.f32.mrf.mxu0
        %v6679 = vadd.f32 0.0, %v6678
        %6680 = vmatmul.bf16.gmra.mxu0 %v6360
        %v6681 = vpop.f32.mrf.mxu0
        %v6682 = vadd.f32 0.0, %v6681
        %v6683 = vpop.f32.mrf.mxu0
        %v6684 = vadd.f32 0.0, %v6683
        %6685 = vmatmul.bf16.gmra.mxu0 %v6361
        %v6686 = vpop.f32.mrf.mxu0
        %v6687 = vadd.f32 0.0, %v6686
        %v6688 = vpop.f32.mrf.mxu0
        %v6689 = vadd.f32 0.0, %v6688
        %6690 = vmatmul.bf16.gmra.mxu0 %v6362
        %v6691 = vpop.f32.mrf.mxu0
        %v6692 = vadd.f32 0.0, %v6691
        %v6693 = vpop.f32.mrf.mxu0
        %v6694 = vadd.f32 0.0, %v6693
        %6695 = vmatmul.bf16.gmra.mxu0 %v6363
        %v6696 = vpop.f32.mrf.mxu0
        %v6697 = vadd.f32 0.0, %v6696
        %v6698 = vpop.f32.mrf.mxu0
        %v6699 = vadd.f32 0.0, %v6698
        %6700 = vmatmul.bf16.gmra.mxu0 %v6364
        %v6701 = vpop.f32.mrf.mxu0
        %v6702 = vadd.f32 0.0, %v6701
        %v6703 = vpop.f32.mrf.mxu0
        %v6704 = vadd.f32 0.0, %v6703
        %6705 = vmatmul.bf16.gmra.mxu0 %v6365
        %v6706 = vpop.f32.mrf.mxu0
        %v6707 = vadd.f32 0.0, %v6706
        %v6708 = vpop.f32.mrf.mxu0
        %v6709 = vadd.f32 0.0, %v6708
        %6710 = vdwg.mxu0
        %6711 = vmatpush.bf16.msra.mxu0 %v6629
        %6712 = vmatpush.bf16.msra.mxu0 %v6628
        %6713 = vmatpush.bf16.msra.mxu0 %v6627
        %6714 = vmatpush.bf16.msra.mxu0 %v6626
        %6715 = vmatpush.bf16.msra.mxu0 %v6625
        %6716 = vmatpush.bf16.msra.mxu0 %v6624
        %6717 = vmatpush.bf16.msra.mxu0 %v6623
        %6718 = vmatpush.bf16.msra.mxu0 %v6622
        %6719 = vmatmul.bf16.gmra.mxu0 %v6406
        %v6720 = vpop.f32.mrf.mxu0
        %v6721 = vadd.f32 %v6672, %v6720
        %v6722 = vpop.f32.mrf.mxu0
        %v6723 = vadd.f32 %v6674, %v6722
        %6724 = vmatmul.bf16.gmra.mxu0 %v6407
        %v6725 = vpop.f32.mrf.mxu0
        %v6726 = vadd.f32 %v6677, %v6725
        %v6727 = vpop.f32.mrf.mxu0
        %v6728 = vadd.f32 %v6679, %v6727
        %6729 = vmatmul.bf16.gmra.mxu0 %v6408
        %v6730 = vpop.f32.mrf.mxu0
        %v6731 = vadd.f32 %v6682, %v6730
        %v6732 = vpop.f32.mrf.mxu0
        %v6733 = vadd.f32 %v6684, %v6732
        %6734 = vmatmul.bf16.gmra.mxu0 %v6409
        %v6735 = vpop.f32.mrf.mxu0
        %v6736 = vadd.f32 %v6687, %v6735
        %v6737 = vpop.f32.mrf.mxu0
        %v6738 = vadd.f32 %v6689, %v6737
        %6739 = vmatmul.bf16.gmra.mxu0 %v6410
        %v6740 = vpop.f32.mrf.mxu0
        %v6741 = vadd.f32 %v6692, %v6740
        %v6742 = vpop.f32.mrf.mxu0
        %v6743 = vadd.f32 %v6694, %v6742
        %6744 = vmatmul.bf16.gmra.mxu0 %v6411
        %v6745 = vpop.f32.mrf.mxu0
        %v6746 = vadd.f32 %v6697, %v6745
        %v6747 = vpop.f32.mrf.mxu0
        %v6748 = vadd.f32 %v6699, %v6747
        %6749 = vmatmul.bf16.gmra.mxu0 %v6412
        %v6750 = vpop.f32.mrf.mxu0
        %v6751 = vadd.f32 %v6702, %v6750
        %v6752 = vpop.f32.mrf.mxu0
        %v6753 = vadd.f32 %v6704, %v6752
        %6754 = vmatmul.bf16.gmra.mxu0 %v6413
        %v6755 = vpop.f32.mrf.mxu0
        %v6756 = vadd.f32 %v6707, %v6755
        %v6757 = vpop.f32.mrf.mxu0
        %v6758 = vadd.f32 %v6709, %v6757
        %6759 = vdwg.mxu0
        %6760 = vmatpush.bf16.msra.mxu0 %v6637
        %6761 = vmatpush.bf16.msra.mxu0 %v6636
        %6762 = vmatpush.bf16.msra.mxu0 %v6635
        %6763 = vmatpush.bf16.msra.mxu0 %v6634
        %6764 = vmatpush.bf16.msra.mxu0 %v6633
        %6765 = vmatpush.bf16.msra.mxu0 %v6632
        %6766 = vmatpush.bf16.msra.mxu0 %v6631
        %6767 = vmatpush.bf16.msra.mxu0 %v6630
        %6768 = vmatmul.bf16.gmra.mxu0 %v6454
        %v6769 = vpop.f32.mrf.mxu0
        %v6770 = vadd.f32 %v6721, %v6769
        %v6771 = vpop.f32.mrf.mxu0
        %v6772 = vadd.f32 %v6723, %v6771
        %6773 = vmatmul.bf16.gmra.mxu0 %v6455
        %v6774 = vpop.f32.mrf.mxu0
        %v6775 = vadd.f32 %v6726, %v6774
        %v6776 = vpop.f32.mrf.mxu0
        %v6777 = vadd.f32 %v6728, %v6776
        %6778 = vmatmul.bf16.gmra.mxu0 %v6456
        %v6779 = vpop.f32.mrf.mxu0
        %v6780 = vadd.f32 %v6731, %v6779
        %v6781 = vpop.f32.mrf.mxu0
        %v6782 = vadd.f32 %v6733, %v6781
        %6783 = vmatmul.bf16.gmra.mxu0 %v6457
        %v6784 = vpop.f32.mrf.mxu0
        %v6785 = vadd.f32 %v6736, %v6784
        %v6786 = vpop.f32.mrf.mxu0
        %v6787 = vadd.f32 %v6738, %v6786
        %6788 = vmatmul.bf16.gmra.mxu0 %v6458
        %v6789 = vpop.f32.mrf.mxu0
        %v6790 = vadd.f32 %v6741, %v6789
        %v6791 = vpop.f32.mrf.mxu0
        %v6792 = vadd.f32 %v6743, %v6791
        %6793 = vmatmul.bf16.gmra.mxu0 %v6459
        %v6794 = vpop.f32.mrf.mxu0
        %v6795 = vadd.f32 %v6746, %v6794
        %v6796 = vpop.f32.mrf.mxu0
        %v6797 = vadd.f32 %v6748, %v6796
        %6798 = vmatmul.bf16.gmra.mxu0 %v6460
        %v6799 = vpop.f32.mrf.mxu0
        %v6800 = vadd.f32 %v6751, %v6799
        %v6801 = vpop.f32.mrf.mxu0
        %v6802 = vadd.f32 %v6753, %v6801
        %6803 = vmatmul.bf16.gmra.mxu0 %v6461
        %v6804 = vpop.f32.mrf.mxu0
        %v6805 = vadd.f32 %v6756, %v6804
        %v6806 = vpop.f32.mrf.mxu0
        %v6807 = vadd.f32 %v6758, %v6806
        %6808 = vdwg.mxu0
        %v6857 = vunpack.c.l.b16 %v6118
        %v6858 = vunpack.c.l.b16 %v6119
        %v6859 = vunpack.c.l.b16 %v6120
        %v6860 = vunpack.c.l.b16 %v6121
        %v6861 = vunpack.c.l.b16 %v6122
        %v6862 = vunpack.c.l.b16 %v6123
        %v6863 = vunpack.c.l.b16 %v6124
        %v6864 = vunpack.c.l.b16 %v6125
        %v6865 = vunpack.c.l.b16 %v6126
        %v6866 = vunpack.c.l.b16 %v6127
        %v6867 = vunpack.c.l.b16 %v6128
        %v6868 = vunpack.c.l.b16 %v6129
        %v6869 = vunpack.c.l.b16 %v6130
        %v6870 = vunpack.c.l.b16 %v6131
        %v6871 = vunpack.c.l.b16 %v6132
        %v6872 = vunpack.c.l.b16 %v6133
        %v6873 = vunpack.c.l.b16 %v6134
        %v6874 = vunpack.c.l.b16 %v6135
        %v6875 = vunpack.c.l.b16 %v6136
        %v6876 = vunpack.c.l.b16 %v6137
        %v6877 = vunpack.c.l.b16 %v6138
        %v6878 = vunpack.c.l.b16 %v6139
        %v6879 = vunpack.c.l.b16 %v6140
        %v6880 = vunpack.c.l.b16 %v6141
        %v6881 = vunpack.c.l.b16 %v6142
        %v6882 = vunpack.c.l.b16 %v6143
        %v6883 = vunpack.c.l.b16 %v6144
        %v6884 = vunpack.c.l.b16 %v6145
        %v6885 = vunpack.c.l.b16 %v6146
        %v6886 = vunpack.c.l.b16 %v6147
        %v6887 = vunpack.c.l.b16 %v6148
        %v6888 = vunpack.c.l.b16 %v6149
        %v6889 = vunpack.c.l.b16 %v6150
        %v6890 = vunpack.c.l.b16 %v6151
        %v6891 = vunpack.c.l.b16 %v6152
        %v6892 = vunpack.c.l.b16 %v6153
        %v6893 = vunpack.c.l.b16 %v6154
        %v6894 = vunpack.c.l.b16 %v6155
        %v6895 = vunpack.c.l.b16 %v6156
        %v6896 = vunpack.c.l.b16 %v6157
        %v6897 = vunpack.c.l.b16 %v6158
        %v6898 = vunpack.c.l.b16 %v6159
        %v6899 = vunpack.c.l.b16 %v6160
        %v6900 = vunpack.c.l.b16 %v6161
        %v6901 = vunpack.c.l.b16 %v6162
        %v6902 = vunpack.c.l.b16 %v6163
        %v6903 = vunpack.c.l.b16 %v6164
        %v6904 = vunpack.c.l.b16 %v6165
        %v6905 = vpack.c.b16 %v6858, %v6857
        %v6906 = vpack.c.b16 %v6860, %v6859
        %v6907 = vpack.c.b16 %v6862, %v6861
        %v6908 = vpack.c.b16 %v6864, %v6863
        %v6909 = vpack.c.b16 %v6866, %v6865
        %v6910 = vpack.c.b16 %v6868, %v6867
        %v6911 = vpack.c.b16 %v6870, %v6869
        %v6912 = vpack.c.b16 %v6872, %v6871
        %v6913 = vpack.c.b16 %v6874, %v6873
        %v6914 = vpack.c.b16 %v6876, %v6875
        %v6915 = vpack.c.b16 %v6878, %v6877
        %v6916 = vpack.c.b16 %v6880, %v6879
        %v6917 = vpack.c.b16 %v6882, %v6881
        %v6918 = vpack.c.b16 %v6884, %v6883
        %v6919 = vpack.c.b16 %v6886, %v6885
        %v6920 = vpack.c.b16 %v6888, %v6887
        %v6921 = vpack.c.b16 %v6890, %v6889
        %v6922 = vpack.c.b16 %v6892, %v6891
        %v6923 = vpack.c.b16 %v6894, %v6893
        %v6924 = vpack.c.b16 %v6896, %v6895
        %v6925 = vpack.c.b16 %v6898, %v6897
        %v6926 = vpack.c.b16 %v6900, %v6899
        %v6927 = vpack.c.b16 %v6902, %v6901
        %v6928 = vpack.c.b16 %v6904, %v6903
        %6953 = vmatpush.bf16.msra.mxu0 %v6912
        %6954 = vmatpush.bf16.msra.mxu0 %v6911
        %6955 = vmatpush.bf16.msra.mxu0 %v6910
        %6956 = vmatpush.bf16.msra.mxu0 %v6909
        %6957 = vmatpush.bf16.msra.mxu0 %v6908
        %6958 = vmatpush.bf16.msra.mxu0 %v6907
        %6959 = vmatpush.bf16.msra.mxu0 %v6906
        %6960 = vmatpush.bf16.msra.mxu0 %v6905
        %6961 = vmatmul.bf16.gmra.mxu0 %v6006
        %v6962 = vpop.f32.mrf.mxu0
        %v6963 = vadd.f32 %v6770, %v6962
        %v6964 = vpop.f32.mrf.mxu0
        %v6965 = vadd.f32 %v6772, %v6964
        %6966 = vmatmul.bf16.gmra.mxu0 %v6007
        %v6967 = vpop.f32.mrf.mxu0
        %v6968 = vadd.f32 %v6775, %v6967
        %v6969 = vpop.f32.mrf.mxu0
        %v6970 = vadd.f32 %v6777, %v6969
        %6971 = vmatmul.bf16.gmra.mxu0 %v6008
        %v6972 = vpop.f32.mrf.mxu0
        %v6973 = vadd.f32 %v6780, %v6972
        %v6974 = vpop.f32.mrf.mxu0
        %v6975 = vadd.f32 %v6782, %v6974
        %6976 = vmatmul.bf16.gmra.mxu0 %v6009
        %v6977 = vpop.f32.mrf.mxu0
        %v6978 = vadd.f32 %v6785, %v6977
        %v6979 = vpop.f32.mrf.mxu0
        %v6980 = vadd.f32 %v6787, %v6979
        %6981 = vmatmul.bf16.gmra.mxu0 %v6010
        %v6982 = vpop.f32.mrf.mxu0
        %v6983 = vadd.f32 %v6790, %v6982
        %v6984 = vpop.f32.mrf.mxu0
        %v6985 = vadd.f32 %v6792, %v6984
        %6986 = vmatmul.bf16.gmra.mxu0 %v6011
        %v6987 = vpop.f32.mrf.mxu0
        %v6988 = vadd.f32 %v6795, %v6987
        %v6989 = vpop.f32.mrf.mxu0
        %v6990 = vadd.f32 %v6797, %v6989
        %6991 = vmatmul.bf16.gmra.mxu0 %v6012
        %v6992 = vpop.f32.mrf.mxu0
        %v6993 = vadd.f32 %v6800, %v6992
        %v6994 = vpop.f32.mrf.mxu0
        %v6995 = vadd.f32 %v6802, %v6994
        %6996 = vmatmul.bf16.gmra.mxu0 %v6013
        %v6997 = vpop.f32.mrf.mxu0
        %v6998 = vadd.f32 %v6805, %v6997
        %v6999 = vpop.f32.mrf.mxu0
        %v7000 = vadd.f32 %v6807, %v6999
        %7001 = vdwg.mxu0
        %7002 = vmatpush.bf16.msra.mxu0 %v6920
        %7003 = vmatpush.bf16.msra.mxu0 %v6919
        %7004 = vmatpush.bf16.msra.mxu0 %v6918
        %7005 = vmatpush.bf16.msra.mxu0 %v6917
        %7006 = vmatpush.bf16.msra.mxu0 %v6916
        %7007 = vmatpush.bf16.msra.mxu0 %v6915
        %7008 = vmatpush.bf16.msra.mxu0 %v6914
        %7009 = vmatpush.bf16.msra.mxu0 %v6913
        %7010 = vmatmul.bf16.gmra.mxu0 %v6054
        %v7011 = vpop.f32.mrf.mxu0
        %v7012 = vadd.f32 %v6963, %v7011
        %v7013 = vpop.f32.mrf.mxu0
        %v7014 = vadd.f32 %v6965, %v7013
        %7015 = vmatmul.bf16.gmra.mxu0 %v6055
        %v7016 = vpop.f32.mrf.mxu0
        %v7017 = vadd.f32 %v6968, %v7016
        %v7018 = vpop.f32.mrf.mxu0
        %v7019 = vadd.f32 %v6970, %v7018
        %7020 = vmatmul.bf16.gmra.mxu0 %v6056
        %v7021 = vpop.f32.mrf.mxu0
        %v7022 = vadd.f32 %v6973, %v7021
        %v7023 = vpop.f32.mrf.mxu0
        %v7024 = vadd.f32 %v6975, %v7023
        %7025 = vmatmul.bf16.gmra.mxu0 %v6057
        %v7026 = vpop.f32.mrf.mxu0
        %v7027 = vadd.f32 %v6978, %v7026
        %v7028 = vpop.f32.mrf.mxu0
        %v7029 = vadd.f32 %v6980, %v7028
        %7030 = vmatmul.bf16.gmra.mxu0 %v6058
        %v7031 = vpop.f32.mrf.mxu0
        %v7032 = vadd.f32 %v6983, %v7031
        %v7033 = vpop.f32.mrf.mxu0
        %v7034 = vadd.f32 %v6985, %v7033
        %7035 = vmatmul.bf16.gmra.mxu0 %v6059
        %v7036 = vpop.f32.mrf.mxu0
        %v7037 = vadd.f32 %v6988, %v7036
        %v7038 = vpop.f32.mrf.mxu0
        %v7039 = vadd.f32 %v6990, %v7038
        %7040 = vmatmul.bf16.gmra.mxu0 %v6060
        %v7041 = vpop.f32.mrf.mxu0
        %v7042 = vadd.f32 %v6993, %v7041
        %v7043 = vpop.f32.mrf.mxu0
        %v7044 = vadd.f32 %v6995, %v7043
        %7045 = vmatmul.bf16.gmra.mxu0 %v6061
        %v7046 = vpop.f32.mrf.mxu0
        %v7047 = vadd.f32 %v6998, %v7046
        %v7048 = vpop.f32.mrf.mxu0
        %v7049 = vadd.f32 %v7000, %v7048
        %7050 = vdwg.mxu0
        %7051 = vmatpush.bf16.msra.mxu0 %v6928
        %7052 = vmatpush.bf16.msra.mxu0 %v6927
        %7053 = vmatpush.bf16.msra.mxu0 %v6926
        %7054 = vmatpush.bf16.msra.mxu0 %v6925
        %7055 = vmatpush.bf16.msra.mxu0 %v6924
        %7056 = vmatpush.bf16.msra.mxu0 %v6923
        %7057 = vmatpush.bf16.msra.mxu0 %v6922
        %7058 = vmatpush.bf16.msra.mxu0 %v6921
        %7059 = vmatmul.bf16.gmra.mxu0 %v6102
        %v7060 = vpop.f32.mrf.mxu0
        %v7061 = vadd.f32 %v7012, %v7060
        %v7062 = vpop.f32.mrf.mxu0
        %v7063 = vadd.f32 %v7014, %v7062
        %7064 = vmatmul.bf16.gmra.mxu0 %v6103
        %v7065 = vpop.f32.mrf.mxu0
        %v7066 = vadd.f32 %v7017, %v7065
        %v7067 = vpop.f32.mrf.mxu0
        %v7068 = vadd.f32 %v7019, %v7067
        %7069 = vmatmul.bf16.gmra.mxu0 %v6104
        %v7070 = vpop.f32.mrf.mxu0
        %v7071 = vadd.f32 %v7022, %v7070
        %v7072 = vpop.f32.mrf.mxu0
        %v7073 = vadd.f32 %v7024, %v7072
        %7074 = vmatmul.bf16.gmra.mxu0 %v6105
        %v7075 = vpop.f32.mrf.mxu0
        %v7076 = vadd.f32 %v7027, %v7075
        %v7077 = vpop.f32.mrf.mxu0
        %v7078 = vadd.f32 %v7029, %v7077
        %7079 = vmatmul.bf16.gmra.mxu0 %v6106
        %v7080 = vpop.f32.mrf.mxu0
        %v7081 = vadd.f32 %v7032, %v7080
        %v7082 = vpop.f32.mrf.mxu0
        %v7083 = vadd.f32 %v7034, %v7082
        %7084 = vmatmul.bf16.gmra.mxu0 %v6107
        %v7085 = vpop.f32.mrf.mxu0
        %v7086 = vadd.f32 %v7037, %v7085
        %v7087 = vpop.f32.mrf.mxu0
        %v7088 = vadd.f32 %v7039, %v7087
        %7089 = vmatmul.bf16.gmra.mxu0 %v6108
        %v7090 = vpop.f32.mrf.mxu0
        %v7091 = vadd.f32 %v7042, %v7090
        %v7092 = vpop.f32.mrf.mxu0
        %v7093 = vadd.f32 %v7044, %v7092
        %7094 = vmatmul.bf16.gmra.mxu0 %v6109
        %v7095 = vpop.f32.mrf.mxu0
        %v7096 = vadd.f32 %v7047, %v7095
        %v7097 = vpop.f32.mrf.mxu0
        %v7098 = vadd.f32 %v7049, %v7097
        %7099 = vdwg.mxu0
        %s7100 = scalar_lea.vmem [#allocation2], 144
        %v7101 = vld [vmem:[%s7100] sm:$0xff]
        %v7102 = vld [vmem:[%s7100 + $0x8] sm:$0xff]
        %v7103 = vld [vmem:[%s7100 + $0x10] sm:$0xff]
        %v7104 = vld [vmem:[%s7100 + $0x18] sm:$0xff]
        %v7105 = vld [vmem:[%s7100 + $0x20] sm:$0xff]
        %v7106 = vld [vmem:[%s7100 + $0x28] sm:$0xff]
        %v7107 = vld [vmem:[%s7100 + $0x30] sm:$0xff]
        %v7108 = vld [vmem:[%s7100 + $0x38] sm:$0xff]
        %v7109 = vld [vmem:[%s7100 + $0x40] sm:$0xff]
        %v7110 = vld [vmem:[%s7100 + $0x48] sm:$0xff]
        %v7111 = vld [vmem:[%s7100 + $0x50] sm:$0xff]
        %v7112 = vld [vmem:[%s7100 + $0x58] sm:$0xff]
        %v7113 = vld [vmem:[%s7100 + $0x60] sm:$0xff]
        %v7114 = vld [vmem:[%s7100 + $0x68] sm:$0xff]
        %v7115 = vrot.slane %v7101, 7
        %v7116 = vrot.slane %v7103, 7
        %v7117 = vrot.slane %v7105, 7
        %v7118 = vrot.slane %v7107, 7
        %v7119 = vrot.slane %v7109, 7
        %v7120 = vrot.slane %v7111, 7
        %v7121 = vrot.slane %v7113, 7
        %v7122 = vrot.slane %v7102, 7
        %v7123 = vrot.slane %v7104, 7
        %v7124 = vrot.slane %v7106, 7
        %v7125 = vrot.slane %v7108, 7
        %v7126 = vrot.slane %v7110, 7
        %v7127 = vrot.slane %v7112, 7
        %v7128 = vrot.slane %v7114, 7
        %v7129 = vsel %vm379, %v7115, %v7122
        %v7130 = vsel %vm379, %v7116, %v7123
        %v7131 = vsel %vm379, %v7117, %v7124
        %v7132 = vsel %vm379, %v7118, %v7125
        %v7133 = vsel %vm379, %v7119, %v7126
        %v7134 = vsel %vm379, %v7120, %v7127
        %v7135 = vsel %vm379, %v7121, %v7128
        %v7136 = vsel %vm379, %v7122, %v7115
        %v7137 = vsel %vm379, %v7123, %v7116
        %v7138 = vsel %vm379, %v7124, %v7117
        %v7139 = vsel %vm379, %v7125, %v7118
        %v7140 = vsel %vm379, %v7126, %v7119
        %v7141 = vsel %vm379, %v7127, %v7120
        %v7142 = vsel %vm379, %v7128, %v7121
        %v7143 = vmul.f32 %v7136, %v343
        %v7144 = vmul.f32 %v7129, %v344
        %v7145 = vmul.f32 %v7137, %v343
        %v7146 = vmul.f32 %v7130, %v344
        %v7147 = vmul.f32 %v7138, %v343
        %v7148 = vmul.f32 %v7131, %v344
        %v7149 = vmul.f32 %v7139, %v343
        %v7150 = vmul.f32 %v7132, %v344
        %v7151 = vmul.f32 %v7140, %v343
        %v7152 = vmul.f32 %v7133, %v344
        %v7153 = vmul.f32 %v7141, %v343
        %v7154 = vmul.f32 %v7134, %v344
        %v7155 = vmul.f32 %v7142, %v343
        %v7156 = vmul.f32 %v7135, %v344
        %v7157 = vpack.c.bf16 %v7143, %v7143
        %v7158 = vpack.c.bf16 %v7144, %v7144
        %v7159 = vpack.c.bf16 %v7145, %v7145
        %v7160 = vpack.c.bf16 %v7146, %v7146
        %v7161 = vpack.c.bf16 %v7147, %v7147
        %v7162 = vpack.c.bf16 %v7148, %v7148
        %v7163 = vpack.c.bf16 %v7149, %v7149
        %v7164 = vpack.c.bf16 %v7150, %v7150
        %v7165 = vpack.c.bf16 %v7151, %v7151
        %v7166 = vpack.c.bf16 %v7152, %v7152
        %v7167 = vpack.c.bf16 %v7153, %v7153
        %v7168 = vpack.c.bf16 %v7154, %v7154
        %v7169 = vpack.c.bf16 %v7155, %v7155
        %v7170 = vpack.c.bf16 %v7156, %v7156
        %v7171 = vrot.slane %v7101, 1
        %v7172 = vrot.slane %v7103, 1
        %v7173 = vrot.slane %v7105, 1
        %v7174 = vrot.slane %v7107, 1
        %v7175 = vrot.slane %v7109, 1
        %v7176 = vrot.slane %v7111, 1
        %v7177 = vrot.slane %v7113, 1
        %v7178 = vrot.slane %v7102, 1
        %v7179 = vrot.slane %v7104, 1
        %v7180 = vrot.slane %v7106, 1
        %v7181 = vrot.slane %v7108, 1
        %v7182 = vrot.slane %v7110, 1
        %v7183 = vrot.slane %v7112, 1
        %v7184 = vrot.slane %v7114, 1
        %v7185 = vsel %vm440, %v7171, %v7178
        %v7186 = vsel %vm440, %v7172, %v7179
        %v7187 = vsel %vm440, %v7173, %v7180
        %v7188 = vsel %vm440, %v7174, %v7181
        %v7189 = vsel %vm440, %v7175, %v7182
        %v7190 = vsel %vm440, %v7176, %v7183
        %v7191 = vsel %vm440, %v7177, %v7184
        %v7192 = vsel %vm440, %v7178, %v7171
        %v7193 = vsel %vm440, %v7179, %v7172
        %v7194 = vsel %vm440, %v7180, %v7173
        %v7195 = vsel %vm440, %v7181, %v7174
        %v7196 = vsel %vm440, %v7182, %v7175
        %v7197 = vsel %vm440, %v7183, %v7176
        %v7198 = vsel %vm440, %v7184, %v7177
        %v7199 = vmul.f32 %v7185, %v349
        %v7200 = vmul.f32 %v7192, %v350
        %v7201 = vmul.f32 %v7186, %v349
        %v7202 = vmul.f32 %v7193, %v350
        %v7203 = vmul.f32 %v7187, %v349
        %v7204 = vmul.f32 %v7194, %v350
        %v7205 = vmul.f32 %v7188, %v349
        %v7206 = vmul.f32 %v7195, %v350
        %v7207 = vmul.f32 %v7189, %v349
        %v7208 = vmul.f32 %v7196, %v350
        %v7209 = vmul.f32 %v7190, %v349
        %v7210 = vmul.f32 %v7197, %v350
        %v7211 = vmul.f32 %v7191, %v349
        %v7212 = vmul.f32 %v7198, %v350
        %v7213 = vpack.c.bf16 %v7199, %v7199
        %v7214 = vpack.c.bf16 %v7200, %v7200
        %v7215 = vpack.c.bf16 %v7201, %v7201
        %v7216 = vpack.c.bf16 %v7202, %v7202
        %v7217 = vpack.c.bf16 %v7203, %v7203
        %v7218 = vpack.c.bf16 %v7204, %v7204
        %v7219 = vpack.c.bf16 %v7205, %v7205
        %v7220 = vpack.c.bf16 %v7206, %v7206
        %v7221 = vpack.c.bf16 %v7207, %v7207
        %v7222 = vpack.c.bf16 %v7208, %v7208
        %v7223 = vpack.c.bf16 %v7209, %v7209
        %v7224 = vpack.c.bf16 %v7210, %v7210
        %v7225 = vpack.c.bf16 %v7211, %v7211
        %v7226 = vpack.c.bf16 %v7212, %v7212
        %v7227 = vpack.c.bf16 %v7101, %v7101
        %v7228 = vpack.c.bf16 %v7102, %v7102
        %v7229 = vpack.c.bf16 %v7103, %v7103
        %v7230 = vpack.c.bf16 %v7104, %v7104
        %v7231 = vpack.c.bf16 %v7105, %v7105
        %v7232 = vpack.c.bf16 %v7106, %v7106
        %v7233 = vpack.c.bf16 %v7107, %v7107
        %v7234 = vpack.c.bf16 %v7108, %v7108
        %v7235 = vpack.c.bf16 %v7109, %v7109
        %v7236 = vpack.c.bf16 %v7110, %v7110
        %v7237 = vpack.c.bf16 %v7111, %v7111
        %v7238 = vpack.c.bf16 %v7112, %v7112
        %v7239 = vpack.c.bf16 %v7113, %v7113
        %v7240 = vpack.c.bf16 %v7114, %v7114
        %v7255 = vunpack.c.l.b16 %v7157
        %v7256 = vunpack.c.l.b16 %v7158
        %v7257 = vunpack.c.l.b16 %v7159
        %v7258 = vunpack.c.l.b16 %v7160
        %v7259 = vunpack.c.l.b16 %v7161
        %v7260 = vunpack.c.l.b16 %v7162
        %v7261 = vunpack.c.l.b16 %v7163
        %v7262 = vunpack.c.l.b16 %v7164
        %v7263 = vunpack.c.l.b16 %v7165
        %v7264 = vunpack.c.l.b16 %v7166
        %v7265 = vunpack.c.l.b16 %v7167
        %v7266 = vunpack.c.l.b16 %v7168
        %v7267 = vunpack.c.l.b16 %v7169
        %v7268 = vunpack.c.l.b16 %v7170
        %v7269 = vpack.c.b16 %v7256, %v7255
        %v7270 = vpack.c.b16 %v7258, %v7257
        %v7271 = vpack.c.b16 %v7260, %v7259
        %v7272 = vpack.c.b16 %v7262, %v7261
        %v7273 = vpack.c.b16 %v7264, %v7263
        %v7274 = vpack.c.b16 %v7266, %v7265
        %v7275 = vpack.c.b16 %v7268, %v7267
        %v7297 = vunpack.c.l.b16 %v7227
        %v7298 = vunpack.c.l.b16 %v7228
        %v7299 = vunpack.c.l.b16 %v7229
        %v7300 = vunpack.c.l.b16 %v7230
        %v7301 = vunpack.c.l.b16 %v7231
        %v7302 = vunpack.c.l.b16 %v7232
        %v7303 = vunpack.c.l.b16 %v7233
        %v7304 = vunpack.c.l.b16 %v7234
        %v7305 = vunpack.c.l.b16 %v7235
        %v7306 = vunpack.c.l.b16 %v7236
        %v7307 = vunpack.c.l.b16 %v7237
        %v7308 = vunpack.c.l.b16 %v7238
        %v7309 = vunpack.c.l.b16 %v7239
        %v7310 = vunpack.c.l.b16 %v7240
        %v7311 = vpack.c.b16 %v7298, %v7297
        %v7312 = vpack.c.b16 %v7300, %v7299
        %v7313 = vpack.c.b16 %v7302, %v7301
        %v7314 = vpack.c.b16 %v7304, %v7303
        %v7315 = vpack.c.b16 %v7306, %v7305
        %v7316 = vpack.c.b16 %v7308, %v7307
        %v7317 = vpack.c.b16 %v7310, %v7309
        %v7339 = vunpack.c.l.b16 %v7213
        %v7340 = vunpack.c.l.b16 %v7214
        %v7341 = vunpack.c.l.b16 %v7215
        %v7342 = vunpack.c.l.b16 %v7216
        %v7343 = vunpack.c.l.b16 %v7217
        %v7344 = vunpack.c.l.b16 %v7218
        %v7345 = vunpack.c.l.b16 %v7219
        %v7346 = vunpack.c.l.b16 %v7220
        %v7347 = vunpack.c.l.b16 %v7221
        %v7348 = vunpack.c.l.b16 %v7222
        %v7349 = vunpack.c.l.b16 %v7223
        %v7350 = vunpack.c.l.b16 %v7224
        %v7351 = vunpack.c.l.b16 %v7225
        %v7352 = vunpack.c.l.b16 %v7226
        %v7353 = vpack.c.b16 %v7340, %v7339
        %v7354 = vpack.c.b16 %v7342, %v7341
        %v7355 = vpack.c.b16 %v7344, %v7343
        %v7356 = vpack.c.b16 %v7346, %v7345
        %v7357 = vpack.c.b16 %v7348, %v7347
        %v7358 = vpack.c.b16 %v7350, %v7349
        %v7359 = vpack.c.b16 %v7352, %v7351
        %v7367 = vld [vmem:[%s5355] sm:$0xf]
        %v7368 = vld [vmem:[%s5355 + $0x4] sm:$0xf]
        %v7369 = vld [vmem:[%s5355 + $0x8] sm:$0xf]
        %v7370 = vld [vmem:[%s5355 + $0xc] sm:$0xf]
        %v7371 = vld [vmem:[%s5355 + $0x10] sm:$0xf]
        %v7372 = vld [vmem:[%s5355 + $0x14] sm:$0xf]
        %v7373 = vld [vmem:[%s5355 + $0x18] sm:$0xf]
        %v7374 = vld [vmem:[%s5355 + $0x1c] sm:$0xf]
        %v7375 = vld [vmem:[%s5355 + $0x20] sm:$0xf]
        %v7376 = vld [vmem:[%s5355 + $0x24] sm:$0xf]
        %v7377 = vld [vmem:[%s5355 + $0x28] sm:$0xf]
        %v7378 = vld [vmem:[%s5355 + $0x2c] sm:$0xf]
        %v7379 = vld [vmem:[%s5355 + $0x30] sm:$0xf]
        %v7380 = vld [vmem:[%s5355 + $0x34] sm:$0xf]
        %v7381 = vld [vmem:[%s5355 + $0x38] sm:$0xf]
        %v7382 = vld [vmem:[%s5355 + $0x3c] sm:$0xf]
        %v7383 = vld [vmem:[%s5355 + $0x40] sm:$0xf]
        %v7384 = vld [vmem:[%s5355 + $0x44] sm:$0xf]
        %v7385 = vld [vmem:[%s5355 + $0x48] sm:$0xf]
        %v7386 = vld [vmem:[%s5355 + $0x4c] sm:$0xf]
        %v7387 = vld [vmem:[%s5355 + $0x50] sm:$0xf]
        %v7388 = vld [vmem:[%s5355 + $0x54] sm:$0xf]
        %v7389 = vld [vmem:[%s5355 + $0x58] sm:$0xf]
        %v7390 = vld [vmem:[%s5355 + $0x5c] sm:$0xf]
        %v7391 = vld [vmem:[%s5355 + $0x60] sm:$0xf]
        %v7392 = vld [vmem:[%s5355 + $0x64] sm:$0xf]
        %v7393 = vld [vmem:[%s5355 + $0x68] sm:$0xf]
        %v7394 = vld [vmem:[%s5355 + $0x6c] sm:$0xf]
        %v7395 = vld [vmem:[%s5355 + $0x70] sm:$0xf]
        %v7396 = vld [vmem:[%s5355 + $0x74] sm:$0xf]
        %v7397 = vld [vmem:[%s5355 + $0x78] sm:$0xf]
        %v7398 = vld [vmem:[%s5355 + $0x7c] sm:$0xf]
        %v7399 = vld [vmem:[%s5355 + $0x80] sm:$0xf]
        %v7400 = vld [vmem:[%s5355 + $0x84] sm:$0xf]
        %v7401 = vld [vmem:[%s5355 + $0x88] sm:$0xf]
        %v7402 = vld [vmem:[%s5355 + $0x8c] sm:$0xf]
        %v7403 = vld [vmem:[%s5355 + $0x90] sm:$0xf]
        %v7404 = vld [vmem:[%s5355 + $0x94] sm:$0xf]
        %v7405 = vld [vmem:[%s5355 + $0x98] sm:$0xf]
        %v7406 = vld [vmem:[%s5355 + $0x9c] sm:$0xf]
        %v7407 = vld [vmem:[%s5355 + $0xa0] sm:$0xf]
        %v7408 = vld [vmem:[%s5355 + $0xa4] sm:$0xf]
        %v7409 = vld [vmem:[%s5355 + $0xa8] sm:$0xf]
        %v7410 = vld [vmem:[%s5355 + $0xac] sm:$0xf]
        %v7411 = vld [vmem:[%s5355 + $0xb0] sm:$0xf]
        %v7412 = vld [vmem:[%s5355 + $0xb4] sm:$0xf]
        %v7413 = vld [vmem:[%s5355 + $0xb8] sm:$0xf]
        %v7414 = vld [vmem:[%s5355 + $0xbc] sm:$0xf]
        %v7463 = vunpack.c.l.b16 %v7367
        %v7464 = vunpack.c.l.b16 %v7368
        %v7465 = vunpack.c.l.b16 %v7369
        %v7466 = vunpack.c.l.b16 %v7370
        %v7467 = vunpack.c.l.b16 %v7371
        %v7468 = vunpack.c.l.b16 %v7372
        %v7469 = vunpack.c.l.b16 %v7373
        %v7470 = vunpack.c.l.b16 %v7374
        %v7471 = vunpack.c.l.b16 %v7375
        %v7472 = vunpack.c.l.b16 %v7376
        %v7473 = vunpack.c.l.b16 %v7377
        %v7474 = vunpack.c.l.b16 %v7378
        %v7475 = vunpack.c.l.b16 %v7379
        %v7476 = vunpack.c.l.b16 %v7380
        %v7477 = vunpack.c.l.b16 %v7381
        %v7478 = vunpack.c.l.b16 %v7382
        %v7479 = vunpack.c.l.b16 %v7383
        %v7480 = vunpack.c.l.b16 %v7384
        %v7481 = vunpack.c.l.b16 %v7385
        %v7482 = vunpack.c.l.b16 %v7386
        %v7483 = vunpack.c.l.b16 %v7387
        %v7484 = vunpack.c.l.b16 %v7388
        %v7485 = vunpack.c.l.b16 %v7389
        %v7486 = vunpack.c.l.b16 %v7390
        %v7487 = vunpack.c.l.b16 %v7391
        %v7488 = vunpack.c.l.b16 %v7392
        %v7489 = vunpack.c.l.b16 %v7393
        %v7490 = vunpack.c.l.b16 %v7394
        %v7491 = vunpack.c.l.b16 %v7395
        %v7492 = vunpack.c.l.b16 %v7396
        %v7493 = vunpack.c.l.b16 %v7397
        %v7494 = vunpack.c.l.b16 %v7398
        %v7495 = vunpack.c.l.b16 %v7399
        %v7496 = vunpack.c.l.b16 %v7400
        %v7497 = vunpack.c.l.b16 %v7401
        %v7498 = vunpack.c.l.b16 %v7402
        %v7499 = vunpack.c.l.b16 %v7403
        %v7500 = vunpack.c.l.b16 %v7404
        %v7501 = vunpack.c.l.b16 %v7405
        %v7502 = vunpack.c.l.b16 %v7406
        %v7503 = vunpack.c.l.b16 %v7407
        %v7504 = vunpack.c.l.b16 %v7408
        %v7505 = vunpack.c.l.b16 %v7409
        %v7506 = vunpack.c.l.b16 %v7410
        %v7507 = vunpack.c.l.b16 %v7411
        %v7508 = vunpack.c.l.b16 %v7412
        %v7509 = vunpack.c.l.b16 %v7413
        %v7510 = vunpack.c.l.b16 %v7414
        %v7511 = vpack.c.b16 %v7464, %v7463
        %v7512 = vpack.c.b16 %v7466, %v7465
        %v7513 = vpack.c.b16 %v7468, %v7467
        %v7514 = vpack.c.b16 %v7470, %v7469
        %v7515 = vpack.c.b16 %v7472, %v7471
        %v7516 = vpack.c.b16 %v7474, %v7473
        %v7517 = vpack.c.b16 %v7476, %v7475
        %v7518 = vpack.c.b16 %v7478, %v7477
        %v7519 = vpack.c.b16 %v7480, %v7479
        %v7520 = vpack.c.b16 %v7482, %v7481
        %v7521 = vpack.c.b16 %v7484, %v7483
        %v7522 = vpack.c.b16 %v7486, %v7485
        %v7523 = vpack.c.b16 %v7488, %v7487
        %v7524 = vpack.c.b16 %v7490, %v7489
        %v7525 = vpack.c.b16 %v7492, %v7491
        %v7526 = vpack.c.b16 %v7494, %v7493
        %v7527 = vpack.c.b16 %v7496, %v7495
        %v7528 = vpack.c.b16 %v7498, %v7497
        %v7529 = vpack.c.b16 %v7500, %v7499
        %v7530 = vpack.c.b16 %v7502, %v7501
        %v7531 = vpack.c.b16 %v7504, %v7503
        %v7532 = vpack.c.b16 %v7506, %v7505
        %v7533 = vpack.c.b16 %v7508, %v7507
        %v7534 = vpack.c.b16 %v7510, %v7509
        %7559 = vmatpush.bf16.msra.mxu0 %v7518
        %7560 = vmatpush.bf16.msra.mxu0 %v7517
        %7561 = vmatpush.bf16.msra.mxu0 %v7516
        %7562 = vmatpush.bf16.msra.mxu0 %v7515
        %7563 = vmatpush.bf16.msra.mxu0 %v7514
        %7564 = vmatpush.bf16.msra.mxu0 %v7513
        %7565 = vmatpush.bf16.msra.mxu0 %v7512
        %7566 = vmatpush.bf16.msra.mxu0 %v7511
        %7567 = vmatmul.bf16.gmra.mxu0 %v7269
        %v7568 = vpop.f32.mrf.mxu0
        %v7569 = vadd.f32 0.0, %v7568
        %v7570 = vpop.f32.mrf.mxu0
        %v7571 = vadd.f32 0.0, %v7570
        %7572 = vmatmul.bf16.gmra.mxu0 %v7270
        %v7573 = vpop.f32.mrf.mxu0
        %v7574 = vadd.f32 0.0, %v7573
        %v7575 = vpop.f32.mrf.mxu0
        %v7576 = vadd.f32 0.0, %v7575
        %7577 = vmatmul.bf16.gmra.mxu0 %v7271
        %v7578 = vpop.f32.mrf.mxu0
        %v7579 = vadd.f32 0.0, %v7578
        %v7580 = vpop.f32.mrf.mxu0
        %v7581 = vadd.f32 0.0, %v7580
        %7582 = vmatmul.bf16.gmra.mxu0 %v7272
        %v7583 = vpop.f32.mrf.mxu0
        %v7584 = vadd.f32 0.0, %v7583
        %v7585 = vpop.f32.mrf.mxu0
        %v7586 = vadd.f32 0.0, %v7585
        %7587 = vmatmul.bf16.gmra.mxu0 %v7273
        %v7588 = vpop.f32.mrf.mxu0
        %v7589 = vadd.f32 0.0, %v7588
        %v7590 = vpop.f32.mrf.mxu0
        %v7591 = vadd.f32 0.0, %v7590
        %7592 = vmatmul.bf16.gmra.mxu0 %v7274
        %v7593 = vpop.f32.mrf.mxu0
        %v7594 = vadd.f32 0.0, %v7593
        %v7595 = vpop.f32.mrf.mxu0
        %v7596 = vadd.f32 0.0, %v7595
        %7597 = vmatmul.bf16.gmra.mxu0 %v7275
        %v7598 = vpop.f32.mrf.mxu0
        %v7599 = vadd.f32 0.0, %v7598
        %v7600 = vpop.f32.mrf.mxu0
        %v7601 = vadd.f32 0.0, %v7600
        %7602 = vmatmul.bf16.gmra.mxu0 %v534
        %v7603 = vpop.f32.mrf.mxu0
        %v7604 = vadd.f32 0.0, %v7603
        %v7605 = vpop.f32.mrf.mxu0
        %v7606 = vadd.f32 0.0, %v7605
        %7607 = vdwg.mxu0
        %7608 = vmatpush.bf16.msra.mxu0 %v7526
        %7609 = vmatpush.bf16.msra.mxu0 %v7525
        %7610 = vmatpush.bf16.msra.mxu0 %v7524
        %7611 = vmatpush.bf16.msra.mxu0 %v7523
        %7612 = vmatpush.bf16.msra.mxu0 %v7522
        %7613 = vmatpush.bf16.msra.mxu0 %v7521
        %7614 = vmatpush.bf16.msra.mxu0 %v7520
        %7615 = vmatpush.bf16.msra.mxu0 %v7519
        %7616 = vmatmul.bf16.gmra.mxu0 %v7311
        %v7617 = vpop.f32.mrf.mxu0
        %v7618 = vadd.f32 %v7569, %v7617
        %v7619 = vpop.f32.mrf.mxu0
        %v7620 = vadd.f32 %v7571, %v7619
        %7621 = vmatmul.bf16.gmra.mxu0 %v7312
        %v7622 = vpop.f32.mrf.mxu0
        %v7623 = vadd.f32 %v7574, %v7622
        %v7624 = vpop.f32.mrf.mxu0
        %v7625 = vadd.f32 %v7576, %v7624
        %7626 = vmatmul.bf16.gmra.mxu0 %v7313
        %v7627 = vpop.f32.mrf.mxu0
        %v7628 = vadd.f32 %v7579, %v7627
        %v7629 = vpop.f32.mrf.mxu0
        %v7630 = vadd.f32 %v7581, %v7629
        %7631 = vmatmul.bf16.gmra.mxu0 %v7314
        %v7632 = vpop.f32.mrf.mxu0
        %v7633 = vadd.f32 %v7584, %v7632
        %v7634 = vpop.f32.mrf.mxu0
        %v7635 = vadd.f32 %v7586, %v7634
        %7636 = vmatmul.bf16.gmra.mxu0 %v7315
        %v7637 = vpop.f32.mrf.mxu0
        %v7638 = vadd.f32 %v7589, %v7637
        %v7639 = vpop.f32.mrf.mxu0
        %v7640 = vadd.f32 %v7591, %v7639
        %7641 = vmatmul.bf16.gmra.mxu0 %v7316
        %v7642 = vpop.f32.mrf.mxu0
        %v7643 = vadd.f32 %v7594, %v7642
        %v7644 = vpop.f32.mrf.mxu0
        %v7645 = vadd.f32 %v7596, %v7644
        %7646 = vmatmul.bf16.gmra.mxu0 %v7317
        %v7647 = vpop.f32.mrf.mxu0
        %v7648 = vadd.f32 %v7599, %v7647
        %v7649 = vpop.f32.mrf.mxu0
        %v7650 = vadd.f32 %v7601, %v7649
        %7651 = vmatmul.bf16.gmra.mxu0 %v580
        %v7652 = vpop.f32.mrf.mxu0
        %v7653 = vadd.f32 %v7604, %v7652
        %v7654 = vpop.f32.mrf.mxu0
        %v7655 = vadd.f32 %v7606, %v7654
        %7656 = vdwg.mxu0
        %7657 = vmatpush.bf16.msra.mxu0 %v7534
        %7658 = vmatpush.bf16.msra.mxu0 %v7533
        %7659 = vmatpush.bf16.msra.mxu0 %v7532
        %7660 = vmatpush.bf16.msra.mxu0 %v7531
        %7661 = vmatpush.bf16.msra.mxu0 %v7530
        %7662 = vmatpush.bf16.msra.mxu0 %v7529
        %7663 = vmatpush.bf16.msra.mxu0 %v7528
        %7664 = vmatpush.bf16.msra.mxu0 %v7527
        %7665 = vmatmul.bf16.gmra.mxu0 %v7353
        %v7666 = vpop.f32.mrf.mxu0
        %v7667 = vadd.f32 %v7618, %v7666
        %v7668 = vpop.f32.mrf.mxu0
        %v7669 = vadd.f32 %v7620, %v7668
        %7670 = vmatmul.bf16.gmra.mxu0 %v7354
        %v7671 = vpop.f32.mrf.mxu0
        %v7672 = vadd.f32 %v7623, %v7671
        %v7673 = vpop.f32.mrf.mxu0
        %v7674 = vadd.f32 %v7625, %v7673
        %7675 = vmatmul.bf16.gmra.mxu0 %v7355
        %v7676 = vpop.f32.mrf.mxu0
        %v7677 = vadd.f32 %v7628, %v7676
        %v7678 = vpop.f32.mrf.mxu0
        %v7679 = vadd.f32 %v7630, %v7678
        %7680 = vmatmul.bf16.gmra.mxu0 %v7356
        %v7681 = vpop.f32.mrf.mxu0
        %v7682 = vadd.f32 %v7633, %v7681
        %v7683 = vpop.f32.mrf.mxu0
        %v7684 = vadd.f32 %v7635, %v7683
        %7685 = vmatmul.bf16.gmra.mxu0 %v7357
        %v7686 = vpop.f32.mrf.mxu0
        %v7687 = vadd.f32 %v7638, %v7686
        %v7688 = vpop.f32.mrf.mxu0
        %v7689 = vadd.f32 %v7640, %v7688
        %7690 = vmatmul.bf16.gmra.mxu0 %v7358
        %v7691 = vpop.f32.mrf.mxu0
        %v7692 = vadd.f32 %v7643, %v7691
        %v7693 = vpop.f32.mrf.mxu0
        %v7694 = vadd.f32 %v7645, %v7693
        %7695 = vmatmul.bf16.gmra.mxu0 %v7359
        %v7696 = vpop.f32.mrf.mxu0
        %v7697 = vadd.f32 %v7648, %v7696
        %v7698 = vpop.f32.mrf.mxu0
        %v7699 = vadd.f32 %v7650, %v7698
        %7700 = vmatmul.bf16.gmra.mxu0 %v628
        %v7701 = vpop.f32.mrf.mxu0
        %v7702 = vadd.f32 %v7653, %v7701
        %v7703 = vpop.f32.mrf.mxu0
        %v7704 = vadd.f32 %v7655, %v7703
        %7705 = vdwg.mxu0
        %v7706 = vadd.f32 %v7061, %v7667
        %v7707 = vadd.f32 %v7063, %v7669
        %v7708 = vadd.f32 %v7066, %v7672
        %v7709 = vadd.f32 %v7068, %v7674
        %v7710 = vadd.f32 %v7071, %v7677
        %v7711 = vadd.f32 %v7073, %v7679
        %v7712 = vadd.f32 %v7076, %v7682
        %v7713 = vadd.f32 %v7078, %v7684
        %v7714 = vadd.f32 %v7081, %v7687
        %v7715 = vadd.f32 %v7083, %v7689
        %v7716 = vadd.f32 %v7086, %v7692
        %v7717 = vadd.f32 %v7088, %v7694
        %v7718 = vadd.f32 %v7091, %v7697
        %v7719 = vadd.f32 %v7093, %v7699
        %v7720 = vadd.f32 %v7096, %v7702
        %v7721 = vadd.f32 %v7098, %v7704
        %v7722 = vmul.f32 %v7706, %v5712
        %v7723 = vmul.f32 %v7707, %v5712
        %v7724 = vmul.f32 %v7708, %v5712
        %v7725 = vmul.f32 %v7709, %v5712
        %v7726 = vmul.f32 %v7710, %v5712
        %v7727 = vmul.f32 %v7711, %v5712
        %v7728 = vmul.f32 %v7712, %v5712
        %v7729 = vmul.f32 %v7713, %v5712
        %v7730 = vmul.f32 %v7714, %v5712
        %v7731 = vmul.f32 %v7715, %v5712
        %v7732 = vmul.f32 %v7716, %v5712
        %v7733 = vmul.f32 %v7717, %v5712
        %v7734 = vmul.f32 %v7718, %v5712
        %v7735 = vmul.f32 %v7719, %v5712
        %v7736 = vmul.f32 %v7720, %v5712
        %v7737 = vmul.f32 %v7721, %v5712
        %v7738 = vadd.f32 %v7722, %v5731
        %v7739 = vadd.f32 %v7723, %v5731
        %v7740 = vadd.f32 %v7724, %v5731
        %v7741 = vadd.f32 %v7725, %v5731
        %v7742 = vadd.f32 %v7726, %v5731
        %v7743 = vadd.f32 %v7727, %v5731
        %v7744 = vadd.f32 %v7728, %v5731
        %v7745 = vadd.f32 %v7729, %v5731
        %v7746 = vadd.f32 %v7730, %v5731
        %v7747 = vadd.f32 %v7731, %v5731
        %v7748 = vadd.f32 %v7732, %v5731
        %v7749 = vadd.f32 %v7733, %v5731
        %v7750 = vadd.f32 %v7734, %v5731
        %v7751 = vadd.f32 %v7735, %v5731
        %v7752 = vadd.f32 %v7736, %v5731
        %v7753 = vadd.f32 %v7737, %v5731
        %v7754 = vld [vmem:[%s2445] sm:$0xff]
        %v7755 = vld [vmem:[%s2445 + $0x8] sm:$0xff]
        %v7756 = vld [vmem:[%s2445 + $0x10] sm:$0xff]
        %v7757 = vld [vmem:[%s2445 + $0x18] sm:$0xff]
        %v7758 = vld [vmem:[%s2445 + $0x20] sm:$0xff]
        %v7759 = vld [vmem:[%s2445 + $0x28] sm:$0xff]
        %v7760 = vld [vmem:[%s2445 + $0x30] sm:$0xff]
        %v7761 = vld [vmem:[%s2445 + $0x38] sm:$0xff]
        %v7762 = vld [vmem:[%s2445 + $0x40] sm:$0xff]
        %v7763 = vld [vmem:[%s2445 + $0x48] sm:$0xff]
        %v7764 = vld [vmem:[%s2445 + $0x50] sm:$0xff]
        %v7765 = vld [vmem:[%s2445 + $0x58] sm:$0xff]
        %v7766 = vld [vmem:[%s2445 + $0x60] sm:$0xff]
        %v7767 = vld [vmem:[%s2445 + $0x68] sm:$0xff]
        %v7768 = vld [vmem:[%s2445 + $0x70] sm:$0xff]
        %v7769 = vld [vmem:[%s2445 + $0x78] sm:$0xff]
        %v7770 = vadd.f32 %v7738, %v7754
        %v7771 = vadd.f32 %v7739, %v7755
        %v7772 = vadd.f32 %v7740, %v7756
        %v7773 = vadd.f32 %v7741, %v7757
        %v7774 = vadd.f32 %v7742, %v7758
        %v7775 = vadd.f32 %v7743, %v7759
        %v7776 = vadd.f32 %v7744, %v7760
        %v7777 = vadd.f32 %v7745, %v7761
        %v7778 = vadd.f32 %v7746, %v7762
        %v7779 = vadd.f32 %v7747, %v7763
        %v7780 = vadd.f32 %v7748, %v7764
        %v7781 = vadd.f32 %v7749, %v7765
        %v7782 = vadd.f32 %v7750, %v7766
        %v7783 = vadd.f32 %v7751, %v7767
        %v7784 = vadd.f32 %v7752, %v7768
        %v7785 = vadd.f32 %v7753, %v7769
        %v7786 = vmax.f32 %v7770, 0.0
        %v7787 = vmax.f32 %v7771, 0.0
        %v7788 = vmax.f32 %v7772, 0.0
        %v7789 = vmax.f32 %v7773, 0.0
        %v7790 = vmax.f32 %v7774, 0.0
        %v7791 = vmax.f32 %v7775, 0.0
        %v7792 = vmax.f32 %v7776, 0.0
        %v7793 = vmax.f32 %v7777, 0.0
        %v7794 = vmax.f32 %v7778, 0.0
        %v7795 = vmax.f32 %v7779, 0.0
        %v7796 = vmax.f32 %v7780, 0.0
        %v7797 = vmax.f32 %v7781, 0.0
        %v7798 = vmax.f32 %v7782, 0.0
        %v7799 = vmax.f32 %v7783, 0.0
        %v7800 = vmax.f32 %v7784, 0.0
        %v7801 = vmax.f32 %v7785, 0.0
        %s7802 = scalar_lea.vmem %s331, 128 [#allocation9]
        %7803 = vst [vmem:[%s7802] sm:$0xff] %v7786
        %7804 = vst [vmem:[%s7802 + $0x8] sm:$0xff] %v7787
        %7805 = vst [vmem:[%s7802 + $0x10] sm:$0xff] %v7788
        %7806 = vst [vmem:[%s7802 + $0x18] sm:$0xff] %v7789
        %7807 = vst [vmem:[%s7802 + $0x20] sm:$0xff] %v7790
        %7808 = vst [vmem:[%s7802 + $0x28] sm:$0xff] %v7791
        %7809 = vst [vmem:[%s7802 + $0x30] sm:$0xff] %v7792
        %7810 = vst [vmem:[%s7802 + $0x38] sm:$0xff] %v7793
        %7811 = vst [vmem:[%s7802 + $0x40] sm:$0xff] %v7794
        %7812 = vst [vmem:[%s7802 + $0x48] sm:$0xff] %v7795
        %7813 = vst [vmem:[%s7802 + $0x50] sm:$0xff] %v7796
        %7814 = vst [vmem:[%s7802 + $0x58] sm:$0xff] %v7797
        %7815 = vst [vmem:[%s7802 + $0x60] sm:$0xff] %v7798
        %7816 = vst [vmem:[%s7802 + $0x68] sm:$0xff] %v7799
        %7817 = vst [vmem:[%s7802 + $0x70] sm:$0xff] %v7800
        %7818 = vst [vmem:[%s7802 + $0x78] sm:$0xff] %v7801
        %s7819 = sand.u32 %s185, 1
        %s7820 = scalar_lea.sflag [#allocation5], %s7819
        %s7821 = sand.u32 %s185, 1
        %s7822 = smul.addr %s7821, 256
        %s7823 = scalar_lea.vmem [#allocation9], %s7822
        // Predicated region
        $region61: #{tpu_custom_call.1} parent=47 // pred_check
          %p7824 = pneg %p195
        $region62: #{tpu_custom_call.1} parent=47 // pred_check_branch
          %7826 = sbr.rel (%p7824) target = $region64
        $region63: #{tpu_custom_call.1} parent=47 // pred_region
          %7828 = vsyncadd %s7820, 0
          %s7829 = smul.addr %s25, 32
          %s7830 = smul.addr %s7829, 8
          %s7831 = scalar_lea.hbm %s7, %s7830
          %s7832 = sshll.u32 %s7823, 4
          %s7833 = int_to_ptr.vmem [resolvable:$true] %s7832
          %s7834 = sshll.u32 %s7831, 4
          %s7835 = int_to_ptr.hbm [resolvable:$true] %s7834
          %7840 = dma.vmem_to_hbm [thread:$0]  %s7833, 4096, %s7835, %s7820, 128, 128, 8
        $region64: #{tpu_custom_call.1} parent=47 // pred_fallthru
          _
      $region48: #{tpu_custom_call.1} parent=5 // pred_fallthru
        _
      %p7841 = scmp.le.s32.totalorder 2, %s20
      // Predicated region
      $region65: #{tpu_custom_call.1} parent=5 // pred_check
        %p7842 = pneg %p7841
      $region66: #{tpu_custom_call.1} parent=5 // pred_check_branch
        %7844 = sbr.rel (%p7842) target = $region68
      $region67: #{tpu_custom_call.1} parent=5 // pred_region
        %s7845 = ssub.s32 %s20, 2
        // Predicated region
        $region69: #{tpu_custom_call.1} parent=67 // pred_check
          %p7846 = pneg %p201
        $region70: #{tpu_custom_call.1} parent=67 // pred_check_branch
          %7848 = sbr.rel (%p7846) target = $region72
        $region71: #{tpu_custom_call.1} parent=67 // pred_region
          %s7849 = sand.u32 %s186, 1
          %s7850 = scalar_lea.sflag [#allocation5], %s7849
          %s7851 = sand.u32 %s186, 1
          %s7852 = smul.addr %s7851, 256
          %s7853 = scalar_lea.vmem [#allocation9], %s7852
          %7855 = dma.done %s7850, 4096
        $region72: #{tpu_custom_call.1} parent=67 // pred_fallthru
          _
      $region68: #{tpu_custom_call.1} parent=5 // pred_fallthru
        _
    $region6: #{tpu_custom_call.1} parent=1 // loop_footer
      %s24 = sadd.s32 1, %s20
    $region7: #{tpu_custom_call.1} parent=1 // loop_footer_branch
      %19 = sbr.rel target = $region3
    $region8: #{tpu_custom_call.1} parent=1 // loop_exit
      _
    %7856 = vsyncpa [#allocation4], 1
    %s7857 = scalar_lea.sflag [#allocation4], 1
    %7858 = vsyncpa %s7857, 1
    %7859 = vsyncpa [#allocation7], 1
    %7860 = vsyncpa [#allocation5], 1
    %s7861 = scalar_lea.sflag [#allocation5], 1
    %7862 = vsyncpa %s7861, 1

</llo_original>
